<compile_context>
chip_gen: v6e
topology: v6e:2x2x1
jax: 0.10.0
libtpu: 0.0.40
codegen_flags: <defaults>
</compile_context>

<pallas_src>
import numpy as np

import jax
import jax.numpy as jnp
from jax import lax
from jax.experimental import pallas as pl
from jax.experimental.pallas import tpu as pltpu


# ---------------------------------------------------------------------------
# Host-side (init-time) parameter construction and repacking
# ---------------------------------------------------------------------------
def init_raw_params(key):
    """PyTorch-default-style uniform init for the original module's tensors."""
    def unif(k, shape, fan_in):
        bound = 1.0 / float(fan_in) ** 0.5
        return jax.random.uniform(k, shape, jnp.float32, -bound, bound)

    ks = jax.random.split(key, 10)
    return {
        "conv1_w": unif(ks[0], (6, 3, 5, 5), 3 * 5 * 5),
        "conv1_b": unif(ks[1], (6,), 3 * 5 * 5),
        "conv2_w": unif(ks[2], (16, 6, 5, 5), 6 * 5 * 5),
        "conv2_b": unif(ks[3], (16,), 6 * 5 * 5),
        "fc1_w": unif(ks[4], (120, 400), 400),
        "fc1_b": unif(ks[5], (120,), 400),
        "fc2_w": unif(ks[6], (84, 120), 120),
        "fc2_b": unif(ks[7], (84,), 120),
        "fc3_w": unif(ks[8], (10, 84), 84),
        "fc3_b": unif(ks[9], (10,), 84),
    }


def _band_conv1(w1):
    """(5, 96, 168): band[kh, (wo+kw)*3 + ci, wo*6 + co] = w1[co, ci, kh, kw].

    Input lanes = w*3 + ci (C_in folded into contraction), output lanes = wo*6 + co.
    """
    w1 = np.asarray(w1)
    band = np.zeros((5, 96, 168), np.float32)
    for kh in range(5):
        for kw in range(5):
            for wo in range(28):
                band[kh, (wo + kw) * 3:(wo + kw) * 3 + 3,
                     wo * 6:wo * 6 + 6] = w1[:, :, kh, kw].T   # (ci, co)
    return band


def _band_conv2(w2):
    """(5, 162, 160): band[kh, 12*(wo+kw) + ci, wo*16 + co] = w2[co, ci, kh, kw].

    Input lanes use the *sparse* pooled-conv1 layout (valid at lane 12*j + ci, i.e. the
    even-w position left by the lane-pair max) so no pooled-column compaction is needed.
    """
    w2 = np.asarray(w2)
    band = np.zeros((5, 162, 160), np.float32)
    for kh in range(5):
        for kw in range(5):
            for wo in range(10):
                band[kh, 12 * (wo + kw):12 * (wo + kw) + 6,
                     wo * 16:wo * 16 + 16] = w2[:, :, kh, kw].T   # (ci, co)
    return band


def _fc1_pack(fc1_w):
    """(5, 144, 120): w[h][32*w + c, f] = fc1_w[f, c*25 + h*5 + w].

    Folds the torch (C,H,W) flatten into the weight and matches the sparse pooled-conv2
    lane layout (valid at lane 32*j + c).
    """
    f = np.asarray(fc1_w)
    out = np.zeros((5, 144, 120), np.float32)
    for h in range(5):
        for w in range(5):
            for c in range(16):
                out[h, 32 * w + c, :] = f[:, c * 25 + h * 5 + w]
    return out


def pack_params(raw, dtype=jnp.bfloat16):
    """One-time host-side repack into kernel-friendly (bf16) layouts."""
    bias = np.zeros((8, 168), np.float32)
    bias[0, :168] = np.tile(np.asarray(raw["conv1_b"]), 28)   # lane = wo*6 + co
    bias[1, :160] = np.tile(np.asarray(raw["conv2_b"]), 10)   # lane = wo*16 + co
    bias[2, :120] = np.asarray(raw["fc1_b"])
    bias[3, :84] = np.asarray(raw["fc2_b"])
    bias[4, :10] = np.asarray(raw["fc3_b"])                   # lanes 10..127 stay 0
    w3t = np.zeros((84, 128), np.float32)                     # lane-dense (128) output
    w3t[:, :10] = np.asarray(raw["fc3_w"]).T
    return {
        "band1": jnp.asarray(_band_conv1(raw["conv1_w"]), dtype),   # (5, 96, 168)
        "band2": jnp.asarray(_band_conv2(raw["conv2_w"]), dtype),   # (5, 162, 160)
        "w1p": jnp.asarray(_fc1_pack(raw["fc1_w"]), dtype),         # (5, 144, 120)
        "w2t": jnp.asarray(np.asarray(raw["fc2_w"]).T, dtype),      # (120, 84)
        "w3t": jnp.asarray(w3t, dtype),                             # (84, 128)
        "bias": jnp.asarray(bias, jnp.float32),                     # (8, 168)
    }


# ---------------------------------------------------------------------------
# Fused Pallas kernel: whole forward pass for BLOCK_BATCH images per grid step
# ---------------------------------------------------------------------------
def _lenet_kernel(xw_ref, band1_ref, band2_ref, w1p_ref, w2t_ref, w3t_ref,
                  bias_ref, o_ref):
    f32 = jnp.float32
    cdt = band1_ref.dtype            # bf16 compute dtype for MXU inputs
    m = o_ref.shape[0]               # BLOCK_BATCH * 28 rows (row = n*28 + h)

    # ---- conv1 (3->6, 5x5 valid) + bias + ReLU -> (m, 168), lane = wo*6 + co.
    # 5 lane-dense matmuls, K=96 (C_in folded into contraction), M = B*28.
    acc = jnp.dot(xw_ref[0], band1_ref[0], preferred_element_type=f32)
    for kh in range(1, 5):
        acc = acc + jnp.dot(xw_ref[kh], band1_ref[kh], preferred_element_type=f32)
    h1 = jnp.maximum(acc + bias_ref[0:1, 0:168], 0.0)

    # ---- maxpool 2x2 (off the MXU): lane pairs via slice+max (VPU), row pairs via
    # sublane roll+max (XLU).  Pooled value valid at row n*28+2i, lane 12*j + ci.
    cp = jnp.maximum(h1[:, 0:162], h1[:, 6:168])
    rp = jnp.maximum(cp, pltpu.roll(cp, shift=m - 1, axis=0)).astype(cdt)

    # ---- conv2 (6->16, 5x5) via banded matmuls + row-shifted accumulation (XLU roll).
    # Valid output at row n*28+2*r2, lane = wo2*16 + co.
    acc2 = jnp.dot(rp, band2_ref[0], preferred_element_type=f32)
    for kh in range(1, 5):
        y = jnp.dot(rp, band2_ref[kh], preferred_element_type=f32)
        acc2 = acc2 + pltpu.roll(y, shift=m - 2 * kh, axis=0)
    h2 = jnp.maximum(acc2 + bias_ref[1:2, 0:160], 0.0)

    # ---- maxpool 2x2 again: pooled value valid at row n*28+4*i2, lane 32*j2 + co.
    cp2 = jnp.maximum(h2[:, 0:144], h2[:, 16:160])
    rp2 = jnp.maximum(cp2, pltpu.roll(cp2, shift=m - 2, axis=0)).astype(cdt)

    # ---- fc1: flatten folded into w1p; the 5 "h" rows are combined by row-shifted
    # accumulation.  Valid result at row n*28 (one row per image).
    acc3 = jnp.dot(rp2, w1p_ref[0], preferred_element_type=f32)
    for h in range(1, 5):
        z = jnp.dot(rp2, w1p_ref[h], preferred_element_type=f32)
        acc3 = acc3 + pltpu.roll(z, shift=m - 4 * h, axis=0)
    y1 = jnp.maximum(acc3 + bias_ref[2:3, 0:120], 0.0).astype(cdt)

    # ---- fc2 + ReLU, fc3 (zero-padded to 128 output lanes -> unmasked lane-dense store).
    y2 = jnp.maximum(jnp.dot(y1, w2t_ref[...], preferred_element_type=f32)
                     + bias_ref[3:4, 0:84], 0.0).astype(cdt)
    o_ref[...] = (jnp.dot(y2, w3t_ref[...], preferred_element_type=f32)
                  + bias_ref[4:5, 0:128])


def _pack_x(x):
    """(N,3,32,32) f32 -> (5, N*28, 96) bf16 with lane = w*3 + ci and the 5 conv1 row
    windows (kh) pre-sliced so the kernel does pure 2-D matmuls (layout plumbing only)."""
    n = x.shape[0]
    xt = jnp.transpose(x, (0, 2, 3, 1)).reshape(n, 32, 96)
    xw = jnp.stack([xt[:, kh:kh + 28, :] for kh in range(5)], axis=0)   # (5, n, 28, 96)
    return xw.reshape(5, n * 28, 96).astype(jnp.bfloat16)


def net_forward(params, x_nchw, block_batch=8):
    assert block_batch >= 2 and block_batch % 2 == 0, "block_batch must be even"
    n = x_nchw.shape[0]
    bb = block_batch
    n_pad = ((n + bb - 1) // bb) * bb
    if n_pad != n:
        pad = jnp.zeros((n_pad - n, 3, 32, 32), x_nchw.dtype)
        x_nchw = jnp.concatenate([x_nchw, pad], axis=0)
    xw = _pack_x(x_nchw)                       # (5, n_pad*28, 96) bf16
    m = bb * 28
    steps = n_pad // bb

    out = pl.pallas_call(
        _lenet_kernel,
        out_shape=jax.ShapeDtypeStruct((n_pad * 28, 128), jnp.float32),
        grid=(steps,),
        in_specs=[
            pl.BlockSpec((5, m, 96), lambda i: (0, i, 0)),      # x windows (per B images)
            pl.BlockSpec((5, 96, 168), lambda i: (0, 0, 0)),    # band1
            pl.BlockSpec((5, 162, 160), lambda i: (0, 0, 0)),   # band2 (sparse pooled lanes)
            pl.BlockSpec((5, 144, 120), lambda i: (0, 0, 0)),   # fc1 (flatten folded)
            pl.BlockSpec((120, 84), lambda i: (0, 0)),          # fc2^T
            pl.BlockSpec((84, 128), lambda i: (0, 0)),          # fc3^T (lane-padded)
            pl.BlockSpec((8, 168), lambda i: (0, 0)),           # packed biases
        ],
        out_specs=pl.BlockSpec((m, 128), lambda i: (i, 0)),
        compiler_params=pltpu.CompilerParams(
            # "parallel" lets the runtime shard grid steps across TensorCores (v7x).
            dimension_semantics=("parallel",)),
    )(xw, params["band1"], params["band2"], params["w1p"], params["w2t"],
      params["w3t"], params["bias"])

    # Valid logits live at row n*28, lanes 0..9 of the lane-dense output slab.
    return out.reshape(n_pad, 28, 128)[:n, 0, :10]


# ---------------------------------------------------------------------------
# Pure-JAX reference of the original torch module (for correctness check)
# ---------------------------------------------------------------------------
def net_forward_ref(raw, x):
    dn = ("NCHW", "OIHW", "NCHW")
    hp = lax.Precision.HIGHEST
    y = lax.conv_general_dilated(x, raw["conv1_w"], (1, 1), "VALID",
                                 dimension_numbers=dn, precision=hp)
    y = jnp.maximum(y + raw["conv1_b"][None, :, None, None], 0.0)
    y = lax.reduce_window(y, -jnp.inf, lax.max, (1, 1, 2, 2), (1, 1, 2, 2), "VALID")
    y = lax.conv_general_dilated(y, raw["conv2_w"], (1, 1), "VALID",
                                 dimension_numbers=dn, precision=hp)
    y = jnp.maximum(y + raw["conv2_b"][None, :, None, None], 0.0)
    y = lax.reduce_window(y, -jnp.inf, lax.max, (1, 1, 2, 2), (1, 1, 2, 2), "VALID")
    y = y.reshape(y.shape[0], 16 * 5 * 5)                      # torch (C,H,W) flatten
    y = jnp.maximum(jnp.dot(y, raw["fc1_w"].T, precision=hp) + raw["fc1_b"], 0.0)
    y = jnp.maximum(jnp.dot(y, raw["fc2_w"].T, precision=hp) + raw["fc2_b"], 0.0)
    y = jnp.dot(y, raw["fc3_w"].T, precision=hp) + raw["fc3_b"]
    return y


if __name__ == "__main__":
    key = jax.random.PRNGKey(0)
    pkey, xkey = jax.random.split(key)
    raw = init_raw_params(pkey)
    params = pack_params(raw)
    # Net implies 3x32x32 input (16*5*5 flatten after two conv+pool stages).
    x = jax.random.normal(xkey, (16, 3, 32, 32), dtype=jnp.float32)

    out = jax.jit(net_forward)(params, x)       # block_batch=8 -> grid=(2,)
    out = jax.block_until_ready(out)

    assert out.shape == (16, 10), out.shape
    assert out.dtype == jnp.float32, out.dtype
    assert bool(jnp.all(jnp.isfinite(out)))

    # Correctness vs. the pure-JAX reference (tolerance covers bf16 MXU inputs).
    ref = jax.block_until_ready(jax.jit(net_forward_ref)(raw, x))
    assert bool(jnp.allclose(out, ref, rtol=2e-2, atol=2e-2)), \
        float(jnp.max(jnp.abs(out - ref)))

    print("KERNEL_OK")
</pallas_src>

<mosaic_0001>
module attributes {stable_mosaic.version = 11 : i64} {
  func.func @_lenet_kernel(%arg0: i32, %arg1: memref<5x224x96xbf16, #tpu.memory_space<vmem>>, %arg2: memref<5x96x168xbf16, #tpu.memory_space<vmem>>, %arg3: memref<5x162x160xbf16, #tpu.memory_space<vmem>>, %arg4: memref<5x144x120xbf16, #tpu.memory_space<vmem>>, %arg5: memref<120x84xbf16, #tpu.memory_space<vmem>>, %arg6: memref<84x128xbf16, #tpu.memory_space<vmem>>, %arg7: memref<8x168xf32, #tpu.memory_space<vmem>>, %arg8: memref<224x128xf32, #tpu.memory_space<vmem>>) attributes {dimension_semantics = [#tpu.dimension_semantics<parallel>], iteration_bounds = array<i64: 2>, scalar_prefetch = 0 : i64, scratch_operands = 0 : i64, tpu.core_type = #tpu.core_type<tc>, window_params = [{transform_indices = @transform_0, window_bounds = array<i64: 5, 224, 96>}, {pipeline_mode = #tpu.pipeline_mode<synchronous>, transform_indices = @transform_1, window_bounds = array<i64: 5, 96, 168>}, {pipeline_mode = #tpu.pipeline_mode<synchronous>, transform_indices = @transform_2, window_bounds = array<i64: 5, 162, 160>}, {pipeline_mode = #tpu.pipeline_mode<synchronous>, transform_indices = @transform_3, window_bounds = array<i64: 5, 144, 120>}, {pipeline_mode = #tpu.pipeline_mode<synchronous>, transform_indices = @transform_4, window_bounds = array<i64: 120, 84>}, {pipeline_mode = #tpu.pipeline_mode<synchronous>, transform_indices = @transform_5, window_bounds = array<i64: 84, 128>}, {pipeline_mode = #tpu.pipeline_mode<synchronous>, transform_indices = @transform_6, window_bounds = array<i64: 8, 168>}, {transform_indices = @transform_7, window_bounds = array<i64: 224, 128>}]} {
    %c0 = arith.constant 0 : index
    %c0_0 = arith.constant 0 : index
    %c0_1 = arith.constant 0 : index
    %0 = vector.load %arg1[%c0, %c0_0, %c0_1] : memref<5x224x96xbf16, #tpu.memory_space<vmem>>, vector<1x224x96xbf16>
    %1 = vector.shape_cast %0 : vector<1x224x96xbf16> to vector<224x96xbf16>
    %c0_2 = arith.constant 0 : index
    %c0_3 = arith.constant 0 : index
    %c0_4 = arith.constant 0 : index
    %2 = vector.load %arg2[%c0_2, %c0_3, %c0_4] : memref<5x96x168xbf16, #tpu.memory_space<vmem>>, vector<1x96x168xbf16>
    %3 = vector.shape_cast %2 : vector<1x96x168xbf16> to vector<96x168xbf16>
    %cst = arith.constant dense<0.000000e+00> : vector<224x168xf32>
    %4 = tpu.matmul %1, %3, %cst {dimension_numbers = #tpu.dot_dimension_numbers<[1], [0], [0], [1], [0, 0, 1, 1], [], []>} : vector<224x96xbf16>, vector<96x168xbf16>, vector<224x168xf32> -> vector<224x168xf32>
    %c1 = arith.constant 1 : index
    %c0_5 = arith.constant 0 : index
    %c0_6 = arith.constant 0 : index
    %5 = vector.load %arg1[%c1, %c0_5, %c0_6] : memref<5x224x96xbf16, #tpu.memory_space<vmem>>, vector<1x224x96xbf16>
    %6 = vector.shape_cast %5 : vector<1x224x96xbf16> to vector<224x96xbf16>
    %c1_7 = arith.constant 1 : index
    %c0_8 = arith.constant 0 : index
    %c0_9 = arith.constant 0 : index
    %7 = vector.load %arg2[%c1_7, %c0_8, %c0_9] : memref<5x96x168xbf16, #tpu.memory_space<vmem>>, vector<1x96x168xbf16>
    %8 = vector.shape_cast %7 : vector<1x96x168xbf16> to vector<96x168xbf16>
    %cst_10 = arith.constant dense<0.000000e+00> : vector<224x168xf32>
    %9 = tpu.matmul %6, %8, %cst_10 {dimension_numbers = #tpu.dot_dimension_numbers<[1], [0], [0], [1], [0, 0, 1, 1], [], []>} : vector<224x96xbf16>, vector<96x168xbf16>, vector<224x168xf32> -> vector<224x168xf32>
    %10 = arith.addf %4, %9 : vector<224x168xf32>
    %c2 = arith.constant 2 : index
    %c0_11 = arith.constant 0 : index
    %c0_12 = arith.constant 0 : index
    %11 = vector.load %arg1[%c2, %c0_11, %c0_12] : memref<5x224x96xbf16, #tpu.memory_space<vmem>>, vector<1x224x96xbf16>
    %12 = vector.shape_cast %11 : vector<1x224x96xbf16> to vector<224x96xbf16>
    %c2_13 = arith.constant 2 : index
    %c0_14 = arith.constant 0 : index
    %c0_15 = arith.constant 0 : index
    %13 = vector.load %arg2[%c2_13, %c0_14, %c0_15] : memref<5x96x168xbf16, #tpu.memory_space<vmem>>, vector<1x96x168xbf16>
    %14 = vector.shape_cast %13 : vector<1x96x168xbf16> to vector<96x168xbf16>
    %cst_16 = arith.constant dense<0.000000e+00> : vector<224x168xf32>
    %15 = tpu.matmul %12, %14, %cst_16 {dimension_numbers = #tpu.dot_dimension_numbers<[1], [0], [0], [1], [0, 0, 1, 1], [], []>} : vector<224x96xbf16>, vector<96x168xbf16>, vector<224x168xf32> -> vector<224x168xf32>
    %16 = arith.addf %10, %15 : vector<224x168xf32>
    %c3 = arith.constant 3 : index
    %c0_17 = arith.constant 0 : index
    %c0_18 = arith.constant 0 : index
    %17 = vector.load %arg1[%c3, %c0_17, %c0_18] : memref<5x224x96xbf16, #tpu.memory_space<vmem>>, vector<1x224x96xbf16>
    %18 = vector.shape_cast %17 : vector<1x224x96xbf16> to vector<224x96xbf16>
    %c3_19 = arith.constant 3 : index
    %c0_20 = arith.constant 0 : index
    %c0_21 = arith.constant 0 : index
    %19 = vector.load %arg2[%c3_19, %c0_20, %c0_21] : memref<5x96x168xbf16, #tpu.memory_space<vmem>>, vector<1x96x168xbf16>
    %20 = vector.shape_cast %19 : vector<1x96x168xbf16> to vector<96x168xbf16>
    %cst_22 = arith.constant dense<0.000000e+00> : vector<224x168xf32>
    %21 = tpu.matmul %18, %20, %cst_22 {dimension_numbers = #tpu.dot_dimension_numbers<[1], [0], [0], [1], [0, 0, 1, 1], [], []>} : vector<224x96xbf16>, vector<96x168xbf16>, vector<224x168xf32> -> vector<224x168xf32>
    %22 = arith.addf %16, %21 : vector<224x168xf32>
    %c4 = arith.constant 4 : index
    %c0_23 = arith.constant 0 : index
    %c0_24 = arith.constant 0 : index
    %23 = vector.load %arg1[%c4, %c0_23, %c0_24] : memref<5x224x96xbf16, #tpu.memory_space<vmem>>, vector<1x224x96xbf16>
    %24 = vector.shape_cast %23 : vector<1x224x96xbf16> to vector<224x96xbf16>
    %c4_25 = arith.constant 4 : index
    %c0_26 = arith.constant 0 : index
    %c0_27 = arith.constant 0 : index
    %25 = vector.load %arg2[%c4_25, %c0_26, %c0_27] : memref<5x96x168xbf16, #tpu.memory_space<vmem>>, vector<1x96x168xbf16>
    %26 = vector.shape_cast %25 : vector<1x96x168xbf16> to vector<96x168xbf16>
    %cst_28 = arith.constant dense<0.000000e+00> : vector<224x168xf32>
    %27 = tpu.matmul %24, %26, %cst_28 {dimension_numbers = #tpu.dot_dimension_numbers<[1], [0], [0], [1], [0, 0, 1, 1], [], []>} : vector<224x96xbf16>, vector<96x168xbf16>, vector<224x168xf32> -> vector<224x168xf32>
    %28 = arith.addf %22, %27 : vector<224x168xf32>
    %c0_29 = arith.constant 0 : index
    %c0_30 = arith.constant 0 : index
    %29 = vector.load %arg7[%c0_29, %c0_30] : memref<8x168xf32, #tpu.memory_space<vmem>>, vector<1x168xf32>
    %30 = vector.broadcast %29 : vector<1x168xf32> to vector<224x168xf32>
    %31 = arith.addf %28, %30 : vector<224x168xf32>
    %cst_31 = arith.constant 0.000000e+00 : f32
    %32 = vector.broadcast %cst_31 : f32 to vector<224x168xf32>
    %33 = arith.maximumf %31, %32 : vector<224x168xf32>
    %34 = vector.extract_strided_slice %33 {offsets = [0, 0], sizes = [224, 162], strides = [1, 1]} : vector<224x168xf32> to vector<224x162xf32>
    %35 = vector.extract_strided_slice %33 {offsets = [0, 6], sizes = [224, 162], strides = [1, 1]} : vector<224x168xf32> to vector<224x162xf32>
    %36 = arith.maximumf %34, %35 : vector<224x162xf32>
    %c223_i32 = arith.constant 223 : i32
    %37 = tpu.dynamic_rotate %36 by %c223_i32 dim 0 : vector<224x162xf32>, i32 -> vector<224x162xf32>
    %38 = arith.maximumf %36, %37 : vector<224x162xf32>
    %39 = arith.truncf %38 : vector<224x162xf32> to vector<224x162xbf16>
    %c0_32 = arith.constant 0 : index
    %c0_33 = arith.constant 0 : index
    %c0_34 = arith.constant 0 : index
    %40 = vector.load %arg3[%c0_32, %c0_33, %c0_34] : memref<5x162x160xbf16, #tpu.memory_space<vmem>>, vector<1x162x160xbf16>
    %41 = vector.shape_cast %40 : vector<1x162x160xbf16> to vector<162x160xbf16>
    %cst_35 = arith.constant dense<0.000000e+00> : vector<224x160xf32>
    %42 = tpu.matmul %39, %41, %cst_35 {dimension_numbers = #tpu.dot_dimension_numbers<[1], [0], [0], [1], [0, 0, 1, 1], [], []>} : vector<224x162xbf16>, vector<162x160xbf16>, vector<224x160xf32> -> vector<224x160xf32>
    %c1_36 = arith.constant 1 : index
    %c0_37 = arith.constant 0 : index
    %c0_38 = arith.constant 0 : index
    %43 = vector.load %arg3[%c1_36, %c0_37, %c0_38] : memref<5x162x160xbf16, #tpu.memory_space<vmem>>, vector<1x162x160xbf16>
    %44 = vector.shape_cast %43 : vector<1x162x160xbf16> to vector<162x160xbf16>
    %cst_39 = arith.constant dense<0.000000e+00> : vector<224x160xf32>
    %45 = tpu.matmul %39, %44, %cst_39 {dimension_numbers = #tpu.dot_dimension_numbers<[1], [0], [0], [1], [0, 0, 1, 1], [], []>} : vector<224x162xbf16>, vector<162x160xbf16>, vector<224x160xf32> -> vector<224x160xf32>
    %c222_i32 = arith.constant 222 : i32
    %46 = tpu.dynamic_rotate %45 by %c222_i32 dim 0 : vector<224x160xf32>, i32 -> vector<224x160xf32>
    %47 = arith.addf %42, %46 : vector<224x160xf32>
    %c2_40 = arith.constant 2 : index
    %c0_41 = arith.constant 0 : index
    %c0_42 = arith.constant 0 : index
    %48 = vector.load %arg3[%c2_40, %c0_41, %c0_42] : memref<5x162x160xbf16, #tpu.memory_space<vmem>>, vector<1x162x160xbf16>
    %49 = vector.shape_cast %48 : vector<1x162x160xbf16> to vector<162x160xbf16>
    %cst_43 = arith.constant dense<0.000000e+00> : vector<224x160xf32>
    %50 = tpu.matmul %39, %49, %cst_43 {dimension_numbers = #tpu.dot_dimension_numbers<[1], [0], [0], [1], [0, 0, 1, 1], [], []>} : vector<224x162xbf16>, vector<162x160xbf16>, vector<224x160xf32> -> vector<224x160xf32>
    %c220_i32 = arith.constant 220 : i32
    %51 = tpu.dynamic_rotate %50 by %c220_i32 dim 0 : vector<224x160xf32>, i32 -> vector<224x160xf32>
    %52 = arith.addf %47, %51 : vector<224x160xf32>
    %c3_44 = arith.constant 3 : index
    %c0_45 = arith.constant 0 : index
    %c0_46 = arith.constant 0 : index
    %53 = vector.load %arg3[%c3_44, %c0_45, %c0_46] : memref<5x162x160xbf16, #tpu.memory_space<vmem>>, vector<1x162x160xbf16>
    %54 = vector.shape_cast %53 : vector<1x162x160xbf16> to vector<162x160xbf16>
    %cst_47 = arith.constant dense<0.000000e+00> : vector<224x160xf32>
    %55 = tpu.matmul %39, %54, %cst_47 {dimension_numbers = #tpu.dot_dimension_numbers<[1], [0], [0], [1], [0, 0, 1, 1], [], []>} : vector<224x162xbf16>, vector<162x160xbf16>, vector<224x160xf32> -> vector<224x160xf32>
    %c218_i32 = arith.constant 218 : i32
    %56 = tpu.dynamic_rotate %55 by %c218_i32 dim 0 : vector<224x160xf32>, i32 -> vector<224x160xf32>
    %57 = arith.addf %52, %56 : vector<224x160xf32>
    %c4_48 = arith.constant 4 : index
    %c0_49 = arith.constant 0 : index
    %c0_50 = arith.constant 0 : index
    %58 = vector.load %arg3[%c4_48, %c0_49, %c0_50] : memref<5x162x160xbf16, #tpu.memory_space<vmem>>, vector<1x162x160xbf16>
    %59 = vector.shape_cast %58 : vector<1x162x160xbf16> to vector<162x160xbf16>
    %cst_51 = arith.constant dense<0.000000e+00> : vector<224x160xf32>
    %60 = tpu.matmul %39, %59, %cst_51 {dimension_numbers = #tpu.dot_dimension_numbers<[1], [0], [0], [1], [0, 0, 1, 1], [], []>} : vector<224x162xbf16>, vector<162x160xbf16>, vector<224x160xf32> -> vector<224x160xf32>
    %c216_i32 = arith.constant 216 : i32
    %61 = tpu.dynamic_rotate %60 by %c216_i32 dim 0 : vector<224x160xf32>, i32 -> vector<224x160xf32>
    %62 = arith.addf %57, %61 : vector<224x160xf32>
    %c1_52 = arith.constant 1 : index
    %c0_53 = arith.constant 0 : index
    %63 = vector.load %arg7[%c1_52, %c0_53] : memref<8x168xf32, #tpu.memory_space<vmem>>, vector<1x160xf32>
    %64 = vector.broadcast %63 : vector<1x160xf32> to vector<224x160xf32>
    %65 = arith.addf %62, %64 : vector<224x160xf32>
    %cst_54 = arith.constant 0.000000e+00 : f32
    %66 = vector.broadcast %cst_54 : f32 to vector<224x160xf32>
    %67 = arith.maximumf %65, %66 : vector<224x160xf32>
    %68 = vector.extract_strided_slice %67 {offsets = [0, 0], sizes = [224, 144], strides = [1, 1]} : vector<224x160xf32> to vector<224x144xf32>
    %69 = vector.extract_strided_slice %67 {offsets = [0, 16], sizes = [224, 144], strides = [1, 1]} : vector<224x160xf32> to vector<224x144xf32>
    %70 = arith.maximumf %68, %69 : vector<224x144xf32>
    %c222_i32_55 = arith.constant 222 : i32
    %71 = tpu.dynamic_rotate %70 by %c222_i32_55 dim 0 : vector<224x144xf32>, i32 -> vector<224x144xf32>
    %72 = arith.maximumf %70, %71 : vector<224x144xf32>
    %73 = arith.truncf %72 : vector<224x144xf32> to vector<224x144xbf16>
    %c0_56 = arith.constant 0 : index
    %c0_57 = arith.constant 0 : index
    %c0_58 = arith.constant 0 : index
    %74 = vector.load %arg4[%c0_56, %c0_57, %c0_58] : memref<5x144x120xbf16, #tpu.memory_space<vmem>>, vector<1x144x120xbf16>
    %75 = vector.shape_cast %74 : vector<1x144x120xbf16> to vector<144x120xbf16>
    %cst_59 = arith.constant dense<0.000000e+00> : vector<224x120xf32>
    %76 = tpu.matmul %73, %75, %cst_59 {dimension_numbers = #tpu.dot_dimension_numbers<[1], [0], [0], [1], [0, 0, 1, 1], [], []>} : vector<224x144xbf16>, vector<144x120xbf16>, vector<224x120xf32> -> vector<224x120xf32>
    %c1_60 = arith.constant 1 : index
    %c0_61 = arith.constant 0 : index
    %c0_62 = arith.constant 0 : index
    %77 = vector.load %arg4[%c1_60, %c0_61, %c0_62] : memref<5x144x120xbf16, #tpu.memory_space<vmem>>, vector<1x144x120xbf16>
    %78 = vector.shape_cast %77 : vector<1x144x120xbf16> to vector<144x120xbf16>
    %cst_63 = arith.constant dense<0.000000e+00> : vector<224x120xf32>
    %79 = tpu.matmul %73, %78, %cst_63 {dimension_numbers = #tpu.dot_dimension_numbers<[1], [0], [0], [1], [0, 0, 1, 1], [], []>} : vector<224x144xbf16>, vector<144x120xbf16>, vector<224x120xf32> -> vector<224x120xf32>
    %c220_i32_64 = arith.constant 220 : i32
    %80 = tpu.dynamic_rotate %79 by %c220_i32_64 dim 0 : vector<224x120xf32>, i32 -> vector<224x120xf32>
    %81 = arith.addf %76, %80 : vector<224x120xf32>
    %c2_65 = arith.constant 2 : index
    %c0_66 = arith.constant 0 : index
    %c0_67 = arith.constant 0 : index
    %82 = vector.load %arg4[%c2_65, %c0_66, %c0_67] : memref<5x144x120xbf16, #tpu.memory_space<vmem>>, vector<1x144x120xbf16>
    %83 = vector.shape_cast %82 : vector<1x144x120xbf16> to vector<144x120xbf16>
    %cst_68 = arith.constant dense<0.000000e+00> : vector<224x120xf32>
    %84 = tpu.matmul %73, %83, %cst_68 {dimension_numbers = #tpu.dot_dimension_numbers<[1], [0], [0], [1], [0, 0, 1, 1], [], []>} : vector<224x144xbf16>, vector<144x120xbf16>, vector<224x120xf32> -> vector<224x120xf32>
    %c216_i32_69 = arith.constant 216 : i32
    %85 = tpu.dynamic_rotate %84 by %c216_i32_69 dim 0 : vector<224x120xf32>, i32 -> vector<224x120xf32>
    %86 = arith.addf %81, %85 : vector<224x120xf32>
    %c3_70 = arith.constant 3 : index
    %c0_71 = arith.constant 0 : index
    %c0_72 = arith.constant 0 : index
    %87 = vector.load %arg4[%c3_70, %c0_71, %c0_72] : memref<5x144x120xbf16, #tpu.memory_space<vmem>>, vector<1x144x120xbf16>
    %88 = vector.shape_cast %87 : vector<1x144x120xbf16> to vector<144x120xbf16>
    %cst_73 = arith.constant dense<0.000000e+00> : vector<224x120xf32>
    %89 = tpu.matmul %73, %88, %cst_73 {dimension_numbers = #tpu.dot_dimension_numbers<[1], [0], [0], [1], [0, 0, 1, 1], [], []>} : vector<224x144xbf16>, vector<144x120xbf16>, vector<224x120xf32> -> vector<224x120xf32>
    %c212_i32 = arith.constant 212 : i32
    %90 = tpu.dynamic_rotate %89 by %c212_i32 dim 0 : vector<224x120xf32>, i32 -> vector<224x120xf32>
    %91 = arith.addf %86, %90 : vector<224x120xf32>
    %c4_74 = arith.constant 4 : index
    %c0_75 = arith.constant 0 : index
    %c0_76 = arith.constant 0 : index
    %92 = vector.load %arg4[%c4_74, %c0_75, %c0_76] : memref<5x144x120xbf16, #tpu.memory_space<vmem>>, vector<1x144x120xbf16>
    %93 = vector.shape_cast %92 : vector<1x144x120xbf16> to vector<144x120xbf16>
    %cst_77 = arith.constant dense<0.000000e+00> : vector<224x120xf32>
    %94 = tpu.matmul %73, %93, %cst_77 {dimension_numbers = #tpu.dot_dimension_numbers<[1], [0], [0], [1], [0, 0, 1, 1], [], []>} : vector<224x144xbf16>, vector<144x120xbf16>, vector<224x120xf32> -> vector<224x120xf32>
    %c208_i32 = arith.constant 208 : i32
    %95 = tpu.dynamic_rotate %94 by %c208_i32 dim 0 : vector<224x120xf32>, i32 -> vector<224x120xf32>
    %96 = arith.addf %91, %95 : vector<224x120xf32>
    %c2_78 = arith.constant 2 : index
    %c0_79 = arith.constant 0 : index
    %97 = vector.load %arg7[%c2_78, %c0_79] : memref<8x168xf32, #tpu.memory_space<vmem>>, vector<1x120xf32>
    %98 = vector.broadcast %97 : vector<1x120xf32> to vector<224x120xf32>
    %99 = arith.addf %96, %98 : vector<224x120xf32>
    %cst_80 = arith.constant 0.000000e+00 : f32
    %100 = vector.broadcast %cst_80 : f32 to vector<224x120xf32>
    %101 = arith.maximumf %99, %100 : vector<224x120xf32>
    %102 = arith.truncf %101 : vector<224x120xf32> to vector<224x120xbf16>
    %c0_81 = arith.constant 0 : index
    %c0_82 = arith.constant 0 : index
    %103 = vector.load %arg5[%c0_81, %c0_82] : memref<120x84xbf16, #tpu.memory_space<vmem>>, vector<120x84xbf16>
    %cst_83 = arith.constant dense<0.000000e+00> : vector<224x84xf32>
    %104 = tpu.matmul %102, %103, %cst_83 {dimension_numbers = #tpu.dot_dimension_numbers<[1], [0], [0], [1], [0, 0, 1, 1], [], []>} : vector<224x120xbf16>, vector<120x84xbf16>, vector<224x84xf32> -> vector<224x84xf32>
    %c3_84 = arith.constant 3 : index
    %c0_85 = arith.constant 0 : index
    %105 = vector.load %arg7[%c3_84, %c0_85] : memref<8x168xf32, #tpu.memory_space<vmem>>, vector<1x84xf32>
    %106 = vector.broadcast %105 : vector<1x84xf32> to vector<224x84xf32>
    %107 = arith.addf %104, %106 : vector<224x84xf32>
    %cst_86 = arith.constant 0.000000e+00 : f32
    %108 = vector.broadcast %cst_86 : f32 to vector<224x84xf32>
    %109 = arith.maximumf %107, %108 : vector<224x84xf32>
    %110 = arith.truncf %109 : vector<224x84xf32> to vector<224x84xbf16>
    %c0_87 = arith.constant 0 : index
    %c0_88 = arith.constant 0 : index
    %111 = vector.load %arg6[%c0_87, %c0_88] : memref<84x128xbf16, #tpu.memory_space<vmem>>, vector<84x128xbf16>
    %cst_89 = arith.constant dense<0.000000e+00> : vector<224x128xf32>
    %112 = tpu.matmul %110, %111, %cst_89 {dimension_numbers = #tpu.dot_dimension_numbers<[1], [0], [0], [1], [0, 0, 1, 1], [], []>} : vector<224x84xbf16>, vector<84x128xbf16>, vector<224x128xf32> -> vector<224x128xf32>
    %c4_90 = arith.constant 4 : index
    %c0_91 = arith.constant 0 : index
    %113 = vector.load %arg7[%c4_90, %c0_91] : memref<8x168xf32, #tpu.memory_space<vmem>>, vector<1x128xf32>
    %114 = vector.broadcast %113 : vector<1x128xf32> to vector<224x128xf32>
    %115 = arith.addf %112, %114 : vector<224x128xf32>
    %c0_92 = arith.constant 0 : index
    %c0_93 = arith.constant 0 : index
    %116 = vector.load %arg8[%c0_92, %c0_93] : memref<224x128xf32, #tpu.memory_space<vmem>>, vector<224x128xf32>
    tpu.vector_store %arg8[%c0_92, %c0_93], %115 {strides = array<i32>} : memref<224x128xf32, #tpu.memory_space<vmem>>, vector<224x128xf32>,
    return
  }
  func.func @transform_0(%arg0: i32) -> (i32, i32, i32) {
    %c0_i32 = arith.constant 0 : i32
    %c0_i32_0 = arith.constant 0 : i32
    %c0_i32_1 = arith.constant 0 : i32
    return %c0_i32, %arg0, %c0_i32_0 : i32, i32, i32
  }
  func.func @transform_1(%arg0: i32) -> (i32, i32, i32) {
    %c0_i32 = arith.constant 0 : i32
    %c0_i32_0 = arith.constant 0 : i32
    %c0_i32_1 = arith.constant 0 : i32
    %c0_i32_2 = arith.constant 0 : i32
    return %c0_i32, %c0_i32_0, %c0_i32_1 : i32, i32, i32
  }
  func.func @transform_2(%arg0: i32) -> (i32, i32, i32) {
    %c0_i32 = arith.constant 0 : i32
    %c0_i32_0 = arith.constant 0 : i32
    %c0_i32_1 = arith.constant 0 : i32
    %c0_i32_2 = arith.constant 0 : i32
    return %c0_i32, %c0_i32_0, %c0_i32_1 : i32, i32, i32
  }
  func.func @transform_3(%arg0: i32) -> (i32, i32, i32) {
    %c0_i32 = arith.constant 0 : i32
    %c0_i32_0 = arith.constant 0 : i32
    %c0_i32_1 = arith.constant 0 : i32
    %c0_i32_2 = arith.constant 0 : i32
    return %c0_i32, %c0_i32_0, %c0_i32_1 : i32, i32, i32
  }
  func.func @transform_4(%arg0: i32) -> (i32, i32) {
    %c0_i32 = arith.constant 0 : i32
    %c0_i32_0 = arith.constant 0 : i32
    %c0_i32_1 = arith.constant 0 : i32
    return %c0_i32, %c0_i32_0 : i32, i32
  }
  func.func @transform_5(%arg0: i32) -> (i32, i32) {
    %c0_i32 = arith.constant 0 : i32
    %c0_i32_0 = arith.constant 0 : i32
    %c0_i32_1 = arith.constant 0 : i32
    return %c0_i32, %c0_i32_0 : i32, i32
  }
  func.func @transform_6(%arg0: i32) -> (i32, i32) {
    %c0_i32 = arith.constant 0 : i32
    %c0_i32_0 = arith.constant 0 : i32
    %c0_i32_1 = arith.constant 0 : i32
    return %c0_i32, %c0_i32_0 : i32, i32
  }
  func.func @transform_7(%arg0: i32) -> (i32, i32) {
    %c0_i32 = arith.constant 0 : i32
    %c0_i32_0 = arith.constant 0 : i32
    return %arg0, %c0_i32 : i32, i32
  }
}

</mosaic_0001>

<llo_original>
// kernel: net_forward.1
$region0: #{net_forward.1}
  #allocation0 [shape = 'u32[]', space=smem, size = 0x4, offset = 0x4, fixed_abs, tag = 'smem constant byte address 0x4 - core index']
  #allocation1 [shape = 'u32[144,128]{1,0:T(1,128)}', space=vmem, size = 0x12000, scoped, tag = 'internal scratch']
  %s0 = inlined_call_operand.vmem [shape: bf16[5,448,96], index: 0, kind: input, shape index: {}]
  %s1 = inlined_call_operand.vmem [shape: bf16[5,96,168], index: 1, kind: input, shape index: {}]
  %s2 = inlined_call_operand.vmem [shape: bf16[5,162,160], index: 2, kind: input, shape index: {}]
  %s3 = inlined_call_operand.vmem [shape: bf16[5,144,120], index: 3, kind: input, shape index: {}]
  %s4 = inlined_call_operand.vmem [shape: bf16[120,84], index: 4, kind: input, shape index: {}]
  %s5 = inlined_call_operand.vmem [shape: bf16[84,128], index: 5, kind: input, shape index: {}]
  %s6 = inlined_call_operand.vmem [shape: f32[8,168], index: 6, kind: input, shape index: {}]
  %s7 = inlined_call_operand.vmem [shape: f32[448,128], index: 7, kind: output, shape index: {}]
  %s8 = sld [smem:[#allocation0]]
  $region102: #{net_forward.1} parent=0
    _
  %s10 = ssub.s32 1, %s8
  %s11 = scalar_select 0, %s10, %s8
  $region1: #{net_forward.1} parent=0
    #allocation2 [shape = 'u8[573440]{0}', space=vmem, size = 0x8c000, scoped, tag = 'input window, operand 0']
    loop: start=0, step=1, limit=4
    $region2: #{net_forward.1} parent=1 // loop_pre_header
      _
    $region3: #{net_forward.1} parent=1 // loop_header
      %s13 = sphi 0, %s17
      %p14 = scmp.ge.s32.totalorder %s13, 4
      %s23 = sphi 0, %s25
      %s26 = sphi 0, %s23
      %s27 = sphi 0, %s26
      %s43 = sphi 0, %s27
      %s47 = sphi 0, %s47
      %s49 = sphi 0, %s47
      %s50 = sphi 0, %s49
      %s64 = sphi 0, %s50
      %s68 = sphi 0, %s68
      %s70 = sphi 0, %s68
      %s71 = sphi 0, %s70
      %s85 = sphi 0, %s71
      %s89 = sphi 0, %s89
      %s91 = sphi 0, %s89
      %s92 = sphi 0, %s91
      %s106 = sphi 0, %s92
      %s110 = sphi 0, %s110
      %s112 = sphi 0, %s110
      %s113 = sphi 0, %s112
      %s127 = sphi 0, %s113
      %s131 = sphi 0, %s131
      %s133 = sphi 0, %s131
      %s134 = sphi 0, %s133
      %s148 = sphi 0, %s134
      %s152 = sphi 0, %s152
      %s154 = sphi 0, %s152
      %s155 = sphi 0, %s154
      %s169 = sphi 0, %s155
      %s175 = sphi 0, %s177
      %s178 = sphi 0, %s175
      %s179 = sphi 0, %s178
      %s195 = sphi 0, %s179
    $region4: #{net_forward.1} parent=1 // loop_header_branch
      %16 = sbr.rel (%p14) target = $region8
    $region5: #{net_forward.1} parent=1 // loop_body
      %s18 = ssub.s32 %s13, 1
      %s19 = ssub.s32 %s13, 2
      %s20 = sadd.s32 %s13, 1
      %s21 = ssub.s32 %s13, %s20
      %p22 = scmp.eq.s32.totalorder %s21, 0
      %s24 = sadd.s32 %s23, 1
      %s25 = scalar_select %p22, %s23, %s24
      %p28 = pneg %p22
      %p29 = scmp.eq.s32.totalorder %s13, 1
      %p30 = por %p28, %p29
      %p31 = scmp.ne.s32.totalorder %s23, %s26
      %p32 = scmp.eq.s32.totalorder %s13, 0
      %p33 = por %p31, %p32
      %p34 = scmp.ne.s32.totalorder %s23, %s26
      %p35 = scmp.eq.s32.totalorder %s18, 1
      %p36 = por %p34, %p35
      %p37 = scmp.ne.s32.totalorder %s26, %s27
      %p38 = scmp.eq.s32.totalorder %s18, 0
      %p39 = por %p37, %p38
      %p40 = scmp.ne.s32.totalorder %s26, %s27
      %p41 = scmp.eq.s32.totalorder %s19, 1
      %p42 = por %p40, %p41
      %p44 = scmp.ne.s32.totalorder %s27, %s43
      %p45 = scmp.eq.s32.totalorder %s19, 0
      %p46 = por %p44, %p45
      %s48 = sadd.s32 %s47, 1
      %p51 = scmp.eq.s32.totalorder %s13, 1
      %p52 = scmp.ne.s32.totalorder %s47, %s49
      %p53 = scmp.eq.s32.totalorder %s13, 0
      %p54 = por %p52, %p53
      %p55 = scmp.ne.s32.totalorder %s47, %s49
      %p56 = scmp.eq.s32.totalorder %s18, 1
      %p57 = por %p55, %p56
      %p58 = scmp.ne.s32.totalorder %s49, %s50
      %p59 = scmp.eq.s32.totalorder %s18, 0
      %p60 = por %p58, %p59
      %p61 = scmp.ne.s32.totalorder %s49, %s50
      %p62 = scmp.eq.s32.totalorder %s19, 1
      %p63 = por %p61, %p62
      %p65 = scmp.ne.s32.totalorder %s50, %s64
      %p66 = scmp.eq.s32.totalorder %s19, 0
      %p67 = por %p65, %p66
      %s69 = sadd.s32 %s68, 1
      %p72 = scmp.eq.s32.totalorder %s13, 1
      %p73 = scmp.ne.s32.totalorder %s68, %s70
      %p74 = scmp.eq.s32.totalorder %s13, 0
      %p75 = por %p73, %p74
      %p76 = scmp.ne.s32.totalorder %s68, %s70
      %p77 = scmp.eq.s32.totalorder %s18, 1
      %p78 = por %p76, %p77
      %p79 = scmp.ne.s32.totalorder %s70, %s71
      %p80 = scmp.eq.s32.totalorder %s18, 0
      %p81 = por %p79, %p80
      %p82 = scmp.ne.s32.totalorder %s70, %s71
      %p83 = scmp.eq.s32.totalorder %s19, 1
      %p84 = por %p82, %p83
      %p86 = scmp.ne.s32.totalorder %s71, %s85
      %p87 = scmp.eq.s32.totalorder %s19, 0
      %p88 = por %p86, %p87
      %s90 = sadd.s32 %s89, 1
      %p93 = scmp.eq.s32.totalorder %s13, 1
      %p94 = scmp.ne.s32.totalorder %s89, %s91
      %p95 = scmp.eq.s32.totalorder %s13, 0
      %p96 = por %p94, %p95
      %p97 = scmp.ne.s32.totalorder %s89, %s91
      %p98 = scmp.eq.s32.totalorder %s18, 1
      %p99 = por %p97, %p98
      %p100 = scmp.ne.s32.totalorder %s91, %s92
      %p101 = scmp.eq.s32.totalorder %s18, 0
      %p102 = por %p100, %p101
      %p103 = scmp.ne.s32.totalorder %s91, %s92
      %p104 = scmp.eq.s32.totalorder %s19, 1
      %p105 = por %p103, %p104
      %p107 = scmp.ne.s32.totalorder %s92, %s106
      %p108 = scmp.eq.s32.totalorder %s19, 0
      %p109 = por %p107, %p108
      %s111 = sadd.s32 %s110, 1
      %p114 = scmp.eq.s32.totalorder %s13, 1
      %p115 = scmp.ne.s32.totalorder %s110, %s112
      %p116 = scmp.eq.s32.totalorder %s13, 0
      %p117 = por %p115, %p116
      %p118 = scmp.ne.s32.totalorder %s110, %s112
      %p119 = scmp.eq.s32.totalorder %s18, 1
      %p120 = por %p118, %p119
      %p121 = scmp.ne.s32.totalorder %s112, %s113
      %p122 = scmp.eq.s32.totalorder %s18, 0
      %p123 = por %p121, %p122
      %p124 = scmp.ne.s32.totalorder %s112, %s113
      %p125 = scmp.eq.s32.totalorder %s19, 1
      %p126 = por %p124, %p125
      %p128 = scmp.ne.s32.totalorder %s113, %s127
      %p129 = scmp.eq.s32.totalorder %s19, 0
      %p130 = por %p128, %p129
      %s132 = sadd.s32 %s131, 1
      %p135 = scmp.eq.s32.totalorder %s13, 1
      %p136 = scmp.ne.s32.totalorder %s131, %s133
      %p137 = scmp.eq.s32.totalorder %s13, 0
      %p138 = por %p136, %p137
      %p139 = scmp.ne.s32.totalorder %s131, %s133
      %p140 = scmp.eq.s32.totalorder %s18, 1
      %p141 = por %p139, %p140
      %p142 = scmp.ne.s32.totalorder %s133, %s134
      %p143 = scmp.eq.s32.totalorder %s18, 0
      %p144 = por %p142, %p143
      %p145 = scmp.ne.s32.totalorder %s133, %s134
      %p146 = scmp.eq.s32.totalorder %s19, 1
      %p147 = por %p145, %p146
      %p149 = scmp.ne.s32.totalorder %s134, %s148
      %p150 = scmp.eq.s32.totalorder %s19, 0
      %p151 = por %p149, %p150
      %s153 = sadd.s32 %s152, 1
      %p156 = scmp.eq.s32.totalorder %s13, 1
      %p157 = scmp.ne.s32.totalorder %s152, %s154
      %p158 = scmp.eq.s32.totalorder %s13, 0
      %p159 = por %p157, %p158
      %p160 = scmp.ne.s32.totalorder %s152, %s154
      %p161 = scmp.eq.s32.totalorder %s18, 1
      %p162 = por %p160, %p161
      %p163 = scmp.ne.s32.totalorder %s154, %s155
      %p164 = scmp.eq.s32.totalorder %s18, 0
      %p165 = por %p163, %p164
      %p166 = scmp.ne.s32.totalorder %s154, %s155
      %p167 = scmp.eq.s32.totalorder %s19, 1
      %p168 = por %p166, %p167
      %p170 = scmp.ne.s32.totalorder %s155, %s169
      %p171 = scmp.eq.s32.totalorder %s19, 0
      %p172 = por %p170, %p171
      %s173 = ssub.s32 %s13, %s20
      %p174 = scmp.eq.s32.totalorder %s173, 0
      %s176 = sadd.s32 %s175, 1
      %s177 = scalar_select %p174, %s175, %s176
      %p180 = pneg %p174
      %p181 = scmp.eq.s32.totalorder %s13, 1
      %p182 = por %p180, %p181
      %p183 = scmp.ne.s32.totalorder %s175, %s178
      %p184 = scmp.eq.s32.totalorder %s13, 0
      %p185 = por %p183, %p184
      %p186 = scmp.ne.s32.totalorder %s175, %s178
      %p187 = scmp.eq.s32.totalorder %s18, 1
      %p188 = por %p186, %p187
      %p189 = scmp.ne.s32.totalorder %s178, %s179
      %p190 = scmp.eq.s32.totalorder %s18, 0
      %p191 = por %p189, %p190
      %p192 = scmp.ne.s32.totalorder %s178, %s179
      %p193 = scmp.eq.s32.totalorder %s19, 1
      %p194 = por %p192, %p193
      %p196 = scmp.ne.s32.totalorder %s179, %s195
      %p197 = scmp.eq.s32.totalorder %s19, 0
      %p198 = por %p196, %p197
      %p199 = scmp.le.s32.totalorder 1, %s13
      %p200 = scmp.lt.s32.totalorder %s13, 3
      %p201 = pnand %p199, %p200
      %p202 = pneg %p201
      // Predicated region
      $region9: #{net_forward.1} parent=5 // pred_check
        _
      $region10: #{net_forward.1} parent=5 // pred_check_branch
        %204 = sbr.rel (%p201) target = $region12
      $region11: #{net_forward.1} parent=5 // pred_region
        %s205 = ssub.s32 %s13, 1
        // Predicated region
        $region13: #{net_forward.1} parent=11 // pred_check
          %p206 = pneg %p60
        $region14: #{net_forward.1} parent=11 // pred_check_branch
          %208 = sbr.rel (%p206) target = $region16
        $region15: #{net_forward.1} parent=11 // pred_region
          _
        $region16: #{net_forward.1} parent=11 // pred_fallthru
          _
        // Predicated region
        $region17: #{net_forward.1} parent=11 // pred_check
          %p209 = pneg %p81
        $region18: #{net_forward.1} parent=11 // pred_check_branch
          %211 = sbr.rel (%p209) target = $region20
        $region19: #{net_forward.1} parent=11 // pred_region
          _
        $region20: #{net_forward.1} parent=11 // pred_fallthru
          _
        // Predicated region
        $region21: #{net_forward.1} parent=11 // pred_check
          %p212 = pneg %p102
        $region22: #{net_forward.1} parent=11 // pred_check_branch
          %214 = sbr.rel (%p212) target = $region24
        $region23: #{net_forward.1} parent=11 // pred_region
          _
        $region24: #{net_forward.1} parent=11 // pred_fallthru
          _
        // Predicated region
        $region25: #{net_forward.1} parent=11 // pred_check
          %p215 = pneg %p123
        $region26: #{net_forward.1} parent=11 // pred_check_branch
          %217 = sbr.rel (%p215) target = $region28
        $region27: #{net_forward.1} parent=11 // pred_region
          _
        $region28: #{net_forward.1} parent=11 // pred_fallthru
          _
        // Predicated region
        $region29: #{net_forward.1} parent=11 // pred_check
          %p218 = pneg %p144
        $region30: #{net_forward.1} parent=11 // pred_check_branch
          %220 = sbr.rel (%p218) target = $region32
        $region31: #{net_forward.1} parent=11 // pred_region
          _
        $region32: #{net_forward.1} parent=11 // pred_fallthru
          _
        // Predicated region
        $region33: #{net_forward.1} parent=11 // pred_check
          %p221 = pneg %p165
        $region34: #{net_forward.1} parent=11 // pred_check_branch
          %223 = sbr.rel (%p221) target = $region36
        $region35: #{net_forward.1} parent=11 // pred_region
          _
        $region36: #{net_forward.1} parent=11 // pred_fallthru
          _
      $region12: #{net_forward.1} parent=5 // pred_fallthru
        _
      %p224 = scmp.lt.s32.totalorder %s13, 2
      // Predicated region
      $region37: #{net_forward.1} parent=5 // pred_check
        %p225 = pneg %p224
      $region38: #{net_forward.1} parent=5 // pred_check_branch
        %227 = sbr.rel (%p225) target = $region40
      $region39: #{net_forward.1} parent=5 // pred_region
        // Predicated region
        $region41: #{net_forward.1} parent=39 // pred_check
          %p228 = pneg %p33
        $region42: #{net_forward.1} parent=39 // pred_check_branch
          %230 = sbr.rel (%p228) target = $region44
        $region43: #{net_forward.1} parent=39 // pred_region
          %s231 = sand.u32 %s23, 1
          %s232 = sand.u32 %s23, 1
          %s233 = smul.addr %s232, 560
          %s234 = scalar_lea.vmem [#allocation2], %s233
          %s235 = smul.u32 28, %s13
          %s236 = smul.addr %s235, 4
          %s237 = scalar_lea.vmem %s0, %s236
          // Predicated region
          $region45: #{net_forward.1} parent=43 // pred_check
            _
          $region46: #{net_forward.1} parent=43 // pred_check_branch
            %239 = sbr.rel (0) target = $region48
          $region47: #{net_forward.1} parent=43 // pred_region
            // Predicated region
            $region49: #{net_forward.1} parent=47 // pred_check
              _
            $region50: #{net_forward.1} parent=47 // pred_check_branch
              %241 = sbr.rel target = $region52
            $region51: #{net_forward.1} parent=47 // pred_region
              // Predicated region
              $region64: #{net_forward.1} parent=51 // pred_check
                _
              $region65: #{net_forward.1} parent=51 // pred_check_branch
                %535 = sbr.rel (0) target = $region67
              $region66: #{net_forward.1} parent=51 // pred_region
                loop: start=0, step=1, limit=1
                $region68: #{net_forward.1} parent=66 // loop_pre_header
                  _
                $region69: #{net_forward.1} parent=66 // loop_header
                  %s537 = sphi 0, %s541
                  %p538 = scmp.ge.s32.totalorder %s537, 1
                  %s542 = sphi %s237, %s237
                  %s543 = sphi %s234, %s234
                $region70: #{net_forward.1} parent=66 // loop_header_branch
                  %540 = sbr.rel (%p538) target = $region74
                $region71: #{net_forward.1} parent=66 // loop_body
                  _
                $region72: #{net_forward.1} parent=66 // loop_footer
                  %s541 = sadd.s32 1, %s537
                $region73: #{net_forward.1} parent=66 // loop_footer_branch
                  %536 = sbr.rel target = $region69
                $region74: #{net_forward.1} parent=66 // loop_exit
                  _
                %s545 = ssub.s32 16, 1
                loop: start=0, step=1, limit=1
                $region75: #{net_forward.1} parent=66 // loop_pre_header
                  _
                $region76: #{net_forward.1} parent=66 // loop_header
                  %s547 = sphi 0, %s551
                  %p548 = scmp.ge.s32.totalorder %s547, 1
                  %s552 = sphi %s237, %s237
                  %s553 = sphi %s234, %s234
                $region77: #{net_forward.1} parent=66 // loop_header_branch
                  %550 = sbr.rel (%p548) target = $region81
                $region78: #{net_forward.1} parent=66 // loop_body
                  %v554 = vld [vmem:[%s552] sm:%s545]
                  %555 = vst [vmem:[%s553] sm:%s545] %v554
                  %v556 = vld [vmem:[%s552 + $0x4] sm:%s545]
                  %557 = vst [vmem:[%s553 + $0x4] sm:%s545] %v556
                  %v558 = vld [vmem:[%s552 + $0x8] sm:%s545]
                  %559 = vst [vmem:[%s553 + $0x8] sm:%s545] %v558
                  %v560 = vld [vmem:[%s552 + $0xc] sm:%s545]
                  %561 = vst [vmem:[%s553 + $0xc] sm:%s545] %v560
                  %v562 = vld [vmem:[%s552 + $0x10] sm:%s545]
                  %563 = vst [vmem:[%s553 + $0x10] sm:%s545] %v562
                  %v564 = vld [vmem:[%s552 + $0x14] sm:%s545]
                  %565 = vst [vmem:[%s553 + $0x14] sm:%s545] %v564
                  %v566 = vld [vmem:[%s552 + $0x18] sm:%s545]
                  %567 = vst [vmem:[%s553 + $0x18] sm:%s545] %v566
                  %v568 = vld [vmem:[%s552 + $0x1c] sm:%s545]
                  %569 = vst [vmem:[%s553 + $0x1c] sm:%s545] %v568
                  %v570 = vld [vmem:[%s552 + $0x20] sm:%s545]
                  %571 = vst [vmem:[%s553 + $0x20] sm:%s545] %v570
                  %v572 = vld [vmem:[%s552 + $0x24] sm:%s545]
                  %573 = vst [vmem:[%s553 + $0x24] sm:%s545] %v572
                  %v574 = vld [vmem:[%s552 + $0x28] sm:%s545]
                  %575 = vst [vmem:[%s553 + $0x28] sm:%s545] %v574
                  %v576 = vld [vmem:[%s552 + $0x2c] sm:%s545]
                  %577 = vst [vmem:[%s553 + $0x2c] sm:%s545] %v576
                  %v578 = vld [vmem:[%s552 + $0x30] sm:%s545]
                  %579 = vst [vmem:[%s553 + $0x30] sm:%s545] %v578
                  %v580 = vld [vmem:[%s552 + $0x34] sm:%s545]
                  %581 = vst [vmem:[%s553 + $0x34] sm:%s545] %v580
                  %v582 = vld [vmem:[%s552 + $0x38] sm:%s545]
                  %583 = vst [vmem:[%s553 + $0x38] sm:%s545] %v582
                  %v584 = vld [vmem:[%s552 + $0x3c] sm:%s545]
                  %585 = vst [vmem:[%s553 + $0x3c] sm:%s545] %v584
                  %v586 = vld [vmem:[%s552 + $0x40] sm:%s545]
                  %587 = vst [vmem:[%s553 + $0x40] sm:%s545] %v586
                  %v588 = vld [vmem:[%s552 + $0x44] sm:%s545]
                  %589 = vst [vmem:[%s553 + $0x44] sm:%s545] %v588
                  %v590 = vld [vmem:[%s552 + $0x48] sm:%s545]
                  %591 = vst [vmem:[%s553 + $0x48] sm:%s545] %v590
                  %v592 = vld [vmem:[%s552 + $0x4c] sm:%s545]
                  %593 = vst [vmem:[%s553 + $0x4c] sm:%s545] %v592
                  %v594 = vld [vmem:[%s552 + $0x50] sm:%s545]
                  %595 = vst [vmem:[%s553 + $0x50] sm:%s545] %v594
                  %v596 = vld [vmem:[%s552 + $0x54] sm:%s545]
                  %597 = vst [vmem:[%s553 + $0x54] sm:%s545] %v596
                  %v598 = vld [vmem:[%s552 + $0x58] sm:%s545]
                  %599 = vst [vmem:[%s553 + $0x58] sm:%s545] %v598
                  %v600 = vld [vmem:[%s552 + $0x5c] sm:%s545]
                  %601 = vst [vmem:[%s553 + $0x5c] sm:%s545] %v600
                  %v602 = vld [vmem:[%s552 + $0x60] sm:%s545]
                  %603 = vst [vmem:[%s553 + $0x60] sm:%s545] %v602
                  %v604 = vld [vmem:[%s552 + $0x64] sm:%s545]
                  %605 = vst [vmem:[%s553 + $0x64] sm:%s545] %v604
                  %v606 = vld [vmem:[%s552 + $0x68] sm:%s545]
                  %607 = vst [vmem:[%s553 + $0x68] sm:%s545] %v606
                  %v608 = vld [vmem:[%s552 + $0x6c] sm:%s545]
                  %609 = vst [vmem:[%s553 + $0x6c] sm:%s545] %v608
                  %v610 = vld [vmem:[%s552 + $0xe0] sm:%s545]
                  %611 = vst [vmem:[%s553 + $0x70] sm:%s545] %v610
                  %v612 = vld [vmem:[%s552 + $0xe4] sm:%s545]
                  %613 = vst [vmem:[%s553 + $0x74] sm:%s545] %v612
                  %v614 = vld [vmem:[%s552 + $0xe8] sm:%s545]
                  %615 = vst [vmem:[%s553 + $0x78] sm:%s545] %v614
                  %v616 = vld [vmem:[%s552 + $0xec] sm:%s545]
                  %617 = vst [vmem:[%s553 + $0x7c] sm:%s545] %v616
                  %v618 = vld [vmem:[%s552 + $0xf0] sm:%s545]
                  %619 = vst [vmem:[%s553 + $0x80] sm:%s545] %v618
                  %v620 = vld [vmem:[%s552 + $0xf4] sm:%s545]
                  %621 = vst [vmem:[%s553 + $0x84] sm:%s545] %v620
                  %v622 = vld [vmem:[%s552 + $0xf8] sm:%s545]
                  %623 = vst [vmem:[%s553 + $0x88] sm:%s545] %v622
                  %v624 = vld [vmem:[%s552 + $0xfc] sm:%s545]
                  %625 = vst [vmem:[%s553 + $0x8c] sm:%s545] %v624
                  %v626 = vld [vmem:[%s552 + $0x100] sm:%s545]
                  %627 = vst [vmem:[%s553 + $0x90] sm:%s545] %v626
                  %v628 = vld [vmem:[%s552 + $0x104] sm:%s545]
                  %629 = vst [vmem:[%s553 + $0x94] sm:%s545] %v628
                  %v630 = vld [vmem:[%s552 + $0x108] sm:%s545]
                  %631 = vst [vmem:[%s553 + $0x98] sm:%s545] %v630
                  %v632 = vld [vmem:[%s552 + $0x10c] sm:%s545]
                  %633 = vst [vmem:[%s553 + $0x9c] sm:%s545] %v632
                  %v634 = vld [vmem:[%s552 + $0x110] sm:%s545]
                  %635 = vst [vmem:[%s553 + $0xa0] sm:%s545] %v634
                  %v636 = vld [vmem:[%s552 + $0x114] sm:%s545]
                  %637 = vst [vmem:[%s553 + $0xa4] sm:%s545] %v636
                  %v638 = vld [vmem:[%s552 + $0x118] sm:%s545]
                  %639 = vst [vmem:[%s553 + $0xa8] sm:%s545] %v638
                  %v640 = vld [vmem:[%s552 + $0x11c] sm:%s545]
                  %641 = vst [vmem:[%s553 + $0xac] sm:%s545] %v640
                  %v642 = vld [vmem:[%s552 + $0x120] sm:%s545]
                  %643 = vst [vmem:[%s553 + $0xb0] sm:%s545] %v642
                  %v644 = vld [vmem:[%s552 + $0x124] sm:%s545]
                  %645 = vst [vmem:[%s553 + $0xb4] sm:%s545] %v644
                  %v646 = vld [vmem:[%s552 + $0x128] sm:%s545]
                  %647 = vst [vmem:[%s553 + $0xb8] sm:%s545] %v646
                  %v648 = vld [vmem:[%s552 + $0x12c] sm:%s545]
                  %649 = vst [vmem:[%s553 + $0xbc] sm:%s545] %v648
                  %v650 = vld [vmem:[%s552 + $0x130] sm:%s545]
                  %651 = vst [vmem:[%s553 + $0xc0] sm:%s545] %v650
                  %v652 = vld [vmem:[%s552 + $0x134] sm:%s545]
                  %653 = vst [vmem:[%s553 + $0xc4] sm:%s545] %v652
                  %v654 = vld [vmem:[%s552 + $0x138] sm:%s545]
                  %655 = vst [vmem:[%s553 + $0xc8] sm:%s545] %v654
                  %v656 = vld [vmem:[%s552 + $0x13c] sm:%s545]
                  %657 = vst [vmem:[%s553 + $0xcc] sm:%s545] %v656
                  %v658 = vld [vmem:[%s552 + $0x140] sm:%s545]
                  %659 = vst [vmem:[%s553 + $0xd0] sm:%s545] %v658
                  %v660 = vld [vmem:[%s552 + $0x144] sm:%s545]
                  %661 = vst [vmem:[%s553 + $0xd4] sm:%s545] %v660
                  %v662 = vld [vmem:[%s552 + $0x148] sm:%s545]
                  %663 = vst [vmem:[%s553 + $0xd8] sm:%s545] %v662
                  %v664 = vld [vmem:[%s552 + $0x14c] sm:%s545]
                  %665 = vst [vmem:[%s553 + $0xdc] sm:%s545] %v664
                  %v666 = vld [vmem:[%s552 + $0x1c0] sm:%s545]
                  %667 = vst [vmem:[%s553 + $0xe0] sm:%s545] %v666
                  %v668 = vld [vmem:[%s552 + $0x1c4] sm:%s545]
                  %669 = vst [vmem:[%s553 + $0xe4] sm:%s545] %v668
                  %v670 = vld [vmem:[%s552 + $0x1c8] sm:%s545]
                  %671 = vst [vmem:[%s553 + $0xe8] sm:%s545] %v670
                  %v672 = vld [vmem:[%s552 + $0x1cc] sm:%s545]
                  %673 = vst [vmem:[%s553 + $0xec] sm:%s545] %v672
                  %v674 = vld [vmem:[%s552 + $0x1d0] sm:%s545]
                  %675 = vst [vmem:[%s553 + $0xf0] sm:%s545] %v674
                  %v676 = vld [vmem:[%s552 + $0x1d4] sm:%s545]
                  %677 = vst [vmem:[%s553 + $0xf4] sm:%s545] %v676
                  %v678 = vld [vmem:[%s552 + $0x1d8] sm:%s545]
                  %679 = vst [vmem:[%s553 + $0xf8] sm:%s545] %v678
                  %v680 = vld [vmem:[%s552 + $0x1dc] sm:%s545]
                  %681 = vst [vmem:[%s553 + $0xfc] sm:%s545] %v680
                  %v682 = vld [vmem:[%s552 + $0x1e0] sm:%s545]
                  %683 = vst [vmem:[%s553 + $0x100] sm:%s545] %v682
                  %v684 = vld [vmem:[%s552 + $0x1e4] sm:%s545]
                  %685 = vst [vmem:[%s553 + $0x104] sm:%s545] %v684
                  %v686 = vld [vmem:[%s552 + $0x1e8] sm:%s545]
                  %687 = vst [vmem:[%s553 + $0x108] sm:%s545] %v686
                  %v688 = vld [vmem:[%s552 + $0x1ec] sm:%s545]
                  %689 = vst [vmem:[%s553 + $0x10c] sm:%s545] %v688
                  %v690 = vld [vmem:[%s552 + $0x1f0] sm:%s545]
                  %691 = vst [vmem:[%s553 + $0x110] sm:%s545] %v690
                  %v692 = vld [vmem:[%s552 + $0x1f4] sm:%s545]
                  %693 = vst [vmem:[%s553 + $0x114] sm:%s545] %v692
                  %v694 = vld [vmem:[%s552 + $0x1f8] sm:%s545]
                  %695 = vst [vmem:[%s553 + $0x118] sm:%s545] %v694
                  %v696 = vld [vmem:[%s552 + $0x1fc] sm:%s545]
                  %697 = vst [vmem:[%s553 + $0x11c] sm:%s545] %v696
                  %v698 = vld [vmem:[%s552 + $0x200] sm:%s545]
                  %699 = vst [vmem:[%s553 + $0x120] sm:%s545] %v698
                  %v700 = vld [vmem:[%s552 + $0x204] sm:%s545]
                  %701 = vst [vmem:[%s553 + $0x124] sm:%s545] %v700
                  %v702 = vld [vmem:[%s552 + $0x208] sm:%s545]
                  %703 = vst [vmem:[%s553 + $0x128] sm:%s545] %v702
                  %v704 = vld [vmem:[%s552 + $0x20c] sm:%s545]
                  %705 = vst [vmem:[%s553 + $0x12c] sm:%s545] %v704
                  %v706 = vld [vmem:[%s552 + $0x210] sm:%s545]
                  %707 = vst [vmem:[%s553 + $0x130] sm:%s545] %v706
                  %v708 = vld [vmem:[%s552 + $0x214] sm:%s545]
                  %709 = vst [vmem:[%s553 + $0x134] sm:%s545] %v708
                  %v710 = vld [vmem:[%s552 + $0x218] sm:%s545]
                  %711 = vst [vmem:[%s553 + $0x138] sm:%s545] %v710
                  %v712 = vld [vmem:[%s552 + $0x21c] sm:%s545]
                  %713 = vst [vmem:[%s553 + $0x13c] sm:%s545] %v712
                  %v714 = vld [vmem:[%s552 + $0x220] sm:%s545]
                  %715 = vst [vmem:[%s553 + $0x140] sm:%s545] %v714
                  %v716 = vld [vmem:[%s552 + $0x224] sm:%s545]
                  %717 = vst [vmem:[%s553 + $0x144] sm:%s545] %v716
                  %v718 = vld [vmem:[%s552 + $0x228] sm:%s545]
                  %719 = vst [vmem:[%s553 + $0x148] sm:%s545] %v718
                  %v720 = vld [vmem:[%s552 + $0x22c] sm:%s545]
                  %721 = vst [vmem:[%s553 + $0x14c] sm:%s545] %v720
                  %v722 = vld [vmem:[%s552 + $0x2a0] sm:%s545]
                  %723 = vst [vmem:[%s553 + $0x150] sm:%s545] %v722
                  %v724 = vld [vmem:[%s552 + $0x2a4] sm:%s545]
                  %725 = vst [vmem:[%s553 + $0x154] sm:%s545] %v724
                  %v726 = vld [vmem:[%s552 + $0x2a8] sm:%s545]
                  %727 = vst [vmem:[%s553 + $0x158] sm:%s545] %v726
                  %v728 = vld [vmem:[%s552 + $0x2ac] sm:%s545]
                  %729 = vst [vmem:[%s553 + $0x15c] sm:%s545] %v728
                  %v730 = vld [vmem:[%s552 + $0x2b0] sm:%s545]
                  %731 = vst [vmem:[%s553 + $0x160] sm:%s545] %v730
                  %v732 = vld [vmem:[%s552 + $0x2b4] sm:%s545]
                  %733 = vst [vmem:[%s553 + $0x164] sm:%s545] %v732
                  %v734 = vld [vmem:[%s552 + $0x2b8] sm:%s545]
                  %735 = vst [vmem:[%s553 + $0x168] sm:%s545] %v734
                  %v736 = vld [vmem:[%s552 + $0x2bc] sm:%s545]
                  %737 = vst [vmem:[%s553 + $0x16c] sm:%s545] %v736
                  %v738 = vld [vmem:[%s552 + $0x2c0] sm:%s545]
                  %739 = vst [vmem:[%s553 + $0x170] sm:%s545] %v738
                  %v740 = vld [vmem:[%s552 + $0x2c4] sm:%s545]
                  %741 = vst [vmem:[%s553 + $0x174] sm:%s545] %v740
                  %v742 = vld [vmem:[%s552 + $0x2c8] sm:%s545]
                  %743 = vst [vmem:[%s553 + $0x178] sm:%s545] %v742
                  %v744 = vld [vmem:[%s552 + $0x2cc] sm:%s545]
                  %745 = vst [vmem:[%s553 + $0x17c] sm:%s545] %v744
                  %v746 = vld [vmem:[%s552 + $0x2d0] sm:%s545]
                  %747 = vst [vmem:[%s553 + $0x180] sm:%s545] %v746
                  %v748 = vld [vmem:[%s552 + $0x2d4] sm:%s545]
                  %749 = vst [vmem:[%s553 + $0x184] sm:%s545] %v748
                  %v750 = vld [vmem:[%s552 + $0x2d8] sm:%s545]
                  %751 = vst [vmem:[%s553 + $0x188] sm:%s545] %v750
                  %v752 = vld [vmem:[%s552 + $0x2dc] sm:%s545]
                  %753 = vst [vmem:[%s553 + $0x18c] sm:%s545] %v752
                  %v754 = vld [vmem:[%s552 + $0x2e0] sm:%s545]
                  %755 = vst [vmem:[%s553 + $0x190] sm:%s545] %v754
                  %v756 = vld [vmem:[%s552 + $0x2e4] sm:%s545]
                  %757 = vst [vmem:[%s553 + $0x194] sm:%s545] %v756
                  %v758 = vld [vmem:[%s552 + $0x2e8] sm:%s545]
                  %759 = vst [vmem:[%s553 + $0x198] sm:%s545] %v758
                  %v760 = vld [vmem:[%s552 + $0x2ec] sm:%s545]
                  %761 = vst [vmem:[%s553 + $0x19c] sm:%s545] %v760
                  %v762 = vld [vmem:[%s552 + $0x2f0] sm:%s545]
                  %763 = vst [vmem:[%s553 + $0x1a0] sm:%s545] %v762
                  %v764 = vld [vmem:[%s552 + $0x2f4] sm:%s545]
                  %765 = vst [vmem:[%s553 + $0x1a4] sm:%s545] %v764
                  %v766 = vld [vmem:[%s552 + $0x2f8] sm:%s545]
                  %767 = vst [vmem:[%s553 + $0x1a8] sm:%s545] %v766
                  %v768 = vld [vmem:[%s552 + $0x2fc] sm:%s545]
                  %769 = vst [vmem:[%s553 + $0x1ac] sm:%s545] %v768
                  %v770 = vld [vmem:[%s552 + $0x300] sm:%s545]
                  %771 = vst [vmem:[%s553 + $0x1b0] sm:%s545] %v770
                  %v772 = vld [vmem:[%s552 + $0x304] sm:%s545]
                  %773 = vst [vmem:[%s553 + $0x1b4] sm:%s545] %v772
                  %v774 = vld [vmem:[%s552 + $0x308] sm:%s545]
                  %775 = vst [vmem:[%s553 + $0x1b8] sm:%s545] %v774
                  %v776 = vld [vmem:[%s552 + $0x30c] sm:%s545]
                  %777 = vst [vmem:[%s553 + $0x1bc] sm:%s545] %v776
                  %v778 = vld [vmem:[%s552 + $0x380] sm:%s545]
                  %779 = vst [vmem:[%s553 + $0x1c0] sm:%s545] %v778
                  %v780 = vld [vmem:[%s552 + $0x384] sm:%s545]
                  %781 = vst [vmem:[%s553 + $0x1c4] sm:%s545] %v780
                  %v782 = vld [vmem:[%s552 + $0x388] sm:%s545]
                  %783 = vst [vmem:[%s553 + $0x1c8] sm:%s545] %v782
                  %v784 = vld [vmem:[%s552 + $0x38c] sm:%s545]
                  %785 = vst [vmem:[%s553 + $0x1cc] sm:%s545] %v784
                  %v786 = vld [vmem:[%s552 + $0x390] sm:%s545]
                  %787 = vst [vmem:[%s553 + $0x1d0] sm:%s545] %v786
                  %v788 = vld [vmem:[%s552 + $0x394] sm:%s545]
                  %789 = vst [vmem:[%s553 + $0x1d4] sm:%s545] %v788
                  %v790 = vld [vmem:[%s552 + $0x398] sm:%s545]
                  %791 = vst [vmem:[%s553 + $0x1d8] sm:%s545] %v790
                  %v792 = vld [vmem:[%s552 + $0x39c] sm:%s545]
                  %793 = vst [vmem:[%s553 + $0x1dc] sm:%s545] %v792
                  %v794 = vld [vmem:[%s552 + $0x3a0] sm:%s545]
                  %795 = vst [vmem:[%s553 + $0x1e0] sm:%s545] %v794
                  %v796 = vld [vmem:[%s552 + $0x3a4] sm:%s545]
                  %797 = vst [vmem:[%s553 + $0x1e4] sm:%s545] %v796
                  %v798 = vld [vmem:[%s552 + $0x3a8] sm:%s545]
                  %799 = vst [vmem:[%s553 + $0x1e8] sm:%s545] %v798
                  %v800 = vld [vmem:[%s552 + $0x3ac] sm:%s545]
                  %801 = vst [vmem:[%s553 + $0x1ec] sm:%s545] %v800
                  %v802 = vld [vmem:[%s552 + $0x3b0] sm:%s545]
                  %803 = vst [vmem:[%s553 + $0x1f0] sm:%s545] %v802
                  %v804 = vld [vmem:[%s552 + $0x3b4] sm:%s545]
                  %805 = vst [vmem:[%s553 + $0x1f4] sm:%s545] %v804
                  %v806 = vld [vmem:[%s552 + $0x3b8] sm:%s545]
                  %807 = vst [vmem:[%s553 + $0x1f8] sm:%s545] %v806
                  %v808 = vld [vmem:[%s552 + $0x3bc] sm:%s545]
                  %809 = vst [vmem:[%s553 + $0x1fc] sm:%s545] %v808
                  %v810 = vld [vmem:[%s552 + $0x3c0] sm:%s545]
                  %811 = vst [vmem:[%s553 + $0x200] sm:%s545] %v810
                  %v812 = vld [vmem:[%s552 + $0x3c4] sm:%s545]
                  %813 = vst [vmem:[%s553 + $0x204] sm:%s545] %v812
                  %v814 = vld [vmem:[%s552 + $0x3c8] sm:%s545]
                  %815 = vst [vmem:[%s553 + $0x208] sm:%s545] %v814
                  %v816 = vld [vmem:[%s552 + $0x3cc] sm:%s545]
                  %817 = vst [vmem:[%s553 + $0x20c] sm:%s545] %v816
                  %v818 = vld [vmem:[%s552 + $0x3d0] sm:%s545]
                  %819 = vst [vmem:[%s553 + $0x210] sm:%s545] %v818
                  %v820 = vld [vmem:[%s552 + $0x3d4] sm:%s545]
                  %821 = vst [vmem:[%s553 + $0x214] sm:%s545] %v820
                  %v822 = vld [vmem:[%s552 + $0x3d8] sm:%s545]
                  %823 = vst [vmem:[%s553 + $0x218] sm:%s545] %v822
                  %v824 = vld [vmem:[%s552 + $0x3dc] sm:%s545]
                  %825 = vst [vmem:[%s553 + $0x21c] sm:%s545] %v824
                  %v826 = vld [vmem:[%s552 + $0x3e0] sm:%s545]
                  %827 = vst [vmem:[%s553 + $0x220] sm:%s545] %v826
                  %v828 = vld [vmem:[%s552 + $0x3e4] sm:%s545]
                  %829 = vst [vmem:[%s553 + $0x224] sm:%s545] %v828
                  %v830 = vld [vmem:[%s552 + $0x3e8] sm:%s545]
                  %831 = vst [vmem:[%s553 + $0x228] sm:%s545] %v830
                  %v832 = vld [vmem:[%s552 + $0x3ec] sm:%s545]
                  %833 = vst [vmem:[%s553 + $0x22c] sm:%s545] %v832
                $region79: #{net_forward.1} parent=66 // loop_footer
                  %s551 = sadd.s32 1, %s547
                $region80: #{net_forward.1} parent=66 // loop_footer_branch
                  %546 = sbr.rel target = $region76
                $region81: #{net_forward.1} parent=66 // loop_exit
                  _
              $region67: #{net_forward.1} parent=51 // pred_fallthru
                _
            $region52: #{net_forward.1} parent=47 // pred_fallthru
              _
            // Predicated region
            $region53: #{net_forward.1} parent=47 // pred_check
              _
            $region54: #{net_forward.1} parent=47 // pred_check_branch
              %243 = sbr.rel (0) target = $region56
            $region55: #{net_forward.1} parent=47 // pred_region
              %s245 = ssub.s32 16, 1
              loop: start=0, step=1, limit=1
              $region57: #{net_forward.1} parent=55 // loop_pre_header
                _
              $region58: #{net_forward.1} parent=55 // loop_header
                %s247 = sphi 0, %s251
                %p248 = scmp.ge.s32.totalorder %s247, 1
                %s252 = sphi %s237, %s237
                %s253 = sphi %s234, %s234
              $region59: #{net_forward.1} parent=55 // loop_header_branch
                %250 = sbr.rel (%p248) target = $region63
              $region60: #{net_forward.1} parent=55 // loop_body
                %v254 = vld [vmem:[%s252] sm:%s245]
                %255 = vst [vmem:[%s253] sm:%s245] %v254
                %v256 = vld [vmem:[%s252 + $0x4] sm:%s245]
                %257 = vst [vmem:[%s253 + $0x4] sm:%s245] %v256
                %v258 = vld [vmem:[%s252 + $0x8] sm:%s245]
                %259 = vst [vmem:[%s253 + $0x8] sm:%s245] %v258
                %v260 = vld [vmem:[%s252 + $0xc] sm:%s245]
                %261 = vst [vmem:[%s253 + $0xc] sm:%s245] %v260
                %v262 = vld [vmem:[%s252 + $0x10] sm:%s245]
                %263 = vst [vmem:[%s253 + $0x10] sm:%s245] %v262
                %v264 = vld [vmem:[%s252 + $0x14] sm:%s245]
                %265 = vst [vmem:[%s253 + $0x14] sm:%s245] %v264
                %v266 = vld [vmem:[%s252 + $0x18] sm:%s245]
                %267 = vst [vmem:[%s253 + $0x18] sm:%s245] %v266
                %v268 = vld [vmem:[%s252 + $0x1c] sm:%s245]
                %269 = vst [vmem:[%s253 + $0x1c] sm:%s245] %v268
                %v270 = vld [vmem:[%s252 + $0x20] sm:%s245]
                %271 = vst [vmem:[%s253 + $0x20] sm:%s245] %v270
                %v272 = vld [vmem:[%s252 + $0x24] sm:%s245]
                %273 = vst [vmem:[%s253 + $0x24] sm:%s245] %v272
                %v274 = vld [vmem:[%s252 + $0x28] sm:%s245]
                %275 = vst [vmem:[%s253 + $0x28] sm:%s245] %v274
                %v276 = vld [vmem:[%s252 + $0x2c] sm:%s245]
                %277 = vst [vmem:[%s253 + $0x2c] sm:%s245] %v276
                %v278 = vld [vmem:[%s252 + $0x30] sm:%s245]
                %279 = vst [vmem:[%s253 + $0x30] sm:%s245] %v278
                %v280 = vld [vmem:[%s252 + $0x34] sm:%s245]
                %281 = vst [vmem:[%s253 + $0x34] sm:%s245] %v280
                %v282 = vld [vmem:[%s252 + $0x38] sm:%s245]
                %283 = vst [vmem:[%s253 + $0x38] sm:%s245] %v282
                %v284 = vld [vmem:[%s252 + $0x3c] sm:%s245]
                %285 = vst [vmem:[%s253 + $0x3c] sm:%s245] %v284
                %v286 = vld [vmem:[%s252 + $0x40] sm:%s245]
                %287 = vst [vmem:[%s253 + $0x40] sm:%s245] %v286
                %v288 = vld [vmem:[%s252 + $0x44] sm:%s245]
                %289 = vst [vmem:[%s253 + $0x44] sm:%s245] %v288
                %v290 = vld [vmem:[%s252 + $0x48] sm:%s245]
                %291 = vst [vmem:[%s253 + $0x48] sm:%s245] %v290
                %v292 = vld [vmem:[%s252 + $0x4c] sm:%s245]
                %293 = vst [vmem:[%s253 + $0x4c] sm:%s245] %v292
                %v294 = vld [vmem:[%s252 + $0x50] sm:%s245]
                %295 = vst [vmem:[%s253 + $0x50] sm:%s245] %v294
                %v296 = vld [vmem:[%s252 + $0x54] sm:%s245]
                %297 = vst [vmem:[%s253 + $0x54] sm:%s245] %v296
                %v298 = vld [vmem:[%s252 + $0x58] sm:%s245]
                %299 = vst [vmem:[%s253 + $0x58] sm:%s245] %v298
                %v300 = vld [vmem:[%s252 + $0x5c] sm:%s245]
                %301 = vst [vmem:[%s253 + $0x5c] sm:%s245] %v300
                %v302 = vld [vmem:[%s252 + $0x60] sm:%s245]
                %303 = vst [vmem:[%s253 + $0x60] sm:%s245] %v302
                %v304 = vld [vmem:[%s252 + $0x64] sm:%s245]
                %305 = vst [vmem:[%s253 + $0x64] sm:%s245] %v304
                %v306 = vld [vmem:[%s252 + $0x68] sm:%s245]
                %307 = vst [vmem:[%s253 + $0x68] sm:%s245] %v306
                %v308 = vld [vmem:[%s252 + $0x6c] sm:%s245]
                %309 = vst [vmem:[%s253 + $0x6c] sm:%s245] %v308
                %v310 = vld [vmem:[%s252 + $0xe0] sm:%s245]
                %311 = vst [vmem:[%s253 + $0x70] sm:%s245] %v310
                %v312 = vld [vmem:[%s252 + $0xe4] sm:%s245]
                %313 = vst [vmem:[%s253 + $0x74] sm:%s245] %v312
                %v314 = vld [vmem:[%s252 + $0xe8] sm:%s245]
                %315 = vst [vmem:[%s253 + $0x78] sm:%s245] %v314
                %v316 = vld [vmem:[%s252 + $0xec] sm:%s245]
                %317 = vst [vmem:[%s253 + $0x7c] sm:%s245] %v316
                %v318 = vld [vmem:[%s252 + $0xf0] sm:%s245]
                %319 = vst [vmem:[%s253 + $0x80] sm:%s245] %v318
                %v320 = vld [vmem:[%s252 + $0xf4] sm:%s245]
                %321 = vst [vmem:[%s253 + $0x84] sm:%s245] %v320
                %v322 = vld [vmem:[%s252 + $0xf8] sm:%s245]
                %323 = vst [vmem:[%s253 + $0x88] sm:%s245] %v322
                %v324 = vld [vmem:[%s252 + $0xfc] sm:%s245]
                %325 = vst [vmem:[%s253 + $0x8c] sm:%s245] %v324
                %v326 = vld [vmem:[%s252 + $0x100] sm:%s245]
                %327 = vst [vmem:[%s253 + $0x90] sm:%s245] %v326
                %v328 = vld [vmem:[%s252 + $0x104] sm:%s245]
                %329 = vst [vmem:[%s253 + $0x94] sm:%s245] %v328
                %v330 = vld [vmem:[%s252 + $0x108] sm:%s245]
                %331 = vst [vmem:[%s253 + $0x98] sm:%s245] %v330
                %v332 = vld [vmem:[%s252 + $0x10c] sm:%s245]
                %333 = vst [vmem:[%s253 + $0x9c] sm:%s245] %v332
                %v334 = vld [vmem:[%s252 + $0x110] sm:%s245]
                %335 = vst [vmem:[%s253 + $0xa0] sm:%s245] %v334
                %v336 = vld [vmem:[%s252 + $0x114] sm:%s245]
                %337 = vst [vmem:[%s253 + $0xa4] sm:%s245] %v336
                %v338 = vld [vmem:[%s252 + $0x118] sm:%s245]
                %339 = vst [vmem:[%s253 + $0xa8] sm:%s245] %v338
                %v340 = vld [vmem:[%s252 + $0x11c] sm:%s245]
                %341 = vst [vmem:[%s253 + $0xac] sm:%s245] %v340
                %v342 = vld [vmem:[%s252 + $0x120] sm:%s245]
                %343 = vst [vmem:[%s253 + $0xb0] sm:%s245] %v342
                %v344 = vld [vmem:[%s252 + $0x124] sm:%s245]
                %345 = vst [vmem:[%s253 + $0xb4] sm:%s245] %v344
                %v346 = vld [vmem:[%s252 + $0x128] sm:%s245]
                %347 = vst [vmem:[%s253 + $0xb8] sm:%s245] %v346
                %v348 = vld [vmem:[%s252 + $0x12c] sm:%s245]
                %349 = vst [vmem:[%s253 + $0xbc] sm:%s245] %v348
                %v350 = vld [vmem:[%s252 + $0x130] sm:%s245]
                %351 = vst [vmem:[%s253 + $0xc0] sm:%s245] %v350
                %v352 = vld [vmem:[%s252 + $0x134] sm:%s245]
                %353 = vst [vmem:[%s253 + $0xc4] sm:%s245] %v352
                %v354 = vld [vmem:[%s252 + $0x138] sm:%s245]
                %355 = vst [vmem:[%s253 + $0xc8] sm:%s245] %v354
                %v356 = vld [vmem:[%s252 + $0x13c] sm:%s245]
                %357 = vst [vmem:[%s253 + $0xcc] sm:%s245] %v356
                %v358 = vld [vmem:[%s252 + $0x140] sm:%s245]
                %359 = vst [vmem:[%s253 + $0xd0] sm:%s245] %v358
                %v360 = vld [vmem:[%s252 + $0x144] sm:%s245]
                %361 = vst [vmem:[%s253 + $0xd4] sm:%s245] %v360
                %v362 = vld [vmem:[%s252 + $0x148] sm:%s245]
                %363 = vst [vmem:[%s253 + $0xd8] sm:%s245] %v362
                %v364 = vld [vmem:[%s252 + $0x14c] sm:%s245]
                %365 = vst [vmem:[%s253 + $0xdc] sm:%s245] %v364
                %v366 = vld [vmem:[%s252 + $0x1c0] sm:%s245]
                %367 = vst [vmem:[%s253 + $0xe0] sm:%s245] %v366
                %v368 = vld [vmem:[%s252 + $0x1c4] sm:%s245]
                %369 = vst [vmem:[%s253 + $0xe4] sm:%s245] %v368
                %v370 = vld [vmem:[%s252 + $0x1c8] sm:%s245]
                %371 = vst [vmem:[%s253 + $0xe8] sm:%s245] %v370
                %v372 = vld [vmem:[%s252 + $0x1cc] sm:%s245]
                %373 = vst [vmem:[%s253 + $0xec] sm:%s245] %v372
                %v374 = vld [vmem:[%s252 + $0x1d0] sm:%s245]
                %375 = vst [vmem:[%s253 + $0xf0] sm:%s245] %v374
                %v376 = vld [vmem:[%s252 + $0x1d4] sm:%s245]
                %377 = vst [vmem:[%s253 + $0xf4] sm:%s245] %v376
                %v378 = vld [vmem:[%s252 + $0x1d8] sm:%s245]
                %379 = vst [vmem:[%s253 + $0xf8] sm:%s245] %v378
                %v380 = vld [vmem:[%s252 + $0x1dc] sm:%s245]
                %381 = vst [vmem:[%s253 + $0xfc] sm:%s245] %v380
                %v382 = vld [vmem:[%s252 + $0x1e0] sm:%s245]
                %383 = vst [vmem:[%s253 + $0x100] sm:%s245] %v382
                %v384 = vld [vmem:[%s252 + $0x1e4] sm:%s245]
                %385 = vst [vmem:[%s253 + $0x104] sm:%s245] %v384
                %v386 = vld [vmem:[%s252 + $0x1e8] sm:%s245]
                %387 = vst [vmem:[%s253 + $0x108] sm:%s245] %v386
                %v388 = vld [vmem:[%s252 + $0x1ec] sm:%s245]
                %389 = vst [vmem:[%s253 + $0x10c] sm:%s245] %v388
                %v390 = vld [vmem:[%s252 + $0x1f0] sm:%s245]
                %391 = vst [vmem:[%s253 + $0x110] sm:%s245] %v390
                %v392 = vld [vmem:[%s252 + $0x1f4] sm:%s245]
                %393 = vst [vmem:[%s253 + $0x114] sm:%s245] %v392
                %v394 = vld [vmem:[%s252 + $0x1f8] sm:%s245]
                %395 = vst [vmem:[%s253 + $0x118] sm:%s245] %v394
                %v396 = vld [vmem:[%s252 + $0x1fc] sm:%s245]
                %397 = vst [vmem:[%s253 + $0x11c] sm:%s245] %v396
                %v398 = vld [vmem:[%s252 + $0x200] sm:%s245]
                %399 = vst [vmem:[%s253 + $0x120] sm:%s245] %v398
                %v400 = vld [vmem:[%s252 + $0x204] sm:%s245]
                %401 = vst [vmem:[%s253 + $0x124] sm:%s245] %v400
                %v402 = vld [vmem:[%s252 + $0x208] sm:%s245]
                %403 = vst [vmem:[%s253 + $0x128] sm:%s245] %v402
                %v404 = vld [vmem:[%s252 + $0x20c] sm:%s245]
                %405 = vst [vmem:[%s253 + $0x12c] sm:%s245] %v404
                %v406 = vld [vmem:[%s252 + $0x210] sm:%s245]
                %407 = vst [vmem:[%s253 + $0x130] sm:%s245] %v406
                %v408 = vld [vmem:[%s252 + $0x214] sm:%s245]
                %409 = vst [vmem:[%s253 + $0x134] sm:%s245] %v408
                %v410 = vld [vmem:[%s252 + $0x218] sm:%s245]
                %411 = vst [vmem:[%s253 + $0x138] sm:%s245] %v410
                %v412 = vld [vmem:[%s252 + $0x21c] sm:%s245]
                %413 = vst [vmem:[%s253 + $0x13c] sm:%s245] %v412
                %v414 = vld [vmem:[%s252 + $0x220] sm:%s245]
                %415 = vst [vmem:[%s253 + $0x140] sm:%s245] %v414
                %v416 = vld [vmem:[%s252 + $0x224] sm:%s245]
                %417 = vst [vmem:[%s253 + $0x144] sm:%s245] %v416
                %v418 = vld [vmem:[%s252 + $0x228] sm:%s245]
                %419 = vst [vmem:[%s253 + $0x148] sm:%s245] %v418
                %v420 = vld [vmem:[%s252 + $0x22c] sm:%s245]
                %421 = vst [vmem:[%s253 + $0x14c] sm:%s245] %v420
                %v422 = vld [vmem:[%s252 + $0x2a0] sm:%s245]
                %423 = vst [vmem:[%s253 + $0x150] sm:%s245] %v422
                %v424 = vld [vmem:[%s252 + $0x2a4] sm:%s245]
                %425 = vst [vmem:[%s253 + $0x154] sm:%s245] %v424
                %v426 = vld [vmem:[%s252 + $0x2a8] sm:%s245]
                %427 = vst [vmem:[%s253 + $0x158] sm:%s245] %v426
                %v428 = vld [vmem:[%s252 + $0x2ac] sm:%s245]
                %429 = vst [vmem:[%s253 + $0x15c] sm:%s245] %v428
                %v430 = vld [vmem:[%s252 + $0x2b0] sm:%s245]
                %431 = vst [vmem:[%s253 + $0x160] sm:%s245] %v430
                %v432 = vld [vmem:[%s252 + $0x2b4] sm:%s245]
                %433 = vst [vmem:[%s253 + $0x164] sm:%s245] %v432
                %v434 = vld [vmem:[%s252 + $0x2b8] sm:%s245]
                %435 = vst [vmem:[%s253 + $0x168] sm:%s245] %v434
                %v436 = vld [vmem:[%s252 + $0x2bc] sm:%s245]
                %437 = vst [vmem:[%s253 + $0x16c] sm:%s245] %v436
                %v438 = vld [vmem:[%s252 + $0x2c0] sm:%s245]
                %439 = vst [vmem:[%s253 + $0x170] sm:%s245] %v438
                %v440 = vld [vmem:[%s252 + $0x2c4] sm:%s245]
                %441 = vst [vmem:[%s253 + $0x174] sm:%s245] %v440
                %v442 = vld [vmem:[%s252 + $0x2c8] sm:%s245]
                %443 = vst [vmem:[%s253 + $0x178] sm:%s245] %v442
                %v444 = vld [vmem:[%s252 + $0x2cc] sm:%s245]
                %445 = vst [vmem:[%s253 + $0x17c] sm:%s245] %v444
                %v446 = vld [vmem:[%s252 + $0x2d0] sm:%s245]
                %447 = vst [vmem:[%s253 + $0x180] sm:%s245] %v446
                %v448 = vld [vmem:[%s252 + $0x2d4] sm:%s245]
                %449 = vst [vmem:[%s253 + $0x184] sm:%s245] %v448
                %v450 = vld [vmem:[%s252 + $0x2d8] sm:%s245]
                %451 = vst [vmem:[%s253 + $0x188] sm:%s245] %v450
                %v452 = vld [vmem:[%s252 + $0x2dc] sm:%s245]
                %453 = vst [vmem:[%s253 + $0x18c] sm:%s245] %v452
                %v454 = vld [vmem:[%s252 + $0x2e0] sm:%s245]
                %455 = vst [vmem:[%s253 + $0x190] sm:%s245] %v454
                %v456 = vld [vmem:[%s252 + $0x2e4] sm:%s245]
                %457 = vst [vmem:[%s253 + $0x194] sm:%s245] %v456
                %v458 = vld [vmem:[%s252 + $0x2e8] sm:%s245]
                %459 = vst [vmem:[%s253 + $0x198] sm:%s245] %v458
                %v460 = vld [vmem:[%s252 + $0x2ec] sm:%s245]
                %461 = vst [vmem:[%s253 + $0x19c] sm:%s245] %v460
                %v462 = vld [vmem:[%s252 + $0x2f0] sm:%s245]
                %463 = vst [vmem:[%s253 + $0x1a0] sm:%s245] %v462
                %v464 = vld [vmem:[%s252 + $0x2f4] sm:%s245]
                %465 = vst [vmem:[%s253 + $0x1a4] sm:%s245] %v464
                %v466 = vld [vmem:[%s252 + $0x2f8] sm:%s245]
                %467 = vst [vmem:[%s253 + $0x1a8] sm:%s245] %v466
                %v468 = vld [vmem:[%s252 + $0x2fc] sm:%s245]
                %469 = vst [vmem:[%s253 + $0x1ac] sm:%s245] %v468
                %v470 = vld [vmem:[%s252 + $0x300] sm:%s245]
                %471 = vst [vmem:[%s253 + $0x1b0] sm:%s245] %v470
                %v472 = vld [vmem:[%s252 + $0x304] sm:%s245]
                %473 = vst [vmem:[%s253 + $0x1b4] sm:%s245] %v472
                %v474 = vld [vmem:[%s252 + $0x308] sm:%s245]
                %475 = vst [vmem:[%s253 + $0x1b8] sm:%s245] %v474
                %v476 = vld [vmem:[%s252 + $0x30c] sm:%s245]
                %477 = vst [vmem:[%s253 + $0x1bc] sm:%s245] %v476
                %v478 = vld [vmem:[%s252 + $0x380] sm:%s245]
                %479 = vst [vmem:[%s253 + $0x1c0] sm:%s245] %v478
                %v480 = vld [vmem:[%s252 + $0x384] sm:%s245]
                %481 = vst [vmem:[%s253 + $0x1c4] sm:%s245] %v480
                %v482 = vld [vmem:[%s252 + $0x388] sm:%s245]
                %483 = vst [vmem:[%s253 + $0x1c8] sm:%s245] %v482
                %v484 = vld [vmem:[%s252 + $0x38c] sm:%s245]
                %485 = vst [vmem:[%s253 + $0x1cc] sm:%s245] %v484
                %v486 = vld [vmem:[%s252 + $0x390] sm:%s245]
                %487 = vst [vmem:[%s253 + $0x1d0] sm:%s245] %v486
                %v488 = vld [vmem:[%s252 + $0x394] sm:%s245]
                %489 = vst [vmem:[%s253 + $0x1d4] sm:%s245] %v488
                %v490 = vld [vmem:[%s252 + $0x398] sm:%s245]
                %491 = vst [vmem:[%s253 + $0x1d8] sm:%s245] %v490
                %v492 = vld [vmem:[%s252 + $0x39c] sm:%s245]
                %493 = vst [vmem:[%s253 + $0x1dc] sm:%s245] %v492
                %v494 = vld [vmem:[%s252 + $0x3a0] sm:%s245]
                %495 = vst [vmem:[%s253 + $0x1e0] sm:%s245] %v494
                %v496 = vld [vmem:[%s252 + $0x3a4] sm:%s245]
                %497 = vst [vmem:[%s253 + $0x1e4] sm:%s245] %v496
                %v498 = vld [vmem:[%s252 + $0x3a8] sm:%s245]
                %499 = vst [vmem:[%s253 + $0x1e8] sm:%s245] %v498
                %v500 = vld [vmem:[%s252 + $0x3ac] sm:%s245]
                %501 = vst [vmem:[%s253 + $0x1ec] sm:%s245] %v500
                %v502 = vld [vmem:[%s252 + $0x3b0] sm:%s245]
                %503 = vst [vmem:[%s253 + $0x1f0] sm:%s245] %v502
                %v504 = vld [vmem:[%s252 + $0x3b4] sm:%s245]
                %505 = vst [vmem:[%s253 + $0x1f4] sm:%s245] %v504
                %v506 = vld [vmem:[%s252 + $0x3b8] sm:%s245]
                %507 = vst [vmem:[%s253 + $0x1f8] sm:%s245] %v506
                %v508 = vld [vmem:[%s252 + $0x3bc] sm:%s245]
                %509 = vst [vmem:[%s253 + $0x1fc] sm:%s245] %v508
                %v510 = vld [vmem:[%s252 + $0x3c0] sm:%s245]
                %511 = vst [vmem:[%s253 + $0x200] sm:%s245] %v510
                %v512 = vld [vmem:[%s252 + $0x3c4] sm:%s245]
                %513 = vst [vmem:[%s253 + $0x204] sm:%s245] %v512
                %v514 = vld [vmem:[%s252 + $0x3c8] sm:%s245]
                %515 = vst [vmem:[%s253 + $0x208] sm:%s245] %v514
                %v516 = vld [vmem:[%s252 + $0x3cc] sm:%s245]
                %517 = vst [vmem:[%s253 + $0x20c] sm:%s245] %v516
                %v518 = vld [vmem:[%s252 + $0x3d0] sm:%s245]
                %519 = vst [vmem:[%s253 + $0x210] sm:%s245] %v518
                %v520 = vld [vmem:[%s252 + $0x3d4] sm:%s245]
                %521 = vst [vmem:[%s253 + $0x214] sm:%s245] %v520
                %v522 = vld [vmem:[%s252 + $0x3d8] sm:%s245]
                %523 = vst [vmem:[%s253 + $0x218] sm:%s245] %v522
                %v524 = vld [vmem:[%s252 + $0x3dc] sm:%s245]
                %525 = vst [vmem:[%s253 + $0x21c] sm:%s245] %v524
                %v526 = vld [vmem:[%s252 + $0x3e0] sm:%s245]
                %527 = vst [vmem:[%s253 + $0x220] sm:%s245] %v526
                %v528 = vld [vmem:[%s252 + $0x3e4] sm:%s245]
                %529 = vst [vmem:[%s253 + $0x224] sm:%s245] %v528
                %v530 = vld [vmem:[%s252 + $0x3e8] sm:%s245]
                %531 = vst [vmem:[%s253 + $0x228] sm:%s245] %v530
                %v532 = vld [vmem:[%s252 + $0x3ec] sm:%s245]
                %533 = vst [vmem:[%s253 + $0x22c] sm:%s245] %v532
              $region61: #{net_forward.1} parent=55 // loop_footer
                %s251 = sadd.s32 1, %s247
              $region62: #{net_forward.1} parent=55 // loop_footer_branch
                %246 = sbr.rel target = $region58
              $region63: #{net_forward.1} parent=55 // loop_exit
                _
            $region56: #{net_forward.1} parent=47 // pred_fallthru
              _
          $region48: #{net_forward.1} parent=43 // pred_fallthru
            _
          %834 = vnop
        $region44: #{net_forward.1} parent=39 // pred_fallthru
          _
      $region40: #{net_forward.1} parent=5 // pred_fallthru
        _
      %p835 = scmp.le.s32.totalorder 1, %s13
      %p836 = scmp.lt.s32.totalorder %s13, 3
      %p837 = pnand %p835, %p836
      %p838 = pneg %p837
      // Predicated region
      $region82: #{net_forward.1} parent=5 // pred_check
        _
      $region83: #{net_forward.1} parent=5 // pred_check_branch
        %840 = sbr.rel (%p837) target = $region85
      $region84: #{net_forward.1} parent=5 // pred_region
        %s841 = ssub.s32 %s13, 1
        %s842 = sand.u32 %s26, 1
        %s843 = sand.u32 %s26, 1
        %s844 = smul.addr %s843, 560
        %s845 = scalar_lea.vmem [#allocation2], %s844
        // Predicated region
        $region86: #{net_forward.1} parent=84 // pred_check
          %p846 = pneg %p39
        $region87: #{net_forward.1} parent=84 // pred_check_branch
          %848 = sbr.rel (%p846) target = $region89
        $region88: #{net_forward.1} parent=84 // pred_region
          _
        $region89: #{net_forward.1} parent=84 // pred_fallthru
          _
        %s849 = sand.u32 %s26, 1
        %s850 = sand.u32 %s26, 1
        %s851 = smul.addr %s850, 560
        %s852 = scalar_lea.vmem [#allocation2], %s851
        %p853 = pneg %p39
        %p854 = pneg %p36
        %p855 = pneg %p60
        %p856 = pneg %p57
        %p857 = pneg %p81
        %p858 = pneg %p78
        %p859 = pneg %p102
        %p860 = pneg %p99
        %p861 = pneg %p123
        %p862 = pneg %p120
        %p863 = pneg %p144
        %p864 = pneg %p141
        %p865 = pneg %p165
        %p866 = pneg %p162
        %p867 = pneg %p191
        %p868 = pneg %p188
        %s869 = smul.u32 28, %s18
        %p870 = scmp.lt.s32.totalorder %s869, 55
        %s871 = scalar_select %p870, %s869, 55
        %s872 = smul.addr %s871, 8
        %s873 = scalar_lea.vmem %s7, %s872
        %s874 = smul.u32 28, %s18
        %s875 = smul.u32 28, %s18
        %p876 = scmp.lt.s32.totalorder %s875, 55
        %s877 = scalar_select %p876, %s875, 55
        %s878 = smul.addr %s877, 8
        %s879 = scalar_lea.vmem %s7, %s878
        %s880 = smul.u32 28, %s18
        %v882 = vld [vmem:[%s845] sm:$0xf]
        %v883 = vld [vmem:[%s845 + $0x4] sm:$0xf]
        %v884 = vld [vmem:[%s845 + $0x8] sm:$0xf]
        %v885 = vld [vmem:[%s845 + $0xc] sm:$0xf]
        %v886 = vld [vmem:[%s845 + $0x10] sm:$0xf]
        %v887 = vld [vmem:[%s845 + $0x14] sm:$0xf]
        %v888 = vld [vmem:[%s845 + $0x18] sm:$0xf]
        %v889 = vld [vmem:[%s845 + $0x1c] sm:$0xf]
        %v890 = vld [vmem:[%s845 + $0x20] sm:$0xf]
        %v891 = vld [vmem:[%s845 + $0x24] sm:$0xf]
        %v892 = vld [vmem:[%s845 + $0x28] sm:$0xf]
        %v893 = vld [vmem:[%s845 + $0x2c] sm:$0xf]
        %v894 = vld [vmem:[%s845 + $0x30] sm:$0xf]
        %v895 = vld [vmem:[%s845 + $0x34] sm:$0xf]
        %v896 = vld [vmem:[%s845 + $0x38] sm:$0xf]
        %v897 = vld [vmem:[%s845 + $0x3c] sm:$0xf]
        %v898 = vld [vmem:[%s845 + $0x40] sm:$0xf]
        %v899 = vld [vmem:[%s845 + $0x44] sm:$0xf]
        %v900 = vld [vmem:[%s845 + $0x48] sm:$0xf]
        %v901 = vld [vmem:[%s845 + $0x4c] sm:$0xf]
        %v902 = vld [vmem:[%s845 + $0x50] sm:$0xf]
        %v903 = vld [vmem:[%s845 + $0x54] sm:$0xf]
        %v904 = vld [vmem:[%s845 + $0x58] sm:$0xf]
        %v905 = vld [vmem:[%s845 + $0x5c] sm:$0xf]
        %v906 = vld [vmem:[%s845 + $0x60] sm:$0xf]
        %v907 = vld [vmem:[%s845 + $0x64] sm:$0xf]
        %v908 = vld [vmem:[%s845 + $0x68] sm:$0xf]
        %v909 = vld [vmem:[%s845 + $0x6c] sm:$0xf]
        %v910 = vld [vmem:[%s1] sm:$0xff]
        %v911 = vld [vmem:[%s1 + $0x8] sm:$0xff]
        %v912 = vld [vmem:[%s1 + $0x10] sm:$0xff]
        %v913 = vld [vmem:[%s1 + $0x18] sm:$0xff]
        %v914 = vld [vmem:[%s1 + $0x20] sm:$0xff]
        %v915 = vld [vmem:[%s1 + $0x28] sm:$0xff]
        %v916 = vld [vmem:[%s1 + $0x30] sm:$0xff]
        %v917 = vld [vmem:[%s1 + $0x38] sm:$0xff]
        %v918 = vld [vmem:[%s1 + $0x40] sm:$0xff]
        %v919 = vld [vmem:[%s1 + $0x48] sm:$0xff]
        %v920 = vld [vmem:[%s1 + $0x50] sm:$0xff]
        %v921 = vld [vmem:[%s1 + $0x58] sm:$0xff]
        %s922 = scalar_lea.vmem %s845, 112 [#allocation2]
        %v923 = vld [vmem:[%s922] sm:$0xf]
        %v924 = vld [vmem:[%s922 + $0x4] sm:$0xf]
        %v925 = vld [vmem:[%s922 + $0x8] sm:$0xf]
        %v926 = vld [vmem:[%s922 + $0xc] sm:$0xf]
        %v927 = vld [vmem:[%s922 + $0x10] sm:$0xf]
        %v928 = vld [vmem:[%s922 + $0x14] sm:$0xf]
        %v929 = vld [vmem:[%s922 + $0x18] sm:$0xf]
        %v930 = vld [vmem:[%s922 + $0x1c] sm:$0xf]
        %v931 = vld [vmem:[%s922 + $0x20] sm:$0xf]
        %v932 = vld [vmem:[%s922 + $0x24] sm:$0xf]
        %v933 = vld [vmem:[%s922 + $0x28] sm:$0xf]
        %v934 = vld [vmem:[%s922 + $0x2c] sm:$0xf]
        %v935 = vld [vmem:[%s922 + $0x30] sm:$0xf]
        %v936 = vld [vmem:[%s922 + $0x34] sm:$0xf]
        %v937 = vld [vmem:[%s922 + $0x38] sm:$0xf]
        %v938 = vld [vmem:[%s922 + $0x3c] sm:$0xf]
        %v939 = vld [vmem:[%s922 + $0x40] sm:$0xf]
        %v940 = vld [vmem:[%s922 + $0x44] sm:$0xf]
        %v941 = vld [vmem:[%s922 + $0x48] sm:$0xf]
        %v942 = vld [vmem:[%s922 + $0x4c] sm:$0xf]
        %v943 = vld [vmem:[%s922 + $0x50] sm:$0xf]
        %v944 = vld [vmem:[%s922 + $0x54] sm:$0xf]
        %v945 = vld [vmem:[%s922 + $0x58] sm:$0xf]
        %v946 = vld [vmem:[%s922 + $0x5c] sm:$0xf]
        %v947 = vld [vmem:[%s922 + $0x60] sm:$0xf]
        %v948 = vld [vmem:[%s922 + $0x64] sm:$0xf]
        %v949 = vld [vmem:[%s922 + $0x68] sm:$0xf]
        %v950 = vld [vmem:[%s922 + $0x6c] sm:$0xf]
        %s951 = scalar_lea.vmem %s1, 96
        %v952 = vld [vmem:[%s951] sm:$0xff]
        %v953 = vld [vmem:[%s951 + $0x8] sm:$0xff]
        %v954 = vld [vmem:[%s951 + $0x10] sm:$0xff]
        %v955 = vld [vmem:[%s951 + $0x18] sm:$0xff]
        %v956 = vld [vmem:[%s951 + $0x20] sm:$0xff]
        %v957 = vld [vmem:[%s951 + $0x28] sm:$0xff]
        %v958 = vld [vmem:[%s951 + $0x30] sm:$0xff]
        %v959 = vld [vmem:[%s951 + $0x38] sm:$0xff]
        %v960 = vld [vmem:[%s951 + $0x40] sm:$0xff]
        %v961 = vld [vmem:[%s951 + $0x48] sm:$0xff]
        %v962 = vld [vmem:[%s951 + $0x50] sm:$0xff]
        %v963 = vld [vmem:[%s951 + $0x58] sm:$0xff]
        %v992 = vunpack.c.l.b16 %v923
        %v993 = vunpack.c.l.b16 %v924
        %v994 = vunpack.c.l.b16 %v925
        %v995 = vunpack.c.l.b16 %v926
        %v996 = vunpack.c.l.b16 %v927
        %v997 = vunpack.c.l.b16 %v928
        %v998 = vunpack.c.l.b16 %v929
        %v999 = vunpack.c.l.b16 %v930
        %v1000 = vunpack.c.l.b16 %v931
        %v1001 = vunpack.c.l.b16 %v932
        %v1002 = vunpack.c.l.b16 %v933
        %v1003 = vunpack.c.l.b16 %v934
        %v1004 = vunpack.c.l.b16 %v935
        %v1005 = vunpack.c.l.b16 %v936
        %v1006 = vunpack.c.l.b16 %v937
        %v1007 = vunpack.c.l.b16 %v938
        %v1008 = vunpack.c.l.b16 %v939
        %v1009 = vunpack.c.l.b16 %v940
        %v1010 = vunpack.c.l.b16 %v941
        %v1011 = vunpack.c.l.b16 %v942
        %v1012 = vunpack.c.l.b16 %v943
        %v1013 = vunpack.c.l.b16 %v944
        %v1014 = vunpack.c.l.b16 %v945
        %v1015 = vunpack.c.l.b16 %v946
        %v1016 = vunpack.c.l.b16 %v947
        %v1017 = vunpack.c.l.b16 %v948
        %v1018 = vunpack.c.l.b16 %v949
        %v1019 = vunpack.c.l.b16 %v950
        %v1020 = vpack.c.b16 %v993, %v992
        %v1021 = vpack.c.b16 %v995, %v994
        %v1022 = vpack.c.b16 %v997, %v996
        %v1023 = vpack.c.b16 %v999, %v998
        %v1024 = vpack.c.b16 %v1001, %v1000
        %v1025 = vpack.c.b16 %v1003, %v1002
        %v1026 = vpack.c.b16 %v1005, %v1004
        %v1027 = vpack.c.b16 %v1007, %v1006
        %v1028 = vpack.c.b16 %v1009, %v1008
        %v1029 = vpack.c.b16 %v1011, %v1010
        %v1030 = vpack.c.b16 %v1013, %v1012
        %v1031 = vpack.c.b16 %v1015, %v1014
        %v1032 = vpack.c.b16 %v1017, %v1016
        %v1033 = vpack.c.b16 %v1019, %v1018
        %v1046 = vunpack.c.l.b16 %v952
        %v1047 = vunpack.c.h.b16 %v952
        %v1048 = vunpack.c.l.b16 %v953
        %v1049 = vunpack.c.h.b16 %v953
        %v1050 = vunpack.c.l.b16 %v954
        %v1051 = vunpack.c.h.b16 %v954
        %v1052 = vunpack.c.l.b16 %v955
        %v1053 = vunpack.c.h.b16 %v955
        %v1054 = vunpack.c.l.b16 %v956
        %v1055 = vunpack.c.h.b16 %v956
        %v1056 = vunpack.c.l.b16 %v957
        %v1057 = vunpack.c.h.b16 %v957
        %v1058 = vunpack.c.l.b16 %v958
        %v1059 = vunpack.c.h.b16 %v958
        %v1060 = vunpack.c.l.b16 %v959
        %v1061 = vunpack.c.h.b16 %v959
        %v1062 = vunpack.c.l.b16 %v960
        %v1063 = vunpack.c.h.b16 %v960
        %v1064 = vunpack.c.l.b16 %v961
        %v1065 = vunpack.c.h.b16 %v961
        %v1066 = vunpack.c.l.b16 %v962
        %v1067 = vunpack.c.h.b16 %v962
        %v1068 = vunpack.c.l.b16 %v963
        %v1069 = vunpack.c.h.b16 %v963
        %v1070 = vpack.c.b16 %v1048, %v1046
        %v1071 = vpack.c.b16 %v1049, %v1047
        %v1072 = vpack.c.b16 %v1052, %v1050
        %v1073 = vpack.c.b16 %v1053, %v1051
        %v1074 = vpack.c.b16 %v1056, %v1054
        %v1075 = vpack.c.b16 %v1057, %v1055
        %v1076 = vpack.c.b16 %v1060, %v1058
        %v1077 = vpack.c.b16 %v1061, %v1059
        %v1078 = vpack.c.b16 %v1064, %v1062
        %v1079 = vpack.c.b16 %v1065, %v1063
        %v1080 = vpack.c.b16 %v1068, %v1066
        %v1081 = vpack.c.b16 %v1069, %v1067
        %vm1094 = vcmask 785408
        %v1096 = vsel %vm1094, %v1020, 0
        %v1099 = vsel %vm1094, %v1021, 0
        %v1102 = vsel %vm1094, %v1022, 0
        %v1105 = vsel %vm1094, %v1023, 0
        %v1108 = vsel %vm1094, %v1024, 0
        %v1111 = vsel %vm1094, %v1025, 0
        %v1114 = vsel %vm1094, %v1026, 0
        %v1117 = vsel %vm1094, %v1027, 0
        %v1120 = vsel %vm1094, %v1028, 0
        %v1123 = vsel %vm1094, %v1029, 0
        %v1126 = vsel %vm1094, %v1030, 0
        %v1129 = vsel %vm1094, %v1031, 0
        %v1132 = vsel %vm1094, %v1032, 0
        %v1135 = vsel %vm1094, %v1033, 0
        %1137 = vmatprep.subr.bf16.mxu0 0
        %1138 = vmatpush1.bf16.msra.mxu0 0
        %1139 = vmatprep.subr.bf16.mxu0 0
        %1140 = vmatpush1.bf16.msra.mxu0 0
        %1141 = vmatprep.subr.bf16.mxu0 %v1081
        %1142 = vmatpush1.bf16.msra.mxu0 %v1080
        %1143 = vmatprep.subr.bf16.mxu0 %v1079
        %1144 = vmatpush1.bf16.msra.mxu0 %v1078
        %1145 = vmatprep.subr.bf16.mxu0 %v1077
        %1146 = vmatpush1.bf16.msra.mxu0 %v1076
        %1147 = vmatprep.subr.bf16.mxu0 %v1075
        %1148 = vmatpush1.bf16.msra.mxu0 %v1074
        %1149 = vmatprep.subr.bf16.mxu0 %v1073
        %1150 = vmatpush1.bf16.msra.mxu0 %v1072
        %1151 = vmatprep.subr.bf16.mxu0 %v1071
        %1152 = vmatpush1.bf16.msra.mxu0 %v1070
        %1153 = vmatprep.subr.bf16.mxu0 0
        %1154 = vmatpush2.bf16.msra.mxu0 0
        %1155 = vmatprep.subr.bf16.mxu0 0
        %1156 = vmatpush2.bf16.msra.mxu0 0
        %1157 = vmatprep.subr.bf16.mxu0 0
        %1158 = vmatpush2.bf16.msra.mxu0 0
        %1159 = vmatprep.subr.bf16.mxu0 0
        %1160 = vmatpush2.bf16.msra.mxu0 0
        %1161 = vmatprep.subr.bf16.mxu0 0
        %1162 = vmatpush2.bf16.msra.mxu0 0
        %1163 = vmatprep.subr.bf16.mxu0 0
        %1164 = vmatpush2.bf16.msra.mxu0 0
        %1165 = vmatprep.subr.bf16.mxu0 0
        %1166 = vmatpush2.bf16.msra.mxu0 0
        %1167 = vmatprep.subr.bf16.mxu0 0
        %1168 = vmatpush2.bf16.msra.mxu0 0
        %1169 = vmatprep.mubr.bf16.mxu0 0
        %1170 = vmatmul.mubr.bf16.gmra.mxu0 %v1096
        %v1171 = vpop.f32.mrf.mxu0
        %v1172 = vadd.f32 0.0, %v1171
        %v1173 = vpop.f32.mrf.mxu0
        %v1174 = vadd.f32 0.0, %v1173
        %v1175 = vpop.f32.mrf.mxu0
        %v1176 = vadd.f32 0.0, %v1175
        %v1177 = vpop.f32.mrf.mxu0
        %v1178 = vadd.f32 0.0, %v1177
        %1179 = vmatprep.mubr.bf16.mxu0 0
        %1180 = vmatmul.mubr.bf16.gmra.mxu0 %v1099
        %v1181 = vpop.f32.mrf.mxu0
        %v1182 = vadd.f32 0.0, %v1181
        %v1183 = vpop.f32.mrf.mxu0
        %v1184 = vadd.f32 0.0, %v1183
        %v1185 = vpop.f32.mrf.mxu0
        %v1186 = vadd.f32 0.0, %v1185
        %v1187 = vpop.f32.mrf.mxu0
        %v1188 = vadd.f32 0.0, %v1187
        %1189 = vmatprep.mubr.bf16.mxu0 0
        %1190 = vmatmul.mubr.bf16.gmra.mxu0 %v1102
        %v1191 = vpop.f32.mrf.mxu0
        %v1192 = vadd.f32 0.0, %v1191
        %v1193 = vpop.f32.mrf.mxu0
        %v1194 = vadd.f32 0.0, %v1193
        %v1195 = vpop.f32.mrf.mxu0
        %v1196 = vadd.f32 0.0, %v1195
        %v1197 = vpop.f32.mrf.mxu0
        %v1198 = vadd.f32 0.0, %v1197
        %1199 = vmatprep.mubr.bf16.mxu0 0
        %1200 = vmatmul.mubr.bf16.gmra.mxu0 %v1105
        %v1201 = vpop.f32.mrf.mxu0
        %v1202 = vadd.f32 0.0, %v1201
        %v1203 = vpop.f32.mrf.mxu0
        %v1204 = vadd.f32 0.0, %v1203
        %v1205 = vpop.f32.mrf.mxu0
        %v1206 = vadd.f32 0.0, %v1205
        %v1207 = vpop.f32.mrf.mxu0
        %v1208 = vadd.f32 0.0, %v1207
        %1209 = vmatprep.mubr.bf16.mxu0 0
        %1210 = vmatmul.mubr.bf16.gmra.mxu0 %v1108
        %v1211 = vpop.f32.mrf.mxu0
        %v1212 = vadd.f32 0.0, %v1211
        %v1213 = vpop.f32.mrf.mxu0
        %v1214 = vadd.f32 0.0, %v1213
        %v1215 = vpop.f32.mrf.mxu0
        %v1216 = vadd.f32 0.0, %v1215
        %v1217 = vpop.f32.mrf.mxu0
        %v1218 = vadd.f32 0.0, %v1217
        %1219 = vmatprep.mubr.bf16.mxu0 0
        %1220 = vmatmul.mubr.bf16.gmra.mxu0 %v1111
        %v1221 = vpop.f32.mrf.mxu0
        %v1222 = vadd.f32 0.0, %v1221
        %v1223 = vpop.f32.mrf.mxu0
        %v1224 = vadd.f32 0.0, %v1223
        %v1225 = vpop.f32.mrf.mxu0
        %v1226 = vadd.f32 0.0, %v1225
        %v1227 = vpop.f32.mrf.mxu0
        %v1228 = vadd.f32 0.0, %v1227
        %1229 = vmatprep.mubr.bf16.mxu0 0
        %1230 = vmatmul.mubr.bf16.gmra.mxu0 %v1114
        %v1231 = vpop.f32.mrf.mxu0
        %v1232 = vadd.f32 0.0, %v1231
        %v1233 = vpop.f32.mrf.mxu0
        %v1234 = vadd.f32 0.0, %v1233
        %v1235 = vpop.f32.mrf.mxu0
        %v1236 = vadd.f32 0.0, %v1235
        %v1237 = vpop.f32.mrf.mxu0
        %v1238 = vadd.f32 0.0, %v1237
        %1239 = vmatprep.mubr.bf16.mxu0 0
        %1240 = vmatmul.mubr.bf16.gmra.mxu0 %v1117
        %v1241 = vpop.f32.mrf.mxu0
        %v1242 = vadd.f32 0.0, %v1241
        %v1243 = vpop.f32.mrf.mxu0
        %v1244 = vadd.f32 0.0, %v1243
        %v1245 = vpop.f32.mrf.mxu0
        %v1246 = vadd.f32 0.0, %v1245
        %v1247 = vpop.f32.mrf.mxu0
        %v1248 = vadd.f32 0.0, %v1247
        %1249 = vmatprep.mubr.bf16.mxu0 0
        %1250 = vmatmul.mubr.bf16.gmra.mxu0 %v1120
        %v1251 = vpop.f32.mrf.mxu0
        %v1252 = vadd.f32 0.0, %v1251
        %v1253 = vpop.f32.mrf.mxu0
        %v1254 = vadd.f32 0.0, %v1253
        %v1255 = vpop.f32.mrf.mxu0
        %v1256 = vadd.f32 0.0, %v1255
        %v1257 = vpop.f32.mrf.mxu0
        %v1258 = vadd.f32 0.0, %v1257
        %1259 = vmatprep.mubr.bf16.mxu0 0
        %1260 = vmatmul.mubr.bf16.gmra.mxu0 %v1123
        %v1261 = vpop.f32.mrf.mxu0
        %v1262 = vadd.f32 0.0, %v1261
        %v1263 = vpop.f32.mrf.mxu0
        %v1264 = vadd.f32 0.0, %v1263
        %v1265 = vpop.f32.mrf.mxu0
        %v1266 = vadd.f32 0.0, %v1265
        %v1267 = vpop.f32.mrf.mxu0
        %v1268 = vadd.f32 0.0, %v1267
        %1269 = vmatprep.mubr.bf16.mxu0 0
        %1270 = vmatmul.mubr.bf16.gmra.mxu0 %v1126
        %v1271 = vpop.f32.mrf.mxu0
        %v1272 = vadd.f32 0.0, %v1271
        %v1273 = vpop.f32.mrf.mxu0
        %v1274 = vadd.f32 0.0, %v1273
        %v1275 = vpop.f32.mrf.mxu0
        %v1276 = vadd.f32 0.0, %v1275
        %v1277 = vpop.f32.mrf.mxu0
        %v1278 = vadd.f32 0.0, %v1277
        %1279 = vmatprep.mubr.bf16.mxu0 0
        %1280 = vmatmul.mubr.bf16.gmra.mxu0 %v1129
        %v1281 = vpop.f32.mrf.mxu0
        %v1282 = vadd.f32 0.0, %v1281
        %v1283 = vpop.f32.mrf.mxu0
        %v1284 = vadd.f32 0.0, %v1283
        %v1285 = vpop.f32.mrf.mxu0
        %v1286 = vadd.f32 0.0, %v1285
        %v1287 = vpop.f32.mrf.mxu0
        %v1288 = vadd.f32 0.0, %v1287
        %1289 = vmatprep.mubr.bf16.mxu0 0
        %1290 = vmatmul.mubr.bf16.gmra.mxu0 %v1132
        %v1291 = vpop.f32.mrf.mxu0
        %v1292 = vadd.f32 0.0, %v1291
        %v1293 = vpop.f32.mrf.mxu0
        %v1294 = vadd.f32 0.0, %v1293
        %v1295 = vpop.f32.mrf.mxu0
        %v1296 = vadd.f32 0.0, %v1295
        %v1297 = vpop.f32.mrf.mxu0
        %v1298 = vadd.f32 0.0, %v1297
        %1299 = vmatprep.mubr.bf16.mxu0 0
        %1300 = vmatmul.mubr.bf16.gmra.mxu0 %v1135
        %v1301 = vpop.f32.mrf.mxu0
        %v1302 = vadd.f32 0.0, %v1301
        %v1303 = vpop.f32.mrf.mxu0
        %v1304 = vadd.f32 0.0, %v1303
        %v1305 = vpop.f32.mrf.mxu0
        %v1306 = vadd.f32 0.0, %v1305
        %v1307 = vpop.f32.mrf.mxu0
        %v1308 = vadd.f32 0.0, %v1307
        %1309 = vdwg.mxu0
        %v1338 = vunpack.c.l.b16 %v882
        %v1339 = vunpack.c.l.b16 %v883
        %v1340 = vunpack.c.l.b16 %v884
        %v1341 = vunpack.c.l.b16 %v885
        %v1342 = vunpack.c.l.b16 %v886
        %v1343 = vunpack.c.l.b16 %v887
        %v1344 = vunpack.c.l.b16 %v888
        %v1345 = vunpack.c.l.b16 %v889
        %v1346 = vunpack.c.l.b16 %v890
        %v1347 = vunpack.c.l.b16 %v891
        %v1348 = vunpack.c.l.b16 %v892
        %v1349 = vunpack.c.l.b16 %v893
        %v1350 = vunpack.c.l.b16 %v894
        %v1351 = vunpack.c.l.b16 %v895
        %v1352 = vunpack.c.l.b16 %v896
        %v1353 = vunpack.c.l.b16 %v897
        %v1354 = vunpack.c.l.b16 %v898
        %v1355 = vunpack.c.l.b16 %v899
        %v1356 = vunpack.c.l.b16 %v900
        %v1357 = vunpack.c.l.b16 %v901
        %v1358 = vunpack.c.l.b16 %v902
        %v1359 = vunpack.c.l.b16 %v903
        %v1360 = vunpack.c.l.b16 %v904
        %v1361 = vunpack.c.l.b16 %v905
        %v1362 = vunpack.c.l.b16 %v906
        %v1363 = vunpack.c.l.b16 %v907
        %v1364 = vunpack.c.l.b16 %v908
        %v1365 = vunpack.c.l.b16 %v909
        %v1366 = vpack.c.b16 %v1339, %v1338
        %v1367 = vpack.c.b16 %v1341, %v1340
        %v1368 = vpack.c.b16 %v1343, %v1342
        %v1369 = vpack.c.b16 %v1345, %v1344
        %v1370 = vpack.c.b16 %v1347, %v1346
        %v1371 = vpack.c.b16 %v1349, %v1348
        %v1372 = vpack.c.b16 %v1351, %v1350
        %v1373 = vpack.c.b16 %v1353, %v1352
        %v1374 = vpack.c.b16 %v1355, %v1354
        %v1375 = vpack.c.b16 %v1357, %v1356
        %v1376 = vpack.c.b16 %v1359, %v1358
        %v1377 = vpack.c.b16 %v1361, %v1360
        %v1378 = vpack.c.b16 %v1363, %v1362
        %v1379 = vpack.c.b16 %v1365, %v1364
        %v1392 = vunpack.c.l.b16 %v910
        %v1393 = vunpack.c.h.b16 %v910
        %v1394 = vunpack.c.l.b16 %v911
        %v1395 = vunpack.c.h.b16 %v911
        %v1396 = vunpack.c.l.b16 %v912
        %v1397 = vunpack.c.h.b16 %v912
        %v1398 = vunpack.c.l.b16 %v913
        %v1399 = vunpack.c.h.b16 %v913
        %v1400 = vunpack.c.l.b16 %v914
        %v1401 = vunpack.c.h.b16 %v914
        %v1402 = vunpack.c.l.b16 %v915
        %v1403 = vunpack.c.h.b16 %v915
        %v1404 = vunpack.c.l.b16 %v916
        %v1405 = vunpack.c.h.b16 %v916
        %v1406 = vunpack.c.l.b16 %v917
        %v1407 = vunpack.c.h.b16 %v917
        %v1408 = vunpack.c.l.b16 %v918
        %v1409 = vunpack.c.h.b16 %v918
        %v1410 = vunpack.c.l.b16 %v919
        %v1411 = vunpack.c.h.b16 %v919
        %v1412 = vunpack.c.l.b16 %v920
        %v1413 = vunpack.c.h.b16 %v920
        %v1414 = vunpack.c.l.b16 %v921
        %v1415 = vunpack.c.h.b16 %v921
        %v1416 = vpack.c.b16 %v1394, %v1392
        %v1417 = vpack.c.b16 %v1395, %v1393
        %v1418 = vpack.c.b16 %v1398, %v1396
        %v1419 = vpack.c.b16 %v1399, %v1397
        %v1420 = vpack.c.b16 %v1402, %v1400
        %v1421 = vpack.c.b16 %v1403, %v1401
        %v1422 = vpack.c.b16 %v1406, %v1404
        %v1423 = vpack.c.b16 %v1407, %v1405
        %v1424 = vpack.c.b16 %v1410, %v1408
        %v1425 = vpack.c.b16 %v1411, %v1409
        %v1426 = vpack.c.b16 %v1414, %v1412
        %v1427 = vpack.c.b16 %v1415, %v1413
        %v1441 = vsel %vm1094, %v1366, 0
        %v1444 = vsel %vm1094, %v1367, 0
        %v1447 = vsel %vm1094, %v1368, 0
        %v1450 = vsel %vm1094, %v1369, 0
        %v1453 = vsel %vm1094, %v1370, 0
        %v1456 = vsel %vm1094, %v1371, 0
        %v1459 = vsel %vm1094, %v1372, 0
        %v1462 = vsel %vm1094, %v1373, 0
        %v1465 = vsel %vm1094, %v1374, 0
        %v1468 = vsel %vm1094, %v1375, 0
        %v1471 = vsel %vm1094, %v1376, 0
        %v1474 = vsel %vm1094, %v1377, 0
        %v1477 = vsel %vm1094, %v1378, 0
        %v1480 = vsel %vm1094, %v1379, 0
        %1482 = vmatprep.subr.bf16.mxu0 0
        %1483 = vmatpush1.bf16.msra.mxu0 0
        %1484 = vmatprep.subr.bf16.mxu0 0
        %1485 = vmatpush1.bf16.msra.mxu0 0
        %1486 = vmatprep.subr.bf16.mxu0 %v1427
        %1487 = vmatpush1.bf16.msra.mxu0 %v1426
        %1488 = vmatprep.subr.bf16.mxu0 %v1425
        %1489 = vmatpush1.bf16.msra.mxu0 %v1424
        %1490 = vmatprep.subr.bf16.mxu0 %v1423
        %1491 = vmatpush1.bf16.msra.mxu0 %v1422
        %1492 = vmatprep.subr.bf16.mxu0 %v1421
        %1493 = vmatpush1.bf16.msra.mxu0 %v1420
        %1494 = vmatprep.subr.bf16.mxu0 %v1419
        %1495 = vmatpush1.bf16.msra.mxu0 %v1418
        %1496 = vmatprep.subr.bf16.mxu0 %v1417
        %1497 = vmatpush1.bf16.msra.mxu0 %v1416
        %1498 = vmatprep.subr.bf16.mxu0 0
        %1499 = vmatpush2.bf16.msra.mxu0 0
        %1500 = vmatprep.subr.bf16.mxu0 0
        %1501 = vmatpush2.bf16.msra.mxu0 0
        %1502 = vmatprep.subr.bf16.mxu0 0
        %1503 = vmatpush2.bf16.msra.mxu0 0
        %1504 = vmatprep.subr.bf16.mxu0 0
        %1505 = vmatpush2.bf16.msra.mxu0 0
        %1506 = vmatprep.subr.bf16.mxu0 0
        %1507 = vmatpush2.bf16.msra.mxu0 0
        %1508 = vmatprep.subr.bf16.mxu0 0
        %1509 = vmatpush2.bf16.msra.mxu0 0
        %1510 = vmatprep.subr.bf16.mxu0 0
        %1511 = vmatpush2.bf16.msra.mxu0 0
        %1512 = vmatprep.subr.bf16.mxu0 0
        %1513 = vmatpush2.bf16.msra.mxu0 0
        %1514 = vmatprep.mubr.bf16.mxu0 0
        %1515 = vmatmul.mubr.bf16.gmra.mxu0 %v1441
        %v1516 = vpop.f32.mrf.mxu0
        %v1517 = vadd.f32 %v1172, %v1516
        %v1518 = vpop.f32.mrf.mxu0
        %v1519 = vadd.f32 %v1174, %v1518
        %v1520 = vpop.f32.mrf.mxu0
        %v1521 = vadd.f32 %v1176, %v1520
        %v1522 = vpop.f32.mrf.mxu0
        %v1523 = vadd.f32 %v1178, %v1522
        %1524 = vmatprep.mubr.bf16.mxu0 0
        %1525 = vmatmul.mubr.bf16.gmra.mxu0 %v1444
        %v1526 = vpop.f32.mrf.mxu0
        %v1527 = vadd.f32 %v1182, %v1526
        %v1528 = vpop.f32.mrf.mxu0
        %v1529 = vadd.f32 %v1184, %v1528
        %v1530 = vpop.f32.mrf.mxu0
        %v1531 = vadd.f32 %v1186, %v1530
        %v1532 = vpop.f32.mrf.mxu0
        %v1533 = vadd.f32 %v1188, %v1532
        %1534 = vmatprep.mubr.bf16.mxu0 0
        %1535 = vmatmul.mubr.bf16.gmra.mxu0 %v1447
        %v1536 = vpop.f32.mrf.mxu0
        %v1537 = vadd.f32 %v1192, %v1536
        %v1538 = vpop.f32.mrf.mxu0
        %v1539 = vadd.f32 %v1194, %v1538
        %v1540 = vpop.f32.mrf.mxu0
        %v1541 = vadd.f32 %v1196, %v1540
        %v1542 = vpop.f32.mrf.mxu0
        %v1543 = vadd.f32 %v1198, %v1542
        %1544 = vmatprep.mubr.bf16.mxu0 0
        %1545 = vmatmul.mubr.bf16.gmra.mxu0 %v1450
        %v1546 = vpop.f32.mrf.mxu0
        %v1547 = vadd.f32 %v1202, %v1546
        %v1548 = vpop.f32.mrf.mxu0
        %v1549 = vadd.f32 %v1204, %v1548
        %v1550 = vpop.f32.mrf.mxu0
        %v1551 = vadd.f32 %v1206, %v1550
        %v1552 = vpop.f32.mrf.mxu0
        %v1553 = vadd.f32 %v1208, %v1552
        %1554 = vmatprep.mubr.bf16.mxu0 0
        %1555 = vmatmul.mubr.bf16.gmra.mxu0 %v1453
        %v1556 = vpop.f32.mrf.mxu0
        %v1557 = vadd.f32 %v1212, %v1556
        %v1558 = vpop.f32.mrf.mxu0
        %v1559 = vadd.f32 %v1214, %v1558
        %v1560 = vpop.f32.mrf.mxu0
        %v1561 = vadd.f32 %v1216, %v1560
        %v1562 = vpop.f32.mrf.mxu0
        %v1563 = vadd.f32 %v1218, %v1562
        %1564 = vmatprep.mubr.bf16.mxu0 0
        %1565 = vmatmul.mubr.bf16.gmra.mxu0 %v1456
        %v1566 = vpop.f32.mrf.mxu0
        %v1567 = vadd.f32 %v1222, %v1566
        %v1568 = vpop.f32.mrf.mxu0
        %v1569 = vadd.f32 %v1224, %v1568
        %v1570 = vpop.f32.mrf.mxu0
        %v1571 = vadd.f32 %v1226, %v1570
        %v1572 = vpop.f32.mrf.mxu0
        %v1573 = vadd.f32 %v1228, %v1572
        %1574 = vmatprep.mubr.bf16.mxu0 0
        %1575 = vmatmul.mubr.bf16.gmra.mxu0 %v1459
        %v1576 = vpop.f32.mrf.mxu0
        %v1577 = vadd.f32 %v1232, %v1576
        %v1578 = vpop.f32.mrf.mxu0
        %v1579 = vadd.f32 %v1234, %v1578
        %v1580 = vpop.f32.mrf.mxu0
        %v1581 = vadd.f32 %v1236, %v1580
        %v1582 = vpop.f32.mrf.mxu0
        %v1583 = vadd.f32 %v1238, %v1582
        %1584 = vmatprep.mubr.bf16.mxu0 0
        %1585 = vmatmul.mubr.bf16.gmra.mxu0 %v1462
        %v1586 = vpop.f32.mrf.mxu0
        %v1587 = vadd.f32 %v1242, %v1586
        %v1588 = vpop.f32.mrf.mxu0
        %v1589 = vadd.f32 %v1244, %v1588
        %v1590 = vpop.f32.mrf.mxu0
        %v1591 = vadd.f32 %v1246, %v1590
        %v1592 = vpop.f32.mrf.mxu0
        %v1593 = vadd.f32 %v1248, %v1592
        %1594 = vmatprep.mubr.bf16.mxu0 0
        %1595 = vmatmul.mubr.bf16.gmra.mxu0 %v1465
        %v1596 = vpop.f32.mrf.mxu0
        %v1597 = vadd.f32 %v1252, %v1596
        %v1598 = vpop.f32.mrf.mxu0
        %v1599 = vadd.f32 %v1254, %v1598
        %v1600 = vpop.f32.mrf.mxu0
        %v1601 = vadd.f32 %v1256, %v1600
        %v1602 = vpop.f32.mrf.mxu0
        %v1603 = vadd.f32 %v1258, %v1602
        %1604 = vmatprep.mubr.bf16.mxu0 0
        %1605 = vmatmul.mubr.bf16.gmra.mxu0 %v1468
        %v1606 = vpop.f32.mrf.mxu0
        %v1607 = vadd.f32 %v1262, %v1606
        %v1608 = vpop.f32.mrf.mxu0
        %v1609 = vadd.f32 %v1264, %v1608
        %v1610 = vpop.f32.mrf.mxu0
        %v1611 = vadd.f32 %v1266, %v1610
        %v1612 = vpop.f32.mrf.mxu0
        %v1613 = vadd.f32 %v1268, %v1612
        %1614 = vmatprep.mubr.bf16.mxu0 0
        %1615 = vmatmul.mubr.bf16.gmra.mxu0 %v1471
        %v1616 = vpop.f32.mrf.mxu0
        %v1617 = vadd.f32 %v1272, %v1616
        %v1618 = vpop.f32.mrf.mxu0
        %v1619 = vadd.f32 %v1274, %v1618
        %v1620 = vpop.f32.mrf.mxu0
        %v1621 = vadd.f32 %v1276, %v1620
        %v1622 = vpop.f32.mrf.mxu0
        %v1623 = vadd.f32 %v1278, %v1622
        %1624 = vmatprep.mubr.bf16.mxu0 0
        %1625 = vmatmul.mubr.bf16.gmra.mxu0 %v1474
        %v1626 = vpop.f32.mrf.mxu0
        %v1627 = vadd.f32 %v1282, %v1626
        %v1628 = vpop.f32.mrf.mxu0
        %v1629 = vadd.f32 %v1284, %v1628
        %v1630 = vpop.f32.mrf.mxu0
        %v1631 = vadd.f32 %v1286, %v1630
        %v1632 = vpop.f32.mrf.mxu0
        %v1633 = vadd.f32 %v1288, %v1632
        %1634 = vmatprep.mubr.bf16.mxu0 0
        %1635 = vmatmul.mubr.bf16.gmra.mxu0 %v1477
        %v1636 = vpop.f32.mrf.mxu0
        %v1637 = vadd.f32 %v1292, %v1636
        %v1638 = vpop.f32.mrf.mxu0
        %v1639 = vadd.f32 %v1294, %v1638
        %v1640 = vpop.f32.mrf.mxu0
        %v1641 = vadd.f32 %v1296, %v1640
        %v1642 = vpop.f32.mrf.mxu0
        %v1643 = vadd.f32 %v1298, %v1642
        %1644 = vmatprep.mubr.bf16.mxu0 0
        %1645 = vmatmul.mubr.bf16.gmra.mxu0 %v1480
        %v1646 = vpop.f32.mrf.mxu0
        %v1647 = vadd.f32 %v1302, %v1646
        %v1648 = vpop.f32.mrf.mxu0
        %v1649 = vadd.f32 %v1304, %v1648
        %v1650 = vpop.f32.mrf.mxu0
        %v1651 = vadd.f32 %v1306, %v1650
        %v1652 = vpop.f32.mrf.mxu0
        %v1653 = vadd.f32 %v1308, %v1652
        %1654 = vdwg.mxu0
        %s1655 = scalar_lea.vmem %s845, 224 [#allocation2]
        %v1656 = vld [vmem:[%s1655] sm:$0xf]
        %v1657 = vld [vmem:[%s1655 + $0x4] sm:$0xf]
        %v1658 = vld [vmem:[%s1655 + $0x8] sm:$0xf]
        %v1659 = vld [vmem:[%s1655 + $0xc] sm:$0xf]
        %v1660 = vld [vmem:[%s1655 + $0x10] sm:$0xf]
        %v1661 = vld [vmem:[%s1655 + $0x14] sm:$0xf]
        %v1662 = vld [vmem:[%s1655 + $0x18] sm:$0xf]
        %v1663 = vld [vmem:[%s1655 + $0x1c] sm:$0xf]
        %v1664 = vld [vmem:[%s1655 + $0x20] sm:$0xf]
        %v1665 = vld [vmem:[%s1655 + $0x24] sm:$0xf]
        %v1666 = vld [vmem:[%s1655 + $0x28] sm:$0xf]
        %v1667 = vld [vmem:[%s1655 + $0x2c] sm:$0xf]
        %v1668 = vld [vmem:[%s1655 + $0x30] sm:$0xf]
        %v1669 = vld [vmem:[%s1655 + $0x34] sm:$0xf]
        %v1670 = vld [vmem:[%s1655 + $0x38] sm:$0xf]
        %v1671 = vld [vmem:[%s1655 + $0x3c] sm:$0xf]
        %v1672 = vld [vmem:[%s1655 + $0x40] sm:$0xf]
        %v1673 = vld [vmem:[%s1655 + $0x44] sm:$0xf]
        %v1674 = vld [vmem:[%s1655 + $0x48] sm:$0xf]
        %v1675 = vld [vmem:[%s1655 + $0x4c] sm:$0xf]
        %v1676 = vld [vmem:[%s1655 + $0x50] sm:$0xf]
        %v1677 = vld [vmem:[%s1655 + $0x54] sm:$0xf]
        %v1678 = vld [vmem:[%s1655 + $0x58] sm:$0xf]
        %v1679 = vld [vmem:[%s1655 + $0x5c] sm:$0xf]
        %v1680 = vld [vmem:[%s1655 + $0x60] sm:$0xf]
        %v1681 = vld [vmem:[%s1655 + $0x64] sm:$0xf]
        %v1682 = vld [vmem:[%s1655 + $0x68] sm:$0xf]
        %v1683 = vld [vmem:[%s1655 + $0x6c] sm:$0xf]
        %s1684 = scalar_lea.vmem %s1, 192
        %v1685 = vld [vmem:[%s1684] sm:$0xff]
        %v1686 = vld [vmem:[%s1684 + $0x8] sm:$0xff]
        %v1687 = vld [vmem:[%s1684 + $0x10] sm:$0xff]
        %v1688 = vld [vmem:[%s1684 + $0x18] sm:$0xff]
        %v1689 = vld [vmem:[%s1684 + $0x20] sm:$0xff]
        %v1690 = vld [vmem:[%s1684 + $0x28] sm:$0xff]
        %v1691 = vld [vmem:[%s1684 + $0x30] sm:$0xff]
        %v1692 = vld [vmem:[%s1684 + $0x38] sm:$0xff]
        %v1693 = vld [vmem:[%s1684 + $0x40] sm:$0xff]
        %v1694 = vld [vmem:[%s1684 + $0x48] sm:$0xff]
        %v1695 = vld [vmem:[%s1684 + $0x50] sm:$0xff]
        %v1696 = vld [vmem:[%s1684 + $0x58] sm:$0xff]
        %v1725 = vunpack.c.l.b16 %v1656
        %v1726 = vunpack.c.l.b16 %v1657
        %v1727 = vunpack.c.l.b16 %v1658
        %v1728 = vunpack.c.l.b16 %v1659
        %v1729 = vunpack.c.l.b16 %v1660
        %v1730 = vunpack.c.l.b16 %v1661
        %v1731 = vunpack.c.l.b16 %v1662
        %v1732 = vunpack.c.l.b16 %v1663
        %v1733 = vunpack.c.l.b16 %v1664
        %v1734 = vunpack.c.l.b16 %v1665
        %v1735 = vunpack.c.l.b16 %v1666
        %v1736 = vunpack.c.l.b16 %v1667
        %v1737 = vunpack.c.l.b16 %v1668
        %v1738 = vunpack.c.l.b16 %v1669
        %v1739 = vunpack.c.l.b16 %v1670
        %v1740 = vunpack.c.l.b16 %v1671
        %v1741 = vunpack.c.l.b16 %v1672
        %v1742 = vunpack.c.l.b16 %v1673
        %v1743 = vunpack.c.l.b16 %v1674
        %v1744 = vunpack.c.l.b16 %v1675
        %v1745 = vunpack.c.l.b16 %v1676
        %v1746 = vunpack.c.l.b16 %v1677
        %v1747 = vunpack.c.l.b16 %v1678
        %v1748 = vunpack.c.l.b16 %v1679
        %v1749 = vunpack.c.l.b16 %v1680
        %v1750 = vunpack.c.l.b16 %v1681
        %v1751 = vunpack.c.l.b16 %v1682
        %v1752 = vunpack.c.l.b16 %v1683
        %v1753 = vpack.c.b16 %v1726, %v1725
        %v1754 = vpack.c.b16 %v1728, %v1727
        %v1755 = vpack.c.b16 %v1730, %v1729
        %v1756 = vpack.c.b16 %v1732, %v1731
        %v1757 = vpack.c.b16 %v1734, %v1733
        %v1758 = vpack.c.b16 %v1736, %v1735
        %v1759 = vpack.c.b16 %v1738, %v1737
        %v1760 = vpack.c.b16 %v1740, %v1739
        %v1761 = vpack.c.b16 %v1742, %v1741
        %v1762 = vpack.c.b16 %v1744, %v1743
        %v1763 = vpack.c.b16 %v1746, %v1745
        %v1764 = vpack.c.b16 %v1748, %v1747
        %v1765 = vpack.c.b16 %v1750, %v1749
        %v1766 = vpack.c.b16 %v1752, %v1751
        %v1779 = vunpack.c.l.b16 %v1685
        %v1780 = vunpack.c.h.b16 %v1685
        %v1781 = vunpack.c.l.b16 %v1686
        %v1782 = vunpack.c.h.b16 %v1686
        %v1783 = vunpack.c.l.b16 %v1687
        %v1784 = vunpack.c.h.b16 %v1687
        %v1785 = vunpack.c.l.b16 %v1688
        %v1786 = vunpack.c.h.b16 %v1688
        %v1787 = vunpack.c.l.b16 %v1689
        %v1788 = vunpack.c.h.b16 %v1689
        %v1789 = vunpack.c.l.b16 %v1690
        %v1790 = vunpack.c.h.b16 %v1690
        %v1791 = vunpack.c.l.b16 %v1691
        %v1792 = vunpack.c.h.b16 %v1691
        %v1793 = vunpack.c.l.b16 %v1692
        %v1794 = vunpack.c.h.b16 %v1692
        %v1795 = vunpack.c.l.b16 %v1693
        %v1796 = vunpack.c.h.b16 %v1693
        %v1797 = vunpack.c.l.b16 %v1694
        %v1798 = vunpack.c.h.b16 %v1694
        %v1799 = vunpack.c.l.b16 %v1695
        %v1800 = vunpack.c.h.b16 %v1695
        %v1801 = vunpack.c.l.b16 %v1696
        %v1802 = vunpack.c.h.b16 %v1696
        %v1803 = vpack.c.b16 %v1781, %v1779
        %v1804 = vpack.c.b16 %v1782, %v1780
        %v1805 = vpack.c.b16 %v1785, %v1783
        %v1806 = vpack.c.b16 %v1786, %v1784
        %v1807 = vpack.c.b16 %v1789, %v1787
        %v1808 = vpack.c.b16 %v1790, %v1788
        %v1809 = vpack.c.b16 %v1793, %v1791
        %v1810 = vpack.c.b16 %v1794, %v1792
        %v1811 = vpack.c.b16 %v1797, %v1795
        %v1812 = vpack.c.b16 %v1798, %v1796
        %v1813 = vpack.c.b16 %v1801, %v1799
        %v1814 = vpack.c.b16 %v1802, %v1800
        %v1828 = vsel %vm1094, %v1753, 0
        %v1831 = vsel %vm1094, %v1754, 0
        %v1834 = vsel %vm1094, %v1755, 0
        %v1837 = vsel %vm1094, %v1756, 0
        %v1840 = vsel %vm1094, %v1757, 0
        %v1843 = vsel %vm1094, %v1758, 0
        %v1846 = vsel %vm1094, %v1759, 0
        %v1849 = vsel %vm1094, %v1760, 0
        %v1852 = vsel %vm1094, %v1761, 0
        %v1855 = vsel %vm1094, %v1762, 0
        %v1858 = vsel %vm1094, %v1763, 0
        %v1861 = vsel %vm1094, %v1764, 0
        %v1864 = vsel %vm1094, %v1765, 0
        %v1867 = vsel %vm1094, %v1766, 0
        %1869 = vmatprep.subr.bf16.mxu0 0
        %1870 = vmatpush1.bf16.msra.mxu0 0
        %1871 = vmatprep.subr.bf16.mxu0 0
        %1872 = vmatpush1.bf16.msra.mxu0 0
        %1873 = vmatprep.subr.bf16.mxu0 %v1814
        %1874 = vmatpush1.bf16.msra.mxu0 %v1813
        %1875 = vmatprep.subr.bf16.mxu0 %v1812
        %1876 = vmatpush1.bf16.msra.mxu0 %v1811
        %1877 = vmatprep.subr.bf16.mxu0 %v1810
        %1878 = vmatpush1.bf16.msra.mxu0 %v1809
        %1879 = vmatprep.subr.bf16.mxu0 %v1808
        %1880 = vmatpush1.bf16.msra.mxu0 %v1807
        %1881 = vmatprep.subr.bf16.mxu0 %v1806
        %1882 = vmatpush1.bf16.msra.mxu0 %v1805
        %1883 = vmatprep.subr.bf16.mxu0 %v1804
        %1884 = vmatpush1.bf16.msra.mxu0 %v1803
        %1885 = vmatprep.subr.bf16.mxu0 0
        %1886 = vmatpush2.bf16.msra.mxu0 0
        %1887 = vmatprep.subr.bf16.mxu0 0
        %1888 = vmatpush2.bf16.msra.mxu0 0
        %1889 = vmatprep.subr.bf16.mxu0 0
        %1890 = vmatpush2.bf16.msra.mxu0 0
        %1891 = vmatprep.subr.bf16.mxu0 0
        %1892 = vmatpush2.bf16.msra.mxu0 0
        %1893 = vmatprep.subr.bf16.mxu0 0
        %1894 = vmatpush2.bf16.msra.mxu0 0
        %1895 = vmatprep.subr.bf16.mxu0 0
        %1896 = vmatpush2.bf16.msra.mxu0 0
        %1897 = vmatprep.subr.bf16.mxu0 0
        %1898 = vmatpush2.bf16.msra.mxu0 0
        %1899 = vmatprep.subr.bf16.mxu0 0
        %1900 = vmatpush2.bf16.msra.mxu0 0
        %1901 = vmatprep.mubr.bf16.mxu0 0
        %1902 = vmatmul.mubr.bf16.gmra.mxu0 %v1828
        %v1903 = vpop.f32.mrf.mxu0
        %v1904 = vadd.f32 0.0, %v1903
        %v1905 = vpop.f32.mrf.mxu0
        %v1906 = vadd.f32 0.0, %v1905
        %v1907 = vpop.f32.mrf.mxu0
        %v1908 = vadd.f32 0.0, %v1907
        %v1909 = vpop.f32.mrf.mxu0
        %v1910 = vadd.f32 0.0, %v1909
        %1911 = vmatprep.mubr.bf16.mxu0 0
        %1912 = vmatmul.mubr.bf16.gmra.mxu0 %v1831
        %v1913 = vpop.f32.mrf.mxu0
        %v1914 = vadd.f32 0.0, %v1913
        %v1915 = vpop.f32.mrf.mxu0
        %v1916 = vadd.f32 0.0, %v1915
        %v1917 = vpop.f32.mrf.mxu0
        %v1918 = vadd.f32 0.0, %v1917
        %v1919 = vpop.f32.mrf.mxu0
        %v1920 = vadd.f32 0.0, %v1919
        %1921 = vmatprep.mubr.bf16.mxu0 0
        %1922 = vmatmul.mubr.bf16.gmra.mxu0 %v1834
        %v1923 = vpop.f32.mrf.mxu0
        %v1924 = vadd.f32 0.0, %v1923
        %v1925 = vpop.f32.mrf.mxu0
        %v1926 = vadd.f32 0.0, %v1925
        %v1927 = vpop.f32.mrf.mxu0
        %v1928 = vadd.f32 0.0, %v1927
        %v1929 = vpop.f32.mrf.mxu0
        %v1930 = vadd.f32 0.0, %v1929
        %1931 = vmatprep.mubr.bf16.mxu0 0
        %1932 = vmatmul.mubr.bf16.gmra.mxu0 %v1837
        %v1933 = vpop.f32.mrf.mxu0
        %v1934 = vadd.f32 0.0, %v1933
        %v1935 = vpop.f32.mrf.mxu0
        %v1936 = vadd.f32 0.0, %v1935
        %v1937 = vpop.f32.mrf.mxu0
        %v1938 = vadd.f32 0.0, %v1937
        %v1939 = vpop.f32.mrf.mxu0
        %v1940 = vadd.f32 0.0, %v1939
        %1941 = vmatprep.mubr.bf16.mxu0 0
        %1942 = vmatmul.mubr.bf16.gmra.mxu0 %v1840
        %v1943 = vpop.f32.mrf.mxu0
        %v1944 = vadd.f32 0.0, %v1943
        %v1945 = vpop.f32.mrf.mxu0
        %v1946 = vadd.f32 0.0, %v1945
        %v1947 = vpop.f32.mrf.mxu0
        %v1948 = vadd.f32 0.0, %v1947
        %v1949 = vpop.f32.mrf.mxu0
        %v1950 = vadd.f32 0.0, %v1949
        %1951 = vmatprep.mubr.bf16.mxu0 0
        %1952 = vmatmul.mubr.bf16.gmra.mxu0 %v1843
        %v1953 = vpop.f32.mrf.mxu0
        %v1954 = vadd.f32 0.0, %v1953
        %v1955 = vpop.f32.mrf.mxu0
        %v1956 = vadd.f32 0.0, %v1955
        %v1957 = vpop.f32.mrf.mxu0
        %v1958 = vadd.f32 0.0, %v1957
        %v1959 = vpop.f32.mrf.mxu0
        %v1960 = vadd.f32 0.0, %v1959
        %1961 = vmatprep.mubr.bf16.mxu0 0
        %1962 = vmatmul.mubr.bf16.gmra.mxu0 %v1846
        %v1963 = vpop.f32.mrf.mxu0
        %v1964 = vadd.f32 0.0, %v1963
        %v1965 = vpop.f32.mrf.mxu0
        %v1966 = vadd.f32 0.0, %v1965
        %v1967 = vpop.f32.mrf.mxu0
        %v1968 = vadd.f32 0.0, %v1967
        %v1969 = vpop.f32.mrf.mxu0
        %v1970 = vadd.f32 0.0, %v1969
        %1971 = vmatprep.mubr.bf16.mxu0 0
        %1972 = vmatmul.mubr.bf16.gmra.mxu0 %v1849
        %v1973 = vpop.f32.mrf.mxu0
        %v1974 = vadd.f32 0.0, %v1973
        %v1975 = vpop.f32.mrf.mxu0
        %v1976 = vadd.f32 0.0, %v1975
        %v1977 = vpop.f32.mrf.mxu0
        %v1978 = vadd.f32 0.0, %v1977
        %v1979 = vpop.f32.mrf.mxu0
        %v1980 = vadd.f32 0.0, %v1979
        %1981 = vmatprep.mubr.bf16.mxu0 0
        %1982 = vmatmul.mubr.bf16.gmra.mxu0 %v1852
        %v1983 = vpop.f32.mrf.mxu0
        %v1984 = vadd.f32 0.0, %v1983
        %v1985 = vpop.f32.mrf.mxu0
        %v1986 = vadd.f32 0.0, %v1985
        %v1987 = vpop.f32.mrf.mxu0
        %v1988 = vadd.f32 0.0, %v1987
        %v1989 = vpop.f32.mrf.mxu0
        %v1990 = vadd.f32 0.0, %v1989
        %1991 = vmatprep.mubr.bf16.mxu0 0
        %1992 = vmatmul.mubr.bf16.gmra.mxu0 %v1855
        %v1993 = vpop.f32.mrf.mxu0
        %v1994 = vadd.f32 0.0, %v1993
        %v1995 = vpop.f32.mrf.mxu0
        %v1996 = vadd.f32 0.0, %v1995
        %v1997 = vpop.f32.mrf.mxu0
        %v1998 = vadd.f32 0.0, %v1997
        %v1999 = vpop.f32.mrf.mxu0
        %v2000 = vadd.f32 0.0, %v1999
        %2001 = vmatprep.mubr.bf16.mxu0 0
        %2002 = vmatmul.mubr.bf16.gmra.mxu0 %v1858
        %v2003 = vpop.f32.mrf.mxu0
        %v2004 = vadd.f32 0.0, %v2003
        %v2005 = vpop.f32.mrf.mxu0
        %v2006 = vadd.f32 0.0, %v2005
        %v2007 = vpop.f32.mrf.mxu0
        %v2008 = vadd.f32 0.0, %v2007
        %v2009 = vpop.f32.mrf.mxu0
        %v2010 = vadd.f32 0.0, %v2009
        %2011 = vmatprep.mubr.bf16.mxu0 0
        %2012 = vmatmul.mubr.bf16.gmra.mxu0 %v1861
        %v2013 = vpop.f32.mrf.mxu0
        %v2014 = vadd.f32 0.0, %v2013
        %v2015 = vpop.f32.mrf.mxu0
        %v2016 = vadd.f32 0.0, %v2015
        %v2017 = vpop.f32.mrf.mxu0
        %v2018 = vadd.f32 0.0, %v2017
        %v2019 = vpop.f32.mrf.mxu0
        %v2020 = vadd.f32 0.0, %v2019
        %2021 = vmatprep.mubr.bf16.mxu0 0
        %2022 = vmatmul.mubr.bf16.gmra.mxu0 %v1864
        %v2023 = vpop.f32.mrf.mxu0
        %v2024 = vadd.f32 0.0, %v2023
        %v2025 = vpop.f32.mrf.mxu0
        %v2026 = vadd.f32 0.0, %v2025
        %v2027 = vpop.f32.mrf.mxu0
        %v2028 = vadd.f32 0.0, %v2027
        %v2029 = vpop.f32.mrf.mxu0
        %v2030 = vadd.f32 0.0, %v2029
        %2031 = vmatprep.mubr.bf16.mxu0 0
        %2032 = vmatmul.mubr.bf16.gmra.mxu0 %v1867
        %v2033 = vpop.f32.mrf.mxu0
        %v2034 = vadd.f32 0.0, %v2033
        %v2035 = vpop.f32.mrf.mxu0
        %v2036 = vadd.f32 0.0, %v2035
        %v2037 = vpop.f32.mrf.mxu0
        %v2038 = vadd.f32 0.0, %v2037
        %v2039 = vpop.f32.mrf.mxu0
        %v2040 = vadd.f32 0.0, %v2039
        %2041 = vdwg.mxu0
        %v2042 = vadd.f32 %v1517, %v1904
        %v2043 = vadd.f32 %v1519, %v1906
        %v2044 = vadd.f32 %v1521, %v1908
        %v2045 = vadd.f32 %v1523, %v1910
        %v2046 = vadd.f32 %v1527, %v1914
        %v2047 = vadd.f32 %v1529, %v1916
        %v2048 = vadd.f32 %v1531, %v1918
        %v2049 = vadd.f32 %v1533, %v1920
        %v2050 = vadd.f32 %v1537, %v1924
        %v2051 = vadd.f32 %v1539, %v1926
        %v2052 = vadd.f32 %v1541, %v1928
        %v2053 = vadd.f32 %v1543, %v1930
        %v2054 = vadd.f32 %v1547, %v1934
        %v2055 = vadd.f32 %v1549, %v1936
        %v2056 = vadd.f32 %v1551, %v1938
        %v2057 = vadd.f32 %v1553, %v1940
        %v2058 = vadd.f32 %v1557, %v1944
        %v2059 = vadd.f32 %v1559, %v1946
        %v2060 = vadd.f32 %v1561, %v1948
        %v2061 = vadd.f32 %v1563, %v1950
        %v2062 = vadd.f32 %v1567, %v1954
        %v2063 = vadd.f32 %v1569, %v1956
        %v2064 = vadd.f32 %v1571, %v1958
        %v2065 = vadd.f32 %v1573, %v1960
        %v2066 = vadd.f32 %v1577, %v1964
        %v2067 = vadd.f32 %v1579, %v1966
        %v2068 = vadd.f32 %v1581, %v1968
        %v2069 = vadd.f32 %v1583, %v1970
        %v2070 = vadd.f32 %v1587, %v1974
        %v2071 = vadd.f32 %v1589, %v1976
        %v2072 = vadd.f32 %v1591, %v1978
        %v2073 = vadd.f32 %v1593, %v1980
        %v2074 = vadd.f32 %v1597, %v1984
        %v2075 = vadd.f32 %v1599, %v1986
        %v2076 = vadd.f32 %v1601, %v1988
        %v2077 = vadd.f32 %v1603, %v1990
        %v2078 = vadd.f32 %v1607, %v1994
        %v2079 = vadd.f32 %v1609, %v1996
        %v2080 = vadd.f32 %v1611, %v1998
        %v2081 = vadd.f32 %v1613, %v2000
        %v2082 = vadd.f32 %v1617, %v2004
        %v2083 = vadd.f32 %v1619, %v2006
        %v2084 = vadd.f32 %v1621, %v2008
        %v2085 = vadd.f32 %v1623, %v2010
        %v2086 = vadd.f32 %v1627, %v2014
        %v2087 = vadd.f32 %v1629, %v2016
        %v2088 = vadd.f32 %v1631, %v2018
        %v2089 = vadd.f32 %v1633, %v2020
        %v2090 = vadd.f32 %v1637, %v2024
        %v2091 = vadd.f32 %v1639, %v2026
        %v2092 = vadd.f32 %v1641, %v2028
        %v2093 = vadd.f32 %v1643, %v2030
        %v2094 = vadd.f32 %v1647, %v2034
        %v2095 = vadd.f32 %v1649, %v2036
        %v2096 = vadd.f32 %v1651, %v2038
        %v2097 = vadd.f32 %v1653, %v2040
        %s2098 = scalar_lea.vmem %s845, 336 [#allocation2]
        %v2099 = vld [vmem:[%s2098] sm:$0xf]
        %v2100 = vld [vmem:[%s2098 + $0x4] sm:$0xf]
        %v2101 = vld [vmem:[%s2098 + $0x8] sm:$0xf]
        %v2102 = vld [vmem:[%s2098 + $0xc] sm:$0xf]
        %v2103 = vld [vmem:[%s2098 + $0x10] sm:$0xf]
        %v2104 = vld [vmem:[%s2098 + $0x14] sm:$0xf]
        %v2105 = vld [vmem:[%s2098 + $0x18] sm:$0xf]
        %v2106 = vld [vmem:[%s2098 + $0x1c] sm:$0xf]
        %v2107 = vld [vmem:[%s2098 + $0x20] sm:$0xf]
        %v2108 = vld [vmem:[%s2098 + $0x24] sm:$0xf]
        %v2109 = vld [vmem:[%s2098 + $0x28] sm:$0xf]
        %v2110 = vld [vmem:[%s2098 + $0x2c] sm:$0xf]
        %v2111 = vld [vmem:[%s2098 + $0x30] sm:$0xf]
        %v2112 = vld [vmem:[%s2098 + $0x34] sm:$0xf]
        %v2113 = vld [vmem:[%s2098 + $0x38] sm:$0xf]
        %v2114 = vld [vmem:[%s2098 + $0x3c] sm:$0xf]
        %v2115 = vld [vmem:[%s2098 + $0x40] sm:$0xf]
        %v2116 = vld [vmem:[%s2098 + $0x44] sm:$0xf]
        %v2117 = vld [vmem:[%s2098 + $0x48] sm:$0xf]
        %v2118 = vld [vmem:[%s2098 + $0x4c] sm:$0xf]
        %v2119 = vld [vmem:[%s2098 + $0x50] sm:$0xf]
        %v2120 = vld [vmem:[%s2098 + $0x54] sm:$0xf]
        %v2121 = vld [vmem:[%s2098 + $0x58] sm:$0xf]
        %v2122 = vld [vmem:[%s2098 + $0x5c] sm:$0xf]
        %v2123 = vld [vmem:[%s2098 + $0x60] sm:$0xf]
        %v2124 = vld [vmem:[%s2098 + $0x64] sm:$0xf]
        %v2125 = vld [vmem:[%s2098 + $0x68] sm:$0xf]
        %v2126 = vld [vmem:[%s2098 + $0x6c] sm:$0xf]
        %s2127 = scalar_lea.vmem %s1, 288
        %v2128 = vld [vmem:[%s2127] sm:$0xff]
        %v2129 = vld [vmem:[%s2127 + $0x8] sm:$0xff]
        %v2130 = vld [vmem:[%s2127 + $0x10] sm:$0xff]
        %v2131 = vld [vmem:[%s2127 + $0x18] sm:$0xff]
        %v2132 = vld [vmem:[%s2127 + $0x20] sm:$0xff]
        %v2133 = vld [vmem:[%s2127 + $0x28] sm:$0xff]
        %v2134 = vld [vmem:[%s2127 + $0x30] sm:$0xff]
        %v2135 = vld [vmem:[%s2127 + $0x38] sm:$0xff]
        %v2136 = vld [vmem:[%s2127 + $0x40] sm:$0xff]
        %v2137 = vld [vmem:[%s2127 + $0x48] sm:$0xff]
        %v2138 = vld [vmem:[%s2127 + $0x50] sm:$0xff]
        %v2139 = vld [vmem:[%s2127 + $0x58] sm:$0xff]
        %v2168 = vunpack.c.l.b16 %v2099
        %v2169 = vunpack.c.l.b16 %v2100
        %v2170 = vunpack.c.l.b16 %v2101
        %v2171 = vunpack.c.l.b16 %v2102
        %v2172 = vunpack.c.l.b16 %v2103
        %v2173 = vunpack.c.l.b16 %v2104
        %v2174 = vunpack.c.l.b16 %v2105
        %v2175 = vunpack.c.l.b16 %v2106
        %v2176 = vunpack.c.l.b16 %v2107
        %v2177 = vunpack.c.l.b16 %v2108
        %v2178 = vunpack.c.l.b16 %v2109
        %v2179 = vunpack.c.l.b16 %v2110
        %v2180 = vunpack.c.l.b16 %v2111
        %v2181 = vunpack.c.l.b16 %v2112
        %v2182 = vunpack.c.l.b16 %v2113
        %v2183 = vunpack.c.l.b16 %v2114
        %v2184 = vunpack.c.l.b16 %v2115
        %v2185 = vunpack.c.l.b16 %v2116
        %v2186 = vunpack.c.l.b16 %v2117
        %v2187 = vunpack.c.l.b16 %v2118
        %v2188 = vunpack.c.l.b16 %v2119
        %v2189 = vunpack.c.l.b16 %v2120
        %v2190 = vunpack.c.l.b16 %v2121
        %v2191 = vunpack.c.l.b16 %v2122
        %v2192 = vunpack.c.l.b16 %v2123
        %v2193 = vunpack.c.l.b16 %v2124
        %v2194 = vunpack.c.l.b16 %v2125
        %v2195 = vunpack.c.l.b16 %v2126
        %v2196 = vpack.c.b16 %v2169, %v2168
        %v2197 = vpack.c.b16 %v2171, %v2170
        %v2198 = vpack.c.b16 %v2173, %v2172
        %v2199 = vpack.c.b16 %v2175, %v2174
        %v2200 = vpack.c.b16 %v2177, %v2176
        %v2201 = vpack.c.b16 %v2179, %v2178
        %v2202 = vpack.c.b16 %v2181, %v2180
        %v2203 = vpack.c.b16 %v2183, %v2182
        %v2204 = vpack.c.b16 %v2185, %v2184
        %v2205 = vpack.c.b16 %v2187, %v2186
        %v2206 = vpack.c.b16 %v2189, %v2188
        %v2207 = vpack.c.b16 %v2191, %v2190
        %v2208 = vpack.c.b16 %v2193, %v2192
        %v2209 = vpack.c.b16 %v2195, %v2194
        %v2222 = vunpack.c.l.b16 %v2128
        %v2223 = vunpack.c.h.b16 %v2128
        %v2224 = vunpack.c.l.b16 %v2129
        %v2225 = vunpack.c.h.b16 %v2129
        %v2226 = vunpack.c.l.b16 %v2130
        %v2227 = vunpack.c.h.b16 %v2130
        %v2228 = vunpack.c.l.b16 %v2131
        %v2229 = vunpack.c.h.b16 %v2131
        %v2230 = vunpack.c.l.b16 %v2132
        %v2231 = vunpack.c.h.b16 %v2132
        %v2232 = vunpack.c.l.b16 %v2133
        %v2233 = vunpack.c.h.b16 %v2133
        %v2234 = vunpack.c.l.b16 %v2134
        %v2235 = vunpack.c.h.b16 %v2134
        %v2236 = vunpack.c.l.b16 %v2135
        %v2237 = vunpack.c.h.b16 %v2135
        %v2238 = vunpack.c.l.b16 %v2136
        %v2239 = vunpack.c.h.b16 %v2136
        %v2240 = vunpack.c.l.b16 %v2137
        %v2241 = vunpack.c.h.b16 %v2137
        %v2242 = vunpack.c.l.b16 %v2138
        %v2243 = vunpack.c.h.b16 %v2138
        %v2244 = vunpack.c.l.b16 %v2139
        %v2245 = vunpack.c.h.b16 %v2139
        %v2246 = vpack.c.b16 %v2224, %v2222
        %v2247 = vpack.c.b16 %v2225, %v2223
        %v2248 = vpack.c.b16 %v2228, %v2226
        %v2249 = vpack.c.b16 %v2229, %v2227
        %v2250 = vpack.c.b16 %v2232, %v2230
        %v2251 = vpack.c.b16 %v2233, %v2231
        %v2252 = vpack.c.b16 %v2236, %v2234
        %v2253 = vpack.c.b16 %v2237, %v2235
        %v2254 = vpack.c.b16 %v2240, %v2238
        %v2255 = vpack.c.b16 %v2241, %v2239
        %v2256 = vpack.c.b16 %v2244, %v2242
        %v2257 = vpack.c.b16 %v2245, %v2243
        %v2271 = vsel %vm1094, %v2196, 0
        %v2274 = vsel %vm1094, %v2197, 0
        %v2277 = vsel %vm1094, %v2198, 0
        %v2280 = vsel %vm1094, %v2199, 0
        %v2283 = vsel %vm1094, %v2200, 0
        %v2286 = vsel %vm1094, %v2201, 0
        %v2289 = vsel %vm1094, %v2202, 0
        %v2292 = vsel %vm1094, %v2203, 0
        %v2295 = vsel %vm1094, %v2204, 0
        %v2298 = vsel %vm1094, %v2205, 0
        %v2301 = vsel %vm1094, %v2206, 0
        %v2304 = vsel %vm1094, %v2207, 0
        %v2307 = vsel %vm1094, %v2208, 0
        %v2310 = vsel %vm1094, %v2209, 0
        %2312 = vmatprep.subr.bf16.mxu0 0
        %2313 = vmatpush1.bf16.msra.mxu0 0
        %2314 = vmatprep.subr.bf16.mxu0 0
        %2315 = vmatpush1.bf16.msra.mxu0 0
        %2316 = vmatprep.subr.bf16.mxu0 %v2257
        %2317 = vmatpush1.bf16.msra.mxu0 %v2256
        %2318 = vmatprep.subr.bf16.mxu0 %v2255
        %2319 = vmatpush1.bf16.msra.mxu0 %v2254
        %2320 = vmatprep.subr.bf16.mxu0 %v2253
        %2321 = vmatpush1.bf16.msra.mxu0 %v2252
        %2322 = vmatprep.subr.bf16.mxu0 %v2251
        %2323 = vmatpush1.bf16.msra.mxu0 %v2250
        %2324 = vmatprep.subr.bf16.mxu0 %v2249
        %2325 = vmatpush1.bf16.msra.mxu0 %v2248
        %2326 = vmatprep.subr.bf16.mxu0 %v2247
        %2327 = vmatpush1.bf16.msra.mxu0 %v2246
        %2328 = vmatprep.subr.bf16.mxu0 0
        %2329 = vmatpush2.bf16.msra.mxu0 0
        %2330 = vmatprep.subr.bf16.mxu0 0
        %2331 = vmatpush2.bf16.msra.mxu0 0
        %2332 = vmatprep.subr.bf16.mxu0 0
        %2333 = vmatpush2.bf16.msra.mxu0 0
        %2334 = vmatprep.subr.bf16.mxu0 0
        %2335 = vmatpush2.bf16.msra.mxu0 0
        %2336 = vmatprep.subr.bf16.mxu0 0
        %2337 = vmatpush2.bf16.msra.mxu0 0
        %2338 = vmatprep.subr.bf16.mxu0 0
        %2339 = vmatpush2.bf16.msra.mxu0 0
        %2340 = vmatprep.subr.bf16.mxu0 0
        %2341 = vmatpush2.bf16.msra.mxu0 0
        %2342 = vmatprep.subr.bf16.mxu0 0
        %2343 = vmatpush2.bf16.msra.mxu0 0
        %2344 = vmatprep.mubr.bf16.mxu0 0
        %2345 = vmatmul.mubr.bf16.gmra.mxu0 %v2271
        %v2346 = vpop.f32.mrf.mxu0
        %v2347 = vadd.f32 0.0, %v2346
        %v2348 = vpop.f32.mrf.mxu0
        %v2349 = vadd.f32 0.0, %v2348
        %v2350 = vpop.f32.mrf.mxu0
        %v2351 = vadd.f32 0.0, %v2350
        %v2352 = vpop.f32.mrf.mxu0
        %v2353 = vadd.f32 0.0, %v2352
        %2354 = vmatprep.mubr.bf16.mxu0 0
        %2355 = vmatmul.mubr.bf16.gmra.mxu0 %v2274
        %v2356 = vpop.f32.mrf.mxu0
        %v2357 = vadd.f32 0.0, %v2356
        %v2358 = vpop.f32.mrf.mxu0
        %v2359 = vadd.f32 0.0, %v2358
        %v2360 = vpop.f32.mrf.mxu0
        %v2361 = vadd.f32 0.0, %v2360
        %v2362 = vpop.f32.mrf.mxu0
        %v2363 = vadd.f32 0.0, %v2362
        %2364 = vmatprep.mubr.bf16.mxu0 0
        %2365 = vmatmul.mubr.bf16.gmra.mxu0 %v2277
        %v2366 = vpop.f32.mrf.mxu0
        %v2367 = vadd.f32 0.0, %v2366
        %v2368 = vpop.f32.mrf.mxu0
        %v2369 = vadd.f32 0.0, %v2368
        %v2370 = vpop.f32.mrf.mxu0
        %v2371 = vadd.f32 0.0, %v2370
        %v2372 = vpop.f32.mrf.mxu0
        %v2373 = vadd.f32 0.0, %v2372
        %2374 = vmatprep.mubr.bf16.mxu0 0
        %2375 = vmatmul.mubr.bf16.gmra.mxu0 %v2280
        %v2376 = vpop.f32.mrf.mxu0
        %v2377 = vadd.f32 0.0, %v2376
        %v2378 = vpop.f32.mrf.mxu0
        %v2379 = vadd.f32 0.0, %v2378
        %v2380 = vpop.f32.mrf.mxu0
        %v2381 = vadd.f32 0.0, %v2380
        %v2382 = vpop.f32.mrf.mxu0
        %v2383 = vadd.f32 0.0, %v2382
        %2384 = vmatprep.mubr.bf16.mxu0 0
        %2385 = vmatmul.mubr.bf16.gmra.mxu0 %v2283
        %v2386 = vpop.f32.mrf.mxu0
        %v2387 = vadd.f32 0.0, %v2386
        %v2388 = vpop.f32.mrf.mxu0
        %v2389 = vadd.f32 0.0, %v2388
        %v2390 = vpop.f32.mrf.mxu0
        %v2391 = vadd.f32 0.0, %v2390
        %v2392 = vpop.f32.mrf.mxu0
        %v2393 = vadd.f32 0.0, %v2392
        %2394 = vmatprep.mubr.bf16.mxu0 0
        %2395 = vmatmul.mubr.bf16.gmra.mxu0 %v2286
        %v2396 = vpop.f32.mrf.mxu0
        %v2397 = vadd.f32 0.0, %v2396
        %v2398 = vpop.f32.mrf.mxu0
        %v2399 = vadd.f32 0.0, %v2398
        %v2400 = vpop.f32.mrf.mxu0
        %v2401 = vadd.f32 0.0, %v2400
        %v2402 = vpop.f32.mrf.mxu0
        %v2403 = vadd.f32 0.0, %v2402
        %2404 = vmatprep.mubr.bf16.mxu0 0
        %2405 = vmatmul.mubr.bf16.gmra.mxu0 %v2289
        %v2406 = vpop.f32.mrf.mxu0
        %v2407 = vadd.f32 0.0, %v2406
        %v2408 = vpop.f32.mrf.mxu0
        %v2409 = vadd.f32 0.0, %v2408
        %v2410 = vpop.f32.mrf.mxu0
        %v2411 = vadd.f32 0.0, %v2410
        %v2412 = vpop.f32.mrf.mxu0
        %v2413 = vadd.f32 0.0, %v2412
        %2414 = vmatprep.mubr.bf16.mxu0 0
        %2415 = vmatmul.mubr.bf16.gmra.mxu0 %v2292
        %v2416 = vpop.f32.mrf.mxu0
        %v2417 = vadd.f32 0.0, %v2416
        %v2418 = vpop.f32.mrf.mxu0
        %v2419 = vadd.f32 0.0, %v2418
        %v2420 = vpop.f32.mrf.mxu0
        %v2421 = vadd.f32 0.0, %v2420
        %v2422 = vpop.f32.mrf.mxu0
        %v2423 = vadd.f32 0.0, %v2422
        %2424 = vmatprep.mubr.bf16.mxu0 0
        %2425 = vmatmul.mubr.bf16.gmra.mxu0 %v2295
        %v2426 = vpop.f32.mrf.mxu0
        %v2427 = vadd.f32 0.0, %v2426
        %v2428 = vpop.f32.mrf.mxu0
        %v2429 = vadd.f32 0.0, %v2428
        %v2430 = vpop.f32.mrf.mxu0
        %v2431 = vadd.f32 0.0, %v2430
        %v2432 = vpop.f32.mrf.mxu0
        %v2433 = vadd.f32 0.0, %v2432
        %2434 = vmatprep.mubr.bf16.mxu0 0
        %2435 = vmatmul.mubr.bf16.gmra.mxu0 %v2298
        %v2436 = vpop.f32.mrf.mxu0
        %v2437 = vadd.f32 0.0, %v2436
        %v2438 = vpop.f32.mrf.mxu0
        %v2439 = vadd.f32 0.0, %v2438
        %v2440 = vpop.f32.mrf.mxu0
        %v2441 = vadd.f32 0.0, %v2440
        %v2442 = vpop.f32.mrf.mxu0
        %v2443 = vadd.f32 0.0, %v2442
        %2444 = vmatprep.mubr.bf16.mxu0 0
        %2445 = vmatmul.mubr.bf16.gmra.mxu0 %v2301
        %v2446 = vpop.f32.mrf.mxu0
        %v2447 = vadd.f32 0.0, %v2446
        %v2448 = vpop.f32.mrf.mxu0
        %v2449 = vadd.f32 0.0, %v2448
        %v2450 = vpop.f32.mrf.mxu0
        %v2451 = vadd.f32 0.0, %v2450
        %v2452 = vpop.f32.mrf.mxu0
        %v2453 = vadd.f32 0.0, %v2452
        %2454 = vmatprep.mubr.bf16.mxu0 0
        %2455 = vmatmul.mubr.bf16.gmra.mxu0 %v2304
        %v2456 = vpop.f32.mrf.mxu0
        %v2457 = vadd.f32 0.0, %v2456
        %v2458 = vpop.f32.mrf.mxu0
        %v2459 = vadd.f32 0.0, %v2458
        %v2460 = vpop.f32.mrf.mxu0
        %v2461 = vadd.f32 0.0, %v2460
        %v2462 = vpop.f32.mrf.mxu0
        %v2463 = vadd.f32 0.0, %v2462
        %2464 = vmatprep.mubr.bf16.mxu0 0
        %2465 = vmatmul.mubr.bf16.gmra.mxu0 %v2307
        %v2466 = vpop.f32.mrf.mxu0
        %v2467 = vadd.f32 0.0, %v2466
        %v2468 = vpop.f32.mrf.mxu0
        %v2469 = vadd.f32 0.0, %v2468
        %v2470 = vpop.f32.mrf.mxu0
        %v2471 = vadd.f32 0.0, %v2470
        %v2472 = vpop.f32.mrf.mxu0
        %v2473 = vadd.f32 0.0, %v2472
        %2474 = vmatprep.mubr.bf16.mxu0 0
        %2475 = vmatmul.mubr.bf16.gmra.mxu0 %v2310
        %v2476 = vpop.f32.mrf.mxu0
        %v2477 = vadd.f32 0.0, %v2476
        %v2478 = vpop.f32.mrf.mxu0
        %v2479 = vadd.f32 0.0, %v2478
        %v2480 = vpop.f32.mrf.mxu0
        %v2481 = vadd.f32 0.0, %v2480
        %v2482 = vpop.f32.mrf.mxu0
        %v2483 = vadd.f32 0.0, %v2482
        %2484 = vdwg.mxu0
        %v2485 = vadd.f32 %v2042, %v2347
        %v2486 = vadd.f32 %v2043, %v2349
        %v2487 = vadd.f32 %v2044, %v2351
        %v2488 = vadd.f32 %v2045, %v2353
        %v2489 = vadd.f32 %v2046, %v2357
        %v2490 = vadd.f32 %v2047, %v2359
        %v2491 = vadd.f32 %v2048, %v2361
        %v2492 = vadd.f32 %v2049, %v2363
        %v2493 = vadd.f32 %v2050, %v2367
        %v2494 = vadd.f32 %v2051, %v2369
        %v2495 = vadd.f32 %v2052, %v2371
        %v2496 = vadd.f32 %v2053, %v2373
        %v2497 = vadd.f32 %v2054, %v2377
        %v2498 = vadd.f32 %v2055, %v2379
        %v2499 = vadd.f32 %v2056, %v2381
        %v2500 = vadd.f32 %v2057, %v2383
        %v2501 = vadd.f32 %v2058, %v2387
        %v2502 = vadd.f32 %v2059, %v2389
        %v2503 = vadd.f32 %v2060, %v2391
        %v2504 = vadd.f32 %v2061, %v2393
        %v2505 = vadd.f32 %v2062, %v2397
        %v2506 = vadd.f32 %v2063, %v2399
        %v2507 = vadd.f32 %v2064, %v2401
        %v2508 = vadd.f32 %v2065, %v2403
        %v2509 = vadd.f32 %v2066, %v2407
        %v2510 = vadd.f32 %v2067, %v2409
        %v2511 = vadd.f32 %v2068, %v2411
        %v2512 = vadd.f32 %v2069, %v2413
        %v2513 = vadd.f32 %v2070, %v2417
        %v2514 = vadd.f32 %v2071, %v2419
        %v2515 = vadd.f32 %v2072, %v2421
        %v2516 = vadd.f32 %v2073, %v2423
        %v2517 = vadd.f32 %v2074, %v2427
        %v2518 = vadd.f32 %v2075, %v2429
        %v2519 = vadd.f32 %v2076, %v2431
        %v2520 = vadd.f32 %v2077, %v2433
        %v2521 = vadd.f32 %v2078, %v2437
        %v2522 = vadd.f32 %v2079, %v2439
        %v2523 = vadd.f32 %v2080, %v2441
        %v2524 = vadd.f32 %v2081, %v2443
        %v2525 = vadd.f32 %v2082, %v2447
        %v2526 = vadd.f32 %v2083, %v2449
        %v2527 = vadd.f32 %v2084, %v2451
        %v2528 = vadd.f32 %v2085, %v2453
        %v2529 = vadd.f32 %v2086, %v2457
        %v2530 = vadd.f32 %v2087, %v2459
        %v2531 = vadd.f32 %v2088, %v2461
        %v2532 = vadd.f32 %v2089, %v2463
        %v2533 = vadd.f32 %v2090, %v2467
        %v2534 = vadd.f32 %v2091, %v2469
        %v2535 = vadd.f32 %v2092, %v2471
        %v2536 = vadd.f32 %v2093, %v2473
        %v2537 = vadd.f32 %v2094, %v2477
        %v2538 = vadd.f32 %v2095, %v2479
        %v2539 = vadd.f32 %v2096, %v2481
        %v2540 = vadd.f32 %v2097, %v2483
        %s2541 = scalar_lea.vmem %s845, 448 [#allocation2]
        %v2542 = vld [vmem:[%s2541] sm:$0xf]
        %v2543 = vld [vmem:[%s2541 + $0x4] sm:$0xf]
        %v2544 = vld [vmem:[%s2541 + $0x8] sm:$0xf]
        %v2545 = vld [vmem:[%s2541 + $0xc] sm:$0xf]
        %v2546 = vld [vmem:[%s2541 + $0x10] sm:$0xf]
        %v2547 = vld [vmem:[%s2541 + $0x14] sm:$0xf]
        %v2548 = vld [vmem:[%s2541 + $0x18] sm:$0xf]
        %v2549 = vld [vmem:[%s2541 + $0x1c] sm:$0xf]
        %v2550 = vld [vmem:[%s2541 + $0x20] sm:$0xf]
        %v2551 = vld [vmem:[%s2541 + $0x24] sm:$0xf]
        %v2552 = vld [vmem:[%s2541 + $0x28] sm:$0xf]
        %v2553 = vld [vmem:[%s2541 + $0x2c] sm:$0xf]
        %v2554 = vld [vmem:[%s2541 + $0x30] sm:$0xf]
        %v2555 = vld [vmem:[%s2541 + $0x34] sm:$0xf]
        %v2556 = vld [vmem:[%s2541 + $0x38] sm:$0xf]
        %v2557 = vld [vmem:[%s2541 + $0x3c] sm:$0xf]
        %v2558 = vld [vmem:[%s2541 + $0x40] sm:$0xf]
        %v2559 = vld [vmem:[%s2541 + $0x44] sm:$0xf]
        %v2560 = vld [vmem:[%s2541 + $0x48] sm:$0xf]
        %v2561 = vld [vmem:[%s2541 + $0x4c] sm:$0xf]
        %v2562 = vld [vmem:[%s2541 + $0x50] sm:$0xf]
        %v2563 = vld [vmem:[%s2541 + $0x54] sm:$0xf]
        %v2564 = vld [vmem:[%s2541 + $0x58] sm:$0xf]
        %v2565 = vld [vmem:[%s2541 + $0x5c] sm:$0xf]
        %v2566 = vld [vmem:[%s2541 + $0x60] sm:$0xf]
        %v2567 = vld [vmem:[%s2541 + $0x64] sm:$0xf]
        %v2568 = vld [vmem:[%s2541 + $0x68] sm:$0xf]
        %v2569 = vld [vmem:[%s2541 + $0x6c] sm:$0xf]
        %s2570 = scalar_lea.vmem %s1, 384
        %v2571 = vld [vmem:[%s2570] sm:$0xff]
        %v2572 = vld [vmem:[%s2570 + $0x8] sm:$0xff]
        %v2573 = vld [vmem:[%s2570 + $0x10] sm:$0xff]
        %v2574 = vld [vmem:[%s2570 + $0x18] sm:$0xff]
        %v2575 = vld [vmem:[%s2570 + $0x20] sm:$0xff]
        %v2576 = vld [vmem:[%s2570 + $0x28] sm:$0xff]
        %v2577 = vld [vmem:[%s2570 + $0x30] sm:$0xff]
        %v2578 = vld [vmem:[%s2570 + $0x38] sm:$0xff]
        %v2579 = vld [vmem:[%s2570 + $0x40] sm:$0xff]
        %v2580 = vld [vmem:[%s2570 + $0x48] sm:$0xff]
        %v2581 = vld [vmem:[%s2570 + $0x50] sm:$0xff]
        %v2582 = vld [vmem:[%s2570 + $0x58] sm:$0xff]
        %v2611 = vunpack.c.l.b16 %v2542
        %v2612 = vunpack.c.l.b16 %v2543
        %v2613 = vunpack.c.l.b16 %v2544
        %v2614 = vunpack.c.l.b16 %v2545
        %v2615 = vunpack.c.l.b16 %v2546
        %v2616 = vunpack.c.l.b16 %v2547
        %v2617 = vunpack.c.l.b16 %v2548
        %v2618 = vunpack.c.l.b16 %v2549
        %v2619 = vunpack.c.l.b16 %v2550
        %v2620 = vunpack.c.l.b16 %v2551
        %v2621 = vunpack.c.l.b16 %v2552
        %v2622 = vunpack.c.l.b16 %v2553
        %v2623 = vunpack.c.l.b16 %v2554
        %v2624 = vunpack.c.l.b16 %v2555
        %v2625 = vunpack.c.l.b16 %v2556
        %v2626 = vunpack.c.l.b16 %v2557
        %v2627 = vunpack.c.l.b16 %v2558
        %v2628 = vunpack.c.l.b16 %v2559
        %v2629 = vunpack.c.l.b16 %v2560
        %v2630 = vunpack.c.l.b16 %v2561
        %v2631 = vunpack.c.l.b16 %v2562
        %v2632 = vunpack.c.l.b16 %v2563
        %v2633 = vunpack.c.l.b16 %v2564
        %v2634 = vunpack.c.l.b16 %v2565
        %v2635 = vunpack.c.l.b16 %v2566
        %v2636 = vunpack.c.l.b16 %v2567
        %v2637 = vunpack.c.l.b16 %v2568
        %v2638 = vunpack.c.l.b16 %v2569
        %v2639 = vpack.c.b16 %v2612, %v2611
        %v2640 = vpack.c.b16 %v2614, %v2613
        %v2641 = vpack.c.b16 %v2616, %v2615
        %v2642 = vpack.c.b16 %v2618, %v2617
        %v2643 = vpack.c.b16 %v2620, %v2619
        %v2644 = vpack.c.b16 %v2622, %v2621
        %v2645 = vpack.c.b16 %v2624, %v2623
        %v2646 = vpack.c.b16 %v2626, %v2625
        %v2647 = vpack.c.b16 %v2628, %v2627
        %v2648 = vpack.c.b16 %v2630, %v2629
        %v2649 = vpack.c.b16 %v2632, %v2631
        %v2650 = vpack.c.b16 %v2634, %v2633
        %v2651 = vpack.c.b16 %v2636, %v2635
        %v2652 = vpack.c.b16 %v2638, %v2637
        %v2665 = vunpack.c.l.b16 %v2571
        %v2666 = vunpack.c.h.b16 %v2571
        %v2667 = vunpack.c.l.b16 %v2572
        %v2668 = vunpack.c.h.b16 %v2572
        %v2669 = vunpack.c.l.b16 %v2573
        %v2670 = vunpack.c.h.b16 %v2573
        %v2671 = vunpack.c.l.b16 %v2574
        %v2672 = vunpack.c.h.b16 %v2574
        %v2673 = vunpack.c.l.b16 %v2575
        %v2674 = vunpack.c.h.b16 %v2575
        %v2675 = vunpack.c.l.b16 %v2576
        %v2676 = vunpack.c.h.b16 %v2576
        %v2677 = vunpack.c.l.b16 %v2577
        %v2678 = vunpack.c.h.b16 %v2577
        %v2679 = vunpack.c.l.b16 %v2578
        %v2680 = vunpack.c.h.b16 %v2578
        %v2681 = vunpack.c.l.b16 %v2579
        %v2682 = vunpack.c.h.b16 %v2579
        %v2683 = vunpack.c.l.b16 %v2580
        %v2684 = vunpack.c.h.b16 %v2580
        %v2685 = vunpack.c.l.b16 %v2581
        %v2686 = vunpack.c.h.b16 %v2581
        %v2687 = vunpack.c.l.b16 %v2582
        %v2688 = vunpack.c.h.b16 %v2582
        %v2689 = vpack.c.b16 %v2667, %v2665
        %v2690 = vpack.c.b16 %v2668, %v2666
        %v2691 = vpack.c.b16 %v2671, %v2669
        %v2692 = vpack.c.b16 %v2672, %v2670
        %v2693 = vpack.c.b16 %v2675, %v2673
        %v2694 = vpack.c.b16 %v2676, %v2674
        %v2695 = vpack.c.b16 %v2679, %v2677
        %v2696 = vpack.c.b16 %v2680, %v2678
        %v2697 = vpack.c.b16 %v2683, %v2681
        %v2698 = vpack.c.b16 %v2684, %v2682
        %v2699 = vpack.c.b16 %v2687, %v2685
        %v2700 = vpack.c.b16 %v2688, %v2686
        %v2714 = vsel %vm1094, %v2639, 0
        %v2717 = vsel %vm1094, %v2640, 0
        %v2720 = vsel %vm1094, %v2641, 0
        %v2723 = vsel %vm1094, %v2642, 0
        %v2726 = vsel %vm1094, %v2643, 0
        %v2729 = vsel %vm1094, %v2644, 0
        %v2732 = vsel %vm1094, %v2645, 0
        %v2735 = vsel %vm1094, %v2646, 0
        %v2738 = vsel %vm1094, %v2647, 0
        %v2741 = vsel %vm1094, %v2648, 0
        %v2744 = vsel %vm1094, %v2649, 0
        %v2747 = vsel %vm1094, %v2650, 0
        %v2750 = vsel %vm1094, %v2651, 0
        %v2753 = vsel %vm1094, %v2652, 0
        %2755 = vmatprep.subr.bf16.mxu0 0
        %2756 = vmatpush1.bf16.msra.mxu0 0
        %2757 = vmatprep.subr.bf16.mxu0 0
        %2758 = vmatpush1.bf16.msra.mxu0 0
        %2759 = vmatprep.subr.bf16.mxu0 %v2700
        %2760 = vmatpush1.bf16.msra.mxu0 %v2699
        %2761 = vmatprep.subr.bf16.mxu0 %v2698
        %2762 = vmatpush1.bf16.msra.mxu0 %v2697
        %2763 = vmatprep.subr.bf16.mxu0 %v2696
        %2764 = vmatpush1.bf16.msra.mxu0 %v2695
        %2765 = vmatprep.subr.bf16.mxu0 %v2694
        %2766 = vmatpush1.bf16.msra.mxu0 %v2693
        %2767 = vmatprep.subr.bf16.mxu0 %v2692
        %2768 = vmatpush1.bf16.msra.mxu0 %v2691
        %2769 = vmatprep.subr.bf16.mxu0 %v2690
        %2770 = vmatpush1.bf16.msra.mxu0 %v2689
        %2771 = vmatprep.subr.bf16.mxu0 0
        %2772 = vmatpush2.bf16.msra.mxu0 0
        %2773 = vmatprep.subr.bf16.mxu0 0
        %2774 = vmatpush2.bf16.msra.mxu0 0
        %2775 = vmatprep.subr.bf16.mxu0 0
        %2776 = vmatpush2.bf16.msra.mxu0 0
        %2777 = vmatprep.subr.bf16.mxu0 0
        %2778 = vmatpush2.bf16.msra.mxu0 0
        %2779 = vmatprep.subr.bf16.mxu0 0
        %2780 = vmatpush2.bf16.msra.mxu0 0
        %2781 = vmatprep.subr.bf16.mxu0 0
        %2782 = vmatpush2.bf16.msra.mxu0 0
        %2783 = vmatprep.subr.bf16.mxu0 0
        %2784 = vmatpush2.bf16.msra.mxu0 0
        %2785 = vmatprep.subr.bf16.mxu0 0
        %2786 = vmatpush2.bf16.msra.mxu0 0
        %2787 = vmatprep.mubr.bf16.mxu0 0
        %2788 = vmatmul.mubr.bf16.gmra.mxu0 %v2714
        %v2789 = vpop.f32.mrf.mxu0
        %v2790 = vadd.f32 0.0, %v2789
        %v2791 = vpop.f32.mrf.mxu0
        %v2792 = vadd.f32 0.0, %v2791
        %v2793 = vpop.f32.mrf.mxu0
        %v2794 = vadd.f32 0.0, %v2793
        %v2795 = vpop.f32.mrf.mxu0
        %v2796 = vadd.f32 0.0, %v2795
        %2797 = vmatprep.mubr.bf16.mxu0 0
        %2798 = vmatmul.mubr.bf16.gmra.mxu0 %v2717
        %v2799 = vpop.f32.mrf.mxu0
        %v2800 = vadd.f32 0.0, %v2799
        %v2801 = vpop.f32.mrf.mxu0
        %v2802 = vadd.f32 0.0, %v2801
        %v2803 = vpop.f32.mrf.mxu0
        %v2804 = vadd.f32 0.0, %v2803
        %v2805 = vpop.f32.mrf.mxu0
        %v2806 = vadd.f32 0.0, %v2805
        %2807 = vmatprep.mubr.bf16.mxu0 0
        %2808 = vmatmul.mubr.bf16.gmra.mxu0 %v2720
        %v2809 = vpop.f32.mrf.mxu0
        %v2810 = vadd.f32 0.0, %v2809
        %v2811 = vpop.f32.mrf.mxu0
        %v2812 = vadd.f32 0.0, %v2811
        %v2813 = vpop.f32.mrf.mxu0
        %v2814 = vadd.f32 0.0, %v2813
        %v2815 = vpop.f32.mrf.mxu0
        %v2816 = vadd.f32 0.0, %v2815
        %2817 = vmatprep.mubr.bf16.mxu0 0
        %2818 = vmatmul.mubr.bf16.gmra.mxu0 %v2723
        %v2819 = vpop.f32.mrf.mxu0
        %v2820 = vadd.f32 0.0, %v2819
        %v2821 = vpop.f32.mrf.mxu0
        %v2822 = vadd.f32 0.0, %v2821
        %v2823 = vpop.f32.mrf.mxu0
        %v2824 = vadd.f32 0.0, %v2823
        %v2825 = vpop.f32.mrf.mxu0
        %v2826 = vadd.f32 0.0, %v2825
        %2827 = vmatprep.mubr.bf16.mxu0 0
        %2828 = vmatmul.mubr.bf16.gmra.mxu0 %v2726
        %v2829 = vpop.f32.mrf.mxu0
        %v2830 = vadd.f32 0.0, %v2829
        %v2831 = vpop.f32.mrf.mxu0
        %v2832 = vadd.f32 0.0, %v2831
        %v2833 = vpop.f32.mrf.mxu0
        %v2834 = vadd.f32 0.0, %v2833
        %v2835 = vpop.f32.mrf.mxu0
        %v2836 = vadd.f32 0.0, %v2835
        %2837 = vmatprep.mubr.bf16.mxu0 0
        %2838 = vmatmul.mubr.bf16.gmra.mxu0 %v2729
        %v2839 = vpop.f32.mrf.mxu0
        %v2840 = vadd.f32 0.0, %v2839
        %v2841 = vpop.f32.mrf.mxu0
        %v2842 = vadd.f32 0.0, %v2841
        %v2843 = vpop.f32.mrf.mxu0
        %v2844 = vadd.f32 0.0, %v2843
        %v2845 = vpop.f32.mrf.mxu0
        %v2846 = vadd.f32 0.0, %v2845
        %2847 = vmatprep.mubr.bf16.mxu0 0
        %2848 = vmatmul.mubr.bf16.gmra.mxu0 %v2732
        %v2849 = vpop.f32.mrf.mxu0
        %v2850 = vadd.f32 0.0, %v2849
        %v2851 = vpop.f32.mrf.mxu0
        %v2852 = vadd.f32 0.0, %v2851
        %v2853 = vpop.f32.mrf.mxu0
        %v2854 = vadd.f32 0.0, %v2853
        %v2855 = vpop.f32.mrf.mxu0
        %v2856 = vadd.f32 0.0, %v2855
        %2857 = vmatprep.mubr.bf16.mxu0 0
        %2858 = vmatmul.mubr.bf16.gmra.mxu0 %v2735
        %v2859 = vpop.f32.mrf.mxu0
        %v2860 = vadd.f32 0.0, %v2859
        %v2861 = vpop.f32.mrf.mxu0
        %v2862 = vadd.f32 0.0, %v2861
        %v2863 = vpop.f32.mrf.mxu0
        %v2864 = vadd.f32 0.0, %v2863
        %v2865 = vpop.f32.mrf.mxu0
        %v2866 = vadd.f32 0.0, %v2865
        %2867 = vmatprep.mubr.bf16.mxu0 0
        %2868 = vmatmul.mubr.bf16.gmra.mxu0 %v2738
        %v2869 = vpop.f32.mrf.mxu0
        %v2870 = vadd.f32 0.0, %v2869
        %v2871 = vpop.f32.mrf.mxu0
        %v2872 = vadd.f32 0.0, %v2871
        %v2873 = vpop.f32.mrf.mxu0
        %v2874 = vadd.f32 0.0, %v2873
        %v2875 = vpop.f32.mrf.mxu0
        %v2876 = vadd.f32 0.0, %v2875
        %2877 = vmatprep.mubr.bf16.mxu0 0
        %2878 = vmatmul.mubr.bf16.gmra.mxu0 %v2741
        %v2879 = vpop.f32.mrf.mxu0
        %v2880 = vadd.f32 0.0, %v2879
        %v2881 = vpop.f32.mrf.mxu0
        %v2882 = vadd.f32 0.0, %v2881
        %v2883 = vpop.f32.mrf.mxu0
        %v2884 = vadd.f32 0.0, %v2883
        %v2885 = vpop.f32.mrf.mxu0
        %v2886 = vadd.f32 0.0, %v2885
        %2887 = vmatprep.mubr.bf16.mxu0 0
        %2888 = vmatmul.mubr.bf16.gmra.mxu0 %v2744
        %v2889 = vpop.f32.mrf.mxu0
        %v2890 = vadd.f32 0.0, %v2889
        %v2891 = vpop.f32.mrf.mxu0
        %v2892 = vadd.f32 0.0, %v2891
        %v2893 = vpop.f32.mrf.mxu0
        %v2894 = vadd.f32 0.0, %v2893
        %v2895 = vpop.f32.mrf.mxu0
        %v2896 = vadd.f32 0.0, %v2895
        %2897 = vmatprep.mubr.bf16.mxu0 0
        %2898 = vmatmul.mubr.bf16.gmra.mxu0 %v2747
        %v2899 = vpop.f32.mrf.mxu0
        %v2900 = vadd.f32 0.0, %v2899
        %v2901 = vpop.f32.mrf.mxu0
        %v2902 = vadd.f32 0.0, %v2901
        %v2903 = vpop.f32.mrf.mxu0
        %v2904 = vadd.f32 0.0, %v2903
        %v2905 = vpop.f32.mrf.mxu0
        %v2906 = vadd.f32 0.0, %v2905
        %2907 = vmatprep.mubr.bf16.mxu0 0
        %2908 = vmatmul.mubr.bf16.gmra.mxu0 %v2750
        %v2909 = vpop.f32.mrf.mxu0
        %v2910 = vadd.f32 0.0, %v2909
        %v2911 = vpop.f32.mrf.mxu0
        %v2912 = vadd.f32 0.0, %v2911
        %v2913 = vpop.f32.mrf.mxu0
        %v2914 = vadd.f32 0.0, %v2913
        %v2915 = vpop.f32.mrf.mxu0
        %v2916 = vadd.f32 0.0, %v2915
        %2917 = vmatprep.mubr.bf16.mxu0 0
        %2918 = vmatmul.mubr.bf16.gmra.mxu0 %v2753
        %v2919 = vpop.f32.mrf.mxu0
        %v2920 = vadd.f32 0.0, %v2919
        %v2921 = vpop.f32.mrf.mxu0
        %v2922 = vadd.f32 0.0, %v2921
        %v2923 = vpop.f32.mrf.mxu0
        %v2924 = vadd.f32 0.0, %v2923
        %v2925 = vpop.f32.mrf.mxu0
        %v2926 = vadd.f32 0.0, %v2925
        %2927 = vdwg.mxu0
        %v2928 = vadd.f32 %v2485, %v2790
        %v2929 = vadd.f32 %v2486, %v2792
        %v2930 = vadd.f32 %v2487, %v2794
        %v2931 = vadd.f32 %v2488, %v2796
        %v2932 = vadd.f32 %v2489, %v2800
        %v2933 = vadd.f32 %v2490, %v2802
        %v2934 = vadd.f32 %v2491, %v2804
        %v2935 = vadd.f32 %v2492, %v2806
        %v2936 = vadd.f32 %v2493, %v2810
        %v2937 = vadd.f32 %v2494, %v2812
        %v2938 = vadd.f32 %v2495, %v2814
        %v2939 = vadd.f32 %v2496, %v2816
        %v2940 = vadd.f32 %v2497, %v2820
        %v2941 = vadd.f32 %v2498, %v2822
        %v2942 = vadd.f32 %v2499, %v2824
        %v2943 = vadd.f32 %v2500, %v2826
        %v2944 = vadd.f32 %v2501, %v2830
        %v2945 = vadd.f32 %v2502, %v2832
        %v2946 = vadd.f32 %v2503, %v2834
        %v2947 = vadd.f32 %v2504, %v2836
        %v2948 = vadd.f32 %v2505, %v2840
        %v2949 = vadd.f32 %v2506, %v2842
        %v2950 = vadd.f32 %v2507, %v2844
        %v2951 = vadd.f32 %v2508, %v2846
        %v2952 = vadd.f32 %v2509, %v2850
        %v2953 = vadd.f32 %v2510, %v2852
        %v2954 = vadd.f32 %v2511, %v2854
        %v2955 = vadd.f32 %v2512, %v2856
        %v2956 = vadd.f32 %v2513, %v2860
        %v2957 = vadd.f32 %v2514, %v2862
        %v2958 = vadd.f32 %v2515, %v2864
        %v2959 = vadd.f32 %v2516, %v2866
        %v2960 = vadd.f32 %v2517, %v2870
        %v2961 = vadd.f32 %v2518, %v2872
        %v2962 = vadd.f32 %v2519, %v2874
        %v2963 = vadd.f32 %v2520, %v2876
        %v2964 = vadd.f32 %v2521, %v2880
        %v2965 = vadd.f32 %v2522, %v2882
        %v2966 = vadd.f32 %v2523, %v2884
        %v2967 = vadd.f32 %v2524, %v2886
        %v2968 = vadd.f32 %v2525, %v2890
        %v2969 = vadd.f32 %v2526, %v2892
        %v2970 = vadd.f32 %v2527, %v2894
        %v2971 = vadd.f32 %v2528, %v2896
        %v2972 = vadd.f32 %v2529, %v2900
        %v2973 = vadd.f32 %v2530, %v2902
        %v2974 = vadd.f32 %v2531, %v2904
        %v2975 = vadd.f32 %v2532, %v2906
        %v2976 = vadd.f32 %v2533, %v2910
        %v2977 = vadd.f32 %v2534, %v2912
        %v2978 = vadd.f32 %v2535, %v2914
        %v2979 = vadd.f32 %v2536, %v2916
        %v2980 = vadd.f32 %v2537, %v2920
        %v2981 = vadd.f32 %v2538, %v2922
        %v2982 = vadd.f32 %v2539, %v2924
        %v2983 = vadd.f32 %v2540, %v2926
        %v2984 = vld [vmem:[%s6] ss:$8 sm:$0x3]
        %v2986 = vlaneseq
        %v2987 = vshrl.u32 %v2986, 7
        %v2988 = vsub.s32 0, %v2987
        %v2989 = vrot.slane %v2984, %v2988
        %v2990 = vlaneseq
        %v2991 = vshrl.u32 %v2990, 7
        %v2992 = vsub.s32 1, %v2991
        %v2993 = vrot.slane %v2984, %v2992
        %v2996 = vadd.f32 %v2928, %v2989
        %v2997 = vadd.f32 %v2929, %v2993
        %v2998 = vadd.f32 %v2930, %v2989
        %v2999 = vadd.f32 %v2931, %v2993
        %v3000 = vadd.f32 %v2932, %v2989
        %v3001 = vadd.f32 %v2933, %v2993
        %v3002 = vadd.f32 %v2934, %v2989
        %v3003 = vadd.f32 %v2935, %v2993
        %v3004 = vadd.f32 %v2936, %v2989
        %v3005 = vadd.f32 %v2937, %v2993
        %v3006 = vadd.f32 %v2938, %v2989
        %v3007 = vadd.f32 %v2939, %v2993
        %v3008 = vadd.f32 %v2940, %v2989
        %v3009 = vadd.f32 %v2941, %v2993
        %v3010 = vadd.f32 %v2942, %v2989
        %v3011 = vadd.f32 %v2943, %v2993
        %v3012 = vadd.f32 %v2944, %v2989
        %v3013 = vadd.f32 %v2945, %v2993
        %v3014 = vadd.f32 %v2946, %v2989
        %v3015 = vadd.f32 %v2947, %v2993
        %v3016 = vadd.f32 %v2948, %v2989
        %v3017 = vadd.f32 %v2949, %v2993
        %v3018 = vadd.f32 %v2950, %v2989
        %v3019 = vadd.f32 %v2951, %v2993
        %v3020 = vadd.f32 %v2952, %v2989
        %v3021 = vadd.f32 %v2953, %v2993
        %v3022 = vadd.f32 %v2954, %v2989
        %v3023 = vadd.f32 %v2955, %v2993
        %v3024 = vadd.f32 %v2956, %v2989
        %v3025 = vadd.f32 %v2957, %v2993
        %v3026 = vadd.f32 %v2958, %v2989
        %v3027 = vadd.f32 %v2959, %v2993
        %v3028 = vadd.f32 %v2960, %v2989
        %v3029 = vadd.f32 %v2961, %v2993
        %v3030 = vadd.f32 %v2962, %v2989
        %v3031 = vadd.f32 %v2963, %v2993
        %v3032 = vadd.f32 %v2964, %v2989
        %v3033 = vadd.f32 %v2965, %v2993
        %v3034 = vadd.f32 %v2966, %v2989
        %v3035 = vadd.f32 %v2967, %v2993
        %v3036 = vadd.f32 %v2968, %v2989
        %v3037 = vadd.f32 %v2969, %v2993
        %v3038 = vadd.f32 %v2970, %v2989
        %v3039 = vadd.f32 %v2971, %v2993
        %v3040 = vadd.f32 %v2972, %v2989
        %v3041 = vadd.f32 %v2973, %v2993
        %v3042 = vadd.f32 %v2974, %v2989
        %v3043 = vadd.f32 %v2975, %v2993
        %v3044 = vadd.f32 %v2976, %v2989
        %v3045 = vadd.f32 %v2977, %v2993
        %v3046 = vadd.f32 %v2978, %v2989
        %v3047 = vadd.f32 %v2979, %v2993
        %v3048 = vadd.f32 %v2980, %v2989
        %v3049 = vadd.f32 %v2981, %v2993
        %v3050 = vadd.f32 %v2982, %v2989
        %v3051 = vadd.f32 %v2983, %v2993
        %v3052 = vmax.f32 %v2996, 0.0
        %v3053 = vmax.f32 %v2997, 0.0
        %v3054 = vmax.f32 %v2998, 0.0
        %v3055 = vmax.f32 %v2999, 0.0
        %v3056 = vmax.f32 %v3000, 0.0
        %v3057 = vmax.f32 %v3001, 0.0
        %v3058 = vmax.f32 %v3002, 0.0
        %v3059 = vmax.f32 %v3003, 0.0
        %v3060 = vmax.f32 %v3004, 0.0
        %v3061 = vmax.f32 %v3005, 0.0
        %v3062 = vmax.f32 %v3006, 0.0
        %v3063 = vmax.f32 %v3007, 0.0
        %v3064 = vmax.f32 %v3008, 0.0
        %v3065 = vmax.f32 %v3009, 0.0
        %v3066 = vmax.f32 %v3010, 0.0
        %v3067 = vmax.f32 %v3011, 0.0
        %v3068 = vmax.f32 %v3012, 0.0
        %v3069 = vmax.f32 %v3013, 0.0
        %v3070 = vmax.f32 %v3014, 0.0
        %v3071 = vmax.f32 %v3015, 0.0
        %v3072 = vmax.f32 %v3016, 0.0
        %v3073 = vmax.f32 %v3017, 0.0
        %v3074 = vmax.f32 %v3018, 0.0
        %v3075 = vmax.f32 %v3019, 0.0
        %v3076 = vmax.f32 %v3020, 0.0
        %v3077 = vmax.f32 %v3021, 0.0
        %v3078 = vmax.f32 %v3022, 0.0
        %v3079 = vmax.f32 %v3023, 0.0
        %v3080 = vmax.f32 %v3024, 0.0
        %v3081 = vmax.f32 %v3025, 0.0
        %v3082 = vmax.f32 %v3026, 0.0
        %v3083 = vmax.f32 %v3027, 0.0
        %v3084 = vmax.f32 %v3028, 0.0
        %v3085 = vmax.f32 %v3029, 0.0
        %v3086 = vmax.f32 %v3030, 0.0
        %v3087 = vmax.f32 %v3031, 0.0
        %v3088 = vmax.f32 %v3032, 0.0
        %v3089 = vmax.f32 %v3033, 0.0
        %v3090 = vmax.f32 %v3034, 0.0
        %v3091 = vmax.f32 %v3035, 0.0
        %v3092 = vmax.f32 %v3036, 0.0
        %v3093 = vmax.f32 %v3037, 0.0
        %v3094 = vmax.f32 %v3038, 0.0
        %v3095 = vmax.f32 %v3039, 0.0
        %v3096 = vmax.f32 %v3040, 0.0
        %v3097 = vmax.f32 %v3041, 0.0
        %v3098 = vmax.f32 %v3042, 0.0
        %v3099 = vmax.f32 %v3043, 0.0
        %v3100 = vmax.f32 %v3044, 0.0
        %v3101 = vmax.f32 %v3045, 0.0
        %v3102 = vmax.f32 %v3046, 0.0
        %v3103 = vmax.f32 %v3047, 0.0
        %v3104 = vmax.f32 %v3048, 0.0
        %v3105 = vmax.f32 %v3049, 0.0
        %v3106 = vmax.f32 %v3050, 0.0
        %v3107 = vmax.f32 %v3051, 0.0
        %3164 = vrot.lane.b32.xlu0 %v3052, 122
        %v3165 = vpop.permute.xlu0 %3164
        %3166 = vrot.lane.b32.xlu0 %v3053, 122
        %v3167 = vpop.permute.xlu0 %3166
        %3168 = vrot.lane.b32.xlu0 %v3054, 122
        %v3169 = vpop.permute.xlu0 %3168
        %3170 = vrot.lane.b32.xlu0 %v3055, 122
        %v3171 = vpop.permute.xlu0 %3170
        %3172 = vrot.lane.b32.xlu0 %v3056, 122
        %v3173 = vpop.permute.xlu0 %3172
        %3174 = vrot.lane.b32.xlu0 %v3057, 122
        %v3175 = vpop.permute.xlu0 %3174
        %3176 = vrot.lane.b32.xlu0 %v3058, 122
        %v3177 = vpop.permute.xlu0 %3176
        %3178 = vrot.lane.b32.xlu0 %v3059, 122
        %v3179 = vpop.permute.xlu0 %3178
        %3180 = vrot.lane.b32.xlu0 %v3060, 122
        %v3181 = vpop.permute.xlu0 %3180
        %3182 = vrot.lane.b32.xlu0 %v3061, 122
        %v3183 = vpop.permute.xlu0 %3182
        %3184 = vrot.lane.b32.xlu0 %v3062, 122
        %v3185 = vpop.permute.xlu0 %3184
        %3186 = vrot.lane.b32.xlu0 %v3063, 122
        %v3187 = vpop.permute.xlu0 %3186
        %3188 = vrot.lane.b32.xlu0 %v3064, 122
        %v3189 = vpop.permute.xlu0 %3188
        %3190 = vrot.lane.b32.xlu0 %v3065, 122
        %v3191 = vpop.permute.xlu0 %3190
        %3192 = vrot.lane.b32.xlu0 %v3066, 122
        %v3193 = vpop.permute.xlu0 %3192
        %3194 = vrot.lane.b32.xlu0 %v3067, 122
        %v3195 = vpop.permute.xlu0 %3194
        %3196 = vrot.lane.b32.xlu0 %v3068, 122
        %v3197 = vpop.permute.xlu0 %3196
        %3198 = vrot.lane.b32.xlu0 %v3069, 122
        %v3199 = vpop.permute.xlu0 %3198
        %3200 = vrot.lane.b32.xlu0 %v3070, 122
        %v3201 = vpop.permute.xlu0 %3200
        %3202 = vrot.lane.b32.xlu0 %v3071, 122
        %v3203 = vpop.permute.xlu0 %3202
        %3204 = vrot.lane.b32.xlu0 %v3072, 122
        %v3205 = vpop.permute.xlu0 %3204
        %3206 = vrot.lane.b32.xlu0 %v3073, 122
        %v3207 = vpop.permute.xlu0 %3206
        %3208 = vrot.lane.b32.xlu0 %v3074, 122
        %v3209 = vpop.permute.xlu0 %3208
        %3210 = vrot.lane.b32.xlu0 %v3075, 122
        %v3211 = vpop.permute.xlu0 %3210
        %3212 = vrot.lane.b32.xlu0 %v3076, 122
        %v3213 = vpop.permute.xlu0 %3212
        %3214 = vrot.lane.b32.xlu0 %v3077, 122
        %v3215 = vpop.permute.xlu0 %3214
        %3216 = vrot.lane.b32.xlu0 %v3078, 122
        %v3217 = vpop.permute.xlu0 %3216
        %3218 = vrot.lane.b32.xlu0 %v3079, 122
        %v3219 = vpop.permute.xlu0 %3218
        %3220 = vrot.lane.b32.xlu0 %v3080, 122
        %v3221 = vpop.permute.xlu0 %3220
        %3222 = vrot.lane.b32.xlu0 %v3081, 122
        %v3223 = vpop.permute.xlu0 %3222
        %3224 = vrot.lane.b32.xlu0 %v3082, 122
        %v3225 = vpop.permute.xlu0 %3224
        %3226 = vrot.lane.b32.xlu0 %v3083, 122
        %v3227 = vpop.permute.xlu0 %3226
        %3228 = vrot.lane.b32.xlu0 %v3084, 122
        %v3229 = vpop.permute.xlu0 %3228
        %3230 = vrot.lane.b32.xlu0 %v3085, 122
        %v3231 = vpop.permute.xlu0 %3230
        %3232 = vrot.lane.b32.xlu0 %v3086, 122
        %v3233 = vpop.permute.xlu0 %3232
        %3234 = vrot.lane.b32.xlu0 %v3087, 122
        %v3235 = vpop.permute.xlu0 %3234
        %3236 = vrot.lane.b32.xlu0 %v3088, 122
        %v3237 = vpop.permute.xlu0 %3236
        %3238 = vrot.lane.b32.xlu0 %v3089, 122
        %v3239 = vpop.permute.xlu0 %3238
        %3240 = vrot.lane.b32.xlu0 %v3090, 122
        %v3241 = vpop.permute.xlu0 %3240
        %3242 = vrot.lane.b32.xlu0 %v3091, 122
        %v3243 = vpop.permute.xlu0 %3242
        %3244 = vrot.lane.b32.xlu0 %v3092, 122
        %v3245 = vpop.permute.xlu0 %3244
        %3246 = vrot.lane.b32.xlu0 %v3093, 122
        %v3247 = vpop.permute.xlu0 %3246
        %3248 = vrot.lane.b32.xlu0 %v3094, 122
        %v3249 = vpop.permute.xlu0 %3248
        %3250 = vrot.lane.b32.xlu0 %v3095, 122
        %v3251 = vpop.permute.xlu0 %3250
        %3252 = vrot.lane.b32.xlu0 %v3096, 122
        %v3253 = vpop.permute.xlu0 %3252
        %3254 = vrot.lane.b32.xlu0 %v3097, 122
        %v3255 = vpop.permute.xlu0 %3254
        %3256 = vrot.lane.b32.xlu0 %v3098, 122
        %v3257 = vpop.permute.xlu0 %3256
        %3258 = vrot.lane.b32.xlu0 %v3099, 122
        %v3259 = vpop.permute.xlu0 %3258
        %3260 = vrot.lane.b32.xlu0 %v3100, 122
        %v3261 = vpop.permute.xlu0 %3260
        %3262 = vrot.lane.b32.xlu0 %v3101, 122
        %v3263 = vpop.permute.xlu0 %3262
        %3264 = vrot.lane.b32.xlu0 %v3102, 122
        %v3265 = vpop.permute.xlu0 %3264
        %3266 = vrot.lane.b32.xlu0 %v3103, 122
        %v3267 = vpop.permute.xlu0 %3266
        %3268 = vrot.lane.b32.xlu0 %v3104, 122
        %v3269 = vpop.permute.xlu0 %3268
        %3270 = vrot.lane.b32.xlu0 %v3105, 122
        %v3271 = vpop.permute.xlu0 %3270
        %3272 = vrot.lane.b32.xlu0 %v3106, 122
        %v3273 = vpop.permute.xlu0 %3272
        %3274 = vrot.lane.b32.xlu0 %v3107, 122
        %v3275 = vpop.permute.xlu0 %3274
        %vm3276 = vcmask 998400
        %v3277 = vsel %vm3276, %v3165, %v3167
        %v3278 = vsel %vm3276, %v3169, %v3171
        %v3279 = vsel %vm3276, %v3173, %v3175
        %v3280 = vsel %vm3276, %v3177, %v3179
        %v3281 = vsel %vm3276, %v3181, %v3183
        %v3282 = vsel %vm3276, %v3185, %v3187
        %v3283 = vsel %vm3276, %v3189, %v3191
        %v3284 = vsel %vm3276, %v3193, %v3195
        %v3285 = vsel %vm3276, %v3197, %v3199
        %v3286 = vsel %vm3276, %v3201, %v3203
        %v3287 = vsel %vm3276, %v3205, %v3207
        %v3288 = vsel %vm3276, %v3209, %v3211
        %v3289 = vsel %vm3276, %v3213, %v3215
        %v3290 = vsel %vm3276, %v3217, %v3219
        %v3291 = vsel %vm3276, %v3221, %v3223
        %v3292 = vsel %vm3276, %v3225, %v3227
        %v3293 = vsel %vm3276, %v3229, %v3231
        %v3294 = vsel %vm3276, %v3233, %v3235
        %v3295 = vsel %vm3276, %v3237, %v3239
        %v3296 = vsel %vm3276, %v3241, %v3243
        %v3297 = vsel %vm3276, %v3245, %v3247
        %v3298 = vsel %vm3276, %v3249, %v3251
        %v3299 = vsel %vm3276, %v3253, %v3255
        %v3300 = vsel %vm3276, %v3257, %v3259
        %v3301 = vsel %vm3276, %v3261, %v3263
        %v3302 = vsel %vm3276, %v3265, %v3267
        %v3303 = vsel %vm3276, %v3269, %v3271
        %v3304 = vsel %vm3276, %v3273, %v3275
        %v3361 = vmax.f32 %v3052, %v3277
        %v3362 = vmax.f32 %v3053, %v3167
        %v3363 = vmax.f32 %v3054, %v3278
        %v3364 = vmax.f32 %v3055, %v3171
        %v3365 = vmax.f32 %v3056, %v3279
        %v3366 = vmax.f32 %v3057, %v3175
        %v3367 = vmax.f32 %v3058, %v3280
        %v3368 = vmax.f32 %v3059, %v3179
        %v3369 = vmax.f32 %v3060, %v3281
        %v3370 = vmax.f32 %v3061, %v3183
        %v3371 = vmax.f32 %v3062, %v3282
        %v3372 = vmax.f32 %v3063, %v3187
        %v3373 = vmax.f32 %v3064, %v3283
        %v3374 = vmax.f32 %v3065, %v3191
        %v3375 = vmax.f32 %v3066, %v3284
        %v3376 = vmax.f32 %v3067, %v3195
        %v3377 = vmax.f32 %v3068, %v3285
        %v3378 = vmax.f32 %v3069, %v3199
        %v3379 = vmax.f32 %v3070, %v3286
        %v3380 = vmax.f32 %v3071, %v3203
        %v3381 = vmax.f32 %v3072, %v3287
        %v3382 = vmax.f32 %v3073, %v3207
        %v3383 = vmax.f32 %v3074, %v3288
        %v3384 = vmax.f32 %v3075, %v3211
        %v3385 = vmax.f32 %v3076, %v3289
        %v3386 = vmax.f32 %v3077, %v3215
        %v3387 = vmax.f32 %v3078, %v3290
        %v3388 = vmax.f32 %v3079, %v3219
        %v3389 = vmax.f32 %v3080, %v3291
        %v3390 = vmax.f32 %v3081, %v3223
        %v3391 = vmax.f32 %v3082, %v3292
        %v3392 = vmax.f32 %v3083, %v3227
        %v3393 = vmax.f32 %v3084, %v3293
        %v3394 = vmax.f32 %v3085, %v3231
        %v3395 = vmax.f32 %v3086, %v3294
        %v3396 = vmax.f32 %v3087, %v3235
        %v3397 = vmax.f32 %v3088, %v3295
        %v3398 = vmax.f32 %v3089, %v3239
        %v3399 = vmax.f32 %v3090, %v3296
        %v3400 = vmax.f32 %v3091, %v3243
        %v3401 = vmax.f32 %v3092, %v3297
        %v3402 = vmax.f32 %v3093, %v3247
        %v3403 = vmax.f32 %v3094, %v3298
        %v3404 = vmax.f32 %v3095, %v3251
        %v3405 = vmax.f32 %v3096, %v3299
        %v3406 = vmax.f32 %v3097, %v3255
        %v3407 = vmax.f32 %v3098, %v3300
        %v3408 = vmax.f32 %v3099, %v3259
        %v3409 = vmax.f32 %v3100, %v3301
        %v3410 = vmax.f32 %v3101, %v3263
        %v3411 = vmax.f32 %v3102, %v3302
        %v3412 = vmax.f32 %v3103, %v3267
        %v3413 = vmax.f32 %v3104, %v3303
        %v3414 = vmax.f32 %v3105, %v3271
        %v3415 = vmax.f32 %v3106, %v3304
        %v3416 = vmax.f32 %v3107, %v3275
        %v3417 = vrot.slane %v3361, 1
        %v3418 = vrot.slane %v3362, 1
        %v3419 = vrot.slane %v3363, 1
        %v3420 = vrot.slane %v3364, 1
        %v3421 = vrot.slane %v3365, 1
        %v3422 = vrot.slane %v3366, 1
        %v3423 = vrot.slane %v3367, 1
        %v3424 = vrot.slane %v3368, 1
        %v3425 = vrot.slane %v3369, 1
        %v3426 = vrot.slane %v3370, 1
        %v3427 = vrot.slane %v3371, 1
        %v3428 = vrot.slane %v3372, 1
        %v3429 = vrot.slane %v3373, 1
        %v3430 = vrot.slane %v3374, 1
        %v3431 = vrot.slane %v3375, 1
        %v3432 = vrot.slane %v3376, 1
        %v3433 = vrot.slane %v3377, 1
        %v3434 = vrot.slane %v3378, 1
        %v3435 = vrot.slane %v3379, 1
        %v3436 = vrot.slane %v3380, 1
        %v3437 = vrot.slane %v3381, 1
        %v3438 = vrot.slane %v3382, 1
        %v3439 = vrot.slane %v3383, 1
        %v3440 = vrot.slane %v3384, 1
        %v3441 = vrot.slane %v3385, 1
        %v3442 = vrot.slane %v3386, 1
        %v3443 = vrot.slane %v3387, 1
        %v3444 = vrot.slane %v3388, 1
        %v3445 = vrot.slane %v3389, 1
        %v3446 = vrot.slane %v3390, 1
        %v3447 = vrot.slane %v3391, 1
        %v3448 = vrot.slane %v3392, 1
        %v3449 = vrot.slane %v3393, 1
        %v3450 = vrot.slane %v3394, 1
        %v3451 = vrot.slane %v3395, 1
        %v3452 = vrot.slane %v3396, 1
        %v3453 = vrot.slane %v3397, 1
        %v3454 = vrot.slane %v3398, 1
        %v3455 = vrot.slane %v3399, 1
        %v3456 = vrot.slane %v3400, 1
        %v3457 = vrot.slane %v3401, 1
        %v3458 = vrot.slane %v3402, 1
        %v3459 = vrot.slane %v3403, 1
        %v3460 = vrot.slane %v3404, 1
        %v3461 = vrot.slane %v3405, 1
        %v3462 = vrot.slane %v3406, 1
        %v3463 = vrot.slane %v3407, 1
        %v3464 = vrot.slane %v3408, 1
        %v3465 = vrot.slane %v3409, 1
        %v3466 = vrot.slane %v3410, 1
        %v3467 = vrot.slane %v3411, 1
        %v3468 = vrot.slane %v3412, 1
        %v3469 = vrot.slane %v3413, 1
        %v3470 = vrot.slane %v3414, 1
        %v3471 = vrot.slane %v3415, 1
        %v3472 = vrot.slane %v3416, 1
        %v3473 = vlaneseq
        %v3474 = vshrl.u32 %v3473, 7
        %vm3475 = vcmp.lt.s32.totalorder %v3474, 7
        %v3476 = vsel %vm3475, %v3469, %v3471
        %v3477 = vsel %vm3475, %v3470, %v3472
        %v3478 = vsel %vm3475, %v3467, %v3469
        %v3479 = vsel %vm3475, %v3468, %v3470
        %v3480 = vsel %vm3475, %v3465, %v3467
        %v3481 = vsel %vm3475, %v3466, %v3468
        %v3482 = vsel %vm3475, %v3463, %v3465
        %v3483 = vsel %vm3475, %v3464, %v3466
        %v3484 = vsel %vm3475, %v3461, %v3463
        %v3485 = vsel %vm3475, %v3462, %v3464
        %v3486 = vsel %vm3475, %v3459, %v3461
        %v3487 = vsel %vm3475, %v3460, %v3462
        %v3488 = vsel %vm3475, %v3457, %v3459
        %v3489 = vsel %vm3475, %v3458, %v3460
        %v3490 = vsel %vm3475, %v3455, %v3457
        %v3491 = vsel %vm3475, %v3456, %v3458
        %v3492 = vsel %vm3475, %v3453, %v3455
        %v3493 = vsel %vm3475, %v3454, %v3456
        %v3494 = vsel %vm3475, %v3451, %v3453
        %v3495 = vsel %vm3475, %v3452, %v3454
        %v3496 = vsel %vm3475, %v3449, %v3451
        %v3497 = vsel %vm3475, %v3450, %v3452
        %v3498 = vsel %vm3475, %v3447, %v3449
        %v3499 = vsel %vm3475, %v3448, %v3450
        %v3500 = vsel %vm3475, %v3445, %v3447
        %v3501 = vsel %vm3475, %v3446, %v3448
        %v3502 = vsel %vm3475, %v3443, %v3445
        %v3503 = vsel %vm3475, %v3444, %v3446
        %v3504 = vsel %vm3475, %v3441, %v3443
        %v3505 = vsel %vm3475, %v3442, %v3444
        %v3506 = vsel %vm3475, %v3439, %v3441
        %v3507 = vsel %vm3475, %v3440, %v3442
        %v3508 = vsel %vm3475, %v3437, %v3439
        %v3509 = vsel %vm3475, %v3438, %v3440
        %v3510 = vsel %vm3475, %v3435, %v3437
        %v3511 = vsel %vm3475, %v3436, %v3438
        %v3512 = vsel %vm3475, %v3433, %v3435
        %v3513 = vsel %vm3475, %v3434, %v3436
        %v3514 = vsel %vm3475, %v3431, %v3433
        %v3515 = vsel %vm3475, %v3432, %v3434
        %v3516 = vsel %vm3475, %v3429, %v3431
        %v3517 = vsel %vm3475, %v3430, %v3432
        %v3518 = vsel %vm3475, %v3427, %v3429
        %v3519 = vsel %vm3475, %v3428, %v3430
        %v3520 = vsel %vm3475, %v3425, %v3427
        %v3521 = vsel %vm3475, %v3426, %v3428
        %v3522 = vsel %vm3475, %v3423, %v3425
        %v3523 = vsel %vm3475, %v3424, %v3426
        %v3524 = vsel %vm3475, %v3421, %v3423
        %v3525 = vsel %vm3475, %v3422, %v3424
        %v3526 = vsel %vm3475, %v3419, %v3421
        %v3527 = vsel %vm3475, %v3420, %v3422
        %v3528 = vsel %vm3475, %v3417, %v3419
        %v3529 = vsel %vm3475, %v3418, %v3420
        %v3530 = vsel %vm3475, %v3471, %v3417
        %v3531 = vsel %vm3475, %v3472, %v3418
        %v3532 = vmax.f32 %v3361, %v3528
        %v3533 = vmax.f32 %v3362, %v3529
        %v3534 = vmax.f32 %v3363, %v3526
        %v3535 = vmax.f32 %v3364, %v3527
        %v3536 = vmax.f32 %v3365, %v3524
        %v3537 = vmax.f32 %v3366, %v3525
        %v3538 = vmax.f32 %v3367, %v3522
        %v3539 = vmax.f32 %v3368, %v3523
        %v3540 = vmax.f32 %v3369, %v3520
        %v3541 = vmax.f32 %v3370, %v3521
        %v3542 = vmax.f32 %v3371, %v3518
        %v3543 = vmax.f32 %v3372, %v3519
        %v3544 = vmax.f32 %v3373, %v3516
        %v3545 = vmax.f32 %v3374, %v3517
        %v3546 = vmax.f32 %v3375, %v3514
        %v3547 = vmax.f32 %v3376, %v3515
        %v3548 = vmax.f32 %v3377, %v3512
        %v3549 = vmax.f32 %v3378, %v3513
        %v3550 = vmax.f32 %v3379, %v3510
        %v3551 = vmax.f32 %v3380, %v3511
        %v3552 = vmax.f32 %v3381, %v3508
        %v3553 = vmax.f32 %v3382, %v3509
        %v3554 = vmax.f32 %v3383, %v3506
        %v3555 = vmax.f32 %v3384, %v3507
        %v3556 = vmax.f32 %v3385, %v3504
        %v3557 = vmax.f32 %v3386, %v3505
        %v3558 = vmax.f32 %v3387, %v3502
        %v3559 = vmax.f32 %v3388, %v3503
        %v3560 = vmax.f32 %v3389, %v3500
        %v3561 = vmax.f32 %v3390, %v3501
        %v3562 = vmax.f32 %v3391, %v3498
        %v3563 = vmax.f32 %v3392, %v3499
        %v3564 = vmax.f32 %v3393, %v3496
        %v3565 = vmax.f32 %v3394, %v3497
        %v3566 = vmax.f32 %v3395, %v3494
        %v3567 = vmax.f32 %v3396, %v3495
        %v3568 = vmax.f32 %v3397, %v3492
        %v3569 = vmax.f32 %v3398, %v3493
        %v3570 = vmax.f32 %v3399, %v3490
        %v3571 = vmax.f32 %v3400, %v3491
        %v3572 = vmax.f32 %v3401, %v3488
        %v3573 = vmax.f32 %v3402, %v3489
        %v3574 = vmax.f32 %v3403, %v3486
        %v3575 = vmax.f32 %v3404, %v3487
        %v3576 = vmax.f32 %v3405, %v3484
        %v3577 = vmax.f32 %v3406, %v3485
        %v3578 = vmax.f32 %v3407, %v3482
        %v3579 = vmax.f32 %v3408, %v3483
        %v3580 = vmax.f32 %v3409, %v3480
        %v3581 = vmax.f32 %v3410, %v3481
        %v3582 = vmax.f32 %v3411, %v3478
        %v3583 = vmax.f32 %v3412, %v3479
        %v3584 = vmax.f32 %v3413, %v3476
        %v3585 = vmax.f32 %v3414, %v3477
        %v3586 = vmax.f32 %v3415, %v3530
        %v3587 = vmax.f32 %v3416, %v3531
        %v3588 = vpack.c.bf16 %v3534, %v3532
        %v3589 = vpack.c.bf16 %v3535, %v3533
        %v3590 = vpack.c.bf16 %v3538, %v3536
        %v3591 = vpack.c.bf16 %v3539, %v3537
        %v3592 = vpack.c.bf16 %v3542, %v3540
        %v3593 = vpack.c.bf16 %v3543, %v3541
        %v3594 = vpack.c.bf16 %v3546, %v3544
        %v3595 = vpack.c.bf16 %v3547, %v3545
        %v3596 = vpack.c.bf16 %v3550, %v3548
        %v3597 = vpack.c.bf16 %v3551, %v3549
        %v3598 = vpack.c.bf16 %v3554, %v3552
        %v3599 = vpack.c.bf16 %v3555, %v3553
        %v3600 = vpack.c.bf16 %v3558, %v3556
        %v3601 = vpack.c.bf16 %v3559, %v3557
        %v3602 = vpack.c.bf16 %v3562, %v3560
        %v3603 = vpack.c.bf16 %v3563, %v3561
        %v3604 = vpack.c.bf16 %v3566, %v3564
        %v3605 = vpack.c.bf16 %v3567, %v3565
        %v3606 = vpack.c.bf16 %v3570, %v3568
        %v3607 = vpack.c.bf16 %v3571, %v3569
        %v3608 = vpack.c.bf16 %v3574, %v3572
        %v3609 = vpack.c.bf16 %v3575, %v3573
        %v3610 = vpack.c.bf16 %v3578, %v3576
        %v3611 = vpack.c.bf16 %v3579, %v3577
        %v3612 = vpack.c.bf16 %v3582, %v3580
        %v3613 = vpack.c.bf16 %v3583, %v3581
        %v3614 = vpack.c.bf16 %v3586, %v3584
        %v3615 = vpack.c.bf16 %v3587, %v3585
        %v3616 = vld [vmem:[%s2] sm:$0xff]
        %v3617 = vld [vmem:[%s2 + $0x8] sm:$0xff]
        %v3618 = vld [vmem:[%s2 + $0x10] sm:$0xff]
        %v3619 = vld [vmem:[%s2 + $0x18] sm:$0xff]
        %v3620 = vld [vmem:[%s2 + $0x20] sm:$0xff]
        %v3621 = vld [vmem:[%s2 + $0x28] sm:$0xff]
        %v3622 = vld [vmem:[%s2 + $0x30] sm:$0xff]
        %v3623 = vld [vmem:[%s2 + $0x38] sm:$0xff]
        %v3624 = vld [vmem:[%s2 + $0x40] sm:$0xff]
        %v3625 = vld [vmem:[%s2 + $0x48] sm:$0xff]
        %v3626 = vld [vmem:[%s2 + $0x50] sm:$0xff]
        %v3627 = vld [vmem:[%s2 + $0x58] sm:$0xff]
        %v3628 = vld [vmem:[%s2 + $0x60] sm:$0xff]
        %v3629 = vld [vmem:[%s2 + $0x68] sm:$0xff]
        %v3630 = vld [vmem:[%s2 + $0x70] sm:$0xff]
        %v3631 = vld [vmem:[%s2 + $0x78] sm:$0xff]
        %v3632 = vld [vmem:[%s2 + $0x80] sm:$0xff]
        %v3633 = vld [vmem:[%s2 + $0x88] sm:$0xff]
        %v3634 = vld [vmem:[%s2 + $0x90] sm:$0xff]
        %v3635 = vld [vmem:[%s2 + $0x98] sm:$0xff]
        %v3636 = vld [vmem:[%s2 + $0xa0] sm:$0x11]
        %s3637 = scalar_lea.vmem %s2, 168
        %v3638 = vld [vmem:[%s3637] sm:$0xff]
        %v3639 = vld [vmem:[%s3637 + $0x8] sm:$0xff]
        %v3640 = vld [vmem:[%s3637 + $0x10] sm:$0xff]
        %v3641 = vld [vmem:[%s3637 + $0x18] sm:$0xff]
        %v3642 = vld [vmem:[%s3637 + $0x20] sm:$0xff]
        %v3643 = vld [vmem:[%s3637 + $0x28] sm:$0xff]
        %v3644 = vld [vmem:[%s3637 + $0x30] sm:$0xff]
        %v3645 = vld [vmem:[%s3637 + $0x38] sm:$0xff]
        %v3646 = vld [vmem:[%s3637 + $0x40] sm:$0xff]
        %v3647 = vld [vmem:[%s3637 + $0x48] sm:$0xff]
        %v3648 = vld [vmem:[%s3637 + $0x50] sm:$0xff]
        %v3649 = vld [vmem:[%s3637 + $0x58] sm:$0xff]
        %v3650 = vld [vmem:[%s3637 + $0x60] sm:$0xff]
        %v3651 = vld [vmem:[%s3637 + $0x68] sm:$0xff]
        %v3652 = vld [vmem:[%s3637 + $0x70] sm:$0xff]
        %v3653 = vld [vmem:[%s3637 + $0x78] sm:$0xff]
        %v3654 = vld [vmem:[%s3637 + $0x80] sm:$0xff]
        %v3655 = vld [vmem:[%s3637 + $0x88] sm:$0xff]
        %v3656 = vld [vmem:[%s3637 + $0x90] sm:$0xff]
        %v3657 = vld [vmem:[%s3637 + $0x98] sm:$0xff]
        %v3658 = vld [vmem:[%s3637 + $0xa0] sm:$0x11]
        %v3680 = vunpack.c.l.b16 %v3638
        %v3681 = vunpack.c.h.b16 %v3638
        %v3682 = vunpack.c.l.b16 %v3639
        %v3683 = vunpack.c.h.b16 %v3639
        %v3684 = vunpack.c.l.b16 %v3640
        %v3685 = vunpack.c.h.b16 %v3640
        %v3686 = vunpack.c.l.b16 %v3641
        %v3687 = vunpack.c.h.b16 %v3641
        %v3688 = vunpack.c.l.b16 %v3642
        %v3689 = vunpack.c.h.b16 %v3642
        %v3690 = vunpack.c.l.b16 %v3643
        %v3691 = vunpack.c.h.b16 %v3643
        %v3692 = vunpack.c.l.b16 %v3644
        %v3693 = vunpack.c.h.b16 %v3644
        %v3694 = vunpack.c.l.b16 %v3645
        %v3695 = vunpack.c.h.b16 %v3645
        %v3696 = vunpack.c.l.b16 %v3646
        %v3697 = vunpack.c.h.b16 %v3646
        %v3698 = vunpack.c.l.b16 %v3647
        %v3699 = vunpack.c.h.b16 %v3647
        %v3700 = vunpack.c.l.b16 %v3648
        %v3701 = vunpack.c.h.b16 %v3648
        %v3702 = vunpack.c.l.b16 %v3649
        %v3703 = vunpack.c.h.b16 %v3649
        %v3704 = vunpack.c.l.b16 %v3650
        %v3705 = vunpack.c.h.b16 %v3650
        %v3706 = vunpack.c.l.b16 %v3651
        %v3707 = vunpack.c.h.b16 %v3651
        %v3708 = vunpack.c.l.b16 %v3652
        %v3709 = vunpack.c.h.b16 %v3652
        %v3710 = vunpack.c.l.b16 %v3653
        %v3711 = vunpack.c.h.b16 %v3653
        %v3712 = vunpack.c.l.b16 %v3654
        %v3713 = vunpack.c.h.b16 %v3654
        %v3714 = vunpack.c.l.b16 %v3655
        %v3715 = vunpack.c.h.b16 %v3655
        %v3716 = vunpack.c.l.b16 %v3656
        %v3717 = vunpack.c.h.b16 %v3656
        %v3718 = vunpack.c.l.b16 %v3657
        %v3719 = vunpack.c.h.b16 %v3657
        %v3720 = vunpack.c.l.b16 %v3658
        %v3721 = vunpack.c.h.b16 %v3658
        %v3722 = vpack.c.b16 %v3682, %v3680
        %v3723 = vpack.c.b16 %v3683, %v3681
        %v3724 = vpack.c.b16 %v3686, %v3684
        %v3725 = vpack.c.b16 %v3687, %v3685
        %v3726 = vpack.c.b16 %v3690, %v3688
        %v3727 = vpack.c.b16 %v3691, %v3689
        %v3728 = vpack.c.b16 %v3694, %v3692
        %v3729 = vpack.c.b16 %v3695, %v3693
        %v3730 = vpack.c.b16 %v3698, %v3696
        %v3731 = vpack.c.b16 %v3699, %v3697
        %v3732 = vpack.c.b16 %v3702, %v3700
        %v3733 = vpack.c.b16 %v3703, %v3701
        %v3734 = vpack.c.b16 %v3706, %v3704
        %v3735 = vpack.c.b16 %v3707, %v3705
        %v3736 = vpack.c.b16 %v3710, %v3708
        %v3737 = vpack.c.b16 %v3711, %v3709
        %v3738 = vpack.c.b16 %v3714, %v3712
        %v3739 = vpack.c.b16 %v3715, %v3713
        %v3740 = vpack.c.b16 %v3718, %v3716
        %v3741 = vpack.c.b16 %v3719, %v3717
        %v3742 = vpack.c.b16 %v3720, %v3720
        %v3743 = vpack.c.b16 %v3721, %v3721
        %vm3764 = vcmask 277504
        %v3766 = vsel %vm3764, %v3589, 0
        %v3769 = vsel %vm3764, %v3591, 0
        %v3772 = vsel %vm3764, %v3593, 0
        %v3775 = vsel %vm3764, %v3595, 0
        %v3778 = vsel %vm3764, %v3597, 0
        %v3781 = vsel %vm3764, %v3599, 0
        %v3784 = vsel %vm3764, %v3601, 0
        %v3787 = vsel %vm3764, %v3603, 0
        %v3790 = vsel %vm3764, %v3605, 0
        %v3793 = vsel %vm3764, %v3607, 0
        %v3796 = vsel %vm3764, %v3609, 0
        %v3799 = vsel %vm3764, %v3611, 0
        %v3802 = vsel %vm3764, %v3613, 0
        %v3805 = vsel %vm3764, %v3615, 0
        %vm3807 = vcmask 1040384
        %v3809 = vsel %vm3807, %v3742, 0
        %v3812 = vsel %vm3807, %v3743, 0
        %3814 = vmatprep.subr.bf16.mxu0 %v3737
        %3815 = vmatpush1.bf16.msra.mxu0 %v3736
        %3816 = vmatprep.subr.bf16.mxu0 %v3735
        %3817 = vmatpush1.bf16.msra.mxu0 %v3734
        %3818 = vmatprep.subr.bf16.mxu0 %v3733
        %3819 = vmatpush1.bf16.msra.mxu0 %v3732
        %3820 = vmatprep.subr.bf16.mxu0 %v3731
        %3821 = vmatpush1.bf16.msra.mxu0 %v3730
        %3822 = vmatprep.subr.bf16.mxu0 %v3729
        %3823 = vmatpush1.bf16.msra.mxu0 %v3728
        %3824 = vmatprep.subr.bf16.mxu0 %v3727
        %3825 = vmatpush1.bf16.msra.mxu0 %v3726
        %3826 = vmatprep.subr.bf16.mxu0 %v3725
        %3827 = vmatpush1.bf16.msra.mxu0 %v3724
        %3828 = vmatprep.subr.bf16.mxu0 %v3723
        %3829 = vmatpush1.bf16.msra.mxu0 %v3722
        %3830 = vmatprep.subr.bf16.mxu0 0
        %3831 = vmatpush2.bf16.msra.mxu0 0
        %3832 = vmatprep.subr.bf16.mxu0 0
        %3833 = vmatpush2.bf16.msra.mxu0 0
        %3834 = vmatprep.subr.bf16.mxu0 0
        %3835 = vmatpush2.bf16.msra.mxu0 0
        %3836 = vmatprep.subr.bf16.mxu0 0
        %3837 = vmatpush2.bf16.msra.mxu0 0
        %3838 = vmatprep.subr.bf16.mxu0 0
        %3839 = vmatpush2.bf16.msra.mxu0 0
        %3840 = vmatprep.subr.bf16.mxu0 %v3812
        %3841 = vmatpush2.bf16.msra.mxu0 %v3809
        %3842 = vmatprep.subr.bf16.mxu0 %v3741
        %3843 = vmatpush2.bf16.msra.mxu0 %v3740
        %3844 = vmatprep.subr.bf16.mxu0 %v3739
        %3845 = vmatpush2.bf16.msra.mxu0 %v3738
        %3846 = vmatprep.mubr.bf16.mxu0 %v3766
        %3847 = vmatmul.mubr.bf16.gmra.mxu0 %v3588
        %v3848 = vpop.f32.mrf.mxu0
        %v3849 = vadd.f32 0.0, %v3848
        %v3850 = vpop.f32.mrf.mxu0
        %v3851 = vadd.f32 0.0, %v3850
        %v3852 = vpop.f32.mrf.mxu0
        %v3853 = vadd.f32 0.0, %v3852
        %v3854 = vpop.f32.mrf.mxu0
        %v3855 = vadd.f32 0.0, %v3854
        %3856 = vmatprep.mubr.bf16.mxu0 %v3769
        %3857 = vmatmul.mubr.bf16.gmra.mxu0 %v3590
        %v3858 = vpop.f32.mrf.mxu0
        %v3859 = vadd.f32 0.0, %v3858
        %v3860 = vpop.f32.mrf.mxu0
        %v3861 = vadd.f32 0.0, %v3860
        %v3862 = vpop.f32.mrf.mxu0
        %v3863 = vadd.f32 0.0, %v3862
        %v3864 = vpop.f32.mrf.mxu0
        %v3865 = vadd.f32 0.0, %v3864
        %3866 = vmatprep.mubr.bf16.mxu0 %v3772
        %3867 = vmatmul.mubr.bf16.gmra.mxu0 %v3592
        %v3868 = vpop.f32.mrf.mxu0
        %v3869 = vadd.f32 0.0, %v3868
        %v3870 = vpop.f32.mrf.mxu0
        %v3871 = vadd.f32 0.0, %v3870
        %v3872 = vpop.f32.mrf.mxu0
        %v3873 = vadd.f32 0.0, %v3872
        %v3874 = vpop.f32.mrf.mxu0
        %v3875 = vadd.f32 0.0, %v3874
        %3876 = vmatprep.mubr.bf16.mxu0 %v3775
        %3877 = vmatmul.mubr.bf16.gmra.mxu0 %v3594
        %v3878 = vpop.f32.mrf.mxu0
        %v3879 = vadd.f32 0.0, %v3878
        %v3880 = vpop.f32.mrf.mxu0
        %v3881 = vadd.f32 0.0, %v3880
        %v3882 = vpop.f32.mrf.mxu0
        %v3883 = vadd.f32 0.0, %v3882
        %v3884 = vpop.f32.mrf.mxu0
        %v3885 = vadd.f32 0.0, %v3884
        %3886 = vmatprep.mubr.bf16.mxu0 %v3778
        %3887 = vmatmul.mubr.bf16.gmra.mxu0 %v3596
        %v3888 = vpop.f32.mrf.mxu0
        %v3889 = vadd.f32 0.0, %v3888
        %v3890 = vpop.f32.mrf.mxu0
        %v3891 = vadd.f32 0.0, %v3890
        %v3892 = vpop.f32.mrf.mxu0
        %v3893 = vadd.f32 0.0, %v3892
        %v3894 = vpop.f32.mrf.mxu0
        %v3895 = vadd.f32 0.0, %v3894
        %3896 = vmatprep.mubr.bf16.mxu0 %v3781
        %3897 = vmatmul.mubr.bf16.gmra.mxu0 %v3598
        %v3898 = vpop.f32.mrf.mxu0
        %v3899 = vadd.f32 0.0, %v3898
        %v3900 = vpop.f32.mrf.mxu0
        %v3901 = vadd.f32 0.0, %v3900
        %v3902 = vpop.f32.mrf.mxu0
        %v3903 = vadd.f32 0.0, %v3902
        %v3904 = vpop.f32.mrf.mxu0
        %v3905 = vadd.f32 0.0, %v3904
        %3906 = vmatprep.mubr.bf16.mxu0 %v3784
        %3907 = vmatmul.mubr.bf16.gmra.mxu0 %v3600
        %v3908 = vpop.f32.mrf.mxu0
        %v3909 = vadd.f32 0.0, %v3908
        %v3910 = vpop.f32.mrf.mxu0
        %v3911 = vadd.f32 0.0, %v3910
        %v3912 = vpop.f32.mrf.mxu0
        %v3913 = vadd.f32 0.0, %v3912
        %v3914 = vpop.f32.mrf.mxu0
        %v3915 = vadd.f32 0.0, %v3914
        %3916 = vmatprep.mubr.bf16.mxu0 %v3787
        %3917 = vmatmul.mubr.bf16.gmra.mxu0 %v3602
        %v3918 = vpop.f32.mrf.mxu0
        %v3919 = vadd.f32 0.0, %v3918
        %v3920 = vpop.f32.mrf.mxu0
        %v3921 = vadd.f32 0.0, %v3920
        %v3922 = vpop.f32.mrf.mxu0
        %v3923 = vadd.f32 0.0, %v3922
        %v3924 = vpop.f32.mrf.mxu0
        %v3925 = vadd.f32 0.0, %v3924
        %3926 = vmatprep.mubr.bf16.mxu0 %v3790
        %3927 = vmatmul.mubr.bf16.gmra.mxu0 %v3604
        %v3928 = vpop.f32.mrf.mxu0
        %v3929 = vadd.f32 0.0, %v3928
        %v3930 = vpop.f32.mrf.mxu0
        %v3931 = vadd.f32 0.0, %v3930
        %v3932 = vpop.f32.mrf.mxu0
        %v3933 = vadd.f32 0.0, %v3932
        %v3934 = vpop.f32.mrf.mxu0
        %v3935 = vadd.f32 0.0, %v3934
        %3936 = vmatprep.mubr.bf16.mxu0 %v3793
        %3937 = vmatmul.mubr.bf16.gmra.mxu0 %v3606
        %v3938 = vpop.f32.mrf.mxu0
        %v3939 = vadd.f32 0.0, %v3938
        %v3940 = vpop.f32.mrf.mxu0
        %v3941 = vadd.f32 0.0, %v3940
        %v3942 = vpop.f32.mrf.mxu0
        %v3943 = vadd.f32 0.0, %v3942
        %v3944 = vpop.f32.mrf.mxu0
        %v3945 = vadd.f32 0.0, %v3944
        %3946 = vmatprep.mubr.bf16.mxu0 %v3796
        %3947 = vmatmul.mubr.bf16.gmra.mxu0 %v3608
        %v3948 = vpop.f32.mrf.mxu0
        %v3949 = vadd.f32 0.0, %v3948
        %v3950 = vpop.f32.mrf.mxu0
        %v3951 = vadd.f32 0.0, %v3950
        %v3952 = vpop.f32.mrf.mxu0
        %v3953 = vadd.f32 0.0, %v3952
        %v3954 = vpop.f32.mrf.mxu0
        %v3955 = vadd.f32 0.0, %v3954
        %3956 = vmatprep.mubr.bf16.mxu0 %v3799
        %3957 = vmatmul.mubr.bf16.gmra.mxu0 %v3610
        %v3958 = vpop.f32.mrf.mxu0
        %v3959 = vadd.f32 0.0, %v3958
        %v3960 = vpop.f32.mrf.mxu0
        %v3961 = vadd.f32 0.0, %v3960
        %v3962 = vpop.f32.mrf.mxu0
        %v3963 = vadd.f32 0.0, %v3962
        %v3964 = vpop.f32.mrf.mxu0
        %v3965 = vadd.f32 0.0, %v3964
        %3966 = vmatprep.mubr.bf16.mxu0 %v3802
        %3967 = vmatmul.mubr.bf16.gmra.mxu0 %v3612
        %v3968 = vpop.f32.mrf.mxu0
        %v3969 = vadd.f32 0.0, %v3968
        %v3970 = vpop.f32.mrf.mxu0
        %v3971 = vadd.f32 0.0, %v3970
        %v3972 = vpop.f32.mrf.mxu0
        %v3973 = vadd.f32 0.0, %v3972
        %v3974 = vpop.f32.mrf.mxu0
        %v3975 = vadd.f32 0.0, %v3974
        %3976 = vmatprep.mubr.bf16.mxu0 %v3805
        %3977 = vmatmul.mubr.bf16.gmra.mxu0 %v3614
        %v3978 = vpop.f32.mrf.mxu0
        %v3979 = vadd.f32 0.0, %v3978
        %v3980 = vpop.f32.mrf.mxu0
        %v3981 = vadd.f32 0.0, %v3980
        %v3982 = vpop.f32.mrf.mxu0
        %v3983 = vadd.f32 0.0, %v3982
        %v3984 = vpop.f32.mrf.mxu0
        %v3985 = vadd.f32 0.0, %v3984
        %3986 = vdwg.mxu0
        %v3987 = vrot.slane %v3849, 2
        %v3988 = vrot.slane %v3851, 2
        %v3989 = vrot.slane %v3853, 2
        %v3990 = vrot.slane %v3855, 2
        %v3991 = vrot.slane %v3859, 2
        %v3992 = vrot.slane %v3861, 2
        %v3993 = vrot.slane %v3863, 2
        %v3994 = vrot.slane %v3865, 2
        %v3995 = vrot.slane %v3869, 2
        %v3996 = vrot.slane %v3871, 2
        %v3997 = vrot.slane %v3873, 2
        %v3998 = vrot.slane %v3875, 2
        %v3999 = vrot.slane %v3879, 2
        %v4000 = vrot.slane %v3881, 2
        %v4001 = vrot.slane %v3883, 2
        %v4002 = vrot.slane %v3885, 2
        %v4003 = vrot.slane %v3889, 2
        %v4004 = vrot.slane %v3891, 2
        %v4005 = vrot.slane %v3893, 2
        %v4006 = vrot.slane %v3895, 2
        %v4007 = vrot.slane %v3899, 2
        %v4008 = vrot.slane %v3901, 2
        %v4009 = vrot.slane %v3903, 2
        %v4010 = vrot.slane %v3905, 2
        %v4011 = vrot.slane %v3909, 2
        %v4012 = vrot.slane %v3911, 2
        %v4013 = vrot.slane %v3913, 2
        %v4014 = vrot.slane %v3915, 2
        %v4015 = vrot.slane %v3919, 2
        %v4016 = vrot.slane %v3921, 2
        %v4017 = vrot.slane %v3923, 2
        %v4018 = vrot.slane %v3925, 2
        %v4019 = vrot.slane %v3929, 2
        %v4020 = vrot.slane %v3931, 2
        %v4021 = vrot.slane %v3933, 2
        %v4022 = vrot.slane %v3935, 2
        %v4023 = vrot.slane %v3939, 2
        %v4024 = vrot.slane %v3941, 2
        %v4025 = vrot.slane %v3943, 2
        %v4026 = vrot.slane %v3945, 2
        %v4027 = vrot.slane %v3949, 2
        %v4028 = vrot.slane %v3951, 2
        %v4029 = vrot.slane %v3953, 2
        %v4030 = vrot.slane %v3955, 2
        %v4031 = vrot.slane %v3959, 2
        %v4032 = vrot.slane %v3961, 2
        %v4033 = vrot.slane %v3963, 2
        %v4034 = vrot.slane %v3965, 2
        %v4035 = vrot.slane %v3969, 2
        %v4036 = vrot.slane %v3971, 2
        %v4037 = vrot.slane %v3973, 2
        %v4038 = vrot.slane %v3975, 2
        %v4039 = vrot.slane %v3979, 2
        %v4040 = vrot.slane %v3981, 2
        %v4041 = vrot.slane %v3983, 2
        %v4042 = vrot.slane %v3985, 2
        %vm4043 = vcmp.lt.s32.totalorder %v3474, 6
        %v4044 = vsel %vm4043, %v4039, %v4041
        %v4045 = vsel %vm4043, %v4040, %v4042
        %v4046 = vsel %vm4043, %v4037, %v4039
        %v4047 = vsel %vm4043, %v4038, %v4040
        %v4048 = vsel %vm4043, %v4035, %v4037
        %v4049 = vsel %vm4043, %v4036, %v4038
        %v4050 = vsel %vm4043, %v4033, %v4035
        %v4051 = vsel %vm4043, %v4034, %v4036
        %v4052 = vsel %vm4043, %v4031, %v4033
        %v4053 = vsel %vm4043, %v4032, %v4034
        %v4054 = vsel %vm4043, %v4029, %v4031
        %v4055 = vsel %vm4043, %v4030, %v4032
        %v4056 = vsel %vm4043, %v4027, %v4029
        %v4057 = vsel %vm4043, %v4028, %v4030
        %v4058 = vsel %vm4043, %v4025, %v4027
        %v4059 = vsel %vm4043, %v4026, %v4028
        %v4060 = vsel %vm4043, %v4023, %v4025
        %v4061 = vsel %vm4043, %v4024, %v4026
        %v4062 = vsel %vm4043, %v4021, %v4023
        %v4063 = vsel %vm4043, %v4022, %v4024
        %v4064 = vsel %vm4043, %v4019, %v4021
        %v4065 = vsel %vm4043, %v4020, %v4022
        %v4066 = vsel %vm4043, %v4017, %v4019
        %v4067 = vsel %vm4043, %v4018, %v4020
        %v4068 = vsel %vm4043, %v4015, %v4017
        %v4069 = vsel %vm4043, %v4016, %v4018
        %v4070 = vsel %vm4043, %v4013, %v4015
        %v4071 = vsel %vm4043, %v4014, %v4016
        %v4072 = vsel %vm4043, %v4011, %v4013
        %v4073 = vsel %vm4043, %v4012, %v4014
        %v4074 = vsel %vm4043, %v4009, %v4011
        %v4075 = vsel %vm4043, %v4010, %v4012
        %v4076 = vsel %vm4043, %v4007, %v4009
        %v4077 = vsel %vm4043, %v4008, %v4010
        %v4078 = vsel %vm4043, %v4005, %v4007
        %v4079 = vsel %vm4043, %v4006, %v4008
        %v4080 = vsel %vm4043, %v4003, %v4005
        %v4081 = vsel %vm4043, %v4004, %v4006
        %v4082 = vsel %vm4043, %v4001, %v4003
        %v4083 = vsel %vm4043, %v4002, %v4004
        %v4084 = vsel %vm4043, %v3999, %v4001
        %v4085 = vsel %vm4043, %v4000, %v4002
        %v4086 = vsel %vm4043, %v3997, %v3999
        %v4087 = vsel %vm4043, %v3998, %v4000
        %v4088 = vsel %vm4043, %v3995, %v3997
        %v4089 = vsel %vm4043, %v3996, %v3998
        %v4090 = vsel %vm4043, %v3993, %v3995
        %v4091 = vsel %vm4043, %v3994, %v3996
        %v4092 = vsel %vm4043, %v3991, %v3993
        %v4093 = vsel %vm4043, %v3992, %v3994
        %v4094 = vsel %vm4043, %v3989, %v3991
        %v4095 = vsel %vm4043, %v3990, %v3992
        %v4096 = vsel %vm4043, %v3987, %v3989
        %v4097 = vsel %vm4043, %v3988, %v3990
        %v4098 = vsel %vm4043, %v4041, %v3987
        %v4099 = vsel %vm4043, %v4042, %v3988
        %v4121 = vunpack.c.l.b16 %v3616
        %v4122 = vunpack.c.h.b16 %v3616
        %v4123 = vunpack.c.l.b16 %v3617
        %v4124 = vunpack.c.h.b16 %v3617
        %v4125 = vunpack.c.l.b16 %v3618
        %v4126 = vunpack.c.h.b16 %v3618
        %v4127 = vunpack.c.l.b16 %v3619
        %v4128 = vunpack.c.h.b16 %v3619
        %v4129 = vunpack.c.l.b16 %v3620
        %v4130 = vunpack.c.h.b16 %v3620
        %v4131 = vunpack.c.l.b16 %v3621
        %v4132 = vunpack.c.h.b16 %v3621
        %v4133 = vunpack.c.l.b16 %v3622
        %v4134 = vunpack.c.h.b16 %v3622
        %v4135 = vunpack.c.l.b16 %v3623
        %v4136 = vunpack.c.h.b16 %v3623
        %v4137 = vunpack.c.l.b16 %v3624
        %v4138 = vunpack.c.h.b16 %v3624
        %v4139 = vunpack.c.l.b16 %v3625
        %v4140 = vunpack.c.h.b16 %v3625
        %v4141 = vunpack.c.l.b16 %v3626
        %v4142 = vunpack.c.h.b16 %v3626
        %v4143 = vunpack.c.l.b16 %v3627
        %v4144 = vunpack.c.h.b16 %v3627
        %v4145 = vunpack.c.l.b16 %v3628
        %v4146 = vunpack.c.h.b16 %v3628
        %v4147 = vunpack.c.l.b16 %v3629
        %v4148 = vunpack.c.h.b16 %v3629
        %v4149 = vunpack.c.l.b16 %v3630
        %v4150 = vunpack.c.h.b16 %v3630
        %v4151 = vunpack.c.l.b16 %v3631
        %v4152 = vunpack.c.h.b16 %v3631
        %v4153 = vunpack.c.l.b16 %v3632
        %v4154 = vunpack.c.h.b16 %v3632
        %v4155 = vunpack.c.l.b16 %v3633
        %v4156 = vunpack.c.h.b16 %v3633
        %v4157 = vunpack.c.l.b16 %v3634
        %v4158 = vunpack.c.h.b16 %v3634
        %v4159 = vunpack.c.l.b16 %v3635
        %v4160 = vunpack.c.h.b16 %v3635
        %v4161 = vunpack.c.l.b16 %v3636
        %v4162 = vunpack.c.h.b16 %v3636
        %v4163 = vpack.c.b16 %v4123, %v4121
        %v4164 = vpack.c.b16 %v4124, %v4122
        %v4165 = vpack.c.b16 %v4127, %v4125
        %v4166 = vpack.c.b16 %v4128, %v4126
        %v4167 = vpack.c.b16 %v4131, %v4129
        %v4168 = vpack.c.b16 %v4132, %v4130
        %v4169 = vpack.c.b16 %v4135, %v4133
        %v4170 = vpack.c.b16 %v4136, %v4134
        %v4171 = vpack.c.b16 %v4139, %v4137
        %v4172 = vpack.c.b16 %v4140, %v4138
        %v4173 = vpack.c.b16 %v4143, %v4141
        %v4174 = vpack.c.b16 %v4144, %v4142
        %v4175 = vpack.c.b16 %v4147, %v4145
        %v4176 = vpack.c.b16 %v4148, %v4146
        %v4177 = vpack.c.b16 %v4151, %v4149
        %v4178 = vpack.c.b16 %v4152, %v4150
        %v4179 = vpack.c.b16 %v4155, %v4153
        %v4180 = vpack.c.b16 %v4156, %v4154
        %v4181 = vpack.c.b16 %v4159, %v4157
        %v4182 = vpack.c.b16 %v4160, %v4158
        %v4183 = vpack.c.b16 %v4161, %v4161
        %v4184 = vpack.c.b16 %v4162, %v4162
        %v4206 = vsel %vm3807, %v4183, 0
        %v4209 = vsel %vm3807, %v4184, 0
        %4211 = vmatprep.subr.bf16.mxu0 %v4178
        %4212 = vmatpush1.bf16.msra.mxu0 %v4177
        %4213 = vmatprep.subr.bf16.mxu0 %v4176
        %4214 = vmatpush1.bf16.msra.mxu0 %v4175
        %4215 = vmatprep.subr.bf16.mxu0 %v4174
        %4216 = vmatpush1.bf16.msra.mxu0 %v4173
        %4217 = vmatprep.subr.bf16.mxu0 %v4172
        %4218 = vmatpush1.bf16.msra.mxu0 %v4171
        %4219 = vmatprep.subr.bf16.mxu0 %v4170
        %4220 = vmatpush1.bf16.msra.mxu0 %v4169
        %4221 = vmatprep.subr.bf16.mxu0 %v4168
        %4222 = vmatpush1.bf16.msra.mxu0 %v4167
        %4223 = vmatprep.subr.bf16.mxu0 %v4166
        %4224 = vmatpush1.bf16.msra.mxu0 %v4165
        %4225 = vmatprep.subr.bf16.mxu0 %v4164
        %4226 = vmatpush1.bf16.msra.mxu0 %v4163
        %4227 = vmatprep.subr.bf16.mxu0 0
        %4228 = vmatpush2.bf16.msra.mxu0 0
        %4229 = vmatprep.subr.bf16.mxu0 0
        %4230 = vmatpush2.bf16.msra.mxu0 0
        %4231 = vmatprep.subr.bf16.mxu0 0
        %4232 = vmatpush2.bf16.msra.mxu0 0
        %4233 = vmatprep.subr.bf16.mxu0 0
        %4234 = vmatpush2.bf16.msra.mxu0 0
        %4235 = vmatprep.subr.bf16.mxu0 0
        %4236 = vmatpush2.bf16.msra.mxu0 0
        %4237 = vmatprep.subr.bf16.mxu0 %v4209
        %4238 = vmatpush2.bf16.msra.mxu0 %v4206
        %4239 = vmatprep.subr.bf16.mxu0 %v4182
        %4240 = vmatpush2.bf16.msra.mxu0 %v4181
        %4241 = vmatprep.subr.bf16.mxu0 %v4180
        %4242 = vmatpush2.bf16.msra.mxu0 %v4179
        %4243 = vmatprep.mubr.bf16.mxu0 %v3766
        %4244 = vmatmul.mubr.bf16.gmra.mxu0 %v3588
        %v4245 = vpop.f32.mrf.mxu0
        %v4246 = vadd.f32 %v4096, %v4245
        %v4247 = vpop.f32.mrf.mxu0
        %v4248 = vadd.f32 %v4097, %v4247
        %v4249 = vpop.f32.mrf.mxu0
        %v4250 = vadd.f32 %v4094, %v4249
        %v4251 = vpop.f32.mrf.mxu0
        %v4252 = vadd.f32 %v4095, %v4251
        %4253 = vmatprep.mubr.bf16.mxu0 %v3769
        %4254 = vmatmul.mubr.bf16.gmra.mxu0 %v3590
        %v4255 = vpop.f32.mrf.mxu0
        %v4256 = vadd.f32 %v4092, %v4255
        %v4257 = vpop.f32.mrf.mxu0
        %v4258 = vadd.f32 %v4093, %v4257
        %v4259 = vpop.f32.mrf.mxu0
        %v4260 = vadd.f32 %v4090, %v4259
        %v4261 = vpop.f32.mrf.mxu0
        %v4262 = vadd.f32 %v4091, %v4261
        %4263 = vmatprep.mubr.bf16.mxu0 %v3772
        %4264 = vmatmul.mubr.bf16.gmra.mxu0 %v3592
        %v4265 = vpop.f32.mrf.mxu0
        %v4266 = vadd.f32 %v4088, %v4265
        %v4267 = vpop.f32.mrf.mxu0
        %v4268 = vadd.f32 %v4089, %v4267
        %v4269 = vpop.f32.mrf.mxu0
        %v4270 = vadd.f32 %v4086, %v4269
        %v4271 = vpop.f32.mrf.mxu0
        %v4272 = vadd.f32 %v4087, %v4271
        %4273 = vmatprep.mubr.bf16.mxu0 %v3775
        %4274 = vmatmul.mubr.bf16.gmra.mxu0 %v3594
        %v4275 = vpop.f32.mrf.mxu0
        %v4276 = vadd.f32 %v4084, %v4275
        %v4277 = vpop.f32.mrf.mxu0
        %v4278 = vadd.f32 %v4085, %v4277
        %v4279 = vpop.f32.mrf.mxu0
        %v4280 = vadd.f32 %v4082, %v4279
        %v4281 = vpop.f32.mrf.mxu0
        %v4282 = vadd.f32 %v4083, %v4281
        %4283 = vmatprep.mubr.bf16.mxu0 %v3778
        %4284 = vmatmul.mubr.bf16.gmra.mxu0 %v3596
        %v4285 = vpop.f32.mrf.mxu0
        %v4286 = vadd.f32 %v4080, %v4285
        %v4287 = vpop.f32.mrf.mxu0
        %v4288 = vadd.f32 %v4081, %v4287
        %v4289 = vpop.f32.mrf.mxu0
        %v4290 = vadd.f32 %v4078, %v4289
        %v4291 = vpop.f32.mrf.mxu0
        %v4292 = vadd.f32 %v4079, %v4291
        %4293 = vmatprep.mubr.bf16.mxu0 %v3781
        %4294 = vmatmul.mubr.bf16.gmra.mxu0 %v3598
        %v4295 = vpop.f32.mrf.mxu0
        %v4296 = vadd.f32 %v4076, %v4295
        %v4297 = vpop.f32.mrf.mxu0
        %v4298 = vadd.f32 %v4077, %v4297
        %v4299 = vpop.f32.mrf.mxu0
        %v4300 = vadd.f32 %v4074, %v4299
        %v4301 = vpop.f32.mrf.mxu0
        %v4302 = vadd.f32 %v4075, %v4301
        %4303 = vmatprep.mubr.bf16.mxu0 %v3784
        %4304 = vmatmul.mubr.bf16.gmra.mxu0 %v3600
        %v4305 = vpop.f32.mrf.mxu0
        %v4306 = vadd.f32 %v4072, %v4305
        %v4307 = vpop.f32.mrf.mxu0
        %v4308 = vadd.f32 %v4073, %v4307
        %v4309 = vpop.f32.mrf.mxu0
        %v4310 = vadd.f32 %v4070, %v4309
        %v4311 = vpop.f32.mrf.mxu0
        %v4312 = vadd.f32 %v4071, %v4311
        %4313 = vmatprep.mubr.bf16.mxu0 %v3787
        %4314 = vmatmul.mubr.bf16.gmra.mxu0 %v3602
        %v4315 = vpop.f32.mrf.mxu0
        %v4316 = vadd.f32 %v4068, %v4315
        %v4317 = vpop.f32.mrf.mxu0
        %v4318 = vadd.f32 %v4069, %v4317
        %v4319 = vpop.f32.mrf.mxu0
        %v4320 = vadd.f32 %v4066, %v4319
        %v4321 = vpop.f32.mrf.mxu0
        %v4322 = vadd.f32 %v4067, %v4321
        %4323 = vmatprep.mubr.bf16.mxu0 %v3790
        %4324 = vmatmul.mubr.bf16.gmra.mxu0 %v3604
        %v4325 = vpop.f32.mrf.mxu0
        %v4326 = vadd.f32 %v4064, %v4325
        %v4327 = vpop.f32.mrf.mxu0
        %v4328 = vadd.f32 %v4065, %v4327
        %v4329 = vpop.f32.mrf.mxu0
        %v4330 = vadd.f32 %v4062, %v4329
        %v4331 = vpop.f32.mrf.mxu0
        %v4332 = vadd.f32 %v4063, %v4331
        %4333 = vmatprep.mubr.bf16.mxu0 %v3793
        %4334 = vmatmul.mubr.bf16.gmra.mxu0 %v3606
        %v4335 = vpop.f32.mrf.mxu0
        %v4336 = vadd.f32 %v4060, %v4335
        %v4337 = vpop.f32.mrf.mxu0
        %v4338 = vadd.f32 %v4061, %v4337
        %v4339 = vpop.f32.mrf.mxu0
        %v4340 = vadd.f32 %v4058, %v4339
        %v4341 = vpop.f32.mrf.mxu0
        %v4342 = vadd.f32 %v4059, %v4341
        %4343 = vmatprep.mubr.bf16.mxu0 %v3796
        %4344 = vmatmul.mubr.bf16.gmra.mxu0 %v3608
        %v4345 = vpop.f32.mrf.mxu0
        %v4346 = vadd.f32 %v4056, %v4345
        %v4347 = vpop.f32.mrf.mxu0
        %v4348 = vadd.f32 %v4057, %v4347
        %v4349 = vpop.f32.mrf.mxu0
        %v4350 = vadd.f32 %v4054, %v4349
        %v4351 = vpop.f32.mrf.mxu0
        %v4352 = vadd.f32 %v4055, %v4351
        %4353 = vmatprep.mubr.bf16.mxu0 %v3799
        %4354 = vmatmul.mubr.bf16.gmra.mxu0 %v3610
        %v4355 = vpop.f32.mrf.mxu0
        %v4356 = vadd.f32 %v4052, %v4355
        %v4357 = vpop.f32.mrf.mxu0
        %v4358 = vadd.f32 %v4053, %v4357
        %v4359 = vpop.f32.mrf.mxu0
        %v4360 = vadd.f32 %v4050, %v4359
        %v4361 = vpop.f32.mrf.mxu0
        %v4362 = vadd.f32 %v4051, %v4361
        %4363 = vmatprep.mubr.bf16.mxu0 %v3802
        %4364 = vmatmul.mubr.bf16.gmra.mxu0 %v3612
        %v4365 = vpop.f32.mrf.mxu0
        %v4366 = vadd.f32 %v4048, %v4365
        %v4367 = vpop.f32.mrf.mxu0
        %v4368 = vadd.f32 %v4049, %v4367
        %v4369 = vpop.f32.mrf.mxu0
        %v4370 = vadd.f32 %v4046, %v4369
        %v4371 = vpop.f32.mrf.mxu0
        %v4372 = vadd.f32 %v4047, %v4371
        %4373 = vmatprep.mubr.bf16.mxu0 %v3805
        %4374 = vmatmul.mubr.bf16.gmra.mxu0 %v3614
        %v4375 = vpop.f32.mrf.mxu0
        %v4376 = vadd.f32 %v4044, %v4375
        %v4377 = vpop.f32.mrf.mxu0
        %v4378 = vadd.f32 %v4045, %v4377
        %v4379 = vpop.f32.mrf.mxu0
        %v4380 = vadd.f32 %v4098, %v4379
        %v4381 = vpop.f32.mrf.mxu0
        %v4382 = vadd.f32 %v4099, %v4381
        %4383 = vdwg.mxu0
        %s4384 = scalar_lea.vmem %s2, 336
        %v4385 = vld [vmem:[%s4384] sm:$0xff]
        %v4386 = vld [vmem:[%s4384 + $0x8] sm:$0xff]
        %v4387 = vld [vmem:[%s4384 + $0x10] sm:$0xff]
        %v4388 = vld [vmem:[%s4384 + $0x18] sm:$0xff]
        %v4389 = vld [vmem:[%s4384 + $0x20] sm:$0xff]
        %v4390 = vld [vmem:[%s4384 + $0x28] sm:$0xff]
        %v4391 = vld [vmem:[%s4384 + $0x30] sm:$0xff]
        %v4392 = vld [vmem:[%s4384 + $0x38] sm:$0xff]
        %v4393 = vld [vmem:[%s4384 + $0x40] sm:$0xff]
        %v4394 = vld [vmem:[%s4384 + $0x48] sm:$0xff]
        %v4395 = vld [vmem:[%s4384 + $0x50] sm:$0xff]
        %v4396 = vld [vmem:[%s4384 + $0x58] sm:$0xff]
        %v4397 = vld [vmem:[%s4384 + $0x60] sm:$0xff]
        %v4398 = vld [vmem:[%s4384 + $0x68] sm:$0xff]
        %v4399 = vld [vmem:[%s4384 + $0x70] sm:$0xff]
        %v4400 = vld [vmem:[%s4384 + $0x78] sm:$0xff]
        %v4401 = vld [vmem:[%s4384 + $0x80] sm:$0xff]
        %v4402 = vld [vmem:[%s4384 + $0x88] sm:$0xff]
        %v4403 = vld [vmem:[%s4384 + $0x90] sm:$0xff]
        %v4404 = vld [vmem:[%s4384 + $0x98] sm:$0xff]
        %v4405 = vld [vmem:[%s4384 + $0xa0] sm:$0x11]
        %v4427 = vunpack.c.l.b16 %v4385
        %v4428 = vunpack.c.h.b16 %v4385
        %v4429 = vunpack.c.l.b16 %v4386
        %v4430 = vunpack.c.h.b16 %v4386
        %v4431 = vunpack.c.l.b16 %v4387
        %v4432 = vunpack.c.h.b16 %v4387
        %v4433 = vunpack.c.l.b16 %v4388
        %v4434 = vunpack.c.h.b16 %v4388
        %v4435 = vunpack.c.l.b16 %v4389
        %v4436 = vunpack.c.h.b16 %v4389
        %v4437 = vunpack.c.l.b16 %v4390
        %v4438 = vunpack.c.h.b16 %v4390
        %v4439 = vunpack.c.l.b16 %v4391
        %v4440 = vunpack.c.h.b16 %v4391
        %v4441 = vunpack.c.l.b16 %v4392
        %v4442 = vunpack.c.h.b16 %v4392
        %v4443 = vunpack.c.l.b16 %v4393
        %v4444 = vunpack.c.h.b16 %v4393
        %v4445 = vunpack.c.l.b16 %v4394
        %v4446 = vunpack.c.h.b16 %v4394
        %v4447 = vunpack.c.l.b16 %v4395
        %v4448 = vunpack.c.h.b16 %v4395
        %v4449 = vunpack.c.l.b16 %v4396
        %v4450 = vunpack.c.h.b16 %v4396
        %v4451 = vunpack.c.l.b16 %v4397
        %v4452 = vunpack.c.h.b16 %v4397
        %v4453 = vunpack.c.l.b16 %v4398
        %v4454 = vunpack.c.h.b16 %v4398
        %v4455 = vunpack.c.l.b16 %v4399
        %v4456 = vunpack.c.h.b16 %v4399
        %v4457 = vunpack.c.l.b16 %v4400
        %v4458 = vunpack.c.h.b16 %v4400
        %v4459 = vunpack.c.l.b16 %v4401
        %v4460 = vunpack.c.h.b16 %v4401
        %v4461 = vunpack.c.l.b16 %v4402
        %v4462 = vunpack.c.h.b16 %v4402
        %v4463 = vunpack.c.l.b16 %v4403
        %v4464 = vunpack.c.h.b16 %v4403
        %v4465 = vunpack.c.l.b16 %v4404
        %v4466 = vunpack.c.h.b16 %v4404
        %v4467 = vunpack.c.l.b16 %v4405
        %v4468 = vunpack.c.h.b16 %v4405
        %v4469 = vpack.c.b16 %v4429, %v4427
        %v4470 = vpack.c.b16 %v4430, %v4428
        %v4471 = vpack.c.b16 %v4433, %v4431
        %v4472 = vpack.c.b16 %v4434, %v4432
        %v4473 = vpack.c.b16 %v4437, %v4435
        %v4474 = vpack.c.b16 %v4438, %v4436
        %v4475 = vpack.c.b16 %v4441, %v4439
        %v4476 = vpack.c.b16 %v4442, %v4440
        %v4477 = vpack.c.b16 %v4445, %v4443
        %v4478 = vpack.c.b16 %v4446, %v4444
        %v4479 = vpack.c.b16 %v4449, %v4447
        %v4480 = vpack.c.b16 %v4450, %v4448
        %v4481 = vpack.c.b16 %v4453, %v4451
        %v4482 = vpack.c.b16 %v4454, %v4452
        %v4483 = vpack.c.b16 %v4457, %v4455
        %v4484 = vpack.c.b16 %v4458, %v4456
        %v4485 = vpack.c.b16 %v4461, %v4459
        %v4486 = vpack.c.b16 %v4462, %v4460
        %v4487 = vpack.c.b16 %v4465, %v4463
        %v4488 = vpack.c.b16 %v4466, %v4464
        %v4489 = vpack.c.b16 %v4467, %v4467
        %v4490 = vpack.c.b16 %v4468, %v4468
        %v4512 = vsel %vm3807, %v4489, 0
        %v4515 = vsel %vm3807, %v4490, 0
        %4517 = vmatprep.subr.bf16.mxu0 %v4484
        %4518 = vmatpush1.bf16.msra.mxu0 %v4483
        %4519 = vmatprep.subr.bf16.mxu0 %v4482
        %4520 = vmatpush1.bf16.msra.mxu0 %v4481
        %4521 = vmatprep.subr.bf16.mxu0 %v4480
        %4522 = vmatpush1.bf16.msra.mxu0 %v4479
        %4523 = vmatprep.subr.bf16.mxu0 %v4478
        %4524 = vmatpush1.bf16.msra.mxu0 %v4477
        %4525 = vmatprep.subr.bf16.mxu0 %v4476
        %4526 = vmatpush1.bf16.msra.mxu0 %v4475
        %4527 = vmatprep.subr.bf16.mxu0 %v4474
        %4528 = vmatpush1.bf16.msra.mxu0 %v4473
        %4529 = vmatprep.subr.bf16.mxu0 %v4472
        %4530 = vmatpush1.bf16.msra.mxu0 %v4471
        %4531 = vmatprep.subr.bf16.mxu0 %v4470
        %4532 = vmatpush1.bf16.msra.mxu0 %v4469
        %4533 = vmatprep.subr.bf16.mxu0 0
        %4534 = vmatpush2.bf16.msra.mxu0 0
        %4535 = vmatprep.subr.bf16.mxu0 0
        %4536 = vmatpush2.bf16.msra.mxu0 0
        %4537 = vmatprep.subr.bf16.mxu0 0
        %4538 = vmatpush2.bf16.msra.mxu0 0
        %4539 = vmatprep.subr.bf16.mxu0 0
        %4540 = vmatpush2.bf16.msra.mxu0 0
        %4541 = vmatprep.subr.bf16.mxu0 0
        %4542 = vmatpush2.bf16.msra.mxu0 0
        %4543 = vmatprep.subr.bf16.mxu0 %v4515
        %4544 = vmatpush2.bf16.msra.mxu0 %v4512
        %4545 = vmatprep.subr.bf16.mxu0 %v4488
        %4546 = vmatpush2.bf16.msra.mxu0 %v4487
        %4547 = vmatprep.subr.bf16.mxu0 %v4486
        %4548 = vmatpush2.bf16.msra.mxu0 %v4485
        %4549 = vmatprep.mubr.bf16.mxu0 %v3766
        %4550 = vmatmul.mubr.bf16.gmra.mxu0 %v3588
        %v4551 = vpop.f32.mrf.mxu0
        %v4552 = vadd.f32 0.0, %v4551
        %v4553 = vpop.f32.mrf.mxu0
        %v4554 = vadd.f32 0.0, %v4553
        %v4555 = vpop.f32.mrf.mxu0
        %v4556 = vadd.f32 0.0, %v4555
        %v4557 = vpop.f32.mrf.mxu0
        %v4558 = vadd.f32 0.0, %v4557
        %4559 = vmatprep.mubr.bf16.mxu0 %v3769
        %4560 = vmatmul.mubr.bf16.gmra.mxu0 %v3590
        %v4561 = vpop.f32.mrf.mxu0
        %v4562 = vadd.f32 0.0, %v4561
        %v4563 = vpop.f32.mrf.mxu0
        %v4564 = vadd.f32 0.0, %v4563
        %v4565 = vpop.f32.mrf.mxu0
        %v4566 = vadd.f32 0.0, %v4565
        %v4567 = vpop.f32.mrf.mxu0
        %v4568 = vadd.f32 0.0, %v4567
        %4569 = vmatprep.mubr.bf16.mxu0 %v3772
        %4570 = vmatmul.mubr.bf16.gmra.mxu0 %v3592
        %v4571 = vpop.f32.mrf.mxu0
        %v4572 = vadd.f32 0.0, %v4571
        %v4573 = vpop.f32.mrf.mxu0
        %v4574 = vadd.f32 0.0, %v4573
        %v4575 = vpop.f32.mrf.mxu0
        %v4576 = vadd.f32 0.0, %v4575
        %v4577 = vpop.f32.mrf.mxu0
        %v4578 = vadd.f32 0.0, %v4577
        %4579 = vmatprep.mubr.bf16.mxu0 %v3775
        %4580 = vmatmul.mubr.bf16.gmra.mxu0 %v3594
        %v4581 = vpop.f32.mrf.mxu0
        %v4582 = vadd.f32 0.0, %v4581
        %v4583 = vpop.f32.mrf.mxu0
        %v4584 = vadd.f32 0.0, %v4583
        %v4585 = vpop.f32.mrf.mxu0
        %v4586 = vadd.f32 0.0, %v4585
        %v4587 = vpop.f32.mrf.mxu0
        %v4588 = vadd.f32 0.0, %v4587
        %4589 = vmatprep.mubr.bf16.mxu0 %v3778
        %4590 = vmatmul.mubr.bf16.gmra.mxu0 %v3596
        %v4591 = vpop.f32.mrf.mxu0
        %v4592 = vadd.f32 0.0, %v4591
        %v4593 = vpop.f32.mrf.mxu0
        %v4594 = vadd.f32 0.0, %v4593
        %v4595 = vpop.f32.mrf.mxu0
        %v4596 = vadd.f32 0.0, %v4595
        %v4597 = vpop.f32.mrf.mxu0
        %v4598 = vadd.f32 0.0, %v4597
        %4599 = vmatprep.mubr.bf16.mxu0 %v3781
        %4600 = vmatmul.mubr.bf16.gmra.mxu0 %v3598
        %v4601 = vpop.f32.mrf.mxu0
        %v4602 = vadd.f32 0.0, %v4601
        %v4603 = vpop.f32.mrf.mxu0
        %v4604 = vadd.f32 0.0, %v4603
        %v4605 = vpop.f32.mrf.mxu0
        %v4606 = vadd.f32 0.0, %v4605
        %v4607 = vpop.f32.mrf.mxu0
        %v4608 = vadd.f32 0.0, %v4607
        %4609 = vmatprep.mubr.bf16.mxu0 %v3784
        %4610 = vmatmul.mubr.bf16.gmra.mxu0 %v3600
        %v4611 = vpop.f32.mrf.mxu0
        %v4612 = vadd.f32 0.0, %v4611
        %v4613 = vpop.f32.mrf.mxu0
        %v4614 = vadd.f32 0.0, %v4613
        %v4615 = vpop.f32.mrf.mxu0
        %v4616 = vadd.f32 0.0, %v4615
        %v4617 = vpop.f32.mrf.mxu0
        %v4618 = vadd.f32 0.0, %v4617
        %4619 = vmatprep.mubr.bf16.mxu0 %v3787
        %4620 = vmatmul.mubr.bf16.gmra.mxu0 %v3602
        %v4621 = vpop.f32.mrf.mxu0
        %v4622 = vadd.f32 0.0, %v4621
        %v4623 = vpop.f32.mrf.mxu0
        %v4624 = vadd.f32 0.0, %v4623
        %v4625 = vpop.f32.mrf.mxu0
        %v4626 = vadd.f32 0.0, %v4625
        %v4627 = vpop.f32.mrf.mxu0
        %v4628 = vadd.f32 0.0, %v4627
        %4629 = vmatprep.mubr.bf16.mxu0 %v3790
        %4630 = vmatmul.mubr.bf16.gmra.mxu0 %v3604
        %v4631 = vpop.f32.mrf.mxu0
        %v4632 = vadd.f32 0.0, %v4631
        %v4633 = vpop.f32.mrf.mxu0
        %v4634 = vadd.f32 0.0, %v4633
        %v4635 = vpop.f32.mrf.mxu0
        %v4636 = vadd.f32 0.0, %v4635
        %v4637 = vpop.f32.mrf.mxu0
        %v4638 = vadd.f32 0.0, %v4637
        %4639 = vmatprep.mubr.bf16.mxu0 %v3793
        %4640 = vmatmul.mubr.bf16.gmra.mxu0 %v3606
        %v4641 = vpop.f32.mrf.mxu0
        %v4642 = vadd.f32 0.0, %v4641
        %v4643 = vpop.f32.mrf.mxu0
        %v4644 = vadd.f32 0.0, %v4643
        %v4645 = vpop.f32.mrf.mxu0
        %v4646 = vadd.f32 0.0, %v4645
        %v4647 = vpop.f32.mrf.mxu0
        %v4648 = vadd.f32 0.0, %v4647
        %4649 = vmatprep.mubr.bf16.mxu0 %v3796
        %4650 = vmatmul.mubr.bf16.gmra.mxu0 %v3608
        %v4651 = vpop.f32.mrf.mxu0
        %v4652 = vadd.f32 0.0, %v4651
        %v4653 = vpop.f32.mrf.mxu0
        %v4654 = vadd.f32 0.0, %v4653
        %v4655 = vpop.f32.mrf.mxu0
        %v4656 = vadd.f32 0.0, %v4655
        %v4657 = vpop.f32.mrf.mxu0
        %v4658 = vadd.f32 0.0, %v4657
        %4659 = vmatprep.mubr.bf16.mxu0 %v3799
        %4660 = vmatmul.mubr.bf16.gmra.mxu0 %v3610
        %v4661 = vpop.f32.mrf.mxu0
        %v4662 = vadd.f32 0.0, %v4661
        %v4663 = vpop.f32.mrf.mxu0
        %v4664 = vadd.f32 0.0, %v4663
        %v4665 = vpop.f32.mrf.mxu0
        %v4666 = vadd.f32 0.0, %v4665
        %v4667 = vpop.f32.mrf.mxu0
        %v4668 = vadd.f32 0.0, %v4667
        %4669 = vmatprep.mubr.bf16.mxu0 %v3802
        %4670 = vmatmul.mubr.bf16.gmra.mxu0 %v3612
        %v4671 = vpop.f32.mrf.mxu0
        %v4672 = vadd.f32 0.0, %v4671
        %v4673 = vpop.f32.mrf.mxu0
        %v4674 = vadd.f32 0.0, %v4673
        %v4675 = vpop.f32.mrf.mxu0
        %v4676 = vadd.f32 0.0, %v4675
        %v4677 = vpop.f32.mrf.mxu0
        %v4678 = vadd.f32 0.0, %v4677
        %4679 = vmatprep.mubr.bf16.mxu0 %v3805
        %4680 = vmatmul.mubr.bf16.gmra.mxu0 %v3614
        %v4681 = vpop.f32.mrf.mxu0
        %v4682 = vadd.f32 0.0, %v4681
        %v4683 = vpop.f32.mrf.mxu0
        %v4684 = vadd.f32 0.0, %v4683
        %v4685 = vpop.f32.mrf.mxu0
        %v4686 = vadd.f32 0.0, %v4685
        %v4687 = vpop.f32.mrf.mxu0
        %v4688 = vadd.f32 0.0, %v4687
        %4689 = vdwg.mxu0
        %v4690 = vrot.slane %v4552, 4
        %v4691 = vrot.slane %v4554, 4
        %v4692 = vrot.slane %v4556, 4
        %v4693 = vrot.slane %v4558, 4
        %v4694 = vrot.slane %v4562, 4
        %v4695 = vrot.slane %v4564, 4
        %v4696 = vrot.slane %v4566, 4
        %v4697 = vrot.slane %v4568, 4
        %v4698 = vrot.slane %v4572, 4
        %v4699 = vrot.slane %v4574, 4
        %v4700 = vrot.slane %v4576, 4
        %v4701 = vrot.slane %v4578, 4
        %v4702 = vrot.slane %v4582, 4
        %v4703 = vrot.slane %v4584, 4
        %v4704 = vrot.slane %v4586, 4
        %v4705 = vrot.slane %v4588, 4
        %v4706 = vrot.slane %v4592, 4
        %v4707 = vrot.slane %v4594, 4
        %v4708 = vrot.slane %v4596, 4
        %v4709 = vrot.slane %v4598, 4
        %v4710 = vrot.slane %v4602, 4
        %v4711 = vrot.slane %v4604, 4
        %v4712 = vrot.slane %v4606, 4
        %v4713 = vrot.slane %v4608, 4
        %v4714 = vrot.slane %v4612, 4
        %v4715 = vrot.slane %v4614, 4
        %v4716 = vrot.slane %v4616, 4
        %v4717 = vrot.slane %v4618, 4
        %v4718 = vrot.slane %v4622, 4
        %v4719 = vrot.slane %v4624, 4
        %v4720 = vrot.slane %v4626, 4
        %v4721 = vrot.slane %v4628, 4
        %v4722 = vrot.slane %v4632, 4
        %v4723 = vrot.slane %v4634, 4
        %v4724 = vrot.slane %v4636, 4
        %v4725 = vrot.slane %v4638, 4
        %v4726 = vrot.slane %v4642, 4
        %v4727 = vrot.slane %v4644, 4
        %v4728 = vrot.slane %v4646, 4
        %v4729 = vrot.slane %v4648, 4
        %v4730 = vrot.slane %v4652, 4
        %v4731 = vrot.slane %v4654, 4
        %v4732 = vrot.slane %v4656, 4
        %v4733 = vrot.slane %v4658, 4
        %v4734 = vrot.slane %v4662, 4
        %v4735 = vrot.slane %v4664, 4
        %v4736 = vrot.slane %v4666, 4
        %v4737 = vrot.slane %v4668, 4
        %v4738 = vrot.slane %v4672, 4
        %v4739 = vrot.slane %v4674, 4
        %v4740 = vrot.slane %v4676, 4
        %v4741 = vrot.slane %v4678, 4
        %v4742 = vrot.slane %v4682, 4
        %v4743 = vrot.slane %v4684, 4
        %v4744 = vrot.slane %v4686, 4
        %v4745 = vrot.slane %v4688, 4
        %vm4746 = vcmp.lt.s32.totalorder %v3474, 4
        %v4747 = vsel %vm4746, %v4742, %v4744
        %v4748 = vsel %vm4746, %v4743, %v4745
        %v4749 = vsel %vm4746, %v4740, %v4742
        %v4750 = vsel %vm4746, %v4741, %v4743
        %v4751 = vsel %vm4746, %v4738, %v4740
        %v4752 = vsel %vm4746, %v4739, %v4741
        %v4753 = vsel %vm4746, %v4736, %v4738
        %v4754 = vsel %vm4746, %v4737, %v4739
        %v4755 = vsel %vm4746, %v4734, %v4736
        %v4756 = vsel %vm4746, %v4735, %v4737
        %v4757 = vsel %vm4746, %v4732, %v4734
        %v4758 = vsel %vm4746, %v4733, %v4735
        %v4759 = vsel %vm4746, %v4730, %v4732
        %v4760 = vsel %vm4746, %v4731, %v4733
        %v4761 = vsel %vm4746, %v4728, %v4730
        %v4762 = vsel %vm4746, %v4729, %v4731
        %v4763 = vsel %vm4746, %v4726, %v4728
        %v4764 = vsel %vm4746, %v4727, %v4729
        %v4765 = vsel %vm4746, %v4724, %v4726
        %v4766 = vsel %vm4746, %v4725, %v4727
        %v4767 = vsel %vm4746, %v4722, %v4724
        %v4768 = vsel %vm4746, %v4723, %v4725
        %v4769 = vsel %vm4746, %v4720, %v4722
        %v4770 = vsel %vm4746, %v4721, %v4723
        %v4771 = vsel %vm4746, %v4718, %v4720
        %v4772 = vsel %vm4746, %v4719, %v4721
        %v4773 = vsel %vm4746, %v4716, %v4718
        %v4774 = vsel %vm4746, %v4717, %v4719
        %v4775 = vsel %vm4746, %v4714, %v4716
        %v4776 = vsel %vm4746, %v4715, %v4717
        %v4777 = vsel %vm4746, %v4712, %v4714
        %v4778 = vsel %vm4746, %v4713, %v4715
        %v4779 = vsel %vm4746, %v4710, %v4712
        %v4780 = vsel %vm4746, %v4711, %v4713
        %v4781 = vsel %vm4746, %v4708, %v4710
        %v4782 = vsel %vm4746, %v4709, %v4711
        %v4783 = vsel %vm4746, %v4706, %v4708
        %v4784 = vsel %vm4746, %v4707, %v4709
        %v4785 = vsel %vm4746, %v4704, %v4706
        %v4786 = vsel %vm4746, %v4705, %v4707
        %v4787 = vsel %vm4746, %v4702, %v4704
        %v4788 = vsel %vm4746, %v4703, %v4705
        %v4789 = vsel %vm4746, %v4700, %v4702
        %v4790 = vsel %vm4746, %v4701, %v4703
        %v4791 = vsel %vm4746, %v4698, %v4700
        %v4792 = vsel %vm4746, %v4699, %v4701
        %v4793 = vsel %vm4746, %v4696, %v4698
        %v4794 = vsel %vm4746, %v4697, %v4699
        %v4795 = vsel %vm4746, %v4694, %v4696
        %v4796 = vsel %vm4746, %v4695, %v4697
        %v4797 = vsel %vm4746, %v4692, %v4694
        %v4798 = vsel %vm4746, %v4693, %v4695
        %v4799 = vsel %vm4746, %v4690, %v4692
        %v4800 = vsel %vm4746, %v4691, %v4693
        %v4801 = vsel %vm4746, %v4744, %v4690
        %v4802 = vsel %vm4746, %v4745, %v4691
        %v4803 = vadd.f32 %v4246, %v4799
        %v4804 = vadd.f32 %v4248, %v4800
        %v4805 = vadd.f32 %v4250, %v4797
        %v4806 = vadd.f32 %v4252, %v4798
        %v4807 = vadd.f32 %v4256, %v4795
        %v4808 = vadd.f32 %v4258, %v4796
        %v4809 = vadd.f32 %v4260, %v4793
        %v4810 = vadd.f32 %v4262, %v4794
        %v4811 = vadd.f32 %v4266, %v4791
        %v4812 = vadd.f32 %v4268, %v4792
        %v4813 = vadd.f32 %v4270, %v4789
        %v4814 = vadd.f32 %v4272, %v4790
        %v4815 = vadd.f32 %v4276, %v4787
        %v4816 = vadd.f32 %v4278, %v4788
        %v4817 = vadd.f32 %v4280, %v4785
        %v4818 = vadd.f32 %v4282, %v4786
        %v4819 = vadd.f32 %v4286, %v4783
        %v4820 = vadd.f32 %v4288, %v4784
        %v4821 = vadd.f32 %v4290, %v4781
        %v4822 = vadd.f32 %v4292, %v4782
        %v4823 = vadd.f32 %v4296, %v4779
        %v4824 = vadd.f32 %v4298, %v4780
        %v4825 = vadd.f32 %v4300, %v4777
        %v4826 = vadd.f32 %v4302, %v4778
        %v4827 = vadd.f32 %v4306, %v4775
        %v4828 = vadd.f32 %v4308, %v4776
        %v4829 = vadd.f32 %v4310, %v4773
        %v4830 = vadd.f32 %v4312, %v4774
        %v4831 = vadd.f32 %v4316, %v4771
        %v4832 = vadd.f32 %v4318, %v4772
        %v4833 = vadd.f32 %v4320, %v4769
        %v4834 = vadd.f32 %v4322, %v4770
        %v4835 = vadd.f32 %v4326, %v4767
        %v4836 = vadd.f32 %v4328, %v4768
        %v4837 = vadd.f32 %v4330, %v4765
        %v4838 = vadd.f32 %v4332, %v4766
        %v4839 = vadd.f32 %v4336, %v4763
        %v4840 = vadd.f32 %v4338, %v4764
        %v4841 = vadd.f32 %v4340, %v4761
        %v4842 = vadd.f32 %v4342, %v4762
        %v4843 = vadd.f32 %v4346, %v4759
        %v4844 = vadd.f32 %v4348, %v4760
        %v4845 = vadd.f32 %v4350, %v4757
        %v4846 = vadd.f32 %v4352, %v4758
        %v4847 = vadd.f32 %v4356, %v4755
        %v4848 = vadd.f32 %v4358, %v4756
        %v4849 = vadd.f32 %v4360, %v4753
        %v4850 = vadd.f32 %v4362, %v4754
        %v4851 = vadd.f32 %v4366, %v4751
        %v4852 = vadd.f32 %v4368, %v4752
        %v4853 = vadd.f32 %v4370, %v4749
        %v4854 = vadd.f32 %v4372, %v4750
        %v4855 = vadd.f32 %v4376, %v4747
        %v4856 = vadd.f32 %v4378, %v4748
        %v4857 = vadd.f32 %v4380, %v4801
        %v4858 = vadd.f32 %v4382, %v4802
        %s4859 = scalar_lea.vmem %s2, 504
        %v4860 = vld [vmem:[%s4859] sm:$0xff]
        %v4861 = vld [vmem:[%s4859 + $0x8] sm:$0xff]
        %v4862 = vld [vmem:[%s4859 + $0x10] sm:$0xff]
        %v4863 = vld [vmem:[%s4859 + $0x18] sm:$0xff]
        %v4864 = vld [vmem:[%s4859 + $0x20] sm:$0xff]
        %v4865 = vld [vmem:[%s4859 + $0x28] sm:$0xff]
        %v4866 = vld [vmem:[%s4859 + $0x30] sm:$0xff]
        %v4867 = vld [vmem:[%s4859 + $0x38] sm:$0xff]
        %v4868 = vld [vmem:[%s4859 + $0x40] sm:$0xff]
        %v4869 = vld [vmem:[%s4859 + $0x48] sm:$0xff]
        %v4870 = vld [vmem:[%s4859 + $0x50] sm:$0xff]
        %v4871 = vld [vmem:[%s4859 + $0x58] sm:$0xff]
        %v4872 = vld [vmem:[%s4859 + $0x60] sm:$0xff]
        %v4873 = vld [vmem:[%s4859 + $0x68] sm:$0xff]
        %v4874 = vld [vmem:[%s4859 + $0x70] sm:$0xff]
        %v4875 = vld [vmem:[%s4859 + $0x78] sm:$0xff]
        %v4876 = vld [vmem:[%s4859 + $0x80] sm:$0xff]
        %v4877 = vld [vmem:[%s4859 + $0x88] sm:$0xff]
        %v4878 = vld [vmem:[%s4859 + $0x90] sm:$0xff]
        %v4879 = vld [vmem:[%s4859 + $0x98] sm:$0xff]
        %v4880 = vld [vmem:[%s4859 + $0xa0] sm:$0x11]
        %v4902 = vunpack.c.l.b16 %v4860
        %v4903 = vunpack.c.h.b16 %v4860
        %v4904 = vunpack.c.l.b16 %v4861
        %v4905 = vunpack.c.h.b16 %v4861
        %v4906 = vunpack.c.l.b16 %v4862
        %v4907 = vunpack.c.h.b16 %v4862
        %v4908 = vunpack.c.l.b16 %v4863
        %v4909 = vunpack.c.h.b16 %v4863
        %v4910 = vunpack.c.l.b16 %v4864
        %v4911 = vunpack.c.h.b16 %v4864
        %v4912 = vunpack.c.l.b16 %v4865
        %v4913 = vunpack.c.h.b16 %v4865
        %v4914 = vunpack.c.l.b16 %v4866
        %v4915 = vunpack.c.h.b16 %v4866
        %v4916 = vunpack.c.l.b16 %v4867
        %v4917 = vunpack.c.h.b16 %v4867
        %v4918 = vunpack.c.l.b16 %v4868
        %v4919 = vunpack.c.h.b16 %v4868
        %v4920 = vunpack.c.l.b16 %v4869
        %v4921 = vunpack.c.h.b16 %v4869
        %v4922 = vunpack.c.l.b16 %v4870
        %v4923 = vunpack.c.h.b16 %v4870
        %v4924 = vunpack.c.l.b16 %v4871
        %v4925 = vunpack.c.h.b16 %v4871
        %v4926 = vunpack.c.l.b16 %v4872
        %v4927 = vunpack.c.h.b16 %v4872
        %v4928 = vunpack.c.l.b16 %v4873
        %v4929 = vunpack.c.h.b16 %v4873
        %v4930 = vunpack.c.l.b16 %v4874
        %v4931 = vunpack.c.h.b16 %v4874
        %v4932 = vunpack.c.l.b16 %v4875
        %v4933 = vunpack.c.h.b16 %v4875
        %v4934 = vunpack.c.l.b16 %v4876
        %v4935 = vunpack.c.h.b16 %v4876
        %v4936 = vunpack.c.l.b16 %v4877
        %v4937 = vunpack.c.h.b16 %v4877
        %v4938 = vunpack.c.l.b16 %v4878
        %v4939 = vunpack.c.h.b16 %v4878
        %v4940 = vunpack.c.l.b16 %v4879
        %v4941 = vunpack.c.h.b16 %v4879
        %v4942 = vunpack.c.l.b16 %v4880
        %v4943 = vunpack.c.h.b16 %v4880
        %v4944 = vpack.c.b16 %v4904, %v4902
        %v4945 = vpack.c.b16 %v4905, %v4903
        %v4946 = vpack.c.b16 %v4908, %v4906
        %v4947 = vpack.c.b16 %v4909, %v4907
        %v4948 = vpack.c.b16 %v4912, %v4910
        %v4949 = vpack.c.b16 %v4913, %v4911
        %v4950 = vpack.c.b16 %v4916, %v4914
        %v4951 = vpack.c.b16 %v4917, %v4915
        %v4952 = vpack.c.b16 %v4920, %v4918
        %v4953 = vpack.c.b16 %v4921, %v4919
        %v4954 = vpack.c.b16 %v4924, %v4922
        %v4955 = vpack.c.b16 %v4925, %v4923
        %v4956 = vpack.c.b16 %v4928, %v4926
        %v4957 = vpack.c.b16 %v4929, %v4927
        %v4958 = vpack.c.b16 %v4932, %v4930
        %v4959 = vpack.c.b16 %v4933, %v4931
        %v4960 = vpack.c.b16 %v4936, %v4934
        %v4961 = vpack.c.b16 %v4937, %v4935
        %v4962 = vpack.c.b16 %v4940, %v4938
        %v4963 = vpack.c.b16 %v4941, %v4939
        %v4964 = vpack.c.b16 %v4942, %v4942
        %v4965 = vpack.c.b16 %v4943, %v4943
        %v4987 = vsel %vm3807, %v4964, 0
        %v4990 = vsel %vm3807, %v4965, 0
        %4992 = vmatprep.subr.bf16.mxu0 %v4959
        %4993 = vmatpush1.bf16.msra.mxu0 %v4958
        %4994 = vmatprep.subr.bf16.mxu0 %v4957
        %4995 = vmatpush1.bf16.msra.mxu0 %v4956
        %4996 = vmatprep.subr.bf16.mxu0 %v4955
        %4997 = vmatpush1.bf16.msra.mxu0 %v4954
        %4998 = vmatprep.subr.bf16.mxu0 %v4953
        %4999 = vmatpush1.bf16.msra.mxu0 %v4952
        %5000 = vmatprep.subr.bf16.mxu0 %v4951
        %5001 = vmatpush1.bf16.msra.mxu0 %v4950
        %5002 = vmatprep.subr.bf16.mxu0 %v4949
        %5003 = vmatpush1.bf16.msra.mxu0 %v4948
        %5004 = vmatprep.subr.bf16.mxu0 %v4947
        %5005 = vmatpush1.bf16.msra.mxu0 %v4946
        %5006 = vmatprep.subr.bf16.mxu0 %v4945
        %5007 = vmatpush1.bf16.msra.mxu0 %v4944
        %5008 = vmatprep.subr.bf16.mxu0 0
        %5009 = vmatpush2.bf16.msra.mxu0 0
        %5010 = vmatprep.subr.bf16.mxu0 0
        %5011 = vmatpush2.bf16.msra.mxu0 0
        %5012 = vmatprep.subr.bf16.mxu0 0
        %5013 = vmatpush2.bf16.msra.mxu0 0
        %5014 = vmatprep.subr.bf16.mxu0 0
        %5015 = vmatpush2.bf16.msra.mxu0 0
        %5016 = vmatprep.subr.bf16.mxu0 0
        %5017 = vmatpush2.bf16.msra.mxu0 0
        %5018 = vmatprep.subr.bf16.mxu0 %v4990
        %5019 = vmatpush2.bf16.msra.mxu0 %v4987
        %5020 = vmatprep.subr.bf16.mxu0 %v4963
        %5021 = vmatpush2.bf16.msra.mxu0 %v4962
        %5022 = vmatprep.subr.bf16.mxu0 %v4961
        %5023 = vmatpush2.bf16.msra.mxu0 %v4960
        %5024 = vmatprep.mubr.bf16.mxu0 %v3766
        %5025 = vmatmul.mubr.bf16.gmra.mxu0 %v3588
        %v5026 = vpop.f32.mrf.mxu0
        %v5027 = vadd.f32 0.0, %v5026
        %v5028 = vpop.f32.mrf.mxu0
        %v5029 = vadd.f32 0.0, %v5028
        %v5030 = vpop.f32.mrf.mxu0
        %v5031 = vadd.f32 0.0, %v5030
        %v5032 = vpop.f32.mrf.mxu0
        %v5033 = vadd.f32 0.0, %v5032
        %5034 = vmatprep.mubr.bf16.mxu0 %v3769
        %5035 = vmatmul.mubr.bf16.gmra.mxu0 %v3590
        %v5036 = vpop.f32.mrf.mxu0
        %v5037 = vadd.f32 0.0, %v5036
        %v5038 = vpop.f32.mrf.mxu0
        %v5039 = vadd.f32 0.0, %v5038
        %v5040 = vpop.f32.mrf.mxu0
        %v5041 = vadd.f32 0.0, %v5040
        %v5042 = vpop.f32.mrf.mxu0
        %v5043 = vadd.f32 0.0, %v5042
        %5044 = vmatprep.mubr.bf16.mxu0 %v3772
        %5045 = vmatmul.mubr.bf16.gmra.mxu0 %v3592
        %v5046 = vpop.f32.mrf.mxu0
        %v5047 = vadd.f32 0.0, %v5046
        %v5048 = vpop.f32.mrf.mxu0
        %v5049 = vadd.f32 0.0, %v5048
        %v5050 = vpop.f32.mrf.mxu0
        %v5051 = vadd.f32 0.0, %v5050
        %v5052 = vpop.f32.mrf.mxu0
        %v5053 = vadd.f32 0.0, %v5052
        %5054 = vmatprep.mubr.bf16.mxu0 %v3775
        %5055 = vmatmul.mubr.bf16.gmra.mxu0 %v3594
        %v5056 = vpop.f32.mrf.mxu0
        %v5057 = vadd.f32 0.0, %v5056
        %v5058 = vpop.f32.mrf.mxu0
        %v5059 = vadd.f32 0.0, %v5058
        %v5060 = vpop.f32.mrf.mxu0
        %v5061 = vadd.f32 0.0, %v5060
        %v5062 = vpop.f32.mrf.mxu0
        %v5063 = vadd.f32 0.0, %v5062
        %5064 = vmatprep.mubr.bf16.mxu0 %v3778
        %5065 = vmatmul.mubr.bf16.gmra.mxu0 %v3596
        %v5066 = vpop.f32.mrf.mxu0
        %v5067 = vadd.f32 0.0, %v5066
        %v5068 = vpop.f32.mrf.mxu0
        %v5069 = vadd.f32 0.0, %v5068
        %v5070 = vpop.f32.mrf.mxu0
        %v5071 = vadd.f32 0.0, %v5070
        %v5072 = vpop.f32.mrf.mxu0
        %v5073 = vadd.f32 0.0, %v5072
        %5074 = vmatprep.mubr.bf16.mxu0 %v3781
        %5075 = vmatmul.mubr.bf16.gmra.mxu0 %v3598
        %v5076 = vpop.f32.mrf.mxu0
        %v5077 = vadd.f32 0.0, %v5076
        %v5078 = vpop.f32.mrf.mxu0
        %v5079 = vadd.f32 0.0, %v5078
        %v5080 = vpop.f32.mrf.mxu0
        %v5081 = vadd.f32 0.0, %v5080
        %v5082 = vpop.f32.mrf.mxu0
        %v5083 = vadd.f32 0.0, %v5082
        %5084 = vmatprep.mubr.bf16.mxu0 %v3784
        %5085 = vmatmul.mubr.bf16.gmra.mxu0 %v3600
        %v5086 = vpop.f32.mrf.mxu0
        %v5087 = vadd.f32 0.0, %v5086
        %v5088 = vpop.f32.mrf.mxu0
        %v5089 = vadd.f32 0.0, %v5088
        %v5090 = vpop.f32.mrf.mxu0
        %v5091 = vadd.f32 0.0, %v5090
        %v5092 = vpop.f32.mrf.mxu0
        %v5093 = vadd.f32 0.0, %v5092
        %5094 = vmatprep.mubr.bf16.mxu0 %v3787
        %5095 = vmatmul.mubr.bf16.gmra.mxu0 %v3602
        %v5096 = vpop.f32.mrf.mxu0
        %v5097 = vadd.f32 0.0, %v5096
        %v5098 = vpop.f32.mrf.mxu0
        %v5099 = vadd.f32 0.0, %v5098
        %v5100 = vpop.f32.mrf.mxu0
        %v5101 = vadd.f32 0.0, %v5100
        %v5102 = vpop.f32.mrf.mxu0
        %v5103 = vadd.f32 0.0, %v5102
        %5104 = vmatprep.mubr.bf16.mxu0 %v3790
        %5105 = vmatmul.mubr.bf16.gmra.mxu0 %v3604
        %v5106 = vpop.f32.mrf.mxu0
        %v5107 = vadd.f32 0.0, %v5106
        %v5108 = vpop.f32.mrf.mxu0
        %v5109 = vadd.f32 0.0, %v5108
        %v5110 = vpop.f32.mrf.mxu0
        %v5111 = vadd.f32 0.0, %v5110
        %v5112 = vpop.f32.mrf.mxu0
        %v5113 = vadd.f32 0.0, %v5112
        %5114 = vmatprep.mubr.bf16.mxu0 %v3793
        %5115 = vmatmul.mubr.bf16.gmra.mxu0 %v3606
        %v5116 = vpop.f32.mrf.mxu0
        %v5117 = vadd.f32 0.0, %v5116
        %v5118 = vpop.f32.mrf.mxu0
        %v5119 = vadd.f32 0.0, %v5118
        %v5120 = vpop.f32.mrf.mxu0
        %v5121 = vadd.f32 0.0, %v5120
        %v5122 = vpop.f32.mrf.mxu0
        %v5123 = vadd.f32 0.0, %v5122
        %5124 = vmatprep.mubr.bf16.mxu0 %v3796
        %5125 = vmatmul.mubr.bf16.gmra.mxu0 %v3608
        %v5126 = vpop.f32.mrf.mxu0
        %v5127 = vadd.f32 0.0, %v5126
        %v5128 = vpop.f32.mrf.mxu0
        %v5129 = vadd.f32 0.0, %v5128
        %v5130 = vpop.f32.mrf.mxu0
        %v5131 = vadd.f32 0.0, %v5130
        %v5132 = vpop.f32.mrf.mxu0
        %v5133 = vadd.f32 0.0, %v5132
        %5134 = vmatprep.mubr.bf16.mxu0 %v3799
        %5135 = vmatmul.mubr.bf16.gmra.mxu0 %v3610
        %v5136 = vpop.f32.mrf.mxu0
        %v5137 = vadd.f32 0.0, %v5136
        %v5138 = vpop.f32.mrf.mxu0
        %v5139 = vadd.f32 0.0, %v5138
        %v5140 = vpop.f32.mrf.mxu0
        %v5141 = vadd.f32 0.0, %v5140
        %v5142 = vpop.f32.mrf.mxu0
        %v5143 = vadd.f32 0.0, %v5142
        %5144 = vmatprep.mubr.bf16.mxu0 %v3802
        %5145 = vmatmul.mubr.bf16.gmra.mxu0 %v3612
        %v5146 = vpop.f32.mrf.mxu0
        %v5147 = vadd.f32 0.0, %v5146
        %v5148 = vpop.f32.mrf.mxu0
        %v5149 = vadd.f32 0.0, %v5148
        %v5150 = vpop.f32.mrf.mxu0
        %v5151 = vadd.f32 0.0, %v5150
        %v5152 = vpop.f32.mrf.mxu0
        %v5153 = vadd.f32 0.0, %v5152
        %5154 = vmatprep.mubr.bf16.mxu0 %v3805
        %5155 = vmatmul.mubr.bf16.gmra.mxu0 %v3614
        %v5156 = vpop.f32.mrf.mxu0
        %v5157 = vadd.f32 0.0, %v5156
        %v5158 = vpop.f32.mrf.mxu0
        %v5159 = vadd.f32 0.0, %v5158
        %v5160 = vpop.f32.mrf.mxu0
        %v5161 = vadd.f32 0.0, %v5160
        %v5162 = vpop.f32.mrf.mxu0
        %v5163 = vadd.f32 0.0, %v5162
        %5164 = vdwg.mxu0
        %v5165 = vrot.slane %v5027, 6
        %v5166 = vrot.slane %v5029, 6
        %v5167 = vrot.slane %v5031, 6
        %v5168 = vrot.slane %v5033, 6
        %v5169 = vrot.slane %v5037, 6
        %v5170 = vrot.slane %v5039, 6
        %v5171 = vrot.slane %v5041, 6
        %v5172 = vrot.slane %v5043, 6
        %v5173 = vrot.slane %v5047, 6
        %v5174 = vrot.slane %v5049, 6
        %v5175 = vrot.slane %v5051, 6
        %v5176 = vrot.slane %v5053, 6
        %v5177 = vrot.slane %v5057, 6
        %v5178 = vrot.slane %v5059, 6
        %v5179 = vrot.slane %v5061, 6
        %v5180 = vrot.slane %v5063, 6
        %v5181 = vrot.slane %v5067, 6
        %v5182 = vrot.slane %v5069, 6
        %v5183 = vrot.slane %v5071, 6
        %v5184 = vrot.slane %v5073, 6
        %v5185 = vrot.slane %v5077, 6
        %v5186 = vrot.slane %v5079, 6
        %v5187 = vrot.slane %v5081, 6
        %v5188 = vrot.slane %v5083, 6
        %v5189 = vrot.slane %v5087, 6
        %v5190 = vrot.slane %v5089, 6
        %v5191 = vrot.slane %v5091, 6
        %v5192 = vrot.slane %v5093, 6
        %v5193 = vrot.slane %v5097, 6
        %v5194 = vrot.slane %v5099, 6
        %v5195 = vrot.slane %v5101, 6
        %v5196 = vrot.slane %v5103, 6
        %v5197 = vrot.slane %v5107, 6
        %v5198 = vrot.slane %v5109, 6
        %v5199 = vrot.slane %v5111, 6
        %v5200 = vrot.slane %v5113, 6
        %v5201 = vrot.slane %v5117, 6
        %v5202 = vrot.slane %v5119, 6
        %v5203 = vrot.slane %v5121, 6
        %v5204 = vrot.slane %v5123, 6
        %v5205 = vrot.slane %v5127, 6
        %v5206 = vrot.slane %v5129, 6
        %v5207 = vrot.slane %v5131, 6
        %v5208 = vrot.slane %v5133, 6
        %v5209 = vrot.slane %v5137, 6
        %v5210 = vrot.slane %v5139, 6
        %v5211 = vrot.slane %v5141, 6
        %v5212 = vrot.slane %v5143, 6
        %v5213 = vrot.slane %v5147, 6
        %v5214 = vrot.slane %v5149, 6
        %v5215 = vrot.slane %v5151, 6
        %v5216 = vrot.slane %v5153, 6
        %v5217 = vrot.slane %v5157, 6
        %v5218 = vrot.slane %v5159, 6
        %v5219 = vrot.slane %v5161, 6
        %v5220 = vrot.slane %v5163, 6
        %vm5221 = vcmp.lt.s32.totalorder %v3474, 2
        %v5222 = vsel %vm5221, %v5217, %v5219
        %v5223 = vsel %vm5221, %v5218, %v5220
        %v5224 = vsel %vm5221, %v5215, %v5217
        %v5225 = vsel %vm5221, %v5216, %v5218
        %v5226 = vsel %vm5221, %v5213, %v5215
        %v5227 = vsel %vm5221, %v5214, %v5216
        %v5228 = vsel %vm5221, %v5211, %v5213
        %v5229 = vsel %vm5221, %v5212, %v5214
        %v5230 = vsel %vm5221, %v5209, %v5211
        %v5231 = vsel %vm5221, %v5210, %v5212
        %v5232 = vsel %vm5221, %v5207, %v5209
        %v5233 = vsel %vm5221, %v5208, %v5210
        %v5234 = vsel %vm5221, %v5205, %v5207
        %v5235 = vsel %vm5221, %v5206, %v5208
        %v5236 = vsel %vm5221, %v5203, %v5205
        %v5237 = vsel %vm5221, %v5204, %v5206
        %v5238 = vsel %vm5221, %v5201, %v5203
        %v5239 = vsel %vm5221, %v5202, %v5204
        %v5240 = vsel %vm5221, %v5199, %v5201
        %v5241 = vsel %vm5221, %v5200, %v5202
        %v5242 = vsel %vm5221, %v5197, %v5199
        %v5243 = vsel %vm5221, %v5198, %v5200
        %v5244 = vsel %vm5221, %v5195, %v5197
        %v5245 = vsel %vm5221, %v5196, %v5198
        %v5246 = vsel %vm5221, %v5193, %v5195
        %v5247 = vsel %vm5221, %v5194, %v5196
        %v5248 = vsel %vm5221, %v5191, %v5193
        %v5249 = vsel %vm5221, %v5192, %v5194
        %v5250 = vsel %vm5221, %v5189, %v5191
        %v5251 = vsel %vm5221, %v5190, %v5192
        %v5252 = vsel %vm5221, %v5187, %v5189
        %v5253 = vsel %vm5221, %v5188, %v5190
        %v5254 = vsel %vm5221, %v5185, %v5187
        %v5255 = vsel %vm5221, %v5186, %v5188
        %v5256 = vsel %vm5221, %v5183, %v5185
        %v5257 = vsel %vm5221, %v5184, %v5186
        %v5258 = vsel %vm5221, %v5181, %v5183
        %v5259 = vsel %vm5221, %v5182, %v5184
        %v5260 = vsel %vm5221, %v5179, %v5181
        %v5261 = vsel %vm5221, %v5180, %v5182
        %v5262 = vsel %vm5221, %v5177, %v5179
        %v5263 = vsel %vm5221, %v5178, %v5180
        %v5264 = vsel %vm5221, %v5175, %v5177
        %v5265 = vsel %vm5221, %v5176, %v5178
        %v5266 = vsel %vm5221, %v5173, %v5175
        %v5267 = vsel %vm5221, %v5174, %v5176
        %v5268 = vsel %vm5221, %v5171, %v5173
        %v5269 = vsel %vm5221, %v5172, %v5174
        %v5270 = vsel %vm5221, %v5169, %v5171
        %v5271 = vsel %vm5221, %v5170, %v5172
        %v5272 = vsel %vm5221, %v5167, %v5169
        %v5273 = vsel %vm5221, %v5168, %v5170
        %v5274 = vsel %vm5221, %v5165, %v5167
        %v5275 = vsel %vm5221, %v5166, %v5168
        %v5276 = vsel %vm5221, %v5219, %v5165
        %v5277 = vsel %vm5221, %v5220, %v5166
        %v5278 = vadd.f32 %v4803, %v5274
        %v5279 = vadd.f32 %v4804, %v5275
        %v5280 = vadd.f32 %v4805, %v5272
        %v5281 = vadd.f32 %v4806, %v5273
        %v5282 = vadd.f32 %v4807, %v5270
        %v5283 = vadd.f32 %v4808, %v5271
        %v5284 = vadd.f32 %v4809, %v5268
        %v5285 = vadd.f32 %v4810, %v5269
        %v5286 = vadd.f32 %v4811, %v5266
        %v5287 = vadd.f32 %v4812, %v5267
        %v5288 = vadd.f32 %v4813, %v5264
        %v5289 = vadd.f32 %v4814, %v5265
        %v5290 = vadd.f32 %v4815, %v5262
        %v5291 = vadd.f32 %v4816, %v5263
        %v5292 = vadd.f32 %v4817, %v5260
        %v5293 = vadd.f32 %v4818, %v5261
        %v5294 = vadd.f32 %v4819, %v5258
        %v5295 = vadd.f32 %v4820, %v5259
        %v5296 = vadd.f32 %v4821, %v5256
        %v5297 = vadd.f32 %v4822, %v5257
        %v5298 = vadd.f32 %v4823, %v5254
        %v5299 = vadd.f32 %v4824, %v5255
        %v5300 = vadd.f32 %v4825, %v5252
        %v5301 = vadd.f32 %v4826, %v5253
        %v5302 = vadd.f32 %v4827, %v5250
        %v5303 = vadd.f32 %v4828, %v5251
        %v5304 = vadd.f32 %v4829, %v5248
        %v5305 = vadd.f32 %v4830, %v5249
        %v5306 = vadd.f32 %v4831, %v5246
        %v5307 = vadd.f32 %v4832, %v5247
        %v5308 = vadd.f32 %v4833, %v5244
        %v5309 = vadd.f32 %v4834, %v5245
        %v5310 = vadd.f32 %v4835, %v5242
        %v5311 = vadd.f32 %v4836, %v5243
        %v5312 = vadd.f32 %v4837, %v5240
        %v5313 = vadd.f32 %v4838, %v5241
        %v5314 = vadd.f32 %v4839, %v5238
        %v5315 = vadd.f32 %v4840, %v5239
        %v5316 = vadd.f32 %v4841, %v5236
        %v5317 = vadd.f32 %v4842, %v5237
        %v5318 = vadd.f32 %v4843, %v5234
        %v5319 = vadd.f32 %v4844, %v5235
        %v5320 = vadd.f32 %v4845, %v5232
        %v5321 = vadd.f32 %v4846, %v5233
        %v5322 = vadd.f32 %v4847, %v5230
        %v5323 = vadd.f32 %v4848, %v5231
        %v5324 = vadd.f32 %v4849, %v5228
        %v5325 = vadd.f32 %v4850, %v5229
        %v5326 = vadd.f32 %v4851, %v5226
        %v5327 = vadd.f32 %v4852, %v5227
        %v5328 = vadd.f32 %v4853, %v5224
        %v5329 = vadd.f32 %v4854, %v5225
        %v5330 = vadd.f32 %v4855, %v5222
        %v5331 = vadd.f32 %v4856, %v5223
        %v5332 = vadd.f32 %v4857, %v5276
        %v5333 = vadd.f32 %v4858, %v5277
        %s5334 = scalar_lea.vmem %s2, 672
        %v5335 = vld [vmem:[%s5334] sm:$0xff]
        %v5336 = vld [vmem:[%s5334 + $0x8] sm:$0xff]
        %v5337 = vld [vmem:[%s5334 + $0x10] sm:$0xff]
        %v5338 = vld [vmem:[%s5334 + $0x18] sm:$0xff]
        %v5339 = vld [vmem:[%s5334 + $0x20] sm:$0xff]
        %v5340 = vld [vmem:[%s5334 + $0x28] sm:$0xff]
        %v5341 = vld [vmem:[%s5334 + $0x30] sm:$0xff]
        %v5342 = vld [vmem:[%s5334 + $0x38] sm:$0xff]
        %v5343 = vld [vmem:[%s5334 + $0x40] sm:$0xff]
        %v5344 = vld [vmem:[%s5334 + $0x48] sm:$0xff]
        %v5345 = vld [vmem:[%s5334 + $0x50] sm:$0xff]
        %v5346 = vld [vmem:[%s5334 + $0x58] sm:$0xff]
        %v5347 = vld [vmem:[%s5334 + $0x60] sm:$0xff]
        %v5348 = vld [vmem:[%s5334 + $0x68] sm:$0xff]
        %v5349 = vld [vmem:[%s5334 + $0x70] sm:$0xff]
        %v5350 = vld [vmem:[%s5334 + $0x78] sm:$0xff]
        %v5351 = vld [vmem:[%s5334 + $0x80] sm:$0xff]
        %v5352 = vld [vmem:[%s5334 + $0x88] sm:$0xff]
        %v5353 = vld [vmem:[%s5334 + $0x90] sm:$0xff]
        %v5354 = vld [vmem:[%s5334 + $0x98] sm:$0xff]
        %v5355 = vld [vmem:[%s5334 + $0xa0] sm:$0x11]
        %v5377 = vunpack.c.l.b16 %v5335
        %v5378 = vunpack.c.h.b16 %v5335
        %v5379 = vunpack.c.l.b16 %v5336
        %v5380 = vunpack.c.h.b16 %v5336
        %v5381 = vunpack.c.l.b16 %v5337
        %v5382 = vunpack.c.h.b16 %v5337
        %v5383 = vunpack.c.l.b16 %v5338
        %v5384 = vunpack.c.h.b16 %v5338
        %v5385 = vunpack.c.l.b16 %v5339
        %v5386 = vunpack.c.h.b16 %v5339
        %v5387 = vunpack.c.l.b16 %v5340
        %v5388 = vunpack.c.h.b16 %v5340
        %v5389 = vunpack.c.l.b16 %v5341
        %v5390 = vunpack.c.h.b16 %v5341
        %v5391 = vunpack.c.l.b16 %v5342
        %v5392 = vunpack.c.h.b16 %v5342
        %v5393 = vunpack.c.l.b16 %v5343
        %v5394 = vunpack.c.h.b16 %v5343
        %v5395 = vunpack.c.l.b16 %v5344
        %v5396 = vunpack.c.h.b16 %v5344
        %v5397 = vunpack.c.l.b16 %v5345
        %v5398 = vunpack.c.h.b16 %v5345
        %v5399 = vunpack.c.l.b16 %v5346
        %v5400 = vunpack.c.h.b16 %v5346
        %v5401 = vunpack.c.l.b16 %v5347
        %v5402 = vunpack.c.h.b16 %v5347
        %v5403 = vunpack.c.l.b16 %v5348
        %v5404 = vunpack.c.h.b16 %v5348
        %v5405 = vunpack.c.l.b16 %v5349
        %v5406 = vunpack.c.h.b16 %v5349
        %v5407 = vunpack.c.l.b16 %v5350
        %v5408 = vunpack.c.h.b16 %v5350
        %v5409 = vunpack.c.l.b16 %v5351
        %v5410 = vunpack.c.h.b16 %v5351
        %v5411 = vunpack.c.l.b16 %v5352
        %v5412 = vunpack.c.h.b16 %v5352
        %v5413 = vunpack.c.l.b16 %v5353
        %v5414 = vunpack.c.h.b16 %v5353
        %v5415 = vunpack.c.l.b16 %v5354
        %v5416 = vunpack.c.h.b16 %v5354
        %v5417 = vunpack.c.l.b16 %v5355
        %v5418 = vunpack.c.h.b16 %v5355
        %v5419 = vpack.c.b16 %v5379, %v5377
        %v5420 = vpack.c.b16 %v5380, %v5378
        %v5421 = vpack.c.b16 %v5383, %v5381
        %v5422 = vpack.c.b16 %v5384, %v5382
        %v5423 = vpack.c.b16 %v5387, %v5385
        %v5424 = vpack.c.b16 %v5388, %v5386
        %v5425 = vpack.c.b16 %v5391, %v5389
        %v5426 = vpack.c.b16 %v5392, %v5390
        %v5427 = vpack.c.b16 %v5395, %v5393
        %v5428 = vpack.c.b16 %v5396, %v5394
        %v5429 = vpack.c.b16 %v5399, %v5397
        %v5430 = vpack.c.b16 %v5400, %v5398
        %v5431 = vpack.c.b16 %v5403, %v5401
        %v5432 = vpack.c.b16 %v5404, %v5402
        %v5433 = vpack.c.b16 %v5407, %v5405
        %v5434 = vpack.c.b16 %v5408, %v5406
        %v5435 = vpack.c.b16 %v5411, %v5409
        %v5436 = vpack.c.b16 %v5412, %v5410
        %v5437 = vpack.c.b16 %v5415, %v5413
        %v5438 = vpack.c.b16 %v5416, %v5414
        %v5439 = vpack.c.b16 %v5417, %v5417
        %v5440 = vpack.c.b16 %v5418, %v5418
        %v5462 = vsel %vm3807, %v5439, 0
        %v5465 = vsel %vm3807, %v5440, 0
        %5467 = vmatprep.subr.bf16.mxu0 %v5434
        %5468 = vmatpush1.bf16.msra.mxu0 %v5433
        %5469 = vmatprep.subr.bf16.mxu0 %v5432
        %5470 = vmatpush1.bf16.msra.mxu0 %v5431
        %5471 = vmatprep.subr.bf16.mxu0 %v5430
        %5472 = vmatpush1.bf16.msra.mxu0 %v5429
        %5473 = vmatprep.subr.bf16.mxu0 %v5428
        %5474 = vmatpush1.bf16.msra.mxu0 %v5427
        %5475 = vmatprep.subr.bf16.mxu0 %v5426
        %5476 = vmatpush1.bf16.msra.mxu0 %v5425
        %5477 = vmatprep.subr.bf16.mxu0 %v5424
        %5478 = vmatpush1.bf16.msra.mxu0 %v5423
        %5479 = vmatprep.subr.bf16.mxu0 %v5422
        %5480 = vmatpush1.bf16.msra.mxu0 %v5421
        %5481 = vmatprep.subr.bf16.mxu0 %v5420
        %5482 = vmatpush1.bf16.msra.mxu0 %v5419
        %5483 = vmatprep.subr.bf16.mxu0 0
        %5484 = vmatpush2.bf16.msra.mxu0 0
        %5485 = vmatprep.subr.bf16.mxu0 0
        %5486 = vmatpush2.bf16.msra.mxu0 0
        %5487 = vmatprep.subr.bf16.mxu0 0
        %5488 = vmatpush2.bf16.msra.mxu0 0
        %5489 = vmatprep.subr.bf16.mxu0 0
        %5490 = vmatpush2.bf16.msra.mxu0 0
        %5491 = vmatprep.subr.bf16.mxu0 0
        %5492 = vmatpush2.bf16.msra.mxu0 0
        %5493 = vmatprep.subr.bf16.mxu0 %v5465
        %5494 = vmatpush2.bf16.msra.mxu0 %v5462
        %5495 = vmatprep.subr.bf16.mxu0 %v5438
        %5496 = vmatpush2.bf16.msra.mxu0 %v5437
        %5497 = vmatprep.subr.bf16.mxu0 %v5436
        %5498 = vmatpush2.bf16.msra.mxu0 %v5435
        %5499 = vmatprep.mubr.bf16.mxu0 %v3766
        %5500 = vmatmul.mubr.bf16.gmra.mxu0 %v3588
        %v5501 = vpop.f32.mrf.mxu0
        %v5502 = vadd.f32 0.0, %v5501
        %v5503 = vpop.f32.mrf.mxu0
        %v5504 = vadd.f32 0.0, %v5503
        %v5505 = vpop.f32.mrf.mxu0
        %v5506 = vadd.f32 0.0, %v5505
        %v5507 = vpop.f32.mrf.mxu0
        %v5508 = vadd.f32 0.0, %v5507
        %5509 = vmatprep.mubr.bf16.mxu0 %v3769
        %5510 = vmatmul.mubr.bf16.gmra.mxu0 %v3590
        %v5511 = vpop.f32.mrf.mxu0
        %v5512 = vadd.f32 0.0, %v5511
        %v5513 = vpop.f32.mrf.mxu0
        %v5514 = vadd.f32 0.0, %v5513
        %v5515 = vpop.f32.mrf.mxu0
        %v5516 = vadd.f32 0.0, %v5515
        %v5517 = vpop.f32.mrf.mxu0
        %v5518 = vadd.f32 0.0, %v5517
        %5519 = vmatprep.mubr.bf16.mxu0 %v3772
        %5520 = vmatmul.mubr.bf16.gmra.mxu0 %v3592
        %v5521 = vpop.f32.mrf.mxu0
        %v5522 = vadd.f32 0.0, %v5521
        %v5523 = vpop.f32.mrf.mxu0
        %v5524 = vadd.f32 0.0, %v5523
        %v5525 = vpop.f32.mrf.mxu0
        %v5526 = vadd.f32 0.0, %v5525
        %v5527 = vpop.f32.mrf.mxu0
        %v5528 = vadd.f32 0.0, %v5527
        %5529 = vmatprep.mubr.bf16.mxu0 %v3775
        %5530 = vmatmul.mubr.bf16.gmra.mxu0 %v3594
        %v5531 = vpop.f32.mrf.mxu0
        %v5532 = vadd.f32 0.0, %v5531
        %v5533 = vpop.f32.mrf.mxu0
        %v5534 = vadd.f32 0.0, %v5533
        %v5535 = vpop.f32.mrf.mxu0
        %v5536 = vadd.f32 0.0, %v5535
        %v5537 = vpop.f32.mrf.mxu0
        %v5538 = vadd.f32 0.0, %v5537
        %5539 = vmatprep.mubr.bf16.mxu0 %v3778
        %5540 = vmatmul.mubr.bf16.gmra.mxu0 %v3596
        %v5541 = vpop.f32.mrf.mxu0
        %v5542 = vadd.f32 0.0, %v5541
        %v5543 = vpop.f32.mrf.mxu0
        %v5544 = vadd.f32 0.0, %v5543
        %v5545 = vpop.f32.mrf.mxu0
        %v5546 = vadd.f32 0.0, %v5545
        %v5547 = vpop.f32.mrf.mxu0
        %v5548 = vadd.f32 0.0, %v5547
        %5549 = vmatprep.mubr.bf16.mxu0 %v3781
        %5550 = vmatmul.mubr.bf16.gmra.mxu0 %v3598
        %v5551 = vpop.f32.mrf.mxu0
        %v5552 = vadd.f32 0.0, %v5551
        %v5553 = vpop.f32.mrf.mxu0
        %v5554 = vadd.f32 0.0, %v5553
        %v5555 = vpop.f32.mrf.mxu0
        %v5556 = vadd.f32 0.0, %v5555
        %v5557 = vpop.f32.mrf.mxu0
        %v5558 = vadd.f32 0.0, %v5557
        %5559 = vmatprep.mubr.bf16.mxu0 %v3784
        %5560 = vmatmul.mubr.bf16.gmra.mxu0 %v3600
        %v5561 = vpop.f32.mrf.mxu0
        %v5562 = vadd.f32 0.0, %v5561
        %v5563 = vpop.f32.mrf.mxu0
        %v5564 = vadd.f32 0.0, %v5563
        %v5565 = vpop.f32.mrf.mxu0
        %v5566 = vadd.f32 0.0, %v5565
        %v5567 = vpop.f32.mrf.mxu0
        %v5568 = vadd.f32 0.0, %v5567
        %5569 = vmatprep.mubr.bf16.mxu0 %v3787
        %5570 = vmatmul.mubr.bf16.gmra.mxu0 %v3602
        %v5571 = vpop.f32.mrf.mxu0
        %v5572 = vadd.f32 0.0, %v5571
        %v5573 = vpop.f32.mrf.mxu0
        %v5574 = vadd.f32 0.0, %v5573
        %v5575 = vpop.f32.mrf.mxu0
        %v5576 = vadd.f32 0.0, %v5575
        %v5577 = vpop.f32.mrf.mxu0
        %v5578 = vadd.f32 0.0, %v5577
        %5579 = vmatprep.mubr.bf16.mxu0 %v3790
        %5580 = vmatmul.mubr.bf16.gmra.mxu0 %v3604
        %v5581 = vpop.f32.mrf.mxu0
        %v5582 = vadd.f32 0.0, %v5581
        %v5583 = vpop.f32.mrf.mxu0
        %v5584 = vadd.f32 0.0, %v5583
        %v5585 = vpop.f32.mrf.mxu0
        %v5586 = vadd.f32 0.0, %v5585
        %v5587 = vpop.f32.mrf.mxu0
        %v5588 = vadd.f32 0.0, %v5587
        %5589 = vmatprep.mubr.bf16.mxu0 %v3793
        %5590 = vmatmul.mubr.bf16.gmra.mxu0 %v3606
        %v5591 = vpop.f32.mrf.mxu0
        %v5592 = vadd.f32 0.0, %v5591
        %v5593 = vpop.f32.mrf.mxu0
        %v5594 = vadd.f32 0.0, %v5593
        %v5595 = vpop.f32.mrf.mxu0
        %v5596 = vadd.f32 0.0, %v5595
        %v5597 = vpop.f32.mrf.mxu0
        %v5598 = vadd.f32 0.0, %v5597
        %5599 = vmatprep.mubr.bf16.mxu0 %v3796
        %5600 = vmatmul.mubr.bf16.gmra.mxu0 %v3608
        %v5601 = vpop.f32.mrf.mxu0
        %v5602 = vadd.f32 0.0, %v5601
        %v5603 = vpop.f32.mrf.mxu0
        %v5604 = vadd.f32 0.0, %v5603
        %v5605 = vpop.f32.mrf.mxu0
        %v5606 = vadd.f32 0.0, %v5605
        %v5607 = vpop.f32.mrf.mxu0
        %v5608 = vadd.f32 0.0, %v5607
        %5609 = vmatprep.mubr.bf16.mxu0 %v3799
        %5610 = vmatmul.mubr.bf16.gmra.mxu0 %v3610
        %v5611 = vpop.f32.mrf.mxu0
        %v5612 = vadd.f32 0.0, %v5611
        %v5613 = vpop.f32.mrf.mxu0
        %v5614 = vadd.f32 0.0, %v5613
        %v5615 = vpop.f32.mrf.mxu0
        %v5616 = vadd.f32 0.0, %v5615
        %v5617 = vpop.f32.mrf.mxu0
        %v5618 = vadd.f32 0.0, %v5617
        %5619 = vmatprep.mubr.bf16.mxu0 %v3802
        %5620 = vmatmul.mubr.bf16.gmra.mxu0 %v3612
        %v5621 = vpop.f32.mrf.mxu0
        %v5622 = vadd.f32 0.0, %v5621
        %v5623 = vpop.f32.mrf.mxu0
        %v5624 = vadd.f32 0.0, %v5623
        %v5625 = vpop.f32.mrf.mxu0
        %v5626 = vadd.f32 0.0, %v5625
        %v5627 = vpop.f32.mrf.mxu0
        %v5628 = vadd.f32 0.0, %v5627
        %5629 = vmatprep.mubr.bf16.mxu0 %v3805
        %5630 = vmatmul.mubr.bf16.gmra.mxu0 %v3614
        %v5631 = vpop.f32.mrf.mxu0
        %v5632 = vadd.f32 0.0, %v5631
        %v5633 = vpop.f32.mrf.mxu0
        %v5634 = vadd.f32 0.0, %v5633
        %v5635 = vpop.f32.mrf.mxu0
        %v5636 = vadd.f32 0.0, %v5635
        %v5637 = vpop.f32.mrf.mxu0
        %v5638 = vadd.f32 0.0, %v5637
        %5639 = vdwg.mxu0
        %v5640 = vadd.f32 %v5278, %v5506
        %v5641 = vadd.f32 %v5279, %v5508
        %v5642 = vadd.f32 %v5280, %v5512
        %v5643 = vadd.f32 %v5281, %v5514
        %v5644 = vadd.f32 %v5282, %v5516
        %v5645 = vadd.f32 %v5283, %v5518
        %v5646 = vadd.f32 %v5284, %v5522
        %v5647 = vadd.f32 %v5285, %v5524
        %v5648 = vadd.f32 %v5286, %v5526
        %v5649 = vadd.f32 %v5287, %v5528
        %v5650 = vadd.f32 %v5288, %v5532
        %v5651 = vadd.f32 %v5289, %v5534
        %v5652 = vadd.f32 %v5290, %v5536
        %v5653 = vadd.f32 %v5291, %v5538
        %v5654 = vadd.f32 %v5292, %v5542
        %v5655 = vadd.f32 %v5293, %v5544
        %v5656 = vadd.f32 %v5294, %v5546
        %v5657 = vadd.f32 %v5295, %v5548
        %v5658 = vadd.f32 %v5296, %v5552
        %v5659 = vadd.f32 %v5297, %v5554
        %v5660 = vadd.f32 %v5298, %v5556
        %v5661 = vadd.f32 %v5299, %v5558
        %v5662 = vadd.f32 %v5300, %v5562
        %v5663 = vadd.f32 %v5301, %v5564
        %v5664 = vadd.f32 %v5302, %v5566
        %v5665 = vadd.f32 %v5303, %v5568
        %v5666 = vadd.f32 %v5304, %v5572
        %v5667 = vadd.f32 %v5305, %v5574
        %v5668 = vadd.f32 %v5306, %v5576
        %v5669 = vadd.f32 %v5307, %v5578
        %v5670 = vadd.f32 %v5308, %v5582
        %v5671 = vadd.f32 %v5309, %v5584
        %v5672 = vadd.f32 %v5310, %v5586
        %v5673 = vadd.f32 %v5311, %v5588
        %v5674 = vadd.f32 %v5312, %v5592
        %v5675 = vadd.f32 %v5313, %v5594
        %v5676 = vadd.f32 %v5314, %v5596
        %v5677 = vadd.f32 %v5315, %v5598
        %v5678 = vadd.f32 %v5316, %v5602
        %v5679 = vadd.f32 %v5317, %v5604
        %v5680 = vadd.f32 %v5318, %v5606
        %v5681 = vadd.f32 %v5319, %v5608
        %v5682 = vadd.f32 %v5320, %v5612
        %v5683 = vadd.f32 %v5321, %v5614
        %v5684 = vadd.f32 %v5322, %v5616
        %v5685 = vadd.f32 %v5323, %v5618
        %v5686 = vadd.f32 %v5324, %v5622
        %v5687 = vadd.f32 %v5325, %v5624
        %v5688 = vadd.f32 %v5326, %v5626
        %v5689 = vadd.f32 %v5327, %v5628
        %v5690 = vadd.f32 %v5328, %v5632
        %v5691 = vadd.f32 %v5329, %v5634
        %v5692 = vadd.f32 %v5330, %v5636
        %v5693 = vadd.f32 %v5331, %v5638
        %v5694 = vadd.f32 %v5332, %v5502
        %v5695 = vadd.f32 %v5333, %v5504
        %s5696 = scalar_lea.vmem %s6, 1
        %v5697 = vld [vmem:[%s5696] ss:$8 sm:$0x3]
        %v5699 = vlaneseq
        %v5700 = vshrl.u32 %v5699, 7
        %v5701 = vsub.s32 0, %v5700
        %v5702 = vrot.slane %v5697, %v5701
        %v5703 = vlaneseq
        %v5704 = vshrl.u32 %v5703, 7
        %v5705 = vsub.s32 1, %v5704
        %v5706 = vrot.slane %v5697, %v5705
        %v5709 = vadd.f32 %v5640, %v5702
        %v5710 = vadd.f32 %v5641, %v5706
        %v5711 = vadd.f32 %v5642, %v5702
        %v5712 = vadd.f32 %v5643, %v5706
        %v5713 = vadd.f32 %v5644, %v5702
        %v5714 = vadd.f32 %v5645, %v5706
        %v5715 = vadd.f32 %v5646, %v5702
        %v5716 = vadd.f32 %v5647, %v5706
        %v5717 = vadd.f32 %v5648, %v5702
        %v5718 = vadd.f32 %v5649, %v5706
        %v5719 = vadd.f32 %v5650, %v5702
        %v5720 = vadd.f32 %v5651, %v5706
        %v5721 = vadd.f32 %v5652, %v5702
        %v5722 = vadd.f32 %v5653, %v5706
        %v5723 = vadd.f32 %v5654, %v5702
        %v5724 = vadd.f32 %v5655, %v5706
        %v5725 = vadd.f32 %v5656, %v5702
        %v5726 = vadd.f32 %v5657, %v5706
        %v5727 = vadd.f32 %v5658, %v5702
        %v5728 = vadd.f32 %v5659, %v5706
        %v5729 = vadd.f32 %v5660, %v5702
        %v5730 = vadd.f32 %v5661, %v5706
        %v5731 = vadd.f32 %v5662, %v5702
        %v5732 = vadd.f32 %v5663, %v5706
        %v5733 = vadd.f32 %v5664, %v5702
        %v5734 = vadd.f32 %v5665, %v5706
        %v5735 = vadd.f32 %v5666, %v5702
        %v5736 = vadd.f32 %v5667, %v5706
        %v5737 = vadd.f32 %v5668, %v5702
        %v5738 = vadd.f32 %v5669, %v5706
        %v5739 = vadd.f32 %v5670, %v5702
        %v5740 = vadd.f32 %v5671, %v5706
        %v5741 = vadd.f32 %v5672, %v5702
        %v5742 = vadd.f32 %v5673, %v5706
        %v5743 = vadd.f32 %v5674, %v5702
        %v5744 = vadd.f32 %v5675, %v5706
        %v5745 = vadd.f32 %v5676, %v5702
        %v5746 = vadd.f32 %v5677, %v5706
        %v5747 = vadd.f32 %v5678, %v5702
        %v5748 = vadd.f32 %v5679, %v5706
        %v5749 = vadd.f32 %v5680, %v5702
        %v5750 = vadd.f32 %v5681, %v5706
        %v5751 = vadd.f32 %v5682, %v5702
        %v5752 = vadd.f32 %v5683, %v5706
        %v5753 = vadd.f32 %v5684, %v5702
        %v5754 = vadd.f32 %v5685, %v5706
        %v5755 = vadd.f32 %v5686, %v5702
        %v5756 = vadd.f32 %v5687, %v5706
        %v5757 = vadd.f32 %v5688, %v5702
        %v5758 = vadd.f32 %v5689, %v5706
        %v5759 = vadd.f32 %v5690, %v5702
        %v5760 = vadd.f32 %v5691, %v5706
        %v5761 = vadd.f32 %v5692, %v5702
        %v5762 = vadd.f32 %v5693, %v5706
        %v5763 = vadd.f32 %v5694, %v5702
        %v5764 = vadd.f32 %v5695, %v5706
        %v5765 = vmax.f32 %v5709, 0.0
        %v5766 = vmax.f32 %v5710, 0.0
        %v5767 = vmax.f32 %v5711, 0.0
        %v5768 = vmax.f32 %v5712, 0.0
        %v5769 = vmax.f32 %v5713, 0.0
        %v5770 = vmax.f32 %v5714, 0.0
        %v5771 = vmax.f32 %v5715, 0.0
        %v5772 = vmax.f32 %v5716, 0.0
        %v5773 = vmax.f32 %v5717, 0.0
        %v5774 = vmax.f32 %v5718, 0.0
        %v5775 = vmax.f32 %v5719, 0.0
        %v5776 = vmax.f32 %v5720, 0.0
        %v5777 = vmax.f32 %v5721, 0.0
        %v5778 = vmax.f32 %v5722, 0.0
        %v5779 = vmax.f32 %v5723, 0.0
        %v5780 = vmax.f32 %v5724, 0.0
        %v5781 = vmax.f32 %v5725, 0.0
        %v5782 = vmax.f32 %v5726, 0.0
        %v5783 = vmax.f32 %v5727, 0.0
        %v5784 = vmax.f32 %v5728, 0.0
        %v5785 = vmax.f32 %v5729, 0.0
        %v5786 = vmax.f32 %v5730, 0.0
        %v5787 = vmax.f32 %v5731, 0.0
        %v5788 = vmax.f32 %v5732, 0.0
        %v5789 = vmax.f32 %v5733, 0.0
        %v5790 = vmax.f32 %v5734, 0.0
        %v5791 = vmax.f32 %v5735, 0.0
        %v5792 = vmax.f32 %v5736, 0.0
        %v5793 = vmax.f32 %v5737, 0.0
        %v5794 = vmax.f32 %v5738, 0.0
        %v5795 = vmax.f32 %v5739, 0.0
        %v5796 = vmax.f32 %v5740, 0.0
        %v5797 = vmax.f32 %v5741, 0.0
        %v5798 = vmax.f32 %v5742, 0.0
        %v5799 = vmax.f32 %v5743, 0.0
        %v5800 = vmax.f32 %v5744, 0.0
        %v5801 = vmax.f32 %v5745, 0.0
        %v5802 = vmax.f32 %v5746, 0.0
        %v5803 = vmax.f32 %v5747, 0.0
        %v5804 = vmax.f32 %v5748, 0.0
        %v5805 = vmax.f32 %v5749, 0.0
        %v5806 = vmax.f32 %v5750, 0.0
        %v5807 = vmax.f32 %v5751, 0.0
        %v5808 = vmax.f32 %v5752, 0.0
        %v5809 = vmax.f32 %v5753, 0.0
        %v5810 = vmax.f32 %v5754, 0.0
        %v5811 = vmax.f32 %v5755, 0.0
        %v5812 = vmax.f32 %v5756, 0.0
        %v5813 = vmax.f32 %v5757, 0.0
        %v5814 = vmax.f32 %v5758, 0.0
        %v5815 = vmax.f32 %v5759, 0.0
        %v5816 = vmax.f32 %v5760, 0.0
        %v5817 = vmax.f32 %v5761, 0.0
        %v5818 = vmax.f32 %v5762, 0.0
        %v5819 = vmax.f32 %v5763, 0.0
        %v5820 = vmax.f32 %v5764, 0.0
        %5877 = vrot.lane.b32.xlu0 %v5765, 112
        %v5878 = vpop.permute.xlu0 %5877
        %5879 = vrot.lane.b32.xlu0 %v5766, 112
        %v5880 = vpop.permute.xlu0 %5879
        %5881 = vrot.lane.b32.xlu0 %v5767, 112
        %v5882 = vpop.permute.xlu0 %5881
        %5883 = vrot.lane.b32.xlu0 %v5768, 112
        %v5884 = vpop.permute.xlu0 %5883
        %5885 = vrot.lane.b32.xlu0 %v5769, 112
        %v5886 = vpop.permute.xlu0 %5885
        %5887 = vrot.lane.b32.xlu0 %v5770, 112
        %v5888 = vpop.permute.xlu0 %5887
        %5889 = vrot.lane.b32.xlu0 %v5771, 112
        %v5890 = vpop.permute.xlu0 %5889
        %5891 = vrot.lane.b32.xlu0 %v5772, 112
        %v5892 = vpop.permute.xlu0 %5891
        %5893 = vrot.lane.b32.xlu0 %v5773, 112
        %v5894 = vpop.permute.xlu0 %5893
        %5895 = vrot.lane.b32.xlu0 %v5774, 112
        %v5896 = vpop.permute.xlu0 %5895
        %5897 = vrot.lane.b32.xlu0 %v5775, 112
        %v5898 = vpop.permute.xlu0 %5897
        %5899 = vrot.lane.b32.xlu0 %v5776, 112
        %v5900 = vpop.permute.xlu0 %5899
        %5901 = vrot.lane.b32.xlu0 %v5777, 112
        %v5902 = vpop.permute.xlu0 %5901
        %5903 = vrot.lane.b32.xlu0 %v5778, 112
        %v5904 = vpop.permute.xlu0 %5903
        %5905 = vrot.lane.b32.xlu0 %v5779, 112
        %v5906 = vpop.permute.xlu0 %5905
        %5907 = vrot.lane.b32.xlu0 %v5780, 112
        %v5908 = vpop.permute.xlu0 %5907
        %5909 = vrot.lane.b32.xlu0 %v5781, 112
        %v5910 = vpop.permute.xlu0 %5909
        %5911 = vrot.lane.b32.xlu0 %v5782, 112
        %v5912 = vpop.permute.xlu0 %5911
        %5913 = vrot.lane.b32.xlu0 %v5783, 112
        %v5914 = vpop.permute.xlu0 %5913
        %5915 = vrot.lane.b32.xlu0 %v5784, 112
        %v5916 = vpop.permute.xlu0 %5915
        %5917 = vrot.lane.b32.xlu0 %v5785, 112
        %v5918 = vpop.permute.xlu0 %5917
        %5919 = vrot.lane.b32.xlu0 %v5786, 112
        %v5920 = vpop.permute.xlu0 %5919
        %5921 = vrot.lane.b32.xlu0 %v5787, 112
        %v5922 = vpop.permute.xlu0 %5921
        %5923 = vrot.lane.b32.xlu0 %v5788, 112
        %v5924 = vpop.permute.xlu0 %5923
        %5925 = vrot.lane.b32.xlu0 %v5789, 112
        %v5926 = vpop.permute.xlu0 %5925
        %5927 = vrot.lane.b32.xlu0 %v5790, 112
        %v5928 = vpop.permute.xlu0 %5927
        %5929 = vrot.lane.b32.xlu0 %v5791, 112
        %v5930 = vpop.permute.xlu0 %5929
        %5931 = vrot.lane.b32.xlu0 %v5792, 112
        %v5932 = vpop.permute.xlu0 %5931
        %5933 = vrot.lane.b32.xlu0 %v5793, 112
        %v5934 = vpop.permute.xlu0 %5933
        %5935 = vrot.lane.b32.xlu0 %v5794, 112
        %v5936 = vpop.permute.xlu0 %5935
        %5937 = vrot.lane.b32.xlu0 %v5795, 112
        %v5938 = vpop.permute.xlu0 %5937
        %5939 = vrot.lane.b32.xlu0 %v5796, 112
        %v5940 = vpop.permute.xlu0 %5939
        %5941 = vrot.lane.b32.xlu0 %v5797, 112
        %v5942 = vpop.permute.xlu0 %5941
        %5943 = vrot.lane.b32.xlu0 %v5798, 112
        %v5944 = vpop.permute.xlu0 %5943
        %5945 = vrot.lane.b32.xlu0 %v5799, 112
        %v5946 = vpop.permute.xlu0 %5945
        %5947 = vrot.lane.b32.xlu0 %v5800, 112
        %v5948 = vpop.permute.xlu0 %5947
        %5949 = vrot.lane.b32.xlu0 %v5801, 112
        %v5950 = vpop.permute.xlu0 %5949
        %5951 = vrot.lane.b32.xlu0 %v5802, 112
        %v5952 = vpop.permute.xlu0 %5951
        %5953 = vrot.lane.b32.xlu0 %v5803, 112
        %v5954 = vpop.permute.xlu0 %5953
        %5955 = vrot.lane.b32.xlu0 %v5804, 112
        %v5956 = vpop.permute.xlu0 %5955
        %5957 = vrot.lane.b32.xlu0 %v5805, 112
        %v5958 = vpop.permute.xlu0 %5957
        %5959 = vrot.lane.b32.xlu0 %v5806, 112
        %v5960 = vpop.permute.xlu0 %5959
        %5961 = vrot.lane.b32.xlu0 %v5807, 112
        %v5962 = vpop.permute.xlu0 %5961
        %5963 = vrot.lane.b32.xlu0 %v5808, 112
        %v5964 = vpop.permute.xlu0 %5963
        %5965 = vrot.lane.b32.xlu0 %v5809, 112
        %v5966 = vpop.permute.xlu0 %5965
        %5967 = vrot.lane.b32.xlu0 %v5810, 112
        %v5968 = vpop.permute.xlu0 %5967
        %5969 = vrot.lane.b32.xlu0 %v5811, 112
        %v5970 = vpop.permute.xlu0 %5969
        %5971 = vrot.lane.b32.xlu0 %v5812, 112
        %v5972 = vpop.permute.xlu0 %5971
        %5973 = vrot.lane.b32.xlu0 %v5813, 112
        %v5974 = vpop.permute.xlu0 %5973
        %5975 = vrot.lane.b32.xlu0 %v5814, 112
        %v5976 = vpop.permute.xlu0 %5975
        %5977 = vrot.lane.b32.xlu0 %v5815, 112
        %v5978 = vpop.permute.xlu0 %5977
        %5979 = vrot.lane.b32.xlu0 %v5816, 112
        %v5980 = vpop.permute.xlu0 %5979
        %5981 = vrot.lane.b32.xlu0 %v5817, 112
        %v5982 = vpop.permute.xlu0 %5981
        %5983 = vrot.lane.b32.xlu0 %v5818, 112
        %v5984 = vpop.permute.xlu0 %5983
        %5985 = vrot.lane.b32.xlu0 %v5819, 112
        %v5986 = vpop.permute.xlu0 %5985
        %5987 = vrot.lane.b32.xlu0 %v5820, 112
        %v5988 = vpop.permute.xlu0 %5987
        %vm5989 = vcmask 916480
        %v5990 = vsel %vm5989, %v5878, %v5880
        %v5991 = vsel %vm5989, %v5882, %v5884
        %v5992 = vsel %vm5989, %v5886, %v5888
        %v5993 = vsel %vm5989, %v5890, %v5892
        %v5994 = vsel %vm5989, %v5894, %v5896
        %v5995 = vsel %vm5989, %v5898, %v5900
        %v5996 = vsel %vm5989, %v5902, %v5904
        %v5997 = vsel %vm5989, %v5906, %v5908
        %v5998 = vsel %vm5989, %v5910, %v5912
        %v5999 = vsel %vm5989, %v5914, %v5916
        %v6000 = vsel %vm5989, %v5918, %v5920
        %v6001 = vsel %vm5989, %v5922, %v5924
        %v6002 = vsel %vm5989, %v5926, %v5928
        %v6003 = vsel %vm5989, %v5930, %v5932
        %v6004 = vsel %vm5989, %v5934, %v5936
        %v6005 = vsel %vm5989, %v5938, %v5940
        %v6006 = vsel %vm5989, %v5942, %v5944
        %v6007 = vsel %vm5989, %v5946, %v5948
        %v6008 = vsel %vm5989, %v5950, %v5952
        %v6009 = vsel %vm5989, %v5954, %v5956
        %v6010 = vsel %vm5989, %v5958, %v5960
        %v6011 = vsel %vm5989, %v5962, %v5964
        %v6012 = vsel %vm5989, %v5966, %v5968
        %v6013 = vsel %vm5989, %v5970, %v5972
        %v6014 = vsel %vm5989, %v5974, %v5976
        %v6015 = vsel %vm5989, %v5978, %v5980
        %v6016 = vsel %vm5989, %v5982, %v5984
        %v6017 = vsel %vm5989, %v5986, %v5988
        %v6074 = vmax.f32 %v5765, %v5990
        %v6075 = vmax.f32 %v5766, %v5880
        %v6076 = vmax.f32 %v5767, %v5991
        %v6077 = vmax.f32 %v5768, %v5884
        %v6078 = vmax.f32 %v5769, %v5992
        %v6079 = vmax.f32 %v5770, %v5888
        %v6080 = vmax.f32 %v5771, %v5993
        %v6081 = vmax.f32 %v5772, %v5892
        %v6082 = vmax.f32 %v5773, %v5994
        %v6083 = vmax.f32 %v5774, %v5896
        %v6084 = vmax.f32 %v5775, %v5995
        %v6085 = vmax.f32 %v5776, %v5900
        %v6086 = vmax.f32 %v5777, %v5996
        %v6087 = vmax.f32 %v5778, %v5904
        %v6088 = vmax.f32 %v5779, %v5997
        %v6089 = vmax.f32 %v5780, %v5908
        %v6090 = vmax.f32 %v5781, %v5998
        %v6091 = vmax.f32 %v5782, %v5912
        %v6092 = vmax.f32 %v5783, %v5999
        %v6093 = vmax.f32 %v5784, %v5916
        %v6094 = vmax.f32 %v5785, %v6000
        %v6095 = vmax.f32 %v5786, %v5920
        %v6096 = vmax.f32 %v5787, %v6001
        %v6097 = vmax.f32 %v5788, %v5924
        %v6098 = vmax.f32 %v5789, %v6002
        %v6099 = vmax.f32 %v5790, %v5928
        %v6100 = vmax.f32 %v5791, %v6003
        %v6101 = vmax.f32 %v5792, %v5932
        %v6102 = vmax.f32 %v5793, %v6004
        %v6103 = vmax.f32 %v5794, %v5936
        %v6104 = vmax.f32 %v5795, %v6005
        %v6105 = vmax.f32 %v5796, %v5940
        %v6106 = vmax.f32 %v5797, %v6006
        %v6107 = vmax.f32 %v5798, %v5944
        %v6108 = vmax.f32 %v5799, %v6007
        %v6109 = vmax.f32 %v5800, %v5948
        %v6110 = vmax.f32 %v5801, %v6008
        %v6111 = vmax.f32 %v5802, %v5952
        %v6112 = vmax.f32 %v5803, %v6009
        %v6113 = vmax.f32 %v5804, %v5956
        %v6114 = vmax.f32 %v5805, %v6010
        %v6115 = vmax.f32 %v5806, %v5960
        %v6116 = vmax.f32 %v5807, %v6011
        %v6117 = vmax.f32 %v5808, %v5964
        %v6118 = vmax.f32 %v5809, %v6012
        %v6119 = vmax.f32 %v5810, %v5968
        %v6120 = vmax.f32 %v5811, %v6013
        %v6121 = vmax.f32 %v5812, %v5972
        %v6122 = vmax.f32 %v5813, %v6014
        %v6123 = vmax.f32 %v5814, %v5976
        %v6124 = vmax.f32 %v5815, %v6015
        %v6125 = vmax.f32 %v5816, %v5980
        %v6126 = vmax.f32 %v5817, %v6016
        %v6127 = vmax.f32 %v5818, %v5984
        %v6128 = vmax.f32 %v5819, %v6017
        %v6129 = vmax.f32 %v5820, %v5988
        %v6130 = vrot.slane %v6074, 2
        %v6131 = vrot.slane %v6075, 2
        %v6132 = vrot.slane %v6076, 2
        %v6133 = vrot.slane %v6077, 2
        %v6134 = vrot.slane %v6078, 2
        %v6135 = vrot.slane %v6079, 2
        %v6136 = vrot.slane %v6080, 2
        %v6137 = vrot.slane %v6081, 2
        %v6138 = vrot.slane %v6082, 2
        %v6139 = vrot.slane %v6083, 2
        %v6140 = vrot.slane %v6084, 2
        %v6141 = vrot.slane %v6085, 2
        %v6142 = vrot.slane %v6086, 2
        %v6143 = vrot.slane %v6087, 2
        %v6144 = vrot.slane %v6088, 2
        %v6145 = vrot.slane %v6089, 2
        %v6146 = vrot.slane %v6090, 2
        %v6147 = vrot.slane %v6091, 2
        %v6148 = vrot.slane %v6092, 2
        %v6149 = vrot.slane %v6093, 2
        %v6150 = vrot.slane %v6094, 2
        %v6151 = vrot.slane %v6095, 2
        %v6152 = vrot.slane %v6096, 2
        %v6153 = vrot.slane %v6097, 2
        %v6154 = vrot.slane %v6098, 2
        %v6155 = vrot.slane %v6099, 2
        %v6156 = vrot.slane %v6100, 2
        %v6157 = vrot.slane %v6101, 2
        %v6158 = vrot.slane %v6102, 2
        %v6159 = vrot.slane %v6103, 2
        %v6160 = vrot.slane %v6104, 2
        %v6161 = vrot.slane %v6105, 2
        %v6162 = vrot.slane %v6106, 2
        %v6163 = vrot.slane %v6107, 2
        %v6164 = vrot.slane %v6108, 2
        %v6165 = vrot.slane %v6109, 2
        %v6166 = vrot.slane %v6110, 2
        %v6167 = vrot.slane %v6111, 2
        %v6168 = vrot.slane %v6112, 2
        %v6169 = vrot.slane %v6113, 2
        %v6170 = vrot.slane %v6114, 2
        %v6171 = vrot.slane %v6115, 2
        %v6172 = vrot.slane %v6116, 2
        %v6173 = vrot.slane %v6117, 2
        %v6174 = vrot.slane %v6118, 2
        %v6175 = vrot.slane %v6119, 2
        %v6176 = vrot.slane %v6120, 2
        %v6177 = vrot.slane %v6121, 2
        %v6178 = vrot.slane %v6122, 2
        %v6179 = vrot.slane %v6123, 2
        %v6180 = vrot.slane %v6124, 2
        %v6181 = vrot.slane %v6125, 2
        %v6182 = vrot.slane %v6126, 2
        %v6183 = vrot.slane %v6127, 2
        %v6184 = vrot.slane %v6128, 2
        %v6185 = vrot.slane %v6129, 2
        %v6186 = vsel %vm4043, %v6182, %v6184
        %v6187 = vsel %vm4043, %v6183, %v6185
        %v6188 = vsel %vm4043, %v6180, %v6182
        %v6189 = vsel %vm4043, %v6181, %v6183
        %v6190 = vsel %vm4043, %v6178, %v6180
        %v6191 = vsel %vm4043, %v6179, %v6181
        %v6192 = vsel %vm4043, %v6176, %v6178
        %v6193 = vsel %vm4043, %v6177, %v6179
        %v6194 = vsel %vm4043, %v6174, %v6176
        %v6195 = vsel %vm4043, %v6175, %v6177
        %v6196 = vsel %vm4043, %v6172, %v6174
        %v6197 = vsel %vm4043, %v6173, %v6175
        %v6198 = vsel %vm4043, %v6170, %v6172
        %v6199 = vsel %vm4043, %v6171, %v6173
        %v6200 = vsel %vm4043, %v6168, %v6170
        %v6201 = vsel %vm4043, %v6169, %v6171
        %v6202 = vsel %vm4043, %v6166, %v6168
        %v6203 = vsel %vm4043, %v6167, %v6169
        %v6204 = vsel %vm4043, %v6164, %v6166
        %v6205 = vsel %vm4043, %v6165, %v6167
        %v6206 = vsel %vm4043, %v6162, %v6164
        %v6207 = vsel %vm4043, %v6163, %v6165
        %v6208 = vsel %vm4043, %v6160, %v6162
        %v6209 = vsel %vm4043, %v6161, %v6163
        %v6210 = vsel %vm4043, %v6158, %v6160
        %v6211 = vsel %vm4043, %v6159, %v6161
        %v6212 = vsel %vm4043, %v6156, %v6158
        %v6213 = vsel %vm4043, %v6157, %v6159
        %v6214 = vsel %vm4043, %v6154, %v6156
        %v6215 = vsel %vm4043, %v6155, %v6157
        %v6216 = vsel %vm4043, %v6152, %v6154
        %v6217 = vsel %vm4043, %v6153, %v6155
        %v6218 = vsel %vm4043, %v6150, %v6152
        %v6219 = vsel %vm4043, %v6151, %v6153
        %v6220 = vsel %vm4043, %v6148, %v6150
        %v6221 = vsel %vm4043, %v6149, %v6151
        %v6222 = vsel %vm4043, %v6146, %v6148
        %v6223 = vsel %vm4043, %v6147, %v6149
        %v6224 = vsel %vm4043, %v6144, %v6146
        %v6225 = vsel %vm4043, %v6145, %v6147
        %v6226 = vsel %vm4043, %v6142, %v6144
        %v6227 = vsel %vm4043, %v6143, %v6145
        %v6228 = vsel %vm4043, %v6140, %v6142
        %v6229 = vsel %vm4043, %v6141, %v6143
        %v6230 = vsel %vm4043, %v6138, %v6140
        %v6231 = vsel %vm4043, %v6139, %v6141
        %v6232 = vsel %vm4043, %v6136, %v6138
        %v6233 = vsel %vm4043, %v6137, %v6139
        %v6234 = vsel %vm4043, %v6134, %v6136
        %v6235 = vsel %vm4043, %v6135, %v6137
        %v6236 = vsel %vm4043, %v6132, %v6134
        %v6237 = vsel %vm4043, %v6133, %v6135
        %v6238 = vsel %vm4043, %v6130, %v6132
        %v6239 = vsel %vm4043, %v6131, %v6133
        %v6240 = vsel %vm4043, %v6184, %v6130
        %v6241 = vsel %vm4043, %v6185, %v6131
        %v6242 = vmax.f32 %v6074, %v6238
        %v6243 = vmax.f32 %v6075, %v6239
        %v6244 = vmax.f32 %v6076, %v6236
        %v6245 = vmax.f32 %v6077, %v6237
        %v6246 = vmax.f32 %v6078, %v6234
        %v6247 = vmax.f32 %v6079, %v6235
        %v6248 = vmax.f32 %v6080, %v6232
        %v6249 = vmax.f32 %v6081, %v6233
        %v6250 = vmax.f32 %v6082, %v6230
        %v6251 = vmax.f32 %v6083, %v6231
        %v6252 = vmax.f32 %v6084, %v6228
        %v6253 = vmax.f32 %v6085, %v6229
        %v6254 = vmax.f32 %v6086, %v6226
        %v6255 = vmax.f32 %v6087, %v6227
        %v6256 = vmax.f32 %v6088, %v6224
        %v6257 = vmax.f32 %v6089, %v6225
        %v6258 = vmax.f32 %v6090, %v6222
        %v6259 = vmax.f32 %v6091, %v6223
        %v6260 = vmax.f32 %v6092, %v6220
        %v6261 = vmax.f32 %v6093, %v6221
        %v6262 = vmax.f32 %v6094, %v6218
        %v6263 = vmax.f32 %v6095, %v6219
        %v6264 = vmax.f32 %v6096, %v6216
        %v6265 = vmax.f32 %v6097, %v6217
        %v6266 = vmax.f32 %v6098, %v6214
        %v6267 = vmax.f32 %v6099, %v6215
        %v6268 = vmax.f32 %v6100, %v6212
        %v6269 = vmax.f32 %v6101, %v6213
        %v6270 = vmax.f32 %v6102, %v6210
        %v6271 = vmax.f32 %v6103, %v6211
        %v6272 = vmax.f32 %v6104, %v6208
        %v6273 = vmax.f32 %v6105, %v6209
        %v6274 = vmax.f32 %v6106, %v6206
        %v6275 = vmax.f32 %v6107, %v6207
        %v6276 = vmax.f32 %v6108, %v6204
        %v6277 = vmax.f32 %v6109, %v6205
        %v6278 = vmax.f32 %v6110, %v6202
        %v6279 = vmax.f32 %v6111, %v6203
        %v6280 = vmax.f32 %v6112, %v6200
        %v6281 = vmax.f32 %v6113, %v6201
        %v6282 = vmax.f32 %v6114, %v6198
        %v6283 = vmax.f32 %v6115, %v6199
        %v6284 = vmax.f32 %v6116, %v6196
        %v6285 = vmax.f32 %v6117, %v6197
        %v6286 = vmax.f32 %v6118, %v6194
        %v6287 = vmax.f32 %v6119, %v6195
        %v6288 = vmax.f32 %v6120, %v6192
        %v6289 = vmax.f32 %v6121, %v6193
        %v6290 = vmax.f32 %v6122, %v6190
        %v6291 = vmax.f32 %v6123, %v6191
        %v6292 = vmax.f32 %v6124, %v6188
        %v6293 = vmax.f32 %v6125, %v6189
        %v6294 = vmax.f32 %v6126, %v6186
        %v6295 = vmax.f32 %v6127, %v6187
        %v6296 = vmax.f32 %v6128, %v6240
        %v6297 = vmax.f32 %v6129, %v6241
        %v6298 = vpack.c.bf16 %v6244, %v6242
        %v6299 = vpack.c.bf16 %v6245, %v6243
        %v6300 = vpack.c.bf16 %v6248, %v6246
        %v6301 = vpack.c.bf16 %v6249, %v6247
        %v6302 = vpack.c.bf16 %v6252, %v6250
        %v6303 = vpack.c.bf16 %v6253, %v6251
        %v6304 = vpack.c.bf16 %v6256, %v6254
        %v6305 = vpack.c.bf16 %v6257, %v6255
        %v6306 = vpack.c.bf16 %v6260, %v6258
        %v6307 = vpack.c.bf16 %v6261, %v6259
        %v6308 = vpack.c.bf16 %v6264, %v6262
        %v6309 = vpack.c.bf16 %v6265, %v6263
        %v6310 = vpack.c.bf16 %v6268, %v6266
        %v6311 = vpack.c.bf16 %v6269, %v6267
        %v6312 = vpack.c.bf16 %v6272, %v6270
        %v6313 = vpack.c.bf16 %v6273, %v6271
        %v6314 = vpack.c.bf16 %v6276, %v6274
        %v6315 = vpack.c.bf16 %v6277, %v6275
        %v6316 = vpack.c.bf16 %v6280, %v6278
        %v6317 = vpack.c.bf16 %v6281, %v6279
        %v6318 = vpack.c.bf16 %v6284, %v6282
        %v6319 = vpack.c.bf16 %v6285, %v6283
        %v6320 = vpack.c.bf16 %v6288, %v6286
        %v6321 = vpack.c.bf16 %v6289, %v6287
        %v6322 = vpack.c.bf16 %v6292, %v6290
        %v6323 = vpack.c.bf16 %v6293, %v6291
        %v6324 = vpack.c.bf16 %v6296, %v6294
        %v6325 = vpack.c.bf16 %v6297, %v6295
        %v6326 = vld [vmem:[%s3] sm:$0xf]
        %v6327 = vld [vmem:[%s3 + $0x4] sm:$0xf]
        %v6328 = vld [vmem:[%s3 + $0x8] sm:$0xf]
        %v6329 = vld [vmem:[%s3 + $0xc] sm:$0xf]
        %v6330 = vld [vmem:[%s3 + $0x10] sm:$0xf]
        %v6331 = vld [vmem:[%s3 + $0x14] sm:$0xf]
        %v6332 = vld [vmem:[%s3 + $0x18] sm:$0xf]
        %v6333 = vld [vmem:[%s3 + $0x1c] sm:$0xf]
        %v6334 = vld [vmem:[%s3 + $0x20] sm:$0xf]
        %v6335 = vld [vmem:[%s3 + $0x24] sm:$0xf]
        %v6336 = vld [vmem:[%s3 + $0x28] sm:$0xf]
        %v6337 = vld [vmem:[%s3 + $0x2c] sm:$0xf]
        %v6338 = vld [vmem:[%s3 + $0x30] sm:$0xf]
        %v6339 = vld [vmem:[%s3 + $0x34] sm:$0xf]
        %v6340 = vld [vmem:[%s3 + $0x38] sm:$0xf]
        %v6341 = vld [vmem:[%s3 + $0x3c] sm:$0xf]
        %v6342 = vld [vmem:[%s3 + $0x40] sm:$0xf]
        %v6343 = vld [vmem:[%s3 + $0x44] sm:$0xf]
        %s6344 = scalar_lea.vmem %s3, 72
        %v6345 = vld [vmem:[%s6344] sm:$0xf]
        %v6346 = vld [vmem:[%s6344 + $0x4] sm:$0xf]
        %v6347 = vld [vmem:[%s6344 + $0x8] sm:$0xf]
        %v6348 = vld [vmem:[%s6344 + $0xc] sm:$0xf]
        %v6349 = vld [vmem:[%s6344 + $0x10] sm:$0xf]
        %v6350 = vld [vmem:[%s6344 + $0x14] sm:$0xf]
        %v6351 = vld [vmem:[%s6344 + $0x18] sm:$0xf]
        %v6352 = vld [vmem:[%s6344 + $0x1c] sm:$0xf]
        %v6353 = vld [vmem:[%s6344 + $0x20] sm:$0xf]
        %v6354 = vld [vmem:[%s6344 + $0x24] sm:$0xf]
        %v6355 = vld [vmem:[%s6344 + $0x28] sm:$0xf]
        %v6356 = vld [vmem:[%s6344 + $0x2c] sm:$0xf]
        %v6357 = vld [vmem:[%s6344 + $0x30] sm:$0xf]
        %v6358 = vld [vmem:[%s6344 + $0x34] sm:$0xf]
        %v6359 = vld [vmem:[%s6344 + $0x38] sm:$0xf]
        %v6360 = vld [vmem:[%s6344 + $0x3c] sm:$0xf]
        %v6361 = vld [vmem:[%s6344 + $0x40] sm:$0xf]
        %v6362 = vld [vmem:[%s6344 + $0x44] sm:$0xf]
        %v6381 = vunpack.c.l.b16 %v6345
        %v6382 = vunpack.c.l.b16 %v6346
        %v6383 = vunpack.c.l.b16 %v6347
        %v6384 = vunpack.c.l.b16 %v6348
        %v6385 = vunpack.c.l.b16 %v6349
        %v6386 = vunpack.c.l.b16 %v6350
        %v6387 = vunpack.c.l.b16 %v6351
        %v6388 = vunpack.c.l.b16 %v6352
        %v6389 = vunpack.c.l.b16 %v6353
        %v6390 = vunpack.c.l.b16 %v6354
        %v6391 = vunpack.c.l.b16 %v6355
        %v6392 = vunpack.c.l.b16 %v6356
        %v6393 = vunpack.c.l.b16 %v6357
        %v6394 = vunpack.c.l.b16 %v6358
        %v6395 = vunpack.c.l.b16 %v6359
        %v6396 = vunpack.c.l.b16 %v6360
        %v6397 = vunpack.c.l.b16 %v6361
        %v6398 = vunpack.c.l.b16 %v6362
        %v6399 = vpack.c.b16 %v6382, %v6381
        %v6400 = vpack.c.b16 %v6384, %v6383
        %v6401 = vpack.c.b16 %v6386, %v6385
        %v6402 = vpack.c.b16 %v6388, %v6387
        %v6403 = vpack.c.b16 %v6390, %v6389
        %v6404 = vpack.c.b16 %v6392, %v6391
        %v6405 = vpack.c.b16 %v6394, %v6393
        %v6406 = vpack.c.b16 %v6396, %v6395
        %v6407 = vpack.c.b16 %v6398, %v6397
        %vm6417 = vcmask 130048
        %v6419 = vsel %vm6417, %v6299, 0
        %v6422 = vsel %vm6417, %v6301, 0
        %v6425 = vsel %vm6417, %v6303, 0
        %v6428 = vsel %vm6417, %v6305, 0
        %v6431 = vsel %vm6417, %v6307, 0
        %v6434 = vsel %vm6417, %v6309, 0
        %v6437 = vsel %vm6417, %v6311, 0
        %v6440 = vsel %vm6417, %v6313, 0
        %v6443 = vsel %vm6417, %v6315, 0
        %v6446 = vsel %vm6417, %v6317, 0
        %v6449 = vsel %vm6417, %v6319, 0
        %v6452 = vsel %vm6417, %v6321, 0
        %v6455 = vsel %vm6417, %v6323, 0
        %v6458 = vsel %vm6417, %v6325, 0
        %6460 = vmatprep.subr.bf16.mxu0 0
        %6461 = vmatpush1.bf16.msra.mxu0 %v6406
        %6462 = vmatprep.subr.bf16.mxu0 0
        %6463 = vmatpush1.bf16.msra.mxu0 %v6405
        %6464 = vmatprep.subr.bf16.mxu0 0
        %6465 = vmatpush1.bf16.msra.mxu0 %v6404
        %6466 = vmatprep.subr.bf16.mxu0 0
        %6467 = vmatpush1.bf16.msra.mxu0 %v6403
        %6468 = vmatprep.subr.bf16.mxu0 0
        %6469 = vmatpush1.bf16.msra.mxu0 %v6402
        %6470 = vmatprep.subr.bf16.mxu0 0
        %6471 = vmatpush1.bf16.msra.mxu0 %v6401
        %6472 = vmatprep.subr.bf16.mxu0 0
        %6473 = vmatpush1.bf16.msra.mxu0 %v6400
        %6474 = vmatprep.subr.bf16.mxu0 0
        %6475 = vmatpush1.bf16.msra.mxu0 %v6399
        %6476 = vmatprep.subr.bf16.mxu0 0
        %6477 = vmatpush2.bf16.msra.mxu0 0
        %6478 = vmatprep.subr.bf16.mxu0 0
        %6479 = vmatpush2.bf16.msra.mxu0 0
        %6480 = vmatprep.subr.bf16.mxu0 0
        %6481 = vmatpush2.bf16.msra.mxu0 0
        %6482 = vmatprep.subr.bf16.mxu0 0
        %6483 = vmatpush2.bf16.msra.mxu0 0
        %6484 = vmatprep.subr.bf16.mxu0 0
        %6485 = vmatpush2.bf16.msra.mxu0 0
        %6486 = vmatprep.subr.bf16.mxu0 0
        %6487 = vmatpush2.bf16.msra.mxu0 0
        %6488 = vmatprep.subr.bf16.mxu0 0
        %6489 = vmatpush2.bf16.msra.mxu0 0
        %6490 = vmatprep.subr.bf16.mxu0 0
        %6491 = vmatpush2.bf16.msra.mxu0 %v6407
        %6492 = vmatprep.mubr.bf16.mxu0 %v6419
        %6493 = vmatmul.mubr.bf16.gmra.mxu0 %v6298
        %v6494 = vpop.f32.mrf.mxu0
        %v6495 = vadd.f32 0.0, %v6494
        %v6496 = vpop.f32.mrf.mxu0
        %v6497 = vpop.f32.mrf.mxu0
        %v6498 = vadd.f32 0.0, %v6497
        %v6499 = vpop.f32.mrf.mxu0
        %6500 = vmatprep.mubr.bf16.mxu0 %v6422
        %6501 = vmatmul.mubr.bf16.gmra.mxu0 %v6300
        %v6502 = vpop.f32.mrf.mxu0
        %v6503 = vadd.f32 0.0, %v6502
        %v6504 = vpop.f32.mrf.mxu0
        %v6505 = vpop.f32.mrf.mxu0
        %v6506 = vadd.f32 0.0, %v6505
        %v6507 = vpop.f32.mrf.mxu0
        %6508 = vmatprep.mubr.bf16.mxu0 %v6425
        %6509 = vmatmul.mubr.bf16.gmra.mxu0 %v6302
        %v6510 = vpop.f32.mrf.mxu0
        %v6511 = vadd.f32 0.0, %v6510
        %v6512 = vpop.f32.mrf.mxu0
        %v6513 = vpop.f32.mrf.mxu0
        %v6514 = vadd.f32 0.0, %v6513
        %v6515 = vpop.f32.mrf.mxu0
        %6516 = vmatprep.mubr.bf16.mxu0 %v6428
        %6517 = vmatmul.mubr.bf16.gmra.mxu0 %v6304
        %v6518 = vpop.f32.mrf.mxu0
        %v6519 = vadd.f32 0.0, %v6518
        %v6520 = vpop.f32.mrf.mxu0
        %v6521 = vpop.f32.mrf.mxu0
        %v6522 = vadd.f32 0.0, %v6521
        %v6523 = vpop.f32.mrf.mxu0
        %6524 = vmatprep.mubr.bf16.mxu0 %v6431
        %6525 = vmatmul.mubr.bf16.gmra.mxu0 %v6306
        %v6526 = vpop.f32.mrf.mxu0
        %v6527 = vadd.f32 0.0, %v6526
        %v6528 = vpop.f32.mrf.mxu0
        %v6529 = vpop.f32.mrf.mxu0
        %v6530 = vadd.f32 0.0, %v6529
        %v6531 = vpop.f32.mrf.mxu0
        %6532 = vmatprep.mubr.bf16.mxu0 %v6434
        %6533 = vmatmul.mubr.bf16.gmra.mxu0 %v6308
        %v6534 = vpop.f32.mrf.mxu0
        %v6535 = vadd.f32 0.0, %v6534
        %v6536 = vpop.f32.mrf.mxu0
        %v6537 = vpop.f32.mrf.mxu0
        %v6538 = vadd.f32 0.0, %v6537
        %v6539 = vpop.f32.mrf.mxu0
        %6540 = vmatprep.mubr.bf16.mxu0 %v6437
        %6541 = vmatmul.mubr.bf16.gmra.mxu0 %v6310
        %v6542 = vpop.f32.mrf.mxu0
        %v6543 = vadd.f32 0.0, %v6542
        %v6544 = vpop.f32.mrf.mxu0
        %v6545 = vpop.f32.mrf.mxu0
        %v6546 = vadd.f32 0.0, %v6545
        %v6547 = vpop.f32.mrf.mxu0
        %6548 = vmatprep.mubr.bf16.mxu0 %v6440
        %6549 = vmatmul.mubr.bf16.gmra.mxu0 %v6312
        %v6550 = vpop.f32.mrf.mxu0
        %v6551 = vadd.f32 0.0, %v6550
        %v6552 = vpop.f32.mrf.mxu0
        %v6553 = vpop.f32.mrf.mxu0
        %v6554 = vadd.f32 0.0, %v6553
        %v6555 = vpop.f32.mrf.mxu0
        %6556 = vmatprep.mubr.bf16.mxu0 %v6443
        %6557 = vmatmul.mubr.bf16.gmra.mxu0 %v6314
        %v6558 = vpop.f32.mrf.mxu0
        %v6559 = vadd.f32 0.0, %v6558
        %v6560 = vpop.f32.mrf.mxu0
        %v6561 = vpop.f32.mrf.mxu0
        %v6562 = vadd.f32 0.0, %v6561
        %v6563 = vpop.f32.mrf.mxu0
        %6564 = vmatprep.mubr.bf16.mxu0 %v6446
        %6565 = vmatmul.mubr.bf16.gmra.mxu0 %v6316
        %v6566 = vpop.f32.mrf.mxu0
        %v6567 = vadd.f32 0.0, %v6566
        %v6568 = vpop.f32.mrf.mxu0
        %v6569 = vpop.f32.mrf.mxu0
        %v6570 = vadd.f32 0.0, %v6569
        %v6571 = vpop.f32.mrf.mxu0
        %6572 = vmatprep.mubr.bf16.mxu0 %v6449
        %6573 = vmatmul.mubr.bf16.gmra.mxu0 %v6318
        %v6574 = vpop.f32.mrf.mxu0
        %v6575 = vadd.f32 0.0, %v6574
        %v6576 = vpop.f32.mrf.mxu0
        %v6577 = vpop.f32.mrf.mxu0
        %v6578 = vadd.f32 0.0, %v6577
        %v6579 = vpop.f32.mrf.mxu0
        %6580 = vmatprep.mubr.bf16.mxu0 %v6452
        %6581 = vmatmul.mubr.bf16.gmra.mxu0 %v6320
        %v6582 = vpop.f32.mrf.mxu0
        %v6583 = vadd.f32 0.0, %v6582
        %v6584 = vpop.f32.mrf.mxu0
        %v6585 = vpop.f32.mrf.mxu0
        %v6586 = vadd.f32 0.0, %v6585
        %v6587 = vpop.f32.mrf.mxu0
        %6588 = vmatprep.mubr.bf16.mxu0 %v6455
        %6589 = vmatmul.mubr.bf16.gmra.mxu0 %v6322
        %v6590 = vpop.f32.mrf.mxu0
        %v6591 = vadd.f32 0.0, %v6590
        %v6592 = vpop.f32.mrf.mxu0
        %v6593 = vpop.f32.mrf.mxu0
        %v6594 = vadd.f32 0.0, %v6593
        %v6595 = vpop.f32.mrf.mxu0
        %6596 = vmatprep.mubr.bf16.mxu0 %v6458
        %6597 = vmatmul.mubr.bf16.gmra.mxu0 %v6324
        %v6598 = vpop.f32.mrf.mxu0
        %v6599 = vadd.f32 0.0, %v6598
        %v6600 = vpop.f32.mrf.mxu0
        %v6601 = vpop.f32.mrf.mxu0
        %v6602 = vadd.f32 0.0, %v6601
        %v6603 = vpop.f32.mrf.mxu0
        %6604 = vdwg.mxu0
        %v6605 = vrot.slane %v6495, 4
        %v6606 = vrot.slane %v6498, 4
        %v6607 = vrot.slane %v6503, 4
        %v6608 = vrot.slane %v6506, 4
        %v6609 = vrot.slane %v6511, 4
        %v6610 = vrot.slane %v6514, 4
        %v6611 = vrot.slane %v6519, 4
        %v6612 = vrot.slane %v6522, 4
        %v6613 = vrot.slane %v6527, 4
        %v6614 = vrot.slane %v6530, 4
        %v6615 = vrot.slane %v6535, 4
        %v6616 = vrot.slane %v6538, 4
        %v6617 = vrot.slane %v6543, 4
        %v6618 = vrot.slane %v6546, 4
        %v6619 = vrot.slane %v6551, 4
        %v6620 = vrot.slane %v6554, 4
        %v6621 = vrot.slane %v6559, 4
        %v6622 = vrot.slane %v6562, 4
        %v6623 = vrot.slane %v6567, 4
        %v6624 = vrot.slane %v6570, 4
        %v6625 = vrot.slane %v6575, 4
        %v6626 = vrot.slane %v6578, 4
        %v6627 = vrot.slane %v6583, 4
        %v6628 = vrot.slane %v6586, 4
        %v6629 = vrot.slane %v6591, 4
        %v6630 = vrot.slane %v6594, 4
        %v6631 = vrot.slane %v6599, 4
        %v6632 = vrot.slane %v6602, 4
        %v6633 = vsel %vm4746, %v6631, %v6632
        %v6634 = vsel %vm4746, %v6630, %v6631
        %v6635 = vsel %vm4746, %v6629, %v6630
        %v6636 = vsel %vm4746, %v6628, %v6629
        %v6637 = vsel %vm4746, %v6627, %v6628
        %v6638 = vsel %vm4746, %v6626, %v6627
        %v6639 = vsel %vm4746, %v6625, %v6626
        %v6640 = vsel %vm4746, %v6624, %v6625
        %v6641 = vsel %vm4746, %v6623, %v6624
        %v6642 = vsel %vm4746, %v6622, %v6623
        %v6643 = vsel %vm4746, %v6621, %v6622
        %v6644 = vsel %vm4746, %v6620, %v6621
        %v6645 = vsel %vm4746, %v6619, %v6620
        %v6646 = vsel %vm4746, %v6618, %v6619
        %v6647 = vsel %vm4746, %v6617, %v6618
        %v6648 = vsel %vm4746, %v6616, %v6617
        %v6649 = vsel %vm4746, %v6615, %v6616
        %v6650 = vsel %vm4746, %v6614, %v6615
        %v6651 = vsel %vm4746, %v6613, %v6614
        %v6652 = vsel %vm4746, %v6612, %v6613
        %v6653 = vsel %vm4746, %v6611, %v6612
        %v6654 = vsel %vm4746, %v6610, %v6611
        %v6655 = vsel %vm4746, %v6609, %v6610
        %v6656 = vsel %vm4746, %v6608, %v6609
        %v6657 = vsel %vm4746, %v6607, %v6608
        %v6658 = vsel %vm4746, %v6606, %v6607
        %v6659 = vsel %vm4746, %v6605, %v6606
        %v6660 = vsel %vm4746, %v6632, %v6605
        %v6679 = vunpack.c.l.b16 %v6326
        %v6680 = vunpack.c.l.b16 %v6327
        %v6681 = vunpack.c.l.b16 %v6328
        %v6682 = vunpack.c.l.b16 %v6329
        %v6683 = vunpack.c.l.b16 %v6330
        %v6684 = vunpack.c.l.b16 %v6331
        %v6685 = vunpack.c.l.b16 %v6332
        %v6686 = vunpack.c.l.b16 %v6333
        %v6687 = vunpack.c.l.b16 %v6334
        %v6688 = vunpack.c.l.b16 %v6335
        %v6689 = vunpack.c.l.b16 %v6336
        %v6690 = vunpack.c.l.b16 %v6337
        %v6691 = vunpack.c.l.b16 %v6338
        %v6692 = vunpack.c.l.b16 %v6339
        %v6693 = vunpack.c.l.b16 %v6340
        %v6694 = vunpack.c.l.b16 %v6341
        %v6695 = vunpack.c.l.b16 %v6342
        %v6696 = vunpack.c.l.b16 %v6343
        %v6697 = vpack.c.b16 %v6680, %v6679
        %v6698 = vpack.c.b16 %v6682, %v6681
        %v6699 = vpack.c.b16 %v6684, %v6683
        %v6700 = vpack.c.b16 %v6686, %v6685
        %v6701 = vpack.c.b16 %v6688, %v6687
        %v6702 = vpack.c.b16 %v6690, %v6689
        %v6703 = vpack.c.b16 %v6692, %v6691
        %v6704 = vpack.c.b16 %v6694, %v6693
        %v6705 = vpack.c.b16 %v6696, %v6695
        %6715 = vmatprep.subr.bf16.mxu0 0
        %6716 = vmatpush1.bf16.msra.mxu0 %v6704
        %6717 = vmatprep.subr.bf16.mxu0 0
        %6718 = vmatpush1.bf16.msra.mxu0 %v6703
        %6719 = vmatprep.subr.bf16.mxu0 0
        %6720 = vmatpush1.bf16.msra.mxu0 %v6702
        %6721 = vmatprep.subr.bf16.mxu0 0
        %6722 = vmatpush1.bf16.msra.mxu0 %v6701
        %6723 = vmatprep.subr.bf16.mxu0 0
        %6724 = vmatpush1.bf16.msra.mxu0 %v6700
        %6725 = vmatprep.subr.bf16.mxu0 0
        %6726 = vmatpush1.bf16.msra.mxu0 %v6699
        %6727 = vmatprep.subr.bf16.mxu0 0
        %6728 = vmatpush1.bf16.msra.mxu0 %v6698
        %6729 = vmatprep.subr.bf16.mxu0 0
        %6730 = vmatpush1.bf16.msra.mxu0 %v6697
        %6731 = vmatprep.subr.bf16.mxu0 0
        %6732 = vmatpush2.bf16.msra.mxu0 0
        %6733 = vmatprep.subr.bf16.mxu0 0
        %6734 = vmatpush2.bf16.msra.mxu0 0
        %6735 = vmatprep.subr.bf16.mxu0 0
        %6736 = vmatpush2.bf16.msra.mxu0 0
        %6737 = vmatprep.subr.bf16.mxu0 0
        %6738 = vmatpush2.bf16.msra.mxu0 0
        %6739 = vmatprep.subr.bf16.mxu0 0
        %6740 = vmatpush2.bf16.msra.mxu0 0
        %6741 = vmatprep.subr.bf16.mxu0 0
        %6742 = vmatpush2.bf16.msra.mxu0 0
        %6743 = vmatprep.subr.bf16.mxu0 0
        %6744 = vmatpush2.bf16.msra.mxu0 0
        %6745 = vmatprep.subr.bf16.mxu0 0
        %6746 = vmatpush2.bf16.msra.mxu0 %v6705
        %6747 = vmatprep.mubr.bf16.mxu0 %v6419
        %6748 = vmatmul.mubr.bf16.gmra.mxu0 %v6298
        %v6749 = vpop.f32.mrf.mxu0
        %v6750 = vadd.f32 %v6659, %v6749
        %v6751 = vpop.f32.mrf.mxu0
        %v6752 = vpop.f32.mrf.mxu0
        %v6753 = vadd.f32 %v6658, %v6752
        %v6754 = vpop.f32.mrf.mxu0
        %6755 = vmatprep.mubr.bf16.mxu0 %v6422
        %6756 = vmatmul.mubr.bf16.gmra.mxu0 %v6300
        %v6757 = vpop.f32.mrf.mxu0
        %v6758 = vadd.f32 %v6657, %v6757
        %v6759 = vpop.f32.mrf.mxu0
        %v6760 = vpop.f32.mrf.mxu0
        %v6761 = vadd.f32 %v6656, %v6760
        %v6762 = vpop.f32.mrf.mxu0
        %6763 = vmatprep.mubr.bf16.mxu0 %v6425
        %6764 = vmatmul.mubr.bf16.gmra.mxu0 %v6302
        %v6765 = vpop.f32.mrf.mxu0
        %v6766 = vadd.f32 %v6655, %v6765
        %v6767 = vpop.f32.mrf.mxu0
        %v6768 = vpop.f32.mrf.mxu0
        %v6769 = vadd.f32 %v6654, %v6768
        %v6770 = vpop.f32.mrf.mxu0
        %6771 = vmatprep.mubr.bf16.mxu0 %v6428
        %6772 = vmatmul.mubr.bf16.gmra.mxu0 %v6304
        %v6773 = vpop.f32.mrf.mxu0
        %v6774 = vadd.f32 %v6653, %v6773
        %v6775 = vpop.f32.mrf.mxu0
        %v6776 = vpop.f32.mrf.mxu0
        %v6777 = vadd.f32 %v6652, %v6776
        %v6778 = vpop.f32.mrf.mxu0
        %6779 = vmatprep.mubr.bf16.mxu0 %v6431
        %6780 = vmatmul.mubr.bf16.gmra.mxu0 %v6306
        %v6781 = vpop.f32.mrf.mxu0
        %v6782 = vadd.f32 %v6651, %v6781
        %v6783 = vpop.f32.mrf.mxu0
        %v6784 = vpop.f32.mrf.mxu0
        %v6785 = vadd.f32 %v6650, %v6784
        %v6786 = vpop.f32.mrf.mxu0
        %6787 = vmatprep.mubr.bf16.mxu0 %v6434
        %6788 = vmatmul.mubr.bf16.gmra.mxu0 %v6308
        %v6789 = vpop.f32.mrf.mxu0
        %v6790 = vadd.f32 %v6649, %v6789
        %v6791 = vpop.f32.mrf.mxu0
        %v6792 = vpop.f32.mrf.mxu0
        %v6793 = vadd.f32 %v6648, %v6792
        %v6794 = vpop.f32.mrf.mxu0
        %6795 = vmatprep.mubr.bf16.mxu0 %v6437
        %6796 = vmatmul.mubr.bf16.gmra.mxu0 %v6310
        %v6797 = vpop.f32.mrf.mxu0
        %v6798 = vadd.f32 %v6647, %v6797
        %v6799 = vpop.f32.mrf.mxu0
        %v6800 = vpop.f32.mrf.mxu0
        %v6801 = vadd.f32 %v6646, %v6800
        %v6802 = vpop.f32.mrf.mxu0
        %6803 = vmatprep.mubr.bf16.mxu0 %v6440
        %6804 = vmatmul.mubr.bf16.gmra.mxu0 %v6312
        %v6805 = vpop.f32.mrf.mxu0
        %v6806 = vadd.f32 %v6645, %v6805
        %v6807 = vpop.f32.mrf.mxu0
        %v6808 = vpop.f32.mrf.mxu0
        %v6809 = vadd.f32 %v6644, %v6808
        %v6810 = vpop.f32.mrf.mxu0
        %6811 = vmatprep.mubr.bf16.mxu0 %v6443
        %6812 = vmatmul.mubr.bf16.gmra.mxu0 %v6314
        %v6813 = vpop.f32.mrf.mxu0
        %v6814 = vadd.f32 %v6643, %v6813
        %v6815 = vpop.f32.mrf.mxu0
        %v6816 = vpop.f32.mrf.mxu0
        %v6817 = vadd.f32 %v6642, %v6816
        %v6818 = vpop.f32.mrf.mxu0
        %6819 = vmatprep.mubr.bf16.mxu0 %v6446
        %6820 = vmatmul.mubr.bf16.gmra.mxu0 %v6316
        %v6821 = vpop.f32.mrf.mxu0
        %v6822 = vadd.f32 %v6641, %v6821
        %v6823 = vpop.f32.mrf.mxu0
        %v6824 = vpop.f32.mrf.mxu0
        %v6825 = vadd.f32 %v6640, %v6824
        %v6826 = vpop.f32.mrf.mxu0
        %6827 = vmatprep.mubr.bf16.mxu0 %v6449
        %6828 = vmatmul.mubr.bf16.gmra.mxu0 %v6318
        %v6829 = vpop.f32.mrf.mxu0
        %v6830 = vadd.f32 %v6639, %v6829
        %v6831 = vpop.f32.mrf.mxu0
        %v6832 = vpop.f32.mrf.mxu0
        %v6833 = vadd.f32 %v6638, %v6832
        %v6834 = vpop.f32.mrf.mxu0
        %6835 = vmatprep.mubr.bf16.mxu0 %v6452
        %6836 = vmatmul.mubr.bf16.gmra.mxu0 %v6320
        %v6837 = vpop.f32.mrf.mxu0
        %v6838 = vadd.f32 %v6637, %v6837
        %v6839 = vpop.f32.mrf.mxu0
        %v6840 = vpop.f32.mrf.mxu0
        %v6841 = vadd.f32 %v6636, %v6840
        %v6842 = vpop.f32.mrf.mxu0
        %6843 = vmatprep.mubr.bf16.mxu0 %v6455
        %6844 = vmatmul.mubr.bf16.gmra.mxu0 %v6322
        %v6845 = vpop.f32.mrf.mxu0
        %v6846 = vadd.f32 %v6635, %v6845
        %v6847 = vpop.f32.mrf.mxu0
        %v6848 = vpop.f32.mrf.mxu0
        %v6849 = vadd.f32 %v6634, %v6848
        %v6850 = vpop.f32.mrf.mxu0
        %6851 = vmatprep.mubr.bf16.mxu0 %v6458
        %6852 = vmatmul.mubr.bf16.gmra.mxu0 %v6324
        %v6853 = vpop.f32.mrf.mxu0
        %v6854 = vadd.f32 %v6633, %v6853
        %v6855 = vpop.f32.mrf.mxu0
        %v6856 = vpop.f32.mrf.mxu0
        %v6857 = vadd.f32 %v6660, %v6856
        %v6858 = vpop.f32.mrf.mxu0
        %6859 = vdwg.mxu0
        %s6860 = scalar_lea.vmem %s3, 144
        %v6861 = vld [vmem:[%s6860] sm:$0xf]
        %v6862 = vld [vmem:[%s6860 + $0x4] sm:$0xf]
        %v6863 = vld [vmem:[%s6860 + $0x8] sm:$0xf]
        %v6864 = vld [vmem:[%s6860 + $0xc] sm:$0xf]
        %v6865 = vld [vmem:[%s6860 + $0x10] sm:$0xf]
        %v6866 = vld [vmem:[%s6860 + $0x14] sm:$0xf]
        %v6867 = vld [vmem:[%s6860 + $0x18] sm:$0xf]
        %v6868 = vld [vmem:[%s6860 + $0x1c] sm:$0xf]
        %v6869 = vld [vmem:[%s6860 + $0x20] sm:$0xf]
        %v6870 = vld [vmem:[%s6860 + $0x24] sm:$0xf]
        %v6871 = vld [vmem:[%s6860 + $0x28] sm:$0xf]
        %v6872 = vld [vmem:[%s6860 + $0x2c] sm:$0xf]
        %v6873 = vld [vmem:[%s6860 + $0x30] sm:$0xf]
        %v6874 = vld [vmem:[%s6860 + $0x34] sm:$0xf]
        %v6875 = vld [vmem:[%s6860 + $0x38] sm:$0xf]
        %v6876 = vld [vmem:[%s6860 + $0x3c] sm:$0xf]
        %v6877 = vld [vmem:[%s6860 + $0x40] sm:$0xf]
        %v6878 = vld [vmem:[%s6860 + $0x44] sm:$0xf]
        %v6897 = vunpack.c.l.b16 %v6861
        %v6898 = vunpack.c.l.b16 %v6862
        %v6899 = vunpack.c.l.b16 %v6863
        %v6900 = vunpack.c.l.b16 %v6864
        %v6901 = vunpack.c.l.b16 %v6865
        %v6902 = vunpack.c.l.b16 %v6866
        %v6903 = vunpack.c.l.b16 %v6867
        %v6904 = vunpack.c.l.b16 %v6868
        %v6905 = vunpack.c.l.b16 %v6869
        %v6906 = vunpack.c.l.b16 %v6870
        %v6907 = vunpack.c.l.b16 %v6871
        %v6908 = vunpack.c.l.b16 %v6872
        %v6909 = vunpack.c.l.b16 %v6873
        %v6910 = vunpack.c.l.b16 %v6874
        %v6911 = vunpack.c.l.b16 %v6875
        %v6912 = vunpack.c.l.b16 %v6876
        %v6913 = vunpack.c.l.b16 %v6877
        %v6914 = vunpack.c.l.b16 %v6878
        %v6915 = vpack.c.b16 %v6898, %v6897
        %v6916 = vpack.c.b16 %v6900, %v6899
        %v6917 = vpack.c.b16 %v6902, %v6901
        %v6918 = vpack.c.b16 %v6904, %v6903
        %v6919 = vpack.c.b16 %v6906, %v6905
        %v6920 = vpack.c.b16 %v6908, %v6907
        %v6921 = vpack.c.b16 %v6910, %v6909
        %v6922 = vpack.c.b16 %v6912, %v6911
        %v6923 = vpack.c.b16 %v6914, %v6913
        %6933 = vmatprep.subr.bf16.mxu0 0
        %6934 = vmatpush1.bf16.msra.mxu0 %v6922
        %6935 = vmatprep.subr.bf16.mxu0 0
        %6936 = vmatpush1.bf16.msra.mxu0 %v6921
        %6937 = vmatprep.subr.bf16.mxu0 0
        %6938 = vmatpush1.bf16.msra.mxu0 %v6920
        %6939 = vmatprep.subr.bf16.mxu0 0
        %6940 = vmatpush1.bf16.msra.mxu0 %v6919
        %6941 = vmatprep.subr.bf16.mxu0 0
        %6942 = vmatpush1.bf16.msra.mxu0 %v6918
        %6943 = vmatprep.subr.bf16.mxu0 0
        %6944 = vmatpush1.bf16.msra.mxu0 %v6917
        %6945 = vmatprep.subr.bf16.mxu0 0
        %6946 = vmatpush1.bf16.msra.mxu0 %v6916
        %6947 = vmatprep.subr.bf16.mxu0 0
        %6948 = vmatpush1.bf16.msra.mxu0 %v6915
        %6949 = vmatprep.subr.bf16.mxu0 0
        %6950 = vmatpush2.bf16.msra.mxu0 0
        %6951 = vmatprep.subr.bf16.mxu0 0
        %6952 = vmatpush2.bf16.msra.mxu0 0
        %6953 = vmatprep.subr.bf16.mxu0 0
        %6954 = vmatpush2.bf16.msra.mxu0 0
        %6955 = vmatprep.subr.bf16.mxu0 0
        %6956 = vmatpush2.bf16.msra.mxu0 0
        %6957 = vmatprep.subr.bf16.mxu0 0
        %6958 = vmatpush2.bf16.msra.mxu0 0
        %6959 = vmatprep.subr.bf16.mxu0 0
        %6960 = vmatpush2.bf16.msra.mxu0 0
        %6961 = vmatprep.subr.bf16.mxu0 0
        %6962 = vmatpush2.bf16.msra.mxu0 0
        %6963 = vmatprep.subr.bf16.mxu0 0
        %6964 = vmatpush2.bf16.msra.mxu0 %v6923
        %6965 = vmatprep.mubr.bf16.mxu0 %v6419
        %6966 = vmatmul.mubr.bf16.gmra.mxu0 %v6298
        %v6967 = vpop.f32.mrf.mxu0
        %v6968 = vadd.f32 0.0, %v6967
        %v6969 = vpop.f32.mrf.mxu0
        %v6970 = vpop.f32.mrf.mxu0
        %v6971 = vadd.f32 0.0, %v6970
        %v6972 = vpop.f32.mrf.mxu0
        %6973 = vmatprep.mubr.bf16.mxu0 %v6422
        %6974 = vmatmul.mubr.bf16.gmra.mxu0 %v6300
        %v6975 = vpop.f32.mrf.mxu0
        %v6976 = vadd.f32 0.0, %v6975
        %v6977 = vpop.f32.mrf.mxu0
        %v6978 = vpop.f32.mrf.mxu0
        %v6979 = vadd.f32 0.0, %v6978
        %v6980 = vpop.f32.mrf.mxu0
        %6981 = vmatprep.mubr.bf16.mxu0 %v6425
        %6982 = vmatmul.mubr.bf16.gmra.mxu0 %v6302
        %v6983 = vpop.f32.mrf.mxu0
        %v6984 = vadd.f32 0.0, %v6983
        %v6985 = vpop.f32.mrf.mxu0
        %v6986 = vpop.f32.mrf.mxu0
        %v6987 = vadd.f32 0.0, %v6986
        %v6988 = vpop.f32.mrf.mxu0
        %6989 = vmatprep.mubr.bf16.mxu0 %v6428
        %6990 = vmatmul.mubr.bf16.gmra.mxu0 %v6304
        %v6991 = vpop.f32.mrf.mxu0
        %v6992 = vadd.f32 0.0, %v6991
        %v6993 = vpop.f32.mrf.mxu0
        %v6994 = vpop.f32.mrf.mxu0
        %v6995 = vadd.f32 0.0, %v6994
        %v6996 = vpop.f32.mrf.mxu0
        %6997 = vmatprep.mubr.bf16.mxu0 %v6431
        %6998 = vmatmul.mubr.bf16.gmra.mxu0 %v6306
        %v6999 = vpop.f32.mrf.mxu0
        %v7000 = vadd.f32 0.0, %v6999
        %v7001 = vpop.f32.mrf.mxu0
        %v7002 = vpop.f32.mrf.mxu0
        %v7003 = vadd.f32 0.0, %v7002
        %v7004 = vpop.f32.mrf.mxu0
        %7005 = vmatprep.mubr.bf16.mxu0 %v6434
        %7006 = vmatmul.mubr.bf16.gmra.mxu0 %v6308
        %v7007 = vpop.f32.mrf.mxu0
        %v7008 = vadd.f32 0.0, %v7007
        %v7009 = vpop.f32.mrf.mxu0
        %v7010 = vpop.f32.mrf.mxu0
        %v7011 = vadd.f32 0.0, %v7010
        %v7012 = vpop.f32.mrf.mxu0
        %7013 = vmatprep.mubr.bf16.mxu0 %v6437
        %7014 = vmatmul.mubr.bf16.gmra.mxu0 %v6310
        %v7015 = vpop.f32.mrf.mxu0
        %v7016 = vadd.f32 0.0, %v7015
        %v7017 = vpop.f32.mrf.mxu0
        %v7018 = vpop.f32.mrf.mxu0
        %v7019 = vadd.f32 0.0, %v7018
        %v7020 = vpop.f32.mrf.mxu0
        %7021 = vmatprep.mubr.bf16.mxu0 %v6440
        %7022 = vmatmul.mubr.bf16.gmra.mxu0 %v6312
        %v7023 = vpop.f32.mrf.mxu0
        %v7024 = vadd.f32 0.0, %v7023
        %v7025 = vpop.f32.mrf.mxu0
        %v7026 = vpop.f32.mrf.mxu0
        %v7027 = vadd.f32 0.0, %v7026
        %v7028 = vpop.f32.mrf.mxu0
        %7029 = vmatprep.mubr.bf16.mxu0 %v6443
        %7030 = vmatmul.mubr.bf16.gmra.mxu0 %v6314
        %v7031 = vpop.f32.mrf.mxu0
        %v7032 = vadd.f32 0.0, %v7031
        %v7033 = vpop.f32.mrf.mxu0
        %v7034 = vpop.f32.mrf.mxu0
        %v7035 = vadd.f32 0.0, %v7034
        %v7036 = vpop.f32.mrf.mxu0
        %7037 = vmatprep.mubr.bf16.mxu0 %v6446
        %7038 = vmatmul.mubr.bf16.gmra.mxu0 %v6316
        %v7039 = vpop.f32.mrf.mxu0
        %v7040 = vadd.f32 0.0, %v7039
        %v7041 = vpop.f32.mrf.mxu0
        %v7042 = vpop.f32.mrf.mxu0
        %v7043 = vadd.f32 0.0, %v7042
        %v7044 = vpop.f32.mrf.mxu0
        %7045 = vmatprep.mubr.bf16.mxu0 %v6449
        %7046 = vmatmul.mubr.bf16.gmra.mxu0 %v6318
        %v7047 = vpop.f32.mrf.mxu0
        %v7048 = vadd.f32 0.0, %v7047
        %v7049 = vpop.f32.mrf.mxu0
        %v7050 = vpop.f32.mrf.mxu0
        %v7051 = vadd.f32 0.0, %v7050
        %v7052 = vpop.f32.mrf.mxu0
        %7053 = vmatprep.mubr.bf16.mxu0 %v6452
        %7054 = vmatmul.mubr.bf16.gmra.mxu0 %v6320
        %v7055 = vpop.f32.mrf.mxu0
        %v7056 = vadd.f32 0.0, %v7055
        %v7057 = vpop.f32.mrf.mxu0
        %v7058 = vpop.f32.mrf.mxu0
        %v7059 = vadd.f32 0.0, %v7058
        %v7060 = vpop.f32.mrf.mxu0
        %7061 = vmatprep.mubr.bf16.mxu0 %v6455
        %7062 = vmatmul.mubr.bf16.gmra.mxu0 %v6322
        %v7063 = vpop.f32.mrf.mxu0
        %v7064 = vadd.f32 0.0, %v7063
        %v7065 = vpop.f32.mrf.mxu0
        %v7066 = vpop.f32.mrf.mxu0
        %v7067 = vadd.f32 0.0, %v7066
        %v7068 = vpop.f32.mrf.mxu0
        %7069 = vmatprep.mubr.bf16.mxu0 %v6458
        %7070 = vmatmul.mubr.bf16.gmra.mxu0 %v6324
        %v7071 = vpop.f32.mrf.mxu0
        %v7072 = vadd.f32 0.0, %v7071
        %v7073 = vpop.f32.mrf.mxu0
        %v7074 = vpop.f32.mrf.mxu0
        %v7075 = vadd.f32 0.0, %v7074
        %v7076 = vpop.f32.mrf.mxu0
        %7077 = vdwg.mxu0
        %v7078 = vadd.f32 %v6750, %v6971
        %v7079 = vadd.f32 %v6753, %v6976
        %v7080 = vadd.f32 %v6758, %v6979
        %v7081 = vadd.f32 %v6761, %v6984
        %v7082 = vadd.f32 %v6766, %v6987
        %v7083 = vadd.f32 %v6769, %v6992
        %v7084 = vadd.f32 %v6774, %v6995
        %v7085 = vadd.f32 %v6777, %v7000
        %v7086 = vadd.f32 %v6782, %v7003
        %v7087 = vadd.f32 %v6785, %v7008
        %v7088 = vadd.f32 %v6790, %v7011
        %v7089 = vadd.f32 %v6793, %v7016
        %v7090 = vadd.f32 %v6798, %v7019
        %v7091 = vadd.f32 %v6801, %v7024
        %v7092 = vadd.f32 %v6806, %v7027
        %v7093 = vadd.f32 %v6809, %v7032
        %v7094 = vadd.f32 %v6814, %v7035
        %v7095 = vadd.f32 %v6817, %v7040
        %v7096 = vadd.f32 %v6822, %v7043
        %v7097 = vadd.f32 %v6825, %v7048
        %v7098 = vadd.f32 %v6830, %v7051
        %v7099 = vadd.f32 %v6833, %v7056
        %v7100 = vadd.f32 %v6838, %v7059
        %v7101 = vadd.f32 %v6841, %v7064
        %v7102 = vadd.f32 %v6846, %v7067
        %v7103 = vadd.f32 %v6849, %v7072
        %v7104 = vadd.f32 %v6854, %v7075
        %v7105 = vadd.f32 %v6857, %v6968
        %s7106 = scalar_lea.vmem %s3, 216
        %v7107 = vld [vmem:[%s7106] sm:$0xf]
        %v7108 = vld [vmem:[%s7106 + $0x4] sm:$0xf]
        %v7109 = vld [vmem:[%s7106 + $0x8] sm:$0xf]
        %v7110 = vld [vmem:[%s7106 + $0xc] sm:$0xf]
        %v7111 = vld [vmem:[%s7106 + $0x10] sm:$0xf]
        %v7112 = vld [vmem:[%s7106 + $0x14] sm:$0xf]
        %v7113 = vld [vmem:[%s7106 + $0x18] sm:$0xf]
        %v7114 = vld [vmem:[%s7106 + $0x1c] sm:$0xf]
        %v7115 = vld [vmem:[%s7106 + $0x20] sm:$0xf]
        %v7116 = vld [vmem:[%s7106 + $0x24] sm:$0xf]
        %v7117 = vld [vmem:[%s7106 + $0x28] sm:$0xf]
        %v7118 = vld [vmem:[%s7106 + $0x2c] sm:$0xf]
        %v7119 = vld [vmem:[%s7106 + $0x30] sm:$0xf]
        %v7120 = vld [vmem:[%s7106 + $0x34] sm:$0xf]
        %v7121 = vld [vmem:[%s7106 + $0x38] sm:$0xf]
        %v7122 = vld [vmem:[%s7106 + $0x3c] sm:$0xf]
        %v7123 = vld [vmem:[%s7106 + $0x40] sm:$0xf]
        %v7124 = vld [vmem:[%s7106 + $0x44] sm:$0xf]
        %v7143 = vunpack.c.l.b16 %v7107
        %v7144 = vunpack.c.l.b16 %v7108
        %v7145 = vunpack.c.l.b16 %v7109
        %v7146 = vunpack.c.l.b16 %v7110
        %v7147 = vunpack.c.l.b16 %v7111
        %v7148 = vunpack.c.l.b16 %v7112
        %v7149 = vunpack.c.l.b16 %v7113
        %v7150 = vunpack.c.l.b16 %v7114
        %v7151 = vunpack.c.l.b16 %v7115
        %v7152 = vunpack.c.l.b16 %v7116
        %v7153 = vunpack.c.l.b16 %v7117
        %v7154 = vunpack.c.l.b16 %v7118
        %v7155 = vunpack.c.l.b16 %v7119
        %v7156 = vunpack.c.l.b16 %v7120
        %v7157 = vunpack.c.l.b16 %v7121
        %v7158 = vunpack.c.l.b16 %v7122
        %v7159 = vunpack.c.l.b16 %v7123
        %v7160 = vunpack.c.l.b16 %v7124
        %v7161 = vpack.c.b16 %v7144, %v7143
        %v7162 = vpack.c.b16 %v7146, %v7145
        %v7163 = vpack.c.b16 %v7148, %v7147
        %v7164 = vpack.c.b16 %v7150, %v7149
        %v7165 = vpack.c.b16 %v7152, %v7151
        %v7166 = vpack.c.b16 %v7154, %v7153
        %v7167 = vpack.c.b16 %v7156, %v7155
        %v7168 = vpack.c.b16 %v7158, %v7157
        %v7169 = vpack.c.b16 %v7160, %v7159
        %7179 = vmatprep.subr.bf16.mxu0 0
        %7180 = vmatpush1.bf16.msra.mxu0 %v7168
        %7181 = vmatprep.subr.bf16.mxu0 0
        %7182 = vmatpush1.bf16.msra.mxu0 %v7167
        %7183 = vmatprep.subr.bf16.mxu0 0
        %7184 = vmatpush1.bf16.msra.mxu0 %v7166
        %7185 = vmatprep.subr.bf16.mxu0 0
        %7186 = vmatpush1.bf16.msra.mxu0 %v7165
        %7187 = vmatprep.subr.bf16.mxu0 0
        %7188 = vmatpush1.bf16.msra.mxu0 %v7164
        %7189 = vmatprep.subr.bf16.mxu0 0
        %7190 = vmatpush1.bf16.msra.mxu0 %v7163
        %7191 = vmatprep.subr.bf16.mxu0 0
        %7192 = vmatpush1.bf16.msra.mxu0 %v7162
        %7193 = vmatprep.subr.bf16.mxu0 0
        %7194 = vmatpush1.bf16.msra.mxu0 %v7161
        %7195 = vmatprep.subr.bf16.mxu0 0
        %7196 = vmatpush2.bf16.msra.mxu0 0
        %7197 = vmatprep.subr.bf16.mxu0 0
        %7198 = vmatpush2.bf16.msra.mxu0 0
        %7199 = vmatprep.subr.bf16.mxu0 0
        %7200 = vmatpush2.bf16.msra.mxu0 0
        %7201 = vmatprep.subr.bf16.mxu0 0
        %7202 = vmatpush2.bf16.msra.mxu0 0
        %7203 = vmatprep.subr.bf16.mxu0 0
        %7204 = vmatpush2.bf16.msra.mxu0 0
        %7205 = vmatprep.subr.bf16.mxu0 0
        %7206 = vmatpush2.bf16.msra.mxu0 0
        %7207 = vmatprep.subr.bf16.mxu0 0
        %7208 = vmatpush2.bf16.msra.mxu0 0
        %7209 = vmatprep.subr.bf16.mxu0 0
        %7210 = vmatpush2.bf16.msra.mxu0 %v7169
        %7211 = vmatprep.mubr.bf16.mxu0 %v6419
        %7212 = vmatmul.mubr.bf16.gmra.mxu0 %v6298
        %v7213 = vpop.f32.mrf.mxu0
        %v7214 = vadd.f32 0.0, %v7213
        %v7215 = vpop.f32.mrf.mxu0
        %v7216 = vpop.f32.mrf.mxu0
        %v7217 = vadd.f32 0.0, %v7216
        %v7218 = vpop.f32.mrf.mxu0
        %7219 = vmatprep.mubr.bf16.mxu0 %v6422
        %7220 = vmatmul.mubr.bf16.gmra.mxu0 %v6300
        %v7221 = vpop.f32.mrf.mxu0
        %v7222 = vadd.f32 0.0, %v7221
        %v7223 = vpop.f32.mrf.mxu0
        %v7224 = vpop.f32.mrf.mxu0
        %v7225 = vadd.f32 0.0, %v7224
        %v7226 = vpop.f32.mrf.mxu0
        %7227 = vmatprep.mubr.bf16.mxu0 %v6425
        %7228 = vmatmul.mubr.bf16.gmra.mxu0 %v6302
        %v7229 = vpop.f32.mrf.mxu0
        %v7230 = vadd.f32 0.0, %v7229
        %v7231 = vpop.f32.mrf.mxu0
        %v7232 = vpop.f32.mrf.mxu0
        %v7233 = vadd.f32 0.0, %v7232
        %v7234 = vpop.f32.mrf.mxu0
        %7235 = vmatprep.mubr.bf16.mxu0 %v6428
        %7236 = vmatmul.mubr.bf16.gmra.mxu0 %v6304
        %v7237 = vpop.f32.mrf.mxu0
        %v7238 = vadd.f32 0.0, %v7237
        %v7239 = vpop.f32.mrf.mxu0
        %v7240 = vpop.f32.mrf.mxu0
        %v7241 = vadd.f32 0.0, %v7240
        %v7242 = vpop.f32.mrf.mxu0
        %7243 = vmatprep.mubr.bf16.mxu0 %v6431
        %7244 = vmatmul.mubr.bf16.gmra.mxu0 %v6306
        %v7245 = vpop.f32.mrf.mxu0
        %v7246 = vadd.f32 0.0, %v7245
        %v7247 = vpop.f32.mrf.mxu0
        %v7248 = vpop.f32.mrf.mxu0
        %v7249 = vadd.f32 0.0, %v7248
        %v7250 = vpop.f32.mrf.mxu0
        %7251 = vmatprep.mubr.bf16.mxu0 %v6434
        %7252 = vmatmul.mubr.bf16.gmra.mxu0 %v6308
        %v7253 = vpop.f32.mrf.mxu0
        %v7254 = vadd.f32 0.0, %v7253
        %v7255 = vpop.f32.mrf.mxu0
        %v7256 = vpop.f32.mrf.mxu0
        %v7257 = vadd.f32 0.0, %v7256
        %v7258 = vpop.f32.mrf.mxu0
        %7259 = vmatprep.mubr.bf16.mxu0 %v6437
        %7260 = vmatmul.mubr.bf16.gmra.mxu0 %v6310
        %v7261 = vpop.f32.mrf.mxu0
        %v7262 = vadd.f32 0.0, %v7261
        %v7263 = vpop.f32.mrf.mxu0
        %v7264 = vpop.f32.mrf.mxu0
        %v7265 = vadd.f32 0.0, %v7264
        %v7266 = vpop.f32.mrf.mxu0
        %7267 = vmatprep.mubr.bf16.mxu0 %v6440
        %7268 = vmatmul.mubr.bf16.gmra.mxu0 %v6312
        %v7269 = vpop.f32.mrf.mxu0
        %v7270 = vadd.f32 0.0, %v7269
        %v7271 = vpop.f32.mrf.mxu0
        %v7272 = vpop.f32.mrf.mxu0
        %v7273 = vadd.f32 0.0, %v7272
        %v7274 = vpop.f32.mrf.mxu0
        %7275 = vmatprep.mubr.bf16.mxu0 %v6443
        %7276 = vmatmul.mubr.bf16.gmra.mxu0 %v6314
        %v7277 = vpop.f32.mrf.mxu0
        %v7278 = vadd.f32 0.0, %v7277
        %v7279 = vpop.f32.mrf.mxu0
        %v7280 = vpop.f32.mrf.mxu0
        %v7281 = vadd.f32 0.0, %v7280
        %v7282 = vpop.f32.mrf.mxu0
        %7283 = vmatprep.mubr.bf16.mxu0 %v6446
        %7284 = vmatmul.mubr.bf16.gmra.mxu0 %v6316
        %v7285 = vpop.f32.mrf.mxu0
        %v7286 = vadd.f32 0.0, %v7285
        %v7287 = vpop.f32.mrf.mxu0
        %v7288 = vpop.f32.mrf.mxu0
        %v7289 = vadd.f32 0.0, %v7288
        %v7290 = vpop.f32.mrf.mxu0
        %7291 = vmatprep.mubr.bf16.mxu0 %v6449
        %7292 = vmatmul.mubr.bf16.gmra.mxu0 %v6318
        %v7293 = vpop.f32.mrf.mxu0
        %v7294 = vadd.f32 0.0, %v7293
        %v7295 = vpop.f32.mrf.mxu0
        %v7296 = vpop.f32.mrf.mxu0
        %v7297 = vadd.f32 0.0, %v7296
        %v7298 = vpop.f32.mrf.mxu0
        %7299 = vmatprep.mubr.bf16.mxu0 %v6452
        %7300 = vmatmul.mubr.bf16.gmra.mxu0 %v6320
        %v7301 = vpop.f32.mrf.mxu0
        %v7302 = vadd.f32 0.0, %v7301
        %v7303 = vpop.f32.mrf.mxu0
        %v7304 = vpop.f32.mrf.mxu0
        %v7305 = vadd.f32 0.0, %v7304
        %v7306 = vpop.f32.mrf.mxu0
        %7307 = vmatprep.mubr.bf16.mxu0 %v6455
        %7308 = vmatmul.mubr.bf16.gmra.mxu0 %v6322
        %v7309 = vpop.f32.mrf.mxu0
        %v7310 = vadd.f32 0.0, %v7309
        %v7311 = vpop.f32.mrf.mxu0
        %v7312 = vpop.f32.mrf.mxu0
        %v7313 = vadd.f32 0.0, %v7312
        %v7314 = vpop.f32.mrf.mxu0
        %7315 = vmatprep.mubr.bf16.mxu0 %v6458
        %7316 = vmatmul.mubr.bf16.gmra.mxu0 %v6324
        %v7317 = vpop.f32.mrf.mxu0
        %v7318 = vadd.f32 0.0, %v7317
        %v7319 = vpop.f32.mrf.mxu0
        %v7320 = vpop.f32.mrf.mxu0
        %v7321 = vadd.f32 0.0, %v7320
        %v7322 = vpop.f32.mrf.mxu0
        %7323 = vdwg.mxu0
        %v7324 = vrot.slane %v7214, 4
        %v7325 = vrot.slane %v7217, 4
        %v7326 = vrot.slane %v7222, 4
        %v7327 = vrot.slane %v7225, 4
        %v7328 = vrot.slane %v7230, 4
        %v7329 = vrot.slane %v7233, 4
        %v7330 = vrot.slane %v7238, 4
        %v7331 = vrot.slane %v7241, 4
        %v7332 = vrot.slane %v7246, 4
        %v7333 = vrot.slane %v7249, 4
        %v7334 = vrot.slane %v7254, 4
        %v7335 = vrot.slane %v7257, 4
        %v7336 = vrot.slane %v7262, 4
        %v7337 = vrot.slane %v7265, 4
        %v7338 = vrot.slane %v7270, 4
        %v7339 = vrot.slane %v7273, 4
        %v7340 = vrot.slane %v7278, 4
        %v7341 = vrot.slane %v7281, 4
        %v7342 = vrot.slane %v7286, 4
        %v7343 = vrot.slane %v7289, 4
        %v7344 = vrot.slane %v7294, 4
        %v7345 = vrot.slane %v7297, 4
        %v7346 = vrot.slane %v7302, 4
        %v7347 = vrot.slane %v7305, 4
        %v7348 = vrot.slane %v7310, 4
        %v7349 = vrot.slane %v7313, 4
        %v7350 = vrot.slane %v7318, 4
        %v7351 = vrot.slane %v7321, 4
        %v7352 = vsel %vm4746, %v7350, %v7351
        %v7353 = vsel %vm4746, %v7349, %v7350
        %v7354 = vsel %vm4746, %v7348, %v7349
        %v7355 = vsel %vm4746, %v7347, %v7348
        %v7356 = vsel %vm4746, %v7346, %v7347
        %v7357 = vsel %vm4746, %v7345, %v7346
        %v7358 = vsel %vm4746, %v7344, %v7345
        %v7359 = vsel %vm4746, %v7343, %v7344
        %v7360 = vsel %vm4746, %v7342, %v7343
        %v7361 = vsel %vm4746, %v7341, %v7342
        %v7362 = vsel %vm4746, %v7340, %v7341
        %v7363 = vsel %vm4746, %v7339, %v7340
        %v7364 = vsel %vm4746, %v7338, %v7339
        %v7365 = vsel %vm4746, %v7337, %v7338
        %v7366 = vsel %vm4746, %v7336, %v7337
        %v7367 = vsel %vm4746, %v7335, %v7336
        %v7368 = vsel %vm4746, %v7334, %v7335
        %v7369 = vsel %vm4746, %v7333, %v7334
        %v7370 = vsel %vm4746, %v7332, %v7333
        %v7371 = vsel %vm4746, %v7331, %v7332
        %v7372 = vsel %vm4746, %v7330, %v7331
        %v7373 = vsel %vm4746, %v7329, %v7330
        %v7374 = vsel %vm4746, %v7328, %v7329
        %v7375 = vsel %vm4746, %v7327, %v7328
        %v7376 = vsel %vm4746, %v7326, %v7327
        %v7377 = vsel %vm4746, %v7325, %v7326
        %v7378 = vsel %vm4746, %v7324, %v7325
        %v7379 = vsel %vm4746, %v7351, %v7324
        %v7380 = vadd.f32 %v7078, %v7377
        %v7381 = vadd.f32 %v7079, %v7376
        %v7382 = vadd.f32 %v7080, %v7375
        %v7383 = vadd.f32 %v7081, %v7374
        %v7384 = vadd.f32 %v7082, %v7373
        %v7385 = vadd.f32 %v7083, %v7372
        %v7386 = vadd.f32 %v7084, %v7371
        %v7387 = vadd.f32 %v7085, %v7370
        %v7388 = vadd.f32 %v7086, %v7369
        %v7389 = vadd.f32 %v7087, %v7368
        %v7390 = vadd.f32 %v7088, %v7367
        %v7391 = vadd.f32 %v7089, %v7366
        %v7392 = vadd.f32 %v7090, %v7365
        %v7393 = vadd.f32 %v7091, %v7364
        %v7394 = vadd.f32 %v7092, %v7363
        %v7395 = vadd.f32 %v7093, %v7362
        %v7396 = vadd.f32 %v7094, %v7361
        %v7397 = vadd.f32 %v7095, %v7360
        %v7398 = vadd.f32 %v7096, %v7359
        %v7399 = vadd.f32 %v7097, %v7358
        %v7400 = vadd.f32 %v7098, %v7357
        %v7401 = vadd.f32 %v7099, %v7356
        %v7402 = vadd.f32 %v7100, %v7355
        %v7403 = vadd.f32 %v7101, %v7354
        %v7404 = vadd.f32 %v7102, %v7353
        %v7405 = vadd.f32 %v7103, %v7352
        %v7406 = vadd.f32 %v7104, %v7379
        %v7407 = vadd.f32 %v7105, %v7378
        %s7408 = scalar_lea.vmem %s3, 288
        %v7409 = vld [vmem:[%s7408] sm:$0xf]
        %v7410 = vld [vmem:[%s7408 + $0x4] sm:$0xf]
        %v7411 = vld [vmem:[%s7408 + $0x8] sm:$0xf]
        %v7412 = vld [vmem:[%s7408 + $0xc] sm:$0xf]
        %v7413 = vld [vmem:[%s7408 + $0x10] sm:$0xf]
        %v7414 = vld [vmem:[%s7408 + $0x14] sm:$0xf]
        %v7415 = vld [vmem:[%s7408 + $0x18] sm:$0xf]
        %v7416 = vld [vmem:[%s7408 + $0x1c] sm:$0xf]
        %v7417 = vld [vmem:[%s7408 + $0x20] sm:$0xf]
        %v7418 = vld [vmem:[%s7408 + $0x24] sm:$0xf]
        %v7419 = vld [vmem:[%s7408 + $0x28] sm:$0xf]
        %v7420 = vld [vmem:[%s7408 + $0x2c] sm:$0xf]
        %v7421 = vld [vmem:[%s7408 + $0x30] sm:$0xf]
        %v7422 = vld [vmem:[%s7408 + $0x34] sm:$0xf]
        %v7423 = vld [vmem:[%s7408 + $0x38] sm:$0xf]
        %v7424 = vld [vmem:[%s7408 + $0x3c] sm:$0xf]
        %v7425 = vld [vmem:[%s7408 + $0x40] sm:$0xf]
        %v7426 = vld [vmem:[%s7408 + $0x44] sm:$0xf]
        %v7445 = vunpack.c.l.b16 %v7409
        %v7446 = vunpack.c.l.b16 %v7410
        %v7447 = vunpack.c.l.b16 %v7411
        %v7448 = vunpack.c.l.b16 %v7412
        %v7449 = vunpack.c.l.b16 %v7413
        %v7450 = vunpack.c.l.b16 %v7414
        %v7451 = vunpack.c.l.b16 %v7415
        %v7452 = vunpack.c.l.b16 %v7416
        %v7453 = vunpack.c.l.b16 %v7417
        %v7454 = vunpack.c.l.b16 %v7418
        %v7455 = vunpack.c.l.b16 %v7419
        %v7456 = vunpack.c.l.b16 %v7420
        %v7457 = vunpack.c.l.b16 %v7421
        %v7458 = vunpack.c.l.b16 %v7422
        %v7459 = vunpack.c.l.b16 %v7423
        %v7460 = vunpack.c.l.b16 %v7424
        %v7461 = vunpack.c.l.b16 %v7425
        %v7462 = vunpack.c.l.b16 %v7426
        %v7463 = vpack.c.b16 %v7446, %v7445
        %v7464 = vpack.c.b16 %v7448, %v7447
        %v7465 = vpack.c.b16 %v7450, %v7449
        %v7466 = vpack.c.b16 %v7452, %v7451
        %v7467 = vpack.c.b16 %v7454, %v7453
        %v7468 = vpack.c.b16 %v7456, %v7455
        %v7469 = vpack.c.b16 %v7458, %v7457
        %v7470 = vpack.c.b16 %v7460, %v7459
        %v7471 = vpack.c.b16 %v7462, %v7461
        %7481 = vmatprep.subr.bf16.mxu0 0
        %7482 = vmatpush1.bf16.msra.mxu0 %v7470
        %7483 = vmatprep.subr.bf16.mxu0 0
        %7484 = vmatpush1.bf16.msra.mxu0 %v7469
        %7485 = vmatprep.subr.bf16.mxu0 0
        %7486 = vmatpush1.bf16.msra.mxu0 %v7468
        %7487 = vmatprep.subr.bf16.mxu0 0
        %7488 = vmatpush1.bf16.msra.mxu0 %v7467
        %7489 = vmatprep.subr.bf16.mxu0 0
        %7490 = vmatpush1.bf16.msra.mxu0 %v7466
        %7491 = vmatprep.subr.bf16.mxu0 0
        %7492 = vmatpush1.bf16.msra.mxu0 %v7465
        %7493 = vmatprep.subr.bf16.mxu0 0
        %7494 = vmatpush1.bf16.msra.mxu0 %v7464
        %7495 = vmatprep.subr.bf16.mxu0 0
        %7496 = vmatpush1.bf16.msra.mxu0 %v7463
        %7497 = vmatprep.subr.bf16.mxu0 0
        %7498 = vmatpush2.bf16.msra.mxu0 0
        %7499 = vmatprep.subr.bf16.mxu0 0
        %7500 = vmatpush2.bf16.msra.mxu0 0
        %7501 = vmatprep.subr.bf16.mxu0 0
        %7502 = vmatpush2.bf16.msra.mxu0 0
        %7503 = vmatprep.subr.bf16.mxu0 0
        %7504 = vmatpush2.bf16.msra.mxu0 0
        %7505 = vmatprep.subr.bf16.mxu0 0
        %7506 = vmatpush2.bf16.msra.mxu0 0
        %7507 = vmatprep.subr.bf16.mxu0 0
        %7508 = vmatpush2.bf16.msra.mxu0 0
        %7509 = vmatprep.subr.bf16.mxu0 0
        %7510 = vmatpush2.bf16.msra.mxu0 0
        %7511 = vmatprep.subr.bf16.mxu0 0
        %7512 = vmatpush2.bf16.msra.mxu0 %v7471
        %7513 = vmatprep.mubr.bf16.mxu0 %v6419
        %7514 = vmatmul.mubr.bf16.gmra.mxu0 %v6298
        %v7515 = vpop.f32.mrf.mxu0
        %v7516 = vadd.f32 0.0, %v7515
        %v7517 = vpop.f32.mrf.mxu0
        %v7518 = vpop.f32.mrf.mxu0
        %v7519 = vadd.f32 0.0, %v7518
        %v7520 = vpop.f32.mrf.mxu0
        %7521 = vmatprep.mubr.bf16.mxu0 %v6422
        %7522 = vmatmul.mubr.bf16.gmra.mxu0 %v6300
        %v7523 = vpop.f32.mrf.mxu0
        %v7524 = vadd.f32 0.0, %v7523
        %v7525 = vpop.f32.mrf.mxu0
        %v7526 = vpop.f32.mrf.mxu0
        %v7527 = vadd.f32 0.0, %v7526
        %v7528 = vpop.f32.mrf.mxu0
        %7529 = vmatprep.mubr.bf16.mxu0 %v6425
        %7530 = vmatmul.mubr.bf16.gmra.mxu0 %v6302
        %v7531 = vpop.f32.mrf.mxu0
        %v7532 = vadd.f32 0.0, %v7531
        %v7533 = vpop.f32.mrf.mxu0
        %v7534 = vpop.f32.mrf.mxu0
        %v7535 = vadd.f32 0.0, %v7534
        %v7536 = vpop.f32.mrf.mxu0
        %7537 = vmatprep.mubr.bf16.mxu0 %v6428
        %7538 = vmatmul.mubr.bf16.gmra.mxu0 %v6304
        %v7539 = vpop.f32.mrf.mxu0
        %v7540 = vadd.f32 0.0, %v7539
        %v7541 = vpop.f32.mrf.mxu0
        %v7542 = vpop.f32.mrf.mxu0
        %v7543 = vadd.f32 0.0, %v7542
        %v7544 = vpop.f32.mrf.mxu0
        %7545 = vmatprep.mubr.bf16.mxu0 %v6431
        %7546 = vmatmul.mubr.bf16.gmra.mxu0 %v6306
        %v7547 = vpop.f32.mrf.mxu0
        %v7548 = vadd.f32 0.0, %v7547
        %v7549 = vpop.f32.mrf.mxu0
        %v7550 = vpop.f32.mrf.mxu0
        %v7551 = vadd.f32 0.0, %v7550
        %v7552 = vpop.f32.mrf.mxu0
        %7553 = vmatprep.mubr.bf16.mxu0 %v6434
        %7554 = vmatmul.mubr.bf16.gmra.mxu0 %v6308
        %v7555 = vpop.f32.mrf.mxu0
        %v7556 = vadd.f32 0.0, %v7555
        %v7557 = vpop.f32.mrf.mxu0
        %v7558 = vpop.f32.mrf.mxu0
        %v7559 = vadd.f32 0.0, %v7558
        %v7560 = vpop.f32.mrf.mxu0
        %7561 = vmatprep.mubr.bf16.mxu0 %v6437
        %7562 = vmatmul.mubr.bf16.gmra.mxu0 %v6310
        %v7563 = vpop.f32.mrf.mxu0
        %v7564 = vadd.f32 0.0, %v7563
        %v7565 = vpop.f32.mrf.mxu0
        %v7566 = vpop.f32.mrf.mxu0
        %v7567 = vadd.f32 0.0, %v7566
        %v7568 = vpop.f32.mrf.mxu0
        %7569 = vmatprep.mubr.bf16.mxu0 %v6440
        %7570 = vmatmul.mubr.bf16.gmra.mxu0 %v6312
        %v7571 = vpop.f32.mrf.mxu0
        %v7572 = vadd.f32 0.0, %v7571
        %v7573 = vpop.f32.mrf.mxu0
        %v7574 = vpop.f32.mrf.mxu0
        %v7575 = vadd.f32 0.0, %v7574
        %v7576 = vpop.f32.mrf.mxu0
        %7577 = vmatprep.mubr.bf16.mxu0 %v6443
        %7578 = vmatmul.mubr.bf16.gmra.mxu0 %v6314
        %v7579 = vpop.f32.mrf.mxu0
        %v7580 = vadd.f32 0.0, %v7579
        %v7581 = vpop.f32.mrf.mxu0
        %v7582 = vpop.f32.mrf.mxu0
        %v7583 = vadd.f32 0.0, %v7582
        %v7584 = vpop.f32.mrf.mxu0
        %7585 = vmatprep.mubr.bf16.mxu0 %v6446
        %7586 = vmatmul.mubr.bf16.gmra.mxu0 %v6316
        %v7587 = vpop.f32.mrf.mxu0
        %v7588 = vadd.f32 0.0, %v7587
        %v7589 = vpop.f32.mrf.mxu0
        %v7590 = vpop.f32.mrf.mxu0
        %v7591 = vadd.f32 0.0, %v7590
        %v7592 = vpop.f32.mrf.mxu0
        %7593 = vmatprep.mubr.bf16.mxu0 %v6449
        %7594 = vmatmul.mubr.bf16.gmra.mxu0 %v6318
        %v7595 = vpop.f32.mrf.mxu0
        %v7596 = vadd.f32 0.0, %v7595
        %v7597 = vpop.f32.mrf.mxu0
        %v7598 = vpop.f32.mrf.mxu0
        %v7599 = vadd.f32 0.0, %v7598
        %v7600 = vpop.f32.mrf.mxu0
        %7601 = vmatprep.mubr.bf16.mxu0 %v6452
        %7602 = vmatmul.mubr.bf16.gmra.mxu0 %v6320
        %v7603 = vpop.f32.mrf.mxu0
        %v7604 = vadd.f32 0.0, %v7603
        %v7605 = vpop.f32.mrf.mxu0
        %v7606 = vpop.f32.mrf.mxu0
        %v7607 = vadd.f32 0.0, %v7606
        %v7608 = vpop.f32.mrf.mxu0
        %7609 = vmatprep.mubr.bf16.mxu0 %v6455
        %7610 = vmatmul.mubr.bf16.gmra.mxu0 %v6322
        %v7611 = vpop.f32.mrf.mxu0
        %v7612 = vadd.f32 0.0, %v7611
        %v7613 = vpop.f32.mrf.mxu0
        %v7614 = vpop.f32.mrf.mxu0
        %v7615 = vadd.f32 0.0, %v7614
        %v7616 = vpop.f32.mrf.mxu0
        %7617 = vmatprep.mubr.bf16.mxu0 %v6458
        %7618 = vmatmul.mubr.bf16.gmra.mxu0 %v6324
        %v7619 = vpop.f32.mrf.mxu0
        %v7620 = vadd.f32 0.0, %v7619
        %v7621 = vpop.f32.mrf.mxu0
        %v7622 = vpop.f32.mrf.mxu0
        %v7623 = vadd.f32 0.0, %v7622
        %v7624 = vpop.f32.mrf.mxu0
        %7625 = vdwg.mxu0
        %v7626 = vadd.f32 %v7380, %v7524
        %v7627 = vadd.f32 %v7381, %v7527
        %v7628 = vadd.f32 %v7382, %v7532
        %v7629 = vadd.f32 %v7383, %v7535
        %v7630 = vadd.f32 %v7384, %v7540
        %v7631 = vadd.f32 %v7385, %v7543
        %v7632 = vadd.f32 %v7386, %v7548
        %v7633 = vadd.f32 %v7387, %v7551
        %v7634 = vadd.f32 %v7388, %v7556
        %v7635 = vadd.f32 %v7389, %v7559
        %v7636 = vadd.f32 %v7390, %v7564
        %v7637 = vadd.f32 %v7391, %v7567
        %v7638 = vadd.f32 %v7392, %v7572
        %v7639 = vadd.f32 %v7393, %v7575
        %v7640 = vadd.f32 %v7394, %v7580
        %v7641 = vadd.f32 %v7395, %v7583
        %v7642 = vadd.f32 %v7396, %v7588
        %v7643 = vadd.f32 %v7397, %v7591
        %v7644 = vadd.f32 %v7398, %v7596
        %v7645 = vadd.f32 %v7399, %v7599
        %v7646 = vadd.f32 %v7400, %v7604
        %v7647 = vadd.f32 %v7401, %v7607
        %v7648 = vadd.f32 %v7402, %v7612
        %v7649 = vadd.f32 %v7403, %v7615
        %v7650 = vadd.f32 %v7404, %v7620
        %v7651 = vadd.f32 %v7405, %v7623
        %v7652 = vadd.f32 %v7406, %v7516
        %v7653 = vadd.f32 %v7407, %v7519
        %v7654 = vld [vmem:[%s6 + $0x2] ss:$0 sm:$0xff]
        %v7655 = vadd.f32 %v7626, %v7654
        %v7656 = vadd.f32 %v7627, %v7654
        %v7657 = vadd.f32 %v7628, %v7654
        %v7658 = vadd.f32 %v7629, %v7654
        %v7659 = vadd.f32 %v7630, %v7654
        %v7660 = vadd.f32 %v7631, %v7654
        %v7661 = vadd.f32 %v7632, %v7654
        %v7662 = vadd.f32 %v7633, %v7654
        %v7663 = vadd.f32 %v7634, %v7654
        %v7664 = vadd.f32 %v7635, %v7654
        %v7665 = vadd.f32 %v7636, %v7654
        %v7666 = vadd.f32 %v7637, %v7654
        %v7667 = vadd.f32 %v7638, %v7654
        %v7668 = vadd.f32 %v7639, %v7654
        %v7669 = vadd.f32 %v7640, %v7654
        %v7670 = vadd.f32 %v7641, %v7654
        %v7671 = vadd.f32 %v7642, %v7654
        %v7672 = vadd.f32 %v7643, %v7654
        %v7673 = vadd.f32 %v7644, %v7654
        %v7674 = vadd.f32 %v7645, %v7654
        %v7675 = vadd.f32 %v7646, %v7654
        %v7676 = vadd.f32 %v7647, %v7654
        %v7677 = vadd.f32 %v7648, %v7654
        %v7678 = vadd.f32 %v7649, %v7654
        %v7679 = vadd.f32 %v7650, %v7654
        %v7680 = vadd.f32 %v7651, %v7654
        %v7681 = vadd.f32 %v7652, %v7654
        %v7682 = vadd.f32 %v7653, %v7654
        %v7683 = vmax.f32 %v7655, 0.0
        %v7684 = vmax.f32 %v7656, 0.0
        %v7685 = vmax.f32 %v7657, 0.0
        %v7686 = vmax.f32 %v7658, 0.0
        %v7687 = vmax.f32 %v7659, 0.0
        %v7688 = vmax.f32 %v7660, 0.0
        %v7689 = vmax.f32 %v7661, 0.0
        %v7690 = vmax.f32 %v7662, 0.0
        %v7691 = vmax.f32 %v7663, 0.0
        %v7692 = vmax.f32 %v7664, 0.0
        %v7693 = vmax.f32 %v7665, 0.0
        %v7694 = vmax.f32 %v7666, 0.0
        %v7695 = vmax.f32 %v7667, 0.0
        %v7696 = vmax.f32 %v7668, 0.0
        %v7697 = vmax.f32 %v7669, 0.0
        %v7698 = vmax.f32 %v7670, 0.0
        %v7699 = vmax.f32 %v7671, 0.0
        %v7700 = vmax.f32 %v7672, 0.0
        %v7701 = vmax.f32 %v7673, 0.0
        %v7702 = vmax.f32 %v7674, 0.0
        %v7703 = vmax.f32 %v7675, 0.0
        %v7704 = vmax.f32 %v7676, 0.0
        %v7705 = vmax.f32 %v7677, 0.0
        %v7706 = vmax.f32 %v7678, 0.0
        %v7707 = vmax.f32 %v7679, 0.0
        %v7708 = vmax.f32 %v7680, 0.0
        %v7709 = vmax.f32 %v7681, 0.0
        %v7710 = vmax.f32 %v7682, 0.0
        %v7711 = vpack.c.bf16 %v7684, %v7683
        %v7712 = vpack.c.bf16 %v7686, %v7685
        %v7713 = vpack.c.bf16 %v7688, %v7687
        %v7714 = vpack.c.bf16 %v7690, %v7689
        %v7715 = vpack.c.bf16 %v7692, %v7691
        %v7716 = vpack.c.bf16 %v7694, %v7693
        %v7717 = vpack.c.bf16 %v7696, %v7695
        %v7718 = vpack.c.bf16 %v7698, %v7697
        %v7719 = vpack.c.bf16 %v7700, %v7699
        %v7720 = vpack.c.bf16 %v7702, %v7701
        %v7721 = vpack.c.bf16 %v7704, %v7703
        %v7722 = vpack.c.bf16 %v7706, %v7705
        %v7723 = vpack.c.bf16 %v7708, %v7707
        %v7724 = vpack.c.bf16 %v7710, %v7709
        %v7725 = vld [vmem:[%s4] sm:$0xf]
        %v7726 = vld [vmem:[%s4 + $0x4] sm:$0xf]
        %v7727 = vld [vmem:[%s4 + $0x8] sm:$0xf]
        %v7728 = vld [vmem:[%s4 + $0xc] sm:$0xf]
        %v7729 = vld [vmem:[%s4 + $0x10] sm:$0xf]
        %v7730 = vld [vmem:[%s4 + $0x14] sm:$0xf]
        %v7731 = vld [vmem:[%s4 + $0x18] sm:$0xf]
        %v7732 = vld [vmem:[%s4 + $0x1c] sm:$0xf]
        %v7733 = vld [vmem:[%s4 + $0x20] sm:$0xf]
        %v7734 = vld [vmem:[%s4 + $0x24] sm:$0xf]
        %v7735 = vld [vmem:[%s4 + $0x28] sm:$0xf]
        %v7736 = vld [vmem:[%s4 + $0x2c] sm:$0xf]
        %v7737 = vld [vmem:[%s4 + $0x30] sm:$0xf]
        %v7738 = vld [vmem:[%s4 + $0x34] sm:$0xf]
        %v7739 = vld [vmem:[%s4 + $0x38] sm:$0xf]
        %v7740 = vld [vmem:[%s6 + $0x3] ss:$0 sm:$0xff]
        %v7756 = vunpack.c.l.b16 %v7725
        %v7757 = vunpack.c.l.b16 %v7726
        %v7758 = vunpack.c.l.b16 %v7727
        %v7759 = vunpack.c.l.b16 %v7728
        %v7760 = vunpack.c.l.b16 %v7729
        %v7761 = vunpack.c.l.b16 %v7730
        %v7762 = vunpack.c.l.b16 %v7731
        %v7763 = vunpack.c.l.b16 %v7732
        %v7764 = vunpack.c.l.b16 %v7733
        %v7765 = vunpack.c.l.b16 %v7734
        %v7766 = vunpack.c.l.b16 %v7735
        %v7767 = vunpack.c.l.b16 %v7736
        %v7768 = vunpack.c.l.b16 %v7737
        %v7769 = vunpack.c.l.b16 %v7738
        %v7770 = vunpack.c.l.b16 %v7739
        %v7771 = vpack.c.b16 %v7757, %v7756
        %v7772 = vpack.c.b16 %v7759, %v7758
        %v7773 = vpack.c.b16 %v7761, %v7760
        %v7774 = vpack.c.b16 %v7763, %v7762
        %v7775 = vpack.c.b16 %v7765, %v7764
        %v7776 = vpack.c.b16 %v7767, %v7766
        %v7777 = vpack.c.b16 %v7769, %v7768
        %v7778 = vpack.c.b16 %v7770, %v7770
        %vm7786 = vcmask 982016
        %v7788 = vsel %vm7786, %v7711, 0
        %v7791 = vsel %vm7786, %v7712, 0
        %v7794 = vsel %vm7786, %v7713, 0
        %v7797 = vsel %vm7786, %v7714, 0
        %v7800 = vsel %vm7786, %v7715, 0
        %v7803 = vsel %vm7786, %v7716, 0
        %v7806 = vsel %vm7786, %v7717, 0
        %v7809 = vsel %vm7786, %v7718, 0
        %v7812 = vsel %vm7786, %v7719, 0
        %v7815 = vsel %vm7786, %v7720, 0
        %v7818 = vsel %vm7786, %v7721, 0
        %v7821 = vsel %vm7786, %v7722, 0
        %v7824 = vsel %vm7786, %v7723, 0
        %v7827 = vsel %vm7786, %v7724, 0
        %vm7829 = vcmask 1043456
        %v7831 = vsel %vm7829, %v7778, 0
        %7833 = vmatprep.subr.bf16.mxu0 0
        %7834 = vmatpush1.bf16.msra.mxu0 %v7831
        %7835 = vmatprep.subr.bf16.mxu0 0
        %7836 = vmatpush1.bf16.msra.mxu0 %v7777
        %7837 = vmatprep.subr.bf16.mxu0 0
        %7838 = vmatpush1.bf16.msra.mxu0 %v7776
        %7839 = vmatprep.subr.bf16.mxu0 0
        %7840 = vmatpush1.bf16.msra.mxu0 %v7775
        %7841 = vmatprep.subr.bf16.mxu0 0
        %7842 = vmatpush1.bf16.msra.mxu0 %v7774
        %7843 = vmatprep.subr.bf16.mxu0 0
        %7844 = vmatpush1.bf16.msra.mxu0 %v7773
        %7845 = vmatprep.subr.bf16.mxu0 0
        %7846 = vmatpush1.bf16.msra.mxu0 %v7772
        %7847 = vmatprep.subr.bf16.mxu0 0
        %7848 = vmatpush1.bf16.msra.mxu0 %v7771
        %7849 = vmatprep.subr.bf16.mxu0 0
        %7850 = vmatpush2.bf16.msra.mxu0 0
        %7851 = vmatprep.subr.bf16.mxu0 0
        %7852 = vmatpush2.bf16.msra.mxu0 0
        %7853 = vmatprep.subr.bf16.mxu0 0
        %7854 = vmatpush2.bf16.msra.mxu0 0
        %7855 = vmatprep.subr.bf16.mxu0 0
        %7856 = vmatpush2.bf16.msra.mxu0 0
        %7857 = vmatprep.subr.bf16.mxu0 0
        %7858 = vmatpush2.bf16.msra.mxu0 0
        %7859 = vmatprep.subr.bf16.mxu0 0
        %7860 = vmatpush2.bf16.msra.mxu0 0
        %7861 = vmatprep.subr.bf16.mxu0 0
        %7862 = vmatpush2.bf16.msra.mxu0 0
        %7863 = vmatprep.subr.bf16.mxu0 0
        %7864 = vmatpush2.bf16.msra.mxu0 0
        %7865 = vmatprep.mubr.bf16.mxu0 0
        %7866 = vmatmul.mubr.bf16.gmra.mxu0 %v7788
        %v7867 = vpop.f32.mrf.mxu0
        %v7868 = vadd.f32 %v7740, %v7867
        %v7869 = vpop.f32.mrf.mxu0
        %v7870 = vpop.f32.mrf.mxu0
        %v7871 = vadd.f32 %v7740, %v7870
        %v7872 = vpop.f32.mrf.mxu0
        %7873 = vmatprep.mubr.bf16.mxu0 0
        %7874 = vmatmul.mubr.bf16.gmra.mxu0 %v7791
        %v7875 = vpop.f32.mrf.mxu0
        %v7876 = vadd.f32 %v7740, %v7875
        %v7877 = vpop.f32.mrf.mxu0
        %v7878 = vpop.f32.mrf.mxu0
        %v7879 = vadd.f32 %v7740, %v7878
        %v7880 = vpop.f32.mrf.mxu0
        %7881 = vmatprep.mubr.bf16.mxu0 0
        %7882 = vmatmul.mubr.bf16.gmra.mxu0 %v7794
        %v7883 = vpop.f32.mrf.mxu0
        %v7884 = vadd.f32 %v7740, %v7883
        %v7885 = vpop.f32.mrf.mxu0
        %v7886 = vpop.f32.mrf.mxu0
        %v7887 = vadd.f32 %v7740, %v7886
        %v7888 = vpop.f32.mrf.mxu0
        %7889 = vmatprep.mubr.bf16.mxu0 0
        %7890 = vmatmul.mubr.bf16.gmra.mxu0 %v7797
        %v7891 = vpop.f32.mrf.mxu0
        %v7892 = vadd.f32 %v7740, %v7891
        %v7893 = vpop.f32.mrf.mxu0
        %v7894 = vpop.f32.mrf.mxu0
        %v7895 = vadd.f32 %v7740, %v7894
        %v7896 = vpop.f32.mrf.mxu0
        %7897 = vmatprep.mubr.bf16.mxu0 0
        %7898 = vmatmul.mubr.bf16.gmra.mxu0 %v7800
        %v7899 = vpop.f32.mrf.mxu0
        %v7900 = vadd.f32 %v7740, %v7899
        %v7901 = vpop.f32.mrf.mxu0
        %v7902 = vpop.f32.mrf.mxu0
        %v7903 = vadd.f32 %v7740, %v7902
        %v7904 = vpop.f32.mrf.mxu0
        %7905 = vmatprep.mubr.bf16.mxu0 0
        %7906 = vmatmul.mubr.bf16.gmra.mxu0 %v7803
        %v7907 = vpop.f32.mrf.mxu0
        %v7908 = vadd.f32 %v7740, %v7907
        %v7909 = vpop.f32.mrf.mxu0
        %v7910 = vpop.f32.mrf.mxu0
        %v7911 = vadd.f32 %v7740, %v7910
        %v7912 = vpop.f32.mrf.mxu0
        %7913 = vmatprep.mubr.bf16.mxu0 0
        %7914 = vmatmul.mubr.bf16.gmra.mxu0 %v7806
        %v7915 = vpop.f32.mrf.mxu0
        %v7916 = vadd.f32 %v7740, %v7915
        %v7917 = vpop.f32.mrf.mxu0
        %v7918 = vpop.f32.mrf.mxu0
        %v7919 = vadd.f32 %v7740, %v7918
        %v7920 = vpop.f32.mrf.mxu0
        %7921 = vmatprep.mubr.bf16.mxu0 0
        %7922 = vmatmul.mubr.bf16.gmra.mxu0 %v7809
        %v7923 = vpop.f32.mrf.mxu0
        %v7924 = vadd.f32 %v7740, %v7923
        %v7925 = vpop.f32.mrf.mxu0
        %v7926 = vpop.f32.mrf.mxu0
        %v7927 = vadd.f32 %v7740, %v7926
        %v7928 = vpop.f32.mrf.mxu0
        %7929 = vmatprep.mubr.bf16.mxu0 0
        %7930 = vmatmul.mubr.bf16.gmra.mxu0 %v7812
        %v7931 = vpop.f32.mrf.mxu0
        %v7932 = vadd.f32 %v7740, %v7931
        %v7933 = vpop.f32.mrf.mxu0
        %v7934 = vpop.f32.mrf.mxu0
        %v7935 = vadd.f32 %v7740, %v7934
        %v7936 = vpop.f32.mrf.mxu0
        %7937 = vmatprep.mubr.bf16.mxu0 0
        %7938 = vmatmul.mubr.bf16.gmra.mxu0 %v7815
        %v7939 = vpop.f32.mrf.mxu0
        %v7940 = vadd.f32 %v7740, %v7939
        %v7941 = vpop.f32.mrf.mxu0
        %v7942 = vpop.f32.mrf.mxu0
        %v7943 = vadd.f32 %v7740, %v7942
        %v7944 = vpop.f32.mrf.mxu0
        %7945 = vmatprep.mubr.bf16.mxu0 0
        %7946 = vmatmul.mubr.bf16.gmra.mxu0 %v7818
        %v7947 = vpop.f32.mrf.mxu0
        %v7948 = vadd.f32 %v7740, %v7947
        %v7949 = vpop.f32.mrf.mxu0
        %v7950 = vpop.f32.mrf.mxu0
        %v7951 = vadd.f32 %v7740, %v7950
        %v7952 = vpop.f32.mrf.mxu0
        %7953 = vmatprep.mubr.bf16.mxu0 0
        %7954 = vmatmul.mubr.bf16.gmra.mxu0 %v7821
        %v7955 = vpop.f32.mrf.mxu0
        %v7956 = vadd.f32 %v7740, %v7955
        %v7957 = vpop.f32.mrf.mxu0
        %v7958 = vpop.f32.mrf.mxu0
        %v7959 = vadd.f32 %v7740, %v7958
        %v7960 = vpop.f32.mrf.mxu0
        %7961 = vmatprep.mubr.bf16.mxu0 0
        %7962 = vmatmul.mubr.bf16.gmra.mxu0 %v7824
        %v7963 = vpop.f32.mrf.mxu0
        %v7964 = vadd.f32 %v7740, %v7963
        %v7965 = vpop.f32.mrf.mxu0
        %v7966 = vpop.f32.mrf.mxu0
        %v7967 = vadd.f32 %v7740, %v7966
        %v7968 = vpop.f32.mrf.mxu0
        %7969 = vmatprep.mubr.bf16.mxu0 0
        %7970 = vmatmul.mubr.bf16.gmra.mxu0 %v7827
        %v7971 = vpop.f32.mrf.mxu0
        %v7972 = vadd.f32 %v7740, %v7971
        %v7973 = vpop.f32.mrf.mxu0
        %v7974 = vpop.f32.mrf.mxu0
        %v7975 = vadd.f32 %v7740, %v7974
        %v7976 = vpop.f32.mrf.mxu0
        %7977 = vdwg.mxu0
        %v7978 = vmax.f32 %v7868, 0.0
        %v7979 = vmax.f32 %v7871, 0.0
        %v7980 = vmax.f32 %v7876, 0.0
        %v7981 = vmax.f32 %v7879, 0.0
        %v7982 = vmax.f32 %v7884, 0.0
        %v7983 = vmax.f32 %v7887, 0.0
        %v7984 = vmax.f32 %v7892, 0.0
        %v7985 = vmax.f32 %v7895, 0.0
        %v7986 = vmax.f32 %v7900, 0.0
        %v7987 = vmax.f32 %v7903, 0.0
        %v7988 = vmax.f32 %v7908, 0.0
        %v7989 = vmax.f32 %v7911, 0.0
        %v7990 = vmax.f32 %v7916, 0.0
        %v7991 = vmax.f32 %v7919, 0.0
        %v7992 = vmax.f32 %v7924, 0.0
        %v7993 = vmax.f32 %v7927, 0.0
        %v7994 = vmax.f32 %v7932, 0.0
        %v7995 = vmax.f32 %v7935, 0.0
        %v7996 = vmax.f32 %v7940, 0.0
        %v7997 = vmax.f32 %v7943, 0.0
        %v7998 = vmax.f32 %v7948, 0.0
        %v7999 = vmax.f32 %v7951, 0.0
        %v8000 = vmax.f32 %v7956, 0.0
        %v8001 = vmax.f32 %v7959, 0.0
        %v8002 = vmax.f32 %v7964, 0.0
        %v8003 = vmax.f32 %v7967, 0.0
        %v8004 = vmax.f32 %v7972, 0.0
        %v8005 = vmax.f32 %v7975, 0.0
        %v8006 = vpack.c.bf16 %v7979, %v7978
        %v8007 = vpack.c.bf16 %v7981, %v7980
        %v8008 = vpack.c.bf16 %v7983, %v7982
        %v8009 = vpack.c.bf16 %v7985, %v7984
        %v8010 = vpack.c.bf16 %v7987, %v7986
        %v8011 = vpack.c.bf16 %v7989, %v7988
        %v8012 = vpack.c.bf16 %v7991, %v7990
        %v8013 = vpack.c.bf16 %v7993, %v7992
        %v8014 = vpack.c.bf16 %v7995, %v7994
        %v8015 = vpack.c.bf16 %v7997, %v7996
        %v8016 = vpack.c.bf16 %v7999, %v7998
        %v8017 = vpack.c.bf16 %v8001, %v8000
        %v8018 = vpack.c.bf16 %v8003, %v8002
        %v8019 = vpack.c.bf16 %v8005, %v8004
        %v8020 = vld [vmem:[%s5] sm:$0xf]
        %v8021 = vld [vmem:[%s5 + $0x4] sm:$0xf]
        %v8022 = vld [vmem:[%s5 + $0x8] sm:$0xf]
        %v8023 = vld [vmem:[%s5 + $0xc] sm:$0xf]
        %v8024 = vld [vmem:[%s5 + $0x10] sm:$0xf]
        %v8025 = vld [vmem:[%s5 + $0x14] sm:$0xf]
        %v8026 = vld [vmem:[%s5 + $0x18] sm:$0xf]
        %v8027 = vld [vmem:[%s5 + $0x1c] sm:$0xf]
        %v8028 = vld [vmem:[%s5 + $0x20] sm:$0xf]
        %v8029 = vld [vmem:[%s5 + $0x24] sm:$0xf]
        %v8030 = vld [vmem:[%s5 + $0x28] sm:$0x3]
        %v8031 = vld [vmem:[%s6 + $0x4] ss:$0 sm:$0xff]
        %v8043 = vunpack.c.l.b16 %v8020
        %v8044 = vunpack.c.l.b16 %v8021
        %v8045 = vunpack.c.l.b16 %v8022
        %v8046 = vunpack.c.l.b16 %v8023
        %v8047 = vunpack.c.l.b16 %v8024
        %v8048 = vunpack.c.l.b16 %v8025
        %v8049 = vunpack.c.l.b16 %v8026
        %v8050 = vunpack.c.l.b16 %v8027
        %v8051 = vunpack.c.l.b16 %v8028
        %v8052 = vunpack.c.l.b16 %v8029
        %v8053 = vunpack.c.l.b16 %v8030
        %v8054 = vpack.c.b16 %v8044, %v8043
        %v8055 = vpack.c.b16 %v8046, %v8045
        %v8056 = vpack.c.b16 %v8048, %v8047
        %v8057 = vpack.c.b16 %v8050, %v8049
        %v8058 = vpack.c.b16 %v8052, %v8051
        %v8059 = vpack.c.b16 %v8053, %v8053
        %vm8065 = vcmask 687104
        %v8067 = vsel %vm8065, %v8006, 0
        %v8070 = vsel %vm8065, %v8007, 0
        %v8073 = vsel %vm8065, %v8008, 0
        %v8076 = vsel %vm8065, %v8009, 0
        %v8079 = vsel %vm8065, %v8010, 0
        %v8082 = vsel %vm8065, %v8011, 0
        %v8085 = vsel %vm8065, %v8012, 0
        %v8088 = vsel %vm8065, %v8013, 0
        %v8091 = vsel %vm8065, %v8014, 0
        %v8094 = vsel %vm8065, %v8015, 0
        %v8097 = vsel %vm8065, %v8016, 0
        %v8100 = vsel %vm8065, %v8017, 0
        %v8103 = vsel %vm8065, %v8018, 0
        %v8106 = vsel %vm8065, %v8019, 0
        %vm8108 = vcmask 1041408
        %v8110 = vsel %vm8108, %v8059, 0
        %8112 = vmatprep.subr.bf16.mxu0 0
        %8113 = vmatpush1.bf16.msra.mxu0 0
        %8114 = vmatprep.subr.bf16.mxu0 0
        %8115 = vmatpush1.bf16.msra.mxu0 0
        %8116 = vmatprep.subr.bf16.mxu0 0
        %8117 = vmatpush1.bf16.msra.mxu0 %v8110
        %8118 = vmatprep.subr.bf16.mxu0 0
        %8119 = vmatpush1.bf16.msra.mxu0 %v8058
        %8120 = vmatprep.subr.bf16.mxu0 0
        %8121 = vmatpush1.bf16.msra.mxu0 %v8057
        %8122 = vmatprep.subr.bf16.mxu0 0
        %8123 = vmatpush1.bf16.msra.mxu0 %v8056
        %8124 = vmatprep.subr.bf16.mxu0 0
        %8125 = vmatpush1.bf16.msra.mxu0 %v8055
        %8126 = vmatprep.subr.bf16.mxu0 0
        %8127 = vmatpush1.bf16.msra.mxu0 %v8054
        %8128 = vmatprep.subr.bf16.mxu0 0
        %8129 = vmatpush2.bf16.msra.mxu0 0
        %8130 = vmatprep.subr.bf16.mxu0 0
        %8131 = vmatpush2.bf16.msra.mxu0 0
        %8132 = vmatprep.subr.bf16.mxu0 0
        %8133 = vmatpush2.bf16.msra.mxu0 0
        %8134 = vmatprep.subr.bf16.mxu0 0
        %8135 = vmatpush2.bf16.msra.mxu0 0
        %8136 = vmatprep.subr.bf16.mxu0 0
        %8137 = vmatpush2.bf16.msra.mxu0 0
        %8138 = vmatprep.subr.bf16.mxu0 0
        %8139 = vmatpush2.bf16.msra.mxu0 0
        %8140 = vmatprep.subr.bf16.mxu0 0
        %8141 = vmatpush2.bf16.msra.mxu0 0
        %8142 = vmatprep.subr.bf16.mxu0 0
        %8143 = vmatpush2.bf16.msra.mxu0 0
        %8144 = vmatprep.mubr.bf16.mxu0 0
        %8145 = vmatmul.mubr.bf16.gmra.mxu0 %v8067
        %v8146 = vpop.f32.mrf.mxu0
        %v8147 = vadd.f32 %v8031, %v8146
        %v8148 = vpop.f32.mrf.mxu0
        %v8149 = vpop.f32.mrf.mxu0
        %v8150 = vadd.f32 %v8031, %v8149
        %v8151 = vpop.f32.mrf.mxu0
        %8152 = vmatprep.mubr.bf16.mxu0 0
        %8153 = vmatmul.mubr.bf16.gmra.mxu0 %v8070
        %v8154 = vpop.f32.mrf.mxu0
        %v8155 = vadd.f32 %v8031, %v8154
        %v8156 = vpop.f32.mrf.mxu0
        %v8157 = vpop.f32.mrf.mxu0
        %v8158 = vadd.f32 %v8031, %v8157
        %v8159 = vpop.f32.mrf.mxu0
        %8160 = vmatprep.mubr.bf16.mxu0 0
        %8161 = vmatmul.mubr.bf16.gmra.mxu0 %v8073
        %v8162 = vpop.f32.mrf.mxu0
        %v8163 = vadd.f32 %v8031, %v8162
        %v8164 = vpop.f32.mrf.mxu0
        %v8165 = vpop.f32.mrf.mxu0
        %v8166 = vadd.f32 %v8031, %v8165
        %v8167 = vpop.f32.mrf.mxu0
        %8168 = vmatprep.mubr.bf16.mxu0 0
        %8169 = vmatmul.mubr.bf16.gmra.mxu0 %v8076
        %v8170 = vpop.f32.mrf.mxu0
        %v8171 = vadd.f32 %v8031, %v8170
        %v8172 = vpop.f32.mrf.mxu0
        %v8173 = vpop.f32.mrf.mxu0
        %v8174 = vadd.f32 %v8031, %v8173
        %v8175 = vpop.f32.mrf.mxu0
        %8176 = vmatprep.mubr.bf16.mxu0 0
        %8177 = vmatmul.mubr.bf16.gmra.mxu0 %v8079
        %v8178 = vpop.f32.mrf.mxu0
        %v8179 = vadd.f32 %v8031, %v8178
        %v8180 = vpop.f32.mrf.mxu0
        %v8181 = vpop.f32.mrf.mxu0
        %v8182 = vadd.f32 %v8031, %v8181
        %v8183 = vpop.f32.mrf.mxu0
        %8184 = vmatprep.mubr.bf16.mxu0 0
        %8185 = vmatmul.mubr.bf16.gmra.mxu0 %v8082
        %v8186 = vpop.f32.mrf.mxu0
        %v8187 = vadd.f32 %v8031, %v8186
        %v8188 = vpop.f32.mrf.mxu0
        %v8189 = vpop.f32.mrf.mxu0
        %v8190 = vadd.f32 %v8031, %v8189
        %v8191 = vpop.f32.mrf.mxu0
        %8192 = vmatprep.mubr.bf16.mxu0 0
        %8193 = vmatmul.mubr.bf16.gmra.mxu0 %v8085
        %v8194 = vpop.f32.mrf.mxu0
        %v8195 = vadd.f32 %v8031, %v8194
        %v8196 = vpop.f32.mrf.mxu0
        %v8197 = vpop.f32.mrf.mxu0
        %v8198 = vadd.f32 %v8031, %v8197
        %v8199 = vpop.f32.mrf.mxu0
        %8200 = vmatprep.mubr.bf16.mxu0 0
        %8201 = vmatmul.mubr.bf16.gmra.mxu0 %v8088
        %v8202 = vpop.f32.mrf.mxu0
        %v8203 = vadd.f32 %v8031, %v8202
        %v8204 = vpop.f32.mrf.mxu0
        %v8205 = vpop.f32.mrf.mxu0
        %v8206 = vadd.f32 %v8031, %v8205
        %v8207 = vpop.f32.mrf.mxu0
        %8208 = vmatprep.mubr.bf16.mxu0 0
        %8209 = vmatmul.mubr.bf16.gmra.mxu0 %v8091
        %v8210 = vpop.f32.mrf.mxu0
        %v8211 = vadd.f32 %v8031, %v8210
        %v8212 = vpop.f32.mrf.mxu0
        %v8213 = vpop.f32.mrf.mxu0
        %v8214 = vadd.f32 %v8031, %v8213
        %v8215 = vpop.f32.mrf.mxu0
        %8216 = vmatprep.mubr.bf16.mxu0 0
        %8217 = vmatmul.mubr.bf16.gmra.mxu0 %v8094
        %v8218 = vpop.f32.mrf.mxu0
        %v8219 = vadd.f32 %v8031, %v8218
        %v8220 = vpop.f32.mrf.mxu0
        %v8221 = vpop.f32.mrf.mxu0
        %v8222 = vadd.f32 %v8031, %v8221
        %v8223 = vpop.f32.mrf.mxu0
        %8224 = vmatprep.mubr.bf16.mxu0 0
        %8225 = vmatmul.mubr.bf16.gmra.mxu0 %v8097
        %v8226 = vpop.f32.mrf.mxu0
        %v8227 = vadd.f32 %v8031, %v8226
        %v8228 = vpop.f32.mrf.mxu0
        %v8229 = vpop.f32.mrf.mxu0
        %v8230 = vadd.f32 %v8031, %v8229
        %v8231 = vpop.f32.mrf.mxu0
        %8232 = vmatprep.mubr.bf16.mxu0 0
        %8233 = vmatmul.mubr.bf16.gmra.mxu0 %v8100
        %v8234 = vpop.f32.mrf.mxu0
        %v8235 = vadd.f32 %v8031, %v8234
        %v8236 = vpop.f32.mrf.mxu0
        %v8237 = vpop.f32.mrf.mxu0
        %v8238 = vadd.f32 %v8031, %v8237
        %v8239 = vpop.f32.mrf.mxu0
        %8240 = vmatprep.mubr.bf16.mxu0 0
        %8241 = vmatmul.mubr.bf16.gmra.mxu0 %v8103
        %v8242 = vpop.f32.mrf.mxu0
        %v8243 = vadd.f32 %v8031, %v8242
        %v8244 = vpop.f32.mrf.mxu0
        %v8245 = vpop.f32.mrf.mxu0
        %v8246 = vadd.f32 %v8031, %v8245
        %v8247 = vpop.f32.mrf.mxu0
        %8248 = vmatprep.mubr.bf16.mxu0 0
        %8249 = vmatmul.mubr.bf16.gmra.mxu0 %v8106
        %v8250 = vpop.f32.mrf.mxu0
        %v8251 = vadd.f32 %v8031, %v8250
        %v8252 = vpop.f32.mrf.mxu0
        %v8253 = vpop.f32.mrf.mxu0
        %v8254 = vadd.f32 %v8031, %v8253
        %v8255 = vpop.f32.mrf.mxu0
        %8256 = vdwg.mxu0
        %8257 = vst [vmem:[%s879] sm:$0xff] %v8147
        %8258 = vst [vmem:[%s879 + $0x8] sm:$0xff] %v8150
        %8259 = vst [vmem:[%s879 + $0x10] sm:$0xff] %v8155
        %8260 = vst [vmem:[%s879 + $0x18] sm:$0xff] %v8158
        %8261 = vst [vmem:[%s879 + $0x20] sm:$0xff] %v8163
        %8262 = vst [vmem:[%s879 + $0x28] sm:$0xff] %v8166
        %8263 = vst [vmem:[%s879 + $0x30] sm:$0xff] %v8171
        %8264 = vst [vmem:[%s879 + $0x38] sm:$0xff] %v8174
        %8265 = vst [vmem:[%s879 + $0x40] sm:$0xff] %v8179
        %8266 = vst [vmem:[%s879 + $0x48] sm:$0xff] %v8182
        %8267 = vst [vmem:[%s879 + $0x50] sm:$0xff] %v8187
        %8268 = vst [vmem:[%s879 + $0x58] sm:$0xff] %v8190
        %8269 = vst [vmem:[%s879 + $0x60] sm:$0xff] %v8195
        %8270 = vst [vmem:[%s879 + $0x68] sm:$0xff] %v8198
        %8271 = vst [vmem:[%s879 + $0x70] sm:$0xff] %v8203
        %8272 = vst [vmem:[%s879 + $0x78] sm:$0xff] %v8206
        %8273 = vst [vmem:[%s879 + $0x80] sm:$0xff] %v8211
        %8274 = vst [vmem:[%s879 + $0x88] sm:$0xff] %v8214
        %8275 = vst [vmem:[%s879 + $0x90] sm:$0xff] %v8219
        %8276 = vst [vmem:[%s879 + $0x98] sm:$0xff] %v8222
        %8277 = vst [vmem:[%s879 + $0xa0] sm:$0xff] %v8227
        %8278 = vst [vmem:[%s879 + $0xa8] sm:$0xff] %v8230
        %8279 = vst [vmem:[%s879 + $0xb0] sm:$0xff] %v8235
        %8280 = vst [vmem:[%s879 + $0xb8] sm:$0xff] %v8238
        %8281 = vst [vmem:[%s879 + $0xc0] sm:$0xff] %v8243
        %8282 = vst [vmem:[%s879 + $0xc8] sm:$0xff] %v8246
        %8283 = vst [vmem:[%s879 + $0xd0] sm:$0xff] %v8251
        %8284 = vst [vmem:[%s879 + $0xd8] sm:$0xff] %v8254
        %s8285 = smul.u32 28, %s18
        %p8286 = scmp.lt.s32.totalorder %s8285, 55
        %s8287 = scalar_select %p8286, %s8285, 55
        %s8288 = smul.addr %s8287, 8
        %s8289 = scalar_lea.vmem %s7, %s8288
        // Predicated region
        $region90: #{net_forward.1} parent=84 // pred_check
          %p8290 = pneg %p188
        $region91: #{net_forward.1} parent=84 // pred_check_branch
          %8292 = sbr.rel (%p8290) target = $region93
        $region92: #{net_forward.1} parent=84 // pred_region
          %s8293 = smul.u32 28, %s18
        $region93: #{net_forward.1} parent=84 // pred_fallthru
          _
      $region85: #{net_forward.1} parent=5 // pred_fallthru
        _
      %p8294 = scmp.le.s32.totalorder 2, %s13
      // Predicated region
      $region94: #{net_forward.1} parent=5 // pred_check
        %p8295 = pneg %p8294
      $region95: #{net_forward.1} parent=5 // pred_check_branch
        %8297 = sbr.rel (%p8295) target = $region97
      $region96: #{net_forward.1} parent=5 // pred_region
        %s8298 = ssub.s32 %s13, 2
        // Predicated region
        $region98: #{net_forward.1} parent=96 // pred_check
          %p8299 = pneg %p194
        $region99: #{net_forward.1} parent=96 // pred_check_branch
          %8301 = sbr.rel (%p8299) target = $region101
        $region100: #{net_forward.1} parent=96 // pred_region
          %s8302 = smul.u32 28, %s19
          %p8303 = scmp.lt.s32.totalorder %s8302, 55
          %s8304 = scalar_select %p8303, %s8302, 55
          %s8305 = smul.addr %s8304, 8
          %s8306 = scalar_lea.vmem %s7, %s8305
        $region101: #{net_forward.1} parent=96 // pred_fallthru
          _
      $region97: #{net_forward.1} parent=5 // pred_fallthru
        _
    $region6: #{net_forward.1} parent=1 // loop_footer
      %s17 = sadd.s32 1, %s13
    $region7: #{net_forward.1} parent=1 // loop_footer_branch
      %12 = sbr.rel target = $region3
    $region8: #{net_forward.1} parent=1 // loop_exit
      _

</llo_original>
